<compile_context>
chip_gen: v6e
topology: v6e:2x2x1
jax: 0.10.0
libtpu: 0.0.40
codegen_flags: <defaults>
</compile_context>

<pallas_src>
import functools

import jax
import jax.numpy as jnp
from jax import lax
from jax.experimental import pallas as pl
from jax.experimental.pallas import tpu as pltpu


# --------------------------------------------------------------------------------------
# Pallas kernels
# --------------------------------------------------------------------------------------
def _norm_silu_conv_core(x_ref, sc_ref, bi_ref, wexp_ref, bconv_ref, pad_ref,
                         *, tb, h, w, c_in, c_out):
    """Per-channel affine (GroupNorm [+ emb]) -> SiLU -> zero-padded 3x3 conv (+ bias).

    Returns the result as a (tb*h, w*c_out) float32 tile.
    """
    # Lane-dense elementwise work on (tb, h, w*c_in).
    x = x_ref[...].astype(jnp.float32)
    a = x * sc_ref[...] + bi_ref[...]          # (tb, 1, w*c_in) broadcasts over rows
    act = a / (1.0 + jnp.exp(-a))              # SiLU (exp on the EUP)

    # Conv halo padding fused here: zero the VMEM scratch, write the interior.
    pad_ref[...] = jnp.zeros(pad_ref.shape, pad_ref.dtype)
    pad_ref[:, 1:h + 1, c_in:c_in + w * c_in] = act

    # 3x3 conv == 3 MXU matmuls (one per kh tap) against the Toeplitz-expanded weight.
    acc = jnp.zeros((tb * h, w * c_out), jnp.float32)
    for kh in range(3):
        rows = pad_ref[:, kh:kh + h, :].reshape(tb * h, (w + 2) * c_in)
        acc = acc + jnp.dot(rows, wexp_ref[kh], preferred_element_type=jnp.float32)
    return acc + bconv_ref[...].astype(jnp.float32)


def _block_conv_kernel(x_ref, sc_ref, bi_ref, wexp_ref, bconv_ref, o_ref, pad_ref,
                       *, tb, h, w, c_in, c_out):
    acc = _norm_silu_conv_core(x_ref, sc_ref, bi_ref, wexp_ref, bconv_ref, pad_ref,
                               tb=tb, h=h, w=w, c_in=c_in, c_out=c_out)
    o_ref[...] = acc.reshape(tb, h, w * c_out).astype(o_ref.dtype)


def _block_conv_skip_kernel(x_ref, sc_ref, bi_ref, wexp_ref, bconv_ref, skip_ref,
                            o_ref, pad_ref, *, tb, h, w, c_in, c_out):
    acc = _norm_silu_conv_core(x_ref, sc_ref, bi_ref, wexp_ref, bconv_ref, pad_ref,
                               tb=tb, h=h, w=w, c_in=c_in, c_out=c_out)
    acc = acc + skip_ref[...].reshape(tb * h, w * c_out).astype(jnp.float32)
    o_ref[...] = acc.reshape(tb, h, w * c_out).astype(o_ref.dtype)


def _skip_conv1x1_kernel(x_ref, wexp_ref, b_ref, o_ref, *, tb, h, wc_in, wc_out):
    """1x1x1 skip conv in the lane-dense layout (block-diagonal expanded weight)."""
    x2 = x_ref[...].reshape(tb * h, wc_in).astype(jnp.float32)
    acc = jnp.dot(x2, wexp_ref[...], preferred_element_type=jnp.float32)
    acc = acc + b_ref[...].astype(jnp.float32)
    o_ref[...] = acc.reshape(tb, h, wc_out).astype(o_ref.dtype)


# --------------------------------------------------------------------------------------
# Wrapper helpers (plain JAX glue)
# --------------------------------------------------------------------------------------
def _pick_tb(b, frame_bytes, budget_bytes=6 * 1024 * 1024):
    """Largest divisor of b that keeps >= 2 grid steps (megacore) and fits VMEM budget."""
    best = 1
    for d in range(1, b + 1):
        if b % d != 0:
            continue
        if d * frame_bytes > budget_bytes:
            continue
        if b // d >= 2 or b == 1:
            best = d
    return best


def _expand_conv_weight(wgt, w):
    """(3, 3, c_in, c_out) -> (3, (w+2)*c_in, w*c_out) Toeplitz-expanded weight.

    wexp[kh, (wo+kw)*c_in + ci, wo*c_out + co] = wgt[kh, kw, ci, co]
    """
    kh_n, kw_n, c_in, c_out = wgt.shape
    eye_w = jnp.eye(w, dtype=wgt.dtype)
    out = jnp.zeros((kh_n, (w + kw_n - 1) * c_in, w * c_out), wgt.dtype)
    for kw in range(kw_n):
        shift = jnp.zeros((w + kw_n - 1, w), wgt.dtype)
        shift = shift.at[kw:kw + w, :].set(eye_w)      # shift[i, j] = 1 iff i == j + kw
        out = out + jnp.stack(
            [jnp.kron(shift, wgt[kh, kw]) for kh in range(kh_n)], axis=0)
    return out


def _tile_lanes(v, w):
    """(b, c) per-frame channel vector -> (b, 1, w*c) tiled across the W positions."""
    b, c = v.shape
    return jnp.tile(v, (1, w)).reshape(b, 1, w * c)


def _group_stats_ncdhw(x, groups, eps):
    n = x.shape[0]
    xg = x.astype(jnp.float32).reshape(n, groups, -1)
    return xg.mean(axis=-1), lax.rsqrt(xg.var(axis=-1) + eps)


def _group_stats_frames(h_flat, n, t, h, w, c, groups, eps):
    hg = h_flat.astype(jnp.float32).reshape(n, t, h, w, groups, c // groups)
    return hg.mean(axis=(1, 2, 3, 5)), lax.rsqrt(hg.var(axis=(1, 2, 3, 5)) + eps)


def _fold_gn_affine(mean, rstd, gamma, beta, t):
    """(n, groups) stats + (c,) affine -> per-frame per-channel scale/bias, shape (n*t, c)."""
    n, groups = mean.shape
    c = gamma.shape[0]
    rep = c // groups
    mean_c = jnp.repeat(mean, rep, axis=1)
    rstd_c = jnp.repeat(rstd, rep, axis=1)
    scale = gamma[None, :].astype(jnp.float32) * rstd_c
    bias = beta[None, :].astype(jnp.float32) - mean_c * scale
    scale = jnp.repeat(scale[:, None, :], t, axis=1).reshape(n * t, c)
    bias = jnp.repeat(bias[:, None, :], t, axis=1).reshape(n * t, c)
    return scale, bias


# --------------------------------------------------------------------------------------
# pallas_call wrappers
# --------------------------------------------------------------------------------------
def _fused_norm_silu_conv(x_flat, scale_bc, bias_bc, conv_w, conv_b, w, skip_flat=None):
    """Fused GN-affine (+emb) -> SiLU -> 3x3 conv (pad 1) [-> + residual]."""
    b, h, wc_in = x_flat.shape
    c_in = wc_in // w
    c_out = conv_w.shape[-1]

    frame_bytes = 4 * (h * w * c_in + (h + 2) * (w + 2) * c_in + 2 * h * w * c_out)
    tb = _pick_tb(b, frame_bytes)
    grid = (b // tb,)

    sc = _tile_lanes(scale_bc.astype(jnp.float32), w)               # (b, 1, w*c_in)
    bi = _tile_lanes(bias_bc.astype(jnp.float32), w)                # (b, 1, w*c_in)
    wexp = _expand_conv_weight(conv_w.astype(jnp.float32), w)       # (3, (w+2)c_in, w*c_out)
    bconv = jnp.tile(conv_b.astype(jnp.float32), (w,)).reshape(1, w * c_out)

    if skip_flat is None:
        kern = functools.partial(_block_conv_kernel,
                                 tb=tb, h=h, w=w, c_in=c_in, c_out=c_out)
    else:
        kern = functools.partial(_block_conv_skip_kernel,
                                 tb=tb, h=h, w=w, c_in=c_in, c_out=c_out)

    in_specs = [
        pl.BlockSpec((tb, h, w * c_in), lambda i: (i, 0, 0)),                 # x
        pl.BlockSpec((tb, 1, w * c_in), lambda i: (i, 0, 0)),                 # scale
        pl.BlockSpec((tb, 1, w * c_in), lambda i: (i, 0, 0)),                 # bias
        pl.BlockSpec((3, (w + 2) * c_in, w * c_out), lambda i: (0, 0, 0)),    # expanded W
        pl.BlockSpec((1, w * c_out), lambda i: (0, 0)),                       # conv bias
    ]
    args = [x_flat, sc, bi, wexp, bconv]
    if skip_flat is not None:
        in_specs.append(pl.BlockSpec((tb, h, w * c_out), lambda i: (i, 0, 0)))
        args.append(skip_flat)

    n_skip = 0 if skip_flat is None else b * h * w * c_out
    cost = pl.CostEstimate(
        flops=2 * 3 * b * h * ((w + 2) * c_in) * (w * c_out),
        transcendentals=b * h * w * c_in,
        bytes_accessed=4 * (x_flat.size + sc.size + bi.size + wexp.size + bconv.size
                            + n_skip + b * h * w * c_out),
    )

    return pl.pallas_call(
        kern,
        out_shape=jax.ShapeDtypeStruct((b, h, w * c_out), x_flat.dtype),
        grid_spec=pltpu.PrefetchScalarGridSpec(
            num_scalar_prefetch=0,
            grid=grid,
            in_specs=in_specs,
            out_specs=pl.BlockSpec((tb, h, w * c_out), lambda i: (i, 0, 0)),
            scratch_shapes=[pltpu.VMEM((tb, h + 2, (w + 2) * c_in), jnp.float32)],
        ),
        compiler_params=pltpu.CompilerParams(dimension_semantics=("parallel",)),
        cost_estimate=cost,
    )(*args)


def _skip_conv1x1(x_flat, w_skip, b_skip, w):
    """1x1x1 skip conv (used only when dim != dim_out), lane-dense layout."""
    b, h, wc_in = x_flat.shape
    c_in = wc_in // w
    c_out = w_skip.shape[-1]
    tb = _pick_tb(b, 4 * h * w * (c_in + c_out))

    wexp = jnp.kron(jnp.eye(w, dtype=jnp.float32), w_skip.astype(jnp.float32))
    bexp = jnp.tile(b_skip.astype(jnp.float32), (w,)).reshape(1, w * c_out)
    kern = functools.partial(_skip_conv1x1_kernel,
                             tb=tb, h=h, wc_in=w * c_in, wc_out=w * c_out)

    cost = pl.CostEstimate(
        flops=2 * b * h * (w * c_in) * (w * c_out),
        transcendentals=0,
        bytes_accessed=4 * (x_flat.size + wexp.size + bexp.size + b * h * w * c_out),
    )
    return pl.pallas_call(
        kern,
        out_shape=jax.ShapeDtypeStruct((b, h, w * c_out), x_flat.dtype),
        grid_spec=pltpu.PrefetchScalarGridSpec(
            num_scalar_prefetch=0,
            grid=(b // tb,),
            in_specs=[
                pl.BlockSpec((tb, h, w * c_in), lambda i: (i, 0, 0)),
                pl.BlockSpec((w * c_in, w * c_out), lambda i: (0, 0)),
                pl.BlockSpec((1, w * c_out), lambda i: (0, 0)),
            ],
            out_specs=pl.BlockSpec((tb, h, w * c_out), lambda i: (i, 0, 0)),
        ),
        compiler_params=pltpu.CompilerParams(dimension_semantics=("parallel",)),
        cost_estimate=cost,
    )(x_flat, wexp, bexp)


# --------------------------------------------------------------------------------------
# ResnetBlock forward
# --------------------------------------------------------------------------------------
def resnet_block_forward(x, params, emb=None, *, groups=32, eps=1e-6):
    """ResnetBlock.forward.  x: (N, dim, T, H, W); emb: optional (N, T, emb_dim).

    Parameter layout (channel-last weights):
      gn1_gamma/gn1_beta (dim,), conv1_w (3,3,dim,dim_out), conv1_b (dim_out,),
      gn2_gamma/gn2_beta (dim_out,), conv2_w (3,3,dim_out,dim_out), conv2_b (dim_out,),
      optional emb_w (emb_dim, 2*dim_out), emb_b (2*dim_out,),
      skip_w (dim, dim_out), skip_b (dim_out,)   [required iff dim != dim_out]
    """
    n, c_in, t, h, w = x.shape
    c_out = params["conv1_w"].shape[-1]
    b = n * t
    assert c_in % groups == 0 and c_out % groups == 0

    # Single layout change at the API boundary: NCDHW -> frame-flattened channel-minor
    # lane-dense (b, h, w*c).  Everything between the two convs stays in this layout.
    x_flat = jnp.transpose(x, (0, 2, 3, 4, 1)).reshape(b, h, w * c_in)

    # ---- in_layers: GroupNorm(dim) -> SiLU -> conv1 (single fused kernel) ----
    mean1, rstd1 = _group_stats_ncdhw(x, groups, eps)
    sc1, bi1 = _fold_gn_affine(mean1, rstd1, params["gn1_gamma"], params["gn1_beta"], t)
    h_flat = _fused_norm_silu_conv(x_flat, sc1, bi1,
                                   params["conv1_w"], params["conv1_b"], w)

    # ---- out_layers: GroupNorm(dim_out) [* (1+scale) + shift] -> SiLU -> conv2 ----
    mean2, rstd2 = _group_stats_frames(h_flat, n, t, h, w, c_out, groups, eps)
    sc2, bi2 = _fold_gn_affine(mean2, rstd2, params["gn2_gamma"], params["gn2_beta"], t)
    if emb is not None:
        e = jax.nn.silu(emb.astype(jnp.float32)) @ params["emb_w"] + params["emb_b"]
        scale_e, shift_e = jnp.split(e, 2, axis=-1)            # (n, t, c_out) each
        one_plus = 1.0 + scale_e.reshape(b, c_out)
        bi2 = bi2 * one_plus + shift_e.reshape(b, c_out)
        sc2 = sc2 * one_plus

    # ---- skip branch ----
    if c_in == c_out:
        skip_flat = x_flat
    else:
        skip_flat = _skip_conv1x1(x_flat, params["skip_w"], params["skip_b"], w)

    # Second fused kernel also adds the residual before the (lane-dense) store.
    out_flat = _fused_norm_silu_conv(h_flat, sc2, bi2,
                                     params["conv2_w"], params["conv2_b"], w,
                                     skip_flat=skip_flat)

    out = out_flat.reshape(n, t, h, w, c_out)
    return jnp.transpose(out, (0, 4, 1, 2, 3))


# --------------------------------------------------------------------------------------
# Pure-JAX reference (identical semantics to the PyTorch module)
# --------------------------------------------------------------------------------------
def _ref_group_norm(v, gamma, beta, groups, eps):
    n = v.shape[0]
    vg = v.reshape(n, groups, -1)
    mean = vg.mean(axis=-1, keepdims=True)
    var = vg.var(axis=-1, keepdims=True)
    vn = ((vg - mean) / jnp.sqrt(var + eps)).reshape(v.shape)
    return vn * gamma[None, :, None, None, None] + beta[None, :, None, None, None]


def _ref_conv3d_1x3x3(v, wgt, bias):
    w_oidhw = jnp.transpose(wgt, (3, 2, 0, 1))[:, :, None, :, :]   # (O, I, 1, 3, 3)
    y = lax.conv_general_dilated(
        v, w_oidhw, window_strides=(1, 1, 1),
        padding=((0, 0), (1, 1), (1, 1)),
        dimension_numbers=("NCDHW", "OIDHW", "NCDHW"))
    return y + bias[None, :, None, None, None]


def resnet_block_reference(x, params, emb, groups, eps):
    h1 = _ref_conv3d_1x3x3(
        jax.nn.silu(_ref_group_norm(x, params["gn1_gamma"], params["gn1_beta"], groups, eps)),
        params["conv1_w"], params["conv1_b"])
    hn = _ref_group_norm(h1, params["gn2_gamma"], params["gn2_beta"], groups, eps)
    if emb is not None:
        e = jax.nn.silu(emb) @ params["emb_w"] + params["emb_b"]      # (n, t, 2*c)
        scale, shift = jnp.split(e, 2, axis=-1)
        scale = jnp.transpose(scale, (0, 2, 1))[:, :, :, None, None]  # 'b f c -> b c f 1 1'
        shift = jnp.transpose(shift, (0, 2, 1))[:, :, :, None, None]
        hn = hn * (1.0 + scale) + shift
    h2 = _ref_conv3d_1x3x3(jax.nn.silu(hn), params["conv2_w"], params["conv2_b"])
    if "skip_w" in params:
        skip = jnp.einsum("ncthw,cd->ndthw", x, params["skip_w"])
        skip = skip + params["skip_b"][None, :, None, None, None]
    else:
        skip = x
    return skip + h2


# --------------------------------------------------------------------------------------
# Self-test
# --------------------------------------------------------------------------------------
if __name__ == "__main__":
    key = jax.random.PRNGKey(0)

    def _make_params(k, dim, dim_out, emb_dim=None):
        ks = iter(jax.random.split(k, 14))
        p = {
            "gn1_gamma": 1.0 + 0.1 * jax.random.normal(next(ks), (dim,), jnp.float32),
            "gn1_beta": 0.1 * jax.random.normal(next(ks), (dim,), jnp.float32),
            "conv1_w": 0.1 * jax.random.normal(next(ks), (3, 3, dim, dim_out), jnp.float32),
            "conv1_b": 0.1 * jax.random.normal(next(ks), (dim_out,), jnp.float32),
            "gn2_gamma": 1.0 + 0.1 * jax.random.normal(next(ks), (dim_out,), jnp.float32),
            "gn2_beta": 0.1 * jax.random.normal(next(ks), (dim_out,), jnp.float32),
            "conv2_w": 0.1 * jax.random.normal(next(ks), (3, 3, dim_out, dim_out), jnp.float32),
            "conv2_b": 0.1 * jax.random.normal(next(ks), (dim_out,), jnp.float32),
        }
        if emb_dim is not None:
            p["emb_w"] = 0.1 * jax.random.normal(next(ks), (emb_dim, 2 * dim_out), jnp.float32)
            p["emb_b"] = 0.1 * jax.random.normal(next(ks), (2 * dim_out,), jnp.float32)
        if dim != dim_out:
            p["skip_w"] = 0.1 * jax.random.normal(next(ks), (dim, dim_out), jnp.float32)
            p["skip_b"] = 0.1 * jax.random.normal(next(ks), (dim_out,), jnp.float32)
        return p

    N, T, H, W = 2, 3, 16, 16

    # Config A: dim == dim_out (identity skip) + noise-level embedding, default groups=32.
    dim_a, emb_dim = 32, 16
    k1, k2, k3, k4, k5 = jax.random.split(key, 5)
    x_a = jax.random.normal(k1, (N, dim_a, T, H, W), jnp.float32)
    emb_a = jax.random.normal(k2, (N, T, emb_dim), jnp.float32)
    params_a = _make_params(k3, dim_a, dim_a, emb_dim=emb_dim)

    fwd_a = jax.jit(functools.partial(resnet_block_forward, groups=32, eps=1e-6))
    out_a = jax.block_until_ready(fwd_a(x_a, params_a, emb_a))
    ref_a = resnet_block_reference(x_a, params_a, emb_a, groups=32, eps=1e-6)
    assert out_a.shape == (N, dim_a, T, H, W), out_a.shape
    assert jnp.allclose(out_a, ref_a, atol=2e-2, rtol=2e-2), \
        float(jnp.max(jnp.abs(out_a - ref_a)))

    # Config B: dim != dim_out (1x1x1 skip conv), no embedding, groups=16.
    dim_b, dim_out_b = 16, 32
    x_b = jax.random.normal(k4, (N, dim_b, T, H, W), jnp.float32)
    params_b = _make_params(k5, dim_b, dim_out_b, emb_dim=None)

    fwd_b = jax.jit(functools.partial(resnet_block_forward, emb=None, groups=16, eps=1e-6))
    out_b = jax.block_until_ready(fwd_b(x_b, params_b))
    ref_b = resnet_block_reference(x_b, params_b, None, groups=16, eps=1e-6)
    assert out_b.shape == (N, dim_out_b, T, H, W), out_b.shape
    assert jnp.allclose(out_b, ref_b, atol=2e-2, rtol=2e-2), \
        float(jnp.max(jnp.abs(out_b - ref_b)))

    print("KERNEL_OK")
</pallas_src>

<mosaic_0001>
module attributes {stable_mosaic.version = 11 : i64} {
  func.func @_block_conv_kernel(%arg0: i32, %arg1: memref<3x16x512xf32, #tpu.memory_space<vmem>>, %arg2: memref<3x1x512xf32, #tpu.memory_space<vmem>>, %arg3: memref<3x1x512xf32, #tpu.memory_space<vmem>>, %arg4: memref<3x576x512xf32, #tpu.memory_space<vmem>>, %arg5: memref<1x512xf32, #tpu.memory_space<vmem>>, %arg6: memref<3x16x512xf32, #tpu.memory_space<vmem>>, %arg7: memref<3x18x576xf32, #tpu.memory_space<vmem>>) attributes {dimension_semantics = [#tpu.dimension_semantics<parallel>], iteration_bounds = array<i64: 2>, scalar_prefetch = 0 : i64, scratch_operands = 1 : i64, tpu.core_type = #tpu.core_type<tc>, window_params = [{transform_indices = @transform_0, window_bounds = array<i64: 3, 16, 512>}, {transform_indices = @transform_1, window_bounds = array<i64: 3, 1, 512>}, {transform_indices = @transform_2, window_bounds = array<i64: 3, 1, 512>}, {pipeline_mode = #tpu.pipeline_mode<synchronous>, transform_indices = @transform_3, window_bounds = array<i64: 3, 576, 512>}, {pipeline_mode = #tpu.pipeline_mode<synchronous>, transform_indices = @transform_4, window_bounds = array<i64: 1, 512>}, {transform_indices = @transform_5, window_bounds = array<i64: 3, 16, 512>}]} {
    %c0 = arith.constant 0 : index
    %c0_0 = arith.constant 0 : index
    %c0_1 = arith.constant 0 : index
    %0 = vector.load %arg1[%c0, %c0_0, %c0_1] : memref<3x16x512xf32, #tpu.memory_space<vmem>>, vector<3x16x512xf32>
    %c0_2 = arith.constant 0 : index
    %c0_3 = arith.constant 0 : index
    %c0_4 = arith.constant 0 : index
    %1 = vector.load %arg2[%c0_2, %c0_3, %c0_4] : memref<3x1x512xf32, #tpu.memory_space<vmem>>, vector<3x1x512xf32>
    %2 = vector.broadcast %1 : vector<3x1x512xf32> to vector<3x16x512xf32>
    %3 = arith.mulf %0, %2 : vector<3x16x512xf32>
    %c0_5 = arith.constant 0 : index
    %c0_6 = arith.constant 0 : index
    %c0_7 = arith.constant 0 : index
    %4 = vector.load %arg3[%c0_5, %c0_6, %c0_7] : memref<3x1x512xf32, #tpu.memory_space<vmem>>, vector<3x1x512xf32>
    %5 = vector.broadcast %4 : vector<3x1x512xf32> to vector<3x16x512xf32>
    %6 = arith.addf %3, %5 : vector<3x16x512xf32>
    %cst = arith.constant 0.000000e+00 : f32
    %7 = vector.broadcast %cst : f32 to vector<3x16x512xf32>
    %8 = arith.subf %7, %6 : vector<3x16x512xf32>
    %9 = math.exp %8 : vector<3x16x512xf32>
    %cst_8 = arith.constant 1.000000e+00 : f32
    %10 = vector.broadcast %cst_8 : f32 to vector<3x16x512xf32>
    %11 = arith.addf %10, %9 : vector<3x16x512xf32>
    %12 = arith.divf %6, %11 : vector<3x16x512xf32>
    %cst_9 = arith.constant 0.000000e+00 : f32
    %13 = vector.broadcast %cst_9 : f32 to vector<3x18x576xf32>
    %c0_10 = arith.constant 0 : index
    %c0_11 = arith.constant 0 : index
    %c0_12 = arith.constant 0 : index
    %14 = vector.load %arg7[%c0_10, %c0_11, %c0_12] : memref<3x18x576xf32, #tpu.memory_space<vmem>>, vector<3x18x576xf32>
    tpu.vector_store %arg7[%c0_10, %c0_11, %c0_12], %13 {strides = array<i32>} : memref<3x18x576xf32, #tpu.memory_space<vmem>>, vector<3x18x576xf32>,
    %c0_13 = arith.constant 0 : index
    %c1 = arith.constant 1 : index
    %c32 = arith.constant 32 : index
    %15 = vector.load %arg7[%c0_13, %c1, %c32] : memref<3x18x576xf32, #tpu.memory_space<vmem>>, vector<3x16x512xf32>
    tpu.vector_store %arg7[%c0_13, %c1, %c32], %12 {strides = array<i32>} : memref<3x18x576xf32, #tpu.memory_space<vmem>>, vector<3x16x512xf32>,
    %cst_14 = arith.constant 0.000000e+00 : f32
    %16 = vector.broadcast %cst_14 : f32 to vector<48x512xf32>
    %c0_15 = arith.constant 0 : index
    %c0_16 = arith.constant 0 : index
    %c0_17 = arith.constant 0 : index
    %17 = vector.load %arg7[%c0_15, %c0_16, %c0_17] : memref<3x18x576xf32, #tpu.memory_space<vmem>>, vector<3x16x576xf32>
    %18 = vector.shape_cast %17 : vector<3x16x576xf32> to vector<48x576xf32>
    %c0_18 = arith.constant 0 : index
    %c0_19 = arith.constant 0 : index
    %c0_20 = arith.constant 0 : index
    %19 = vector.load %arg4[%c0_18, %c0_19, %c0_20] : memref<3x576x512xf32, #tpu.memory_space<vmem>>, vector<1x576x512xf32>
    %20 = vector.shape_cast %19 : vector<1x576x512xf32> to vector<576x512xf32>
    %cst_21 = arith.constant dense<0.000000e+00> : vector<48x512xf32>
    %21 = tpu.matmul %18, %20, %cst_21 {dimension_numbers = #tpu.dot_dimension_numbers<[1], [0], [0], [1], [0, 0, 1, 1], [], []>} : vector<48x576xf32>, vector<576x512xf32>, vector<48x512xf32> -> vector<48x512xf32>
    %22 = arith.addf %16, %21 : vector<48x512xf32>
    %c0_22 = arith.constant 0 : index
    %c1_23 = arith.constant 1 : index
    %c0_24 = arith.constant 0 : index
    %23 = vector.load %arg7[%c0_22, %c1_23, %c0_24] : memref<3x18x576xf32, #tpu.memory_space<vmem>>, vector<3x16x576xf32>
    %24 = vector.shape_cast %23 : vector<3x16x576xf32> to vector<48x576xf32>
    %c1_25 = arith.constant 1 : index
    %c0_26 = arith.constant 0 : index
    %c0_27 = arith.constant 0 : index
    %25 = vector.load %arg4[%c1_25, %c0_26, %c0_27] : memref<3x576x512xf32, #tpu.memory_space<vmem>>, vector<1x576x512xf32>
    %26 = vector.shape_cast %25 : vector<1x576x512xf32> to vector<576x512xf32>
    %cst_28 = arith.constant dense<0.000000e+00> : vector<48x512xf32>
    %27 = tpu.matmul %24, %26, %cst_28 {dimension_numbers = #tpu.dot_dimension_numbers<[1], [0], [0], [1], [0, 0, 1, 1], [], []>} : vector<48x576xf32>, vector<576x512xf32>, vector<48x512xf32> -> vector<48x512xf32>
    %28 = arith.addf %22, %27 : vector<48x512xf32>
    %c0_29 = arith.constant 0 : index
    %c2 = arith.constant 2 : index
    %c0_30 = arith.constant 0 : index
    %29 = vector.load %arg7[%c0_29, %c2, %c0_30] : memref<3x18x576xf32, #tpu.memory_space<vmem>>, vector<3x16x576xf32>
    %30 = vector.shape_cast %29 : vector<3x16x576xf32> to vector<48x576xf32>
    %c2_31 = arith.constant 2 : index
    %c0_32 = arith.constant 0 : index
    %c0_33 = arith.constant 0 : index
    %31 = vector.load %arg4[%c2_31, %c0_32, %c0_33] : memref<3x576x512xf32, #tpu.memory_space<vmem>>, vector<1x576x512xf32>
    %32 = vector.shape_cast %31 : vector<1x576x512xf32> to vector<576x512xf32>
    %cst_34 = arith.constant dense<0.000000e+00> : vector<48x512xf32>
    %33 = tpu.matmul %30, %32, %cst_34 {dimension_numbers = #tpu.dot_dimension_numbers<[1], [0], [0], [1], [0, 0, 1, 1], [], []>} : vector<48x576xf32>, vector<576x512xf32>, vector<48x512xf32> -> vector<48x512xf32>
    %34 = arith.addf %28, %33 : vector<48x512xf32>
    %c0_35 = arith.constant 0 : index
    %c0_36 = arith.constant 0 : index
    %35 = vector.load %arg5[%c0_35, %c0_36] : memref<1x512xf32, #tpu.memory_space<vmem>>, vector<1x512xf32>
    %36 = vector.broadcast %35 : vector<1x512xf32> to vector<48x512xf32>
    %37 = arith.addf %34, %36 : vector<48x512xf32>
    %38 = vector.shape_cast %37 : vector<48x512xf32> to vector<3x16x512xf32>
    %c0_37 = arith.constant 0 : index
    %c0_38 = arith.constant 0 : index
    %c0_39 = arith.constant 0 : index
    %39 = vector.load %arg6[%c0_37, %c0_38, %c0_39] : memref<3x16x512xf32, #tpu.memory_space<vmem>>, vector<3x16x512xf32>
    tpu.vector_store %arg6[%c0_37, %c0_38, %c0_39], %38 {strides = array<i32>} : memref<3x16x512xf32, #tpu.memory_space<vmem>>, vector<3x16x512xf32>,
    return
  }
  func.func @transform_0(%arg0: i32) -> (i32, i32, i32) {
    %c0_i32 = arith.constant 0 : i32
    %c0_i32_0 = arith.constant 0 : i32
    %c0_i32_1 = arith.constant 0 : i32
    return %arg0, %c0_i32, %c0_i32_0 : i32, i32, i32
  }
  func.func @transform_1(%arg0: i32) -> (i32, i32, i32) {
    %c0_i32 = arith.constant 0 : i32
    %c0_i32_0 = arith.constant 0 : i32
    %c0_i32_1 = arith.constant 0 : i32
    return %arg0, %c0_i32, %c0_i32_0 : i32, i32, i32
  }
  func.func @transform_2(%arg0: i32) -> (i32, i32, i32) {
    %c0_i32 = arith.constant 0 : i32
    %c0_i32_0 = arith.constant 0 : i32
    %c0_i32_1 = arith.constant 0 : i32
    return %arg0, %c0_i32, %c0_i32_0 : i32, i32, i32
  }
  func.func @transform_3(%arg0: i32) -> (i32, i32, i32) {
    %c0_i32 = arith.constant 0 : i32
    %c0_i32_0 = arith.constant 0 : i32
    %c0_i32_1 = arith.constant 0 : i32
    %c0_i32_2 = arith.constant 0 : i32
    return %c0_i32, %c0_i32_0, %c0_i32_1 : i32, i32, i32
  }
  func.func @transform_4(%arg0: i32) -> (i32, i32) {
    %c0_i32 = arith.constant 0 : i32
    %c0_i32_0 = arith.constant 0 : i32
    %c0_i32_1 = arith.constant 0 : i32
    return %c0_i32, %c0_i32_0 : i32, i32
  }
  func.func @transform_5(%arg0: i32) -> (i32, i32, i32) {
    %c0_i32 = arith.constant 0 : i32
    %c0_i32_0 = arith.constant 0 : i32
    %c0_i32_1 = arith.constant 0 : i32
    return %arg0, %c0_i32, %c0_i32_0 : i32, i32, i32
  }
}

module attributes {stable_mosaic.version = 11 : i64} {
  func.func @_block_conv_skip_kernel(%arg0: i32, %arg1: memref<3x16x512xf32, #tpu.memory_space<vmem>>, %arg2: memref<3x1x512xf32, #tpu.memory_space<vmem>>, %arg3: memref<3x1x512xf32, #tpu.memory_space<vmem>>, %arg4: memref<3x576x512xf32, #tpu.memory_space<vmem>>, %arg5: memref<1x512xf32, #tpu.memory_space<vmem>>, %arg6: memref<3x16x512xf32, #tpu.memory_space<vmem>>, %arg7: memref<3x16x512xf32, #tpu.memory_space<vmem>>, %arg8: memref<3x18x576xf32, #tpu.memory_space<vmem>>) attributes {dimension_semantics = [#tpu.dimension_semantics<parallel>], iteration_bounds = array<i64: 2>, scalar_prefetch = 0 : i64, scratch_operands = 1 : i64, tpu.core_type = #tpu.core_type<tc>, window_params = [{transform_indices = @transform_0, window_bounds = array<i64: 3, 16, 512>}, {transform_indices = @transform_1, window_bounds = array<i64: 3, 1, 512>}, {transform_indices = @transform_2, window_bounds = array<i64: 3, 1, 512>}, {pipeline_mode = #tpu.pipeline_mode<synchronous>, transform_indices = @transform_3, window_bounds = array<i64: 3, 576, 512>}, {pipeline_mode = #tpu.pipeline_mode<synchronous>, transform_indices = @transform_4, window_bounds = array<i64: 1, 512>}, {transform_indices = @transform_5, window_bounds = array<i64: 3, 16, 512>}, {transform_indices = @transform_6, window_bounds = array<i64: 3, 16, 512>}]} {
    %c0 = arith.constant 0 : index
    %c0_0 = arith.constant 0 : index
    %c0_1 = arith.constant 0 : index
    %0 = vector.load %arg1[%c0, %c0_0, %c0_1] : memref<3x16x512xf32, #tpu.memory_space<vmem>>, vector<3x16x512xf32>
    %c0_2 = arith.constant 0 : index
    %c0_3 = arith.constant 0 : index
    %c0_4 = arith.constant 0 : index
    %1 = vector.load %arg2[%c0_2, %c0_3, %c0_4] : memref<3x1x512xf32, #tpu.memory_space<vmem>>, vector<3x1x512xf32>
    %2 = vector.broadcast %1 : vector<3x1x512xf32> to vector<3x16x512xf32>
    %3 = arith.mulf %0, %2 : vector<3x16x512xf32>
    %c0_5 = arith.constant 0 : index
    %c0_6 = arith.constant 0 : index
    %c0_7 = arith.constant 0 : index
    %4 = vector.load %arg3[%c0_5, %c0_6, %c0_7] : memref<3x1x512xf32, #tpu.memory_space<vmem>>, vector<3x1x512xf32>
    %5 = vector.broadcast %4 : vector<3x1x512xf32> to vector<3x16x512xf32>
    %6 = arith.addf %3, %5 : vector<3x16x512xf32>
    %cst = arith.constant 0.000000e+00 : f32
    %7 = vector.broadcast %cst : f32 to vector<3x16x512xf32>
    %8 = arith.subf %7, %6 : vector<3x16x512xf32>
    %9 = math.exp %8 : vector<3x16x512xf32>
    %cst_8 = arith.constant 1.000000e+00 : f32
    %10 = vector.broadcast %cst_8 : f32 to vector<3x16x512xf32>
    %11 = arith.addf %10, %9 : vector<3x16x512xf32>
    %12 = arith.divf %6, %11 : vector<3x16x512xf32>
    %cst_9 = arith.constant 0.000000e+00 : f32
    %13 = vector.broadcast %cst_9 : f32 to vector<3x18x576xf32>
    %c0_10 = arith.constant 0 : index
    %c0_11 = arith.constant 0 : index
    %c0_12 = arith.constant 0 : index
    %14 = vector.load %arg8[%c0_10, %c0_11, %c0_12] : memref<3x18x576xf32, #tpu.memory_space<vmem>>, vector<3x18x576xf32>
    tpu.vector_store %arg8[%c0_10, %c0_11, %c0_12], %13 {strides = array<i32>} : memref<3x18x576xf32, #tpu.memory_space<vmem>>, vector<3x18x576xf32>,
    %c0_13 = arith.constant 0 : index
    %c1 = arith.constant 1 : index
    %c32 = arith.constant 32 : index
    %15 = vector.load %arg8[%c0_13, %c1, %c32] : memref<3x18x576xf32, #tpu.memory_space<vmem>>, vector<3x16x512xf32>
    tpu.vector_store %arg8[%c0_13, %c1, %c32], %12 {strides = array<i32>} : memref<3x18x576xf32, #tpu.memory_space<vmem>>, vector<3x16x512xf32>,
    %cst_14 = arith.constant 0.000000e+00 : f32
    %16 = vector.broadcast %cst_14 : f32 to vector<48x512xf32>
    %c0_15 = arith.constant 0 : index
    %c0_16 = arith.constant 0 : index
    %c0_17 = arith.constant 0 : index
    %17 = vector.load %arg8[%c0_15, %c0_16, %c0_17] : memref<3x18x576xf32, #tpu.memory_space<vmem>>, vector<3x16x576xf32>
    %18 = vector.shape_cast %17 : vector<3x16x576xf32> to vector<48x576xf32>
    %c0_18 = arith.constant 0 : index
    %c0_19 = arith.constant 0 : index
    %c0_20 = arith.constant 0 : index
    %19 = vector.load %arg4[%c0_18, %c0_19, %c0_20] : memref<3x576x512xf32, #tpu.memory_space<vmem>>, vector<1x576x512xf32>
    %20 = vector.shape_cast %19 : vector<1x576x512xf32> to vector<576x512xf32>
    %cst_21 = arith.constant dense<0.000000e+00> : vector<48x512xf32>
    %21 = tpu.matmul %18, %20, %cst_21 {dimension_numbers = #tpu.dot_dimension_numbers<[1], [0], [0], [1], [0, 0, 1, 1], [], []>} : vector<48x576xf32>, vector<576x512xf32>, vector<48x512xf32> -> vector<48x512xf32>
    %22 = arith.addf %16, %21 : vector<48x512xf32>
    %c0_22 = arith.constant 0 : index
    %c1_23 = arith.constant 1 : index
    %c0_24 = arith.constant 0 : index
    %23 = vector.load %arg8[%c0_22, %c1_23, %c0_24] : memref<3x18x576xf32, #tpu.memory_space<vmem>>, vector<3x16x576xf32>
    %24 = vector.shape_cast %23 : vector<3x16x576xf32> to vector<48x576xf32>
    %c1_25 = arith.constant 1 : index
    %c0_26 = arith.constant 0 : index
    %c0_27 = arith.constant 0 : index
    %25 = vector.load %arg4[%c1_25, %c0_26, %c0_27] : memref<3x576x512xf32, #tpu.memory_space<vmem>>, vector<1x576x512xf32>
    %26 = vector.shape_cast %25 : vector<1x576x512xf32> to vector<576x512xf32>
    %cst_28 = arith.constant dense<0.000000e+00> : vector<48x512xf32>
    %27 = tpu.matmul %24, %26, %cst_28 {dimension_numbers = #tpu.dot_dimension_numbers<[1], [0], [0], [1], [0, 0, 1, 1], [], []>} : vector<48x576xf32>, vector<576x512xf32>, vector<48x512xf32> -> vector<48x512xf32>
    %28 = arith.addf %22, %27 : vector<48x512xf32>
    %c0_29 = arith.constant 0 : index
    %c2 = arith.constant 2 : index
    %c0_30 = arith.constant 0 : index
    %29 = vector.load %arg8[%c0_29, %c2, %c0_30] : memref<3x18x576xf32, #tpu.memory_space<vmem>>, vector<3x16x576xf32>
    %30 = vector.shape_cast %29 : vector<3x16x576xf32> to vector<48x576xf32>
    %c2_31 = arith.constant 2 : index
    %c0_32 = arith.constant 0 : index
    %c0_33 = arith.constant 0 : index
    %31 = vector.load %arg4[%c2_31, %c0_32, %c0_33] : memref<3x576x512xf32, #tpu.memory_space<vmem>>, vector<1x576x512xf32>
    %32 = vector.shape_cast %31 : vector<1x576x512xf32> to vector<576x512xf32>
    %cst_34 = arith.constant dense<0.000000e+00> : vector<48x512xf32>
    %33 = tpu.matmul %30, %32, %cst_34 {dimension_numbers = #tpu.dot_dimension_numbers<[1], [0], [0], [1], [0, 0, 1, 1], [], []>} : vector<48x576xf32>, vector<576x512xf32>, vector<48x512xf32> -> vector<48x512xf32>
    %34 = arith.addf %28, %33 : vector<48x512xf32>
    %c0_35 = arith.constant 0 : index
    %c0_36 = arith.constant 0 : index
    %35 = vector.load %arg5[%c0_35, %c0_36] : memref<1x512xf32, #tpu.memory_space<vmem>>, vector<1x512xf32>
    %36 = vector.broadcast %35 : vector<1x512xf32> to vector<48x512xf32>
    %37 = arith.addf %34, %36 : vector<48x512xf32>
    %c0_37 = arith.constant 0 : index
    %c0_38 = arith.constant 0 : index
    %c0_39 = arith.constant 0 : index
    %38 = vector.load %arg6[%c0_37, %c0_38, %c0_39] : memref<3x16x512xf32, #tpu.memory_space<vmem>>, vector<3x16x512xf32>
    %39 = vector.shape_cast %38 : vector<3x16x512xf32> to vector<48x512xf32>
    %40 = arith.addf %37, %39 : vector<48x512xf32>
    %41 = vector.shape_cast %40 : vector<48x512xf32> to vector<3x16x512xf32>
    %c0_40 = arith.constant 0 : index
    %c0_41 = arith.constant 0 : index
    %c0_42 = arith.constant 0 : index
    %42 = vector.load %arg7[%c0_40, %c0_41, %c0_42] : memref<3x16x512xf32, #tpu.memory_space<vmem>>, vector<3x16x512xf32>
    tpu.vector_store %arg7[%c0_40, %c0_41, %c0_42], %41 {strides = array<i32>} : memref<3x16x512xf32, #tpu.memory_space<vmem>>, vector<3x16x512xf32>,
    return
  }
  func.func @transform_0(%arg0: i32) -> (i32, i32, i32) {
    %c0_i32 = arith.constant 0 : i32
    %c0_i32_0 = arith.constant 0 : i32
    %c0_i32_1 = arith.constant 0 : i32
    return %arg0, %c0_i32, %c0_i32_0 : i32, i32, i32
  }
  func.func @transform_1(%arg0: i32) -> (i32, i32, i32) {
    %c0_i32 = arith.constant 0 : i32
    %c0_i32_0 = arith.constant 0 : i32
    %c0_i32_1 = arith.constant 0 : i32
    return %arg0, %c0_i32, %c0_i32_0 : i32, i32, i32
  }
  func.func @transform_2(%arg0: i32) -> (i32, i32, i32) {
    %c0_i32 = arith.constant 0 : i32
    %c0_i32_0 = arith.constant 0 : i32
    %c0_i32_1 = arith.constant 0 : i32
    return %arg0, %c0_i32, %c0_i32_0 : i32, i32, i32
  }
  func.func @transform_3(%arg0: i32) -> (i32, i32, i32) {
    %c0_i32 = arith.constant 0 : i32
    %c0_i32_0 = arith.constant 0 : i32
    %c0_i32_1 = arith.constant 0 : i32
    %c0_i32_2 = arith.constant 0 : i32
    return %c0_i32, %c0_i32_0, %c0_i32_1 : i32, i32, i32
  }
  func.func @transform_4(%arg0: i32) -> (i32, i32) {
    %c0_i32 = arith.constant 0 : i32
    %c0_i32_0 = arith.constant 0 : i32
    %c0_i32_1 = arith.constant 0 : i32
    return %c0_i32, %c0_i32_0 : i32, i32
  }
  func.func @transform_5(%arg0: i32) -> (i32, i32, i32) {
    %c0_i32 = arith.constant 0 : i32
    %c0_i32_0 = arith.constant 0 : i32
    %c0_i32_1 = arith.constant 0 : i32
    return %arg0, %c0_i32, %c0_i32_0 : i32, i32, i32
  }
  func.func @transform_6(%arg0: i32) -> (i32, i32, i32) {
    %c0_i32 = arith.constant 0 : i32
    %c0_i32_0 = arith.constant 0 : i32
    %c0_i32_1 = arith.constant 0 : i32
    return %arg0, %c0_i32, %c0_i32_0 : i32, i32, i32
  }
}

</mosaic_0001>

<llo_original>
// kernel: tile.39
$region0: #{tile.39}
  #allocation0 [shape = 's32[1]{0}', space=sflag, size = 0x4, scoped, tag = 'scoped memory for tile.39']
  %s0 = inlined_call_operand.vmem [shape: f32[32], index: 0, kind: input, shape index: {}]
  %s1 = inlined_call_operand.vmem [shape: f32[16,32], index: 1, kind: output, shape index: {}]
  // Predicated region
  $region2: #{tile.39} parent=0 // pred_check
    _
  $region3: #{tile.39} parent=0 // pred_check_branch
    %3 = sbr.rel (0) target = $region5
  $region4: #{tile.39} parent=0 // pred_region
    _
  $region5: #{tile.39} parent=0 // pred_fallthru
    _
  %v4 = vld [vmem:[%s0] ss:$0 sm:$0xff]
  %5 = vst [vmem:[%s1] sm:$0xff] %v4
  %s6 = scalar_lea.vmem %s1, 8
  %7 = vst [vmem:[%s6] sm:$0xff] %v4

// kernel: tile.40
$region0: #{tile.40}
  %s0 = inlined_call_operand.vmem [shape: f32[16,32], index: 0, kind: input, shape index: {}]
  %s1 = inlined_call_operand.vmem [shape: f32[1,512], index: 1, kind: output, shape index: {}]
  $region1: #{tile.40} parent=0
    #allocation0 [shape = 'u8[16384]{0}', space=vmem, size = 0x4000, scoped, tag = 'scoped mem for output reshape']
    %v2 = vld [vmem:[%s0] ss:$4 sm:$0xf]
    %vm3 = vcmask 261120
    %4 = vst.msk [vmem:[#allocation0] ss:$8 sm:$0xf] %vm3, %v2
    %s5 = scalar_lea.vmem %s0, 3
    %v6 = vld [vmem:[%s5] ss:$4 sm:$0xf]
    %7 = vrot.lane.b32.xlu0 %v6, 96
    %v8 = vpop.permute.xlu0 %7
    %vm9 = vcmask 1048320
    %10 = vst.msk [vmem:[#allocation0] ss:$8 sm:$0xf] %vm9, %v8
    %s11 = scalar_lea.vmem %s0, 2
    %v12 = vld [vmem:[%s11] ss:$4 sm:$0xf]
    %13 = vrot.lane.b32.xlu0 %v12, 64
    %v14 = vpop.permute.xlu0 %13
    %vm15 = vcmask 785920
    %16 = vst.msk [vmem:[#allocation0] ss:$8 sm:$0xf] %vm15, %v14
    %s17 = scalar_lea.vmem %s0, 1
    %v18 = vld [vmem:[%s17] ss:$4 sm:$0xf]
    %19 = vrot.lane.b32.xlu0 %v18, 32
    %v20 = vpop.permute.xlu0 %19
    %vm21 = vcmask 523520
    %22 = vst.msk [vmem:[#allocation0] ss:$8 sm:$0xf] %vm21, %v20
    %s24 = sshll.u32 1, 1
    %s25 = ssub.s32 %s24, 1
    %v27 = vld [vmem:[#allocation0] sm:%s25]
    %s28 = sshll.u32 1, 1
    %s29 = ssub.s32 %s28, 1
    %30 = vst [vmem:[%s1] sm:%s29] %v27
    %s31 = scalar_lea.vmem [#allocation0], 8
    %v32 = vld [vmem:[%s31] sm:%s25]
    %s33 = sshll.u32 1, 1
    %s34 = ssub.s32 %s33, 1
    %s35 = scalar_lea.vmem %s1, 1
    %36 = vst [vmem:[%s35] sm:%s34] %v32
    %s37 = scalar_lea.vmem [#allocation0], 16
    %v38 = vld [vmem:[%s37] sm:%s25]
    %s39 = sshll.u32 1, 1
    %s40 = ssub.s32 %s39, 1
    %s41 = smul.addr 1, 2
    %s42 = scalar_lea.vmem %s1, %s41
    %43 = vst [vmem:[%s42] sm:%s40] %v38
    %s44 = scalar_lea.vmem [#allocation0], 24
    %v45 = vld [vmem:[%s44] sm:%s25]
    %s46 = sshll.u32 1, 1
    %s47 = ssub.s32 %s46, 1
    %s48 = smul.addr 1, 3
    %s49 = scalar_lea.vmem %s1, %s48
    %50 = vst [vmem:[%s49] sm:%s47] %v45

// kernel: resnet_block_forward.2
$region0: #{resnet_block_forward.2}
  #allocation0 [shape = 'u32[]', space=smem, size = 0x4, offset = 0x4, fixed_abs, tag = 'smem constant byte address 0x4 - core index']
  #allocation1 [shape = 'u32[144,128]{1,0:T(1,128)}', space=vmem, size = 0x12000, scoped, tag = 'internal scratch']
  #allocation2 [shape = 'f32[3,18,576]{2,1,0:T(8,128)}', space=vmem, size = 0x2d000, scoped, tag = 'scratch operand']
  %s0 = inlined_call_operand.vmem [shape: f32[6,16,512], index: 0, kind: input, shape index: {}]
  %s1 = inlined_call_operand.vmem [shape: f32[6,1,512], index: 1, kind: input, shape index: {}]
  %s2 = inlined_call_operand.vmem [shape: f32[6,1,512], index: 2, kind: input, shape index: {}]
  %s3 = inlined_call_operand.vmem [shape: f32[3,576,512], index: 3, kind: input, shape index: {}]
  %s4 = inlined_call_operand.vmem [shape: f32[1,512], index: 4, kind: input, shape index: {}]
  %s5 = inlined_call_operand.vmem [shape: f32[6,16,512], index: 5, kind: output, shape index: {}]
  %s6 = sld [smem:[#allocation0]]
  $region53: #{resnet_block_forward.2} parent=0
    _
  %s8 = ssub.s32 1, %s6
  %s9 = scalar_select 0, %s8, %s6
  loop: start=0, step=1, limit=4
  $region2: #{resnet_block_forward.2} parent=0 // loop_pre_header
    _
  $region3: #{resnet_block_forward.2} parent=0 // loop_header
    %s11 = sphi 0, %s15
    %p12 = scmp.ge.s32.totalorder %s11, 4
    %s21 = sphi 0, %s23
    %s24 = sphi 0, %s21
    %s25 = sphi 0, %s24
    %s41 = sphi 0, %s25
    %s47 = sphi 0, %s49
    %s50 = sphi 0, %s47
    %s51 = sphi 0, %s50
    %s67 = sphi 0, %s51
    %s73 = sphi 0, %s75
    %s76 = sphi 0, %s73
    %s77 = sphi 0, %s76
    %s93 = sphi 0, %s77
    %s97 = sphi 0, %s97
    %s99 = sphi 0, %s97
    %s100 = sphi 0, %s99
    %s114 = sphi 0, %s100
    %s118 = sphi 0, %s118
    %s120 = sphi 0, %s118
    %s121 = sphi 0, %s120
    %s135 = sphi 0, %s121
    %s141 = sphi 0, %s143
    %s144 = sphi 0, %s141
    %s145 = sphi 0, %s144
    %s161 = sphi 0, %s145
  $region4: #{resnet_block_forward.2} parent=0 // loop_header_branch
    %14 = sbr.rel (%p12) target = $region8
  $region5: #{resnet_block_forward.2} parent=0 // loop_body
    %s16 = ssub.s32 %s11, 1
    %s17 = ssub.s32 %s11, 2
    %s18 = sadd.s32 %s11, 1
    %s19 = ssub.s32 %s11, %s18
    %p20 = scmp.eq.s32.totalorder %s19, 0
    %s22 = sadd.s32 %s21, 1
    %s23 = scalar_select %p20, %s21, %s22
    %p26 = pneg %p20
    %p27 = scmp.eq.s32.totalorder %s11, 1
    %p28 = por %p26, %p27
    %p29 = scmp.ne.s32.totalorder %s21, %s24
    %p30 = scmp.eq.s32.totalorder %s11, 0
    %p31 = por %p29, %p30
    %p32 = scmp.ne.s32.totalorder %s21, %s24
    %p33 = scmp.eq.s32.totalorder %s16, 1
    %p34 = por %p32, %p33
    %p35 = scmp.ne.s32.totalorder %s24, %s25
    %p36 = scmp.eq.s32.totalorder %s16, 0
    %p37 = por %p35, %p36
    %p38 = scmp.ne.s32.totalorder %s24, %s25
    %p39 = scmp.eq.s32.totalorder %s17, 1
    %p40 = por %p38, %p39
    %p42 = scmp.ne.s32.totalorder %s25, %s41
    %p43 = scmp.eq.s32.totalorder %s17, 0
    %p44 = por %p42, %p43
    %s45 = ssub.s32 %s11, %s18
    %p46 = scmp.eq.s32.totalorder %s45, 0
    %s48 = sadd.s32 %s47, 1
    %s49 = scalar_select %p46, %s47, %s48
    %p52 = pneg %p46
    %p53 = scmp.eq.s32.totalorder %s11, 1
    %p54 = por %p52, %p53
    %p55 = scmp.ne.s32.totalorder %s47, %s50
    %p56 = scmp.eq.s32.totalorder %s11, 0
    %p57 = por %p55, %p56
    %p58 = scmp.ne.s32.totalorder %s47, %s50
    %p59 = scmp.eq.s32.totalorder %s16, 1
    %p60 = por %p58, %p59
    %p61 = scmp.ne.s32.totalorder %s50, %s51
    %p62 = scmp.eq.s32.totalorder %s16, 0
    %p63 = por %p61, %p62
    %p64 = scmp.ne.s32.totalorder %s50, %s51
    %p65 = scmp.eq.s32.totalorder %s17, 1
    %p66 = por %p64, %p65
    %p68 = scmp.ne.s32.totalorder %s51, %s67
    %p69 = scmp.eq.s32.totalorder %s17, 0
    %p70 = por %p68, %p69
    %s71 = ssub.s32 %s11, %s18
    %p72 = scmp.eq.s32.totalorder %s71, 0
    %s74 = sadd.s32 %s73, 1
    %s75 = scalar_select %p72, %s73, %s74
    %p78 = pneg %p72
    %p79 = scmp.eq.s32.totalorder %s11, 1
    %p80 = por %p78, %p79
    %p81 = scmp.ne.s32.totalorder %s73, %s76
    %p82 = scmp.eq.s32.totalorder %s11, 0
    %p83 = por %p81, %p82
    %p84 = scmp.ne.s32.totalorder %s73, %s76
    %p85 = scmp.eq.s32.totalorder %s16, 1
    %p86 = por %p84, %p85
    %p87 = scmp.ne.s32.totalorder %s76, %s77
    %p88 = scmp.eq.s32.totalorder %s16, 0
    %p89 = por %p87, %p88
    %p90 = scmp.ne.s32.totalorder %s76, %s77
    %p91 = scmp.eq.s32.totalorder %s17, 1
    %p92 = por %p90, %p91
    %p94 = scmp.ne.s32.totalorder %s77, %s93
    %p95 = scmp.eq.s32.totalorder %s17, 0
    %p96 = por %p94, %p95
    %s98 = sadd.s32 %s97, 1
    %p101 = scmp.eq.s32.totalorder %s11, 1
    %p102 = scmp.ne.s32.totalorder %s97, %s99
    %p103 = scmp.eq.s32.totalorder %s11, 0
    %p104 = por %p102, %p103
    %p105 = scmp.ne.s32.totalorder %s97, %s99
    %p106 = scmp.eq.s32.totalorder %s16, 1
    %p107 = por %p105, %p106
    %p108 = scmp.ne.s32.totalorder %s99, %s100
    %p109 = scmp.eq.s32.totalorder %s16, 0
    %p110 = por %p108, %p109
    %p111 = scmp.ne.s32.totalorder %s99, %s100
    %p112 = scmp.eq.s32.totalorder %s17, 1
    %p113 = por %p111, %p112
    %p115 = scmp.ne.s32.totalorder %s100, %s114
    %p116 = scmp.eq.s32.totalorder %s17, 0
    %p117 = por %p115, %p116
    %s119 = sadd.s32 %s118, 1
    %p122 = scmp.eq.s32.totalorder %s11, 1
    %p123 = scmp.ne.s32.totalorder %s118, %s120
    %p124 = scmp.eq.s32.totalorder %s11, 0
    %p125 = por %p123, %p124
    %p126 = scmp.ne.s32.totalorder %s118, %s120
    %p127 = scmp.eq.s32.totalorder %s16, 1
    %p128 = por %p126, %p127
    %p129 = scmp.ne.s32.totalorder %s120, %s121
    %p130 = scmp.eq.s32.totalorder %s16, 0
    %p131 = por %p129, %p130
    %p132 = scmp.ne.s32.totalorder %s120, %s121
    %p133 = scmp.eq.s32.totalorder %s17, 1
    %p134 = por %p132, %p133
    %p136 = scmp.ne.s32.totalorder %s121, %s135
    %p137 = scmp.eq.s32.totalorder %s17, 0
    %p138 = por %p136, %p137
    %s139 = ssub.s32 %s11, %s18
    %p140 = scmp.eq.s32.totalorder %s139, 0
    %s142 = sadd.s32 %s141, 1
    %s143 = scalar_select %p140, %s141, %s142
    %p146 = pneg %p140
    %p147 = scmp.eq.s32.totalorder %s11, 1
    %p148 = por %p146, %p147
    %p149 = scmp.ne.s32.totalorder %s141, %s144
    %p150 = scmp.eq.s32.totalorder %s11, 0
    %p151 = por %p149, %p150
    %p152 = scmp.ne.s32.totalorder %s141, %s144
    %p153 = scmp.eq.s32.totalorder %s16, 1
    %p154 = por %p152, %p153
    %p155 = scmp.ne.s32.totalorder %s144, %s145
    %p156 = scmp.eq.s32.totalorder %s16, 0
    %p157 = por %p155, %p156
    %p158 = scmp.ne.s32.totalorder %s144, %s145
    %p159 = scmp.eq.s32.totalorder %s17, 1
    %p160 = por %p158, %p159
    %p162 = scmp.ne.s32.totalorder %s145, %s161
    %p163 = scmp.eq.s32.totalorder %s17, 0
    %p164 = por %p162, %p163
    %p165 = scmp.le.s32.totalorder 1, %s11
    %p166 = scmp.lt.s32.totalorder %s11, 3
    %p167 = pnand %p165, %p166
    %p168 = pneg %p167
    // Predicated region
    $region9: #{resnet_block_forward.2} parent=5 // pred_check
      _
    $region10: #{resnet_block_forward.2} parent=5 // pred_check_branch
      %170 = sbr.rel (%p167) target = $region12
    $region11: #{resnet_block_forward.2} parent=5 // pred_region
      %s171 = ssub.s32 %s11, 1
      // Predicated region
      $region13: #{resnet_block_forward.2} parent=11 // pred_check
        %p172 = pneg %p110
      $region14: #{resnet_block_forward.2} parent=11 // pred_check_branch
        %174 = sbr.rel (%p172) target = $region16
      $region15: #{resnet_block_forward.2} parent=11 // pred_region
        _
      $region16: #{resnet_block_forward.2} parent=11 // pred_fallthru
        _
      // Predicated region
      $region17: #{resnet_block_forward.2} parent=11 // pred_check
        %p175 = pneg %p131
      $region18: #{resnet_block_forward.2} parent=11 // pred_check_branch
        %177 = sbr.rel (%p175) target = $region20
      $region19: #{resnet_block_forward.2} parent=11 // pred_region
        _
      $region20: #{resnet_block_forward.2} parent=11 // pred_fallthru
        _
    $region12: #{resnet_block_forward.2} parent=5 // pred_fallthru
      _
    %p178 = scmp.lt.s32.totalorder %s11, 2
    // Predicated region
    $region21: #{resnet_block_forward.2} parent=5 // pred_check
      %p179 = pneg %p178
    $region22: #{resnet_block_forward.2} parent=5 // pred_check_branch
      %181 = sbr.rel (%p179) target = $region24
    $region23: #{resnet_block_forward.2} parent=5 // pred_region
      // Predicated region
      $region25: #{resnet_block_forward.2} parent=23 // pred_check
        %p182 = pneg %p31
      $region26: #{resnet_block_forward.2} parent=23 // pred_check_branch
        %184 = sbr.rel (%p182) target = $region28
      $region27: #{resnet_block_forward.2} parent=23 // pred_region
        %s185 = smul.u32 3, %s11
        %p186 = scmp.lt.s32.totalorder %s185, 5
        %s187 = scalar_select %p186, %s185, 5
        %s188 = smul.addr %s187, 8
        %s189 = smul.addr %s188, 8
        %s190 = scalar_lea.vmem %s0, %s189
        %s191 = smul.u32 3, %s11
      $region28: #{resnet_block_forward.2} parent=23 // pred_fallthru
        _
      // Predicated region
      $region29: #{resnet_block_forward.2} parent=23 // pred_check
        %p192 = pneg %p57
      $region30: #{resnet_block_forward.2} parent=23 // pred_check_branch
        %194 = sbr.rel (%p192) target = $region32
      $region31: #{resnet_block_forward.2} parent=23 // pred_region
        %s195 = smul.u32 3, %s11
        %p196 = scmp.lt.s32.totalorder %s195, 5
        %s197 = scalar_select %p196, %s195, 5
        %s198 = smul.addr %s197, 4
        %s199 = scalar_lea.vmem %s1, %s198
        %s200 = smul.u32 3, %s11
      $region32: #{resnet_block_forward.2} parent=23 // pred_fallthru
        _
      // Predicated region
      $region33: #{resnet_block_forward.2} parent=23 // pred_check
        %p201 = pneg %p83
      $region34: #{resnet_block_forward.2} parent=23 // pred_check_branch
        %203 = sbr.rel (%p201) target = $region36
      $region35: #{resnet_block_forward.2} parent=23 // pred_region
        %s204 = smul.u32 3, %s11
        %p205 = scmp.lt.s32.totalorder %s204, 5
        %s206 = scalar_select %p205, %s204, 5
        %s207 = smul.addr %s206, 4
        %s208 = scalar_lea.vmem %s2, %s207
        %s209 = smul.u32 3, %s11
      $region36: #{resnet_block_forward.2} parent=23 // pred_fallthru
        _
    $region24: #{resnet_block_forward.2} parent=5 // pred_fallthru
      _
    %p210 = scmp.le.s32.totalorder 1, %s11
    %p211 = scmp.lt.s32.totalorder %s11, 3
    %p212 = pnand %p210, %p211
    %p213 = pneg %p212
    // Predicated region
    $region37: #{resnet_block_forward.2} parent=5 // pred_check
      _
    $region38: #{resnet_block_forward.2} parent=5 // pred_check_branch
      %215 = sbr.rel (%p212) target = $region40
    $region39: #{resnet_block_forward.2} parent=5 // pred_region
      %s216 = ssub.s32 %s11, 1
      %s217 = smul.u32 3, %s16
      %p218 = scmp.lt.s32.totalorder %s217, 5
      %s219 = scalar_select %p218, %s217, 5
      %s220 = smul.addr %s219, 8
      %s221 = smul.addr %s220, 8
      %s222 = scalar_lea.vmem %s0, %s221
      %p223 = pneg %p37
      %p224 = pneg %p34
      %s225 = smul.u32 3, %s16
      %p226 = scmp.lt.s32.totalorder %s225, 5
      %s227 = scalar_select %p226, %s225, 5
      %s228 = smul.addr %s227, 4
      %s229 = scalar_lea.vmem %s1, %s228
      %p230 = pneg %p63
      %p231 = pneg %p60
      %s232 = smul.u32 3, %s16
      %p233 = scmp.lt.s32.totalorder %s232, 5
      %s234 = scalar_select %p233, %s232, 5
      %s235 = smul.addr %s234, 4
      %s236 = scalar_lea.vmem %s2, %s235
      %p237 = pneg %p89
      %p238 = pneg %p86
      %p239 = pneg %p110
      %p240 = pneg %p107
      %p241 = pneg %p131
      %p242 = pneg %p128
      %p243 = pneg %p157
      %p244 = pneg %p154
      %s245 = smul.u32 3, %s16
      %p246 = scmp.lt.s32.totalorder %s245, 5
      %s247 = scalar_select %p246, %s245, 5
      %s248 = smul.addr %s247, 8
      %s249 = smul.addr %s248, 8
      %s250 = scalar_lea.vmem %s5, %s249
      %s251 = smul.u32 3, %s16
      %p252 = scmp.lt.s32.totalorder %s251, 5
      %s253 = scalar_select %p252, %s251, 5
      %s254 = smul.addr %s253, 8
      %s255 = smul.addr %s254, 8
      %s256 = scalar_lea.vmem %s0, %s255
      %s257 = smul.u32 3, %s16
      %s258 = smul.u32 3, %s16
      %p259 = scmp.lt.s32.totalorder %s258, 5
      %s260 = scalar_select %p259, %s258, 5
      %s261 = smul.addr %s260, 4
      %s262 = scalar_lea.vmem %s1, %s261
      %s263 = smul.u32 3, %s16
      %s264 = smul.u32 3, %s16
      %p265 = scmp.lt.s32.totalorder %s264, 5
      %s266 = scalar_select %p265, %s264, 5
      %s267 = smul.addr %s266, 4
      %s268 = scalar_lea.vmem %s2, %s267
      %s269 = smul.u32 3, %s16
      %s270 = smul.u32 3, %s16
      %p271 = scmp.lt.s32.totalorder %s270, 5
      %s272 = scalar_select %p271, %s270, 5
      %s273 = smul.addr %s272, 8
      %s274 = smul.addr %s273, 8
      %s275 = scalar_lea.vmem %s5, %s274
      %s276 = smul.u32 3, %s16
      %v277 = vld [vmem:[%s256] sm:$0xff]
      %v278 = vld [vmem:[%s256 + $0x8] sm:$0xff]
      %v279 = vld [vmem:[%s256 + $0x10] sm:$0xff]
      %v280 = vld [vmem:[%s256 + $0x18] sm:$0xff]
      %v281 = vld [vmem:[%s256 + $0x20] sm:$0xff]
      %v282 = vld [vmem:[%s256 + $0x28] sm:$0xff]
      %v283 = vld [vmem:[%s256 + $0x30] sm:$0xff]
      %v284 = vld [vmem:[%s256 + $0x38] sm:$0xff]
      %v285 = vld [vmem:[%s256 + $0x40] sm:$0xff]
      %v286 = vld [vmem:[%s256 + $0x48] sm:$0xff]
      %v287 = vld [vmem:[%s256 + $0x50] sm:$0xff]
      %v288 = vld [vmem:[%s256 + $0x58] sm:$0xff]
      %v289 = vld [vmem:[%s256 + $0x60] sm:$0xff]
      %v290 = vld [vmem:[%s256 + $0x68] sm:$0xff]
      %v291 = vld [vmem:[%s256 + $0x70] sm:$0xff]
      %v292 = vld [vmem:[%s256 + $0x78] sm:$0xff]
      %v293 = vld [vmem:[%s256 + $0x80] sm:$0xff]
      %v294 = vld [vmem:[%s256 + $0x88] sm:$0xff]
      %v295 = vld [vmem:[%s256 + $0x90] sm:$0xff]
      %v296 = vld [vmem:[%s256 + $0x98] sm:$0xff]
      %v297 = vld [vmem:[%s256 + $0xa0] sm:$0xff]
      %v298 = vld [vmem:[%s256 + $0xa8] sm:$0xff]
      %v299 = vld [vmem:[%s256 + $0xb0] sm:$0xff]
      %v300 = vld [vmem:[%s256 + $0xb8] sm:$0xff]
      %v301 = vld [vmem:[%s262] sm:$0xf]
      %v302 = vld [vmem:[%s262 + $0x4] sm:$0xf]
      %v303 = vld [vmem:[%s262 + $0x8] sm:$0xf]
      %v307 = vlaneseq
      %v308 = vshrl.u32 %v307, 7
      %v309 = vsub.s32 0, %v308
      %v310 = vrot.slane %v301, %v309
      %v311 = vlaneseq
      %v312 = vshrl.u32 %v311, 7
      %v313 = vsub.s32 1, %v312
      %v314 = vrot.slane %v301, %v313
      %v315 = vlaneseq
      %v316 = vshrl.u32 %v315, 7
      %v317 = vsub.s32 2, %v316
      %v318 = vrot.slane %v301, %v317
      %v319 = vlaneseq
      %v320 = vshrl.u32 %v319, 7
      %v321 = vsub.s32 3, %v320
      %v322 = vrot.slane %v301, %v321
      %v323 = vlaneseq
      %v324 = vshrl.u32 %v323, 7
      %v325 = vsub.s32 0, %v324
      %v326 = vrot.slane %v302, %v325
      %v327 = vlaneseq
      %v328 = vshrl.u32 %v327, 7
      %v329 = vsub.s32 1, %v328
      %v330 = vrot.slane %v302, %v329
      %v331 = vlaneseq
      %v332 = vshrl.u32 %v331, 7
      %v333 = vsub.s32 2, %v332
      %v334 = vrot.slane %v302, %v333
      %v335 = vlaneseq
      %v336 = vshrl.u32 %v335, 7
      %v337 = vsub.s32 3, %v336
      %v338 = vrot.slane %v302, %v337
      %v339 = vlaneseq
      %v340 = vshrl.u32 %v339, 7
      %v341 = vsub.s32 0, %v340
      %v342 = vrot.slane %v303, %v341
      %v343 = vlaneseq
      %v344 = vshrl.u32 %v343, 7
      %v345 = vsub.s32 1, %v344
      %v346 = vrot.slane %v303, %v345
      %v347 = vlaneseq
      %v348 = vshrl.u32 %v347, 7
      %v349 = vsub.s32 2, %v348
      %v350 = vrot.slane %v303, %v349
      %v351 = vlaneseq
      %v352 = vshrl.u32 %v351, 7
      %v353 = vsub.s32 3, %v352
      %v354 = vrot.slane %v303, %v353
      %v367 = vmul.f32 %v277, %v310
      %v368 = vmul.f32 %v278, %v314
      %v369 = vmul.f32 %v279, %v318
      %v370 = vmul.f32 %v280, %v322
      %v371 = vmul.f32 %v281, %v310
      %v372 = vmul.f32 %v282, %v314
      %v373 = vmul.f32 %v283, %v318
      %v374 = vmul.f32 %v284, %v322
      %v375 = vmul.f32 %v285, %v326
      %v376 = vmul.f32 %v286, %v330
      %v377 = vmul.f32 %v287, %v334
      %v378 = vmul.f32 %v288, %v338
      %v379 = vmul.f32 %v289, %v326
      %v380 = vmul.f32 %v290, %v330
      %v381 = vmul.f32 %v291, %v334
      %v382 = vmul.f32 %v292, %v338
      %v383 = vmul.f32 %v293, %v342
      %v384 = vmul.f32 %v294, %v346
      %v385 = vmul.f32 %v295, %v350
      %v386 = vmul.f32 %v296, %v354
      %v387 = vmul.f32 %v297, %v342
      %v388 = vmul.f32 %v298, %v346
      %v389 = vmul.f32 %v299, %v350
      %v390 = vmul.f32 %v300, %v354
      %v391 = vld [vmem:[%s268] sm:$0xf]
      %v392 = vld [vmem:[%s268 + $0x4] sm:$0xf]
      %v393 = vld [vmem:[%s268 + $0x8] sm:$0xf]
      %v397 = vlaneseq
      %v398 = vshrl.u32 %v397, 7
      %v399 = vsub.s32 0, %v398
      %v400 = vrot.slane %v391, %v399
      %v401 = vlaneseq
      %v402 = vshrl.u32 %v401, 7
      %v403 = vsub.s32 1, %v402
      %v404 = vrot.slane %v391, %v403
      %v405 = vlaneseq
      %v406 = vshrl.u32 %v405, 7
      %v407 = vsub.s32 2, %v406
      %v408 = vrot.slane %v391, %v407
      %v409 = vlaneseq
      %v410 = vshrl.u32 %v409, 7
      %v411 = vsub.s32 3, %v410
      %v412 = vrot.slane %v391, %v411
      %v413 = vlaneseq
      %v414 = vshrl.u32 %v413, 7
      %v415 = vsub.s32 0, %v414
      %v416 = vrot.slane %v392, %v415
      %v417 = vlaneseq
      %v418 = vshrl.u32 %v417, 7
      %v419 = vsub.s32 1, %v418
      %v420 = vrot.slane %v392, %v419
      %v421 = vlaneseq
      %v422 = vshrl.u32 %v421, 7
      %v423 = vsub.s32 2, %v422
      %v424 = vrot.slane %v392, %v423
      %v425 = vlaneseq
      %v426 = vshrl.u32 %v425, 7
      %v427 = vsub.s32 3, %v426
      %v428 = vrot.slane %v392, %v427
      %v429 = vlaneseq
      %v430 = vshrl.u32 %v429, 7
      %v431 = vsub.s32 0, %v430
      %v432 = vrot.slane %v393, %v431
      %v433 = vlaneseq
      %v434 = vshrl.u32 %v433, 7
      %v435 = vsub.s32 1, %v434
      %v436 = vrot.slane %v393, %v435
      %v437 = vlaneseq
      %v438 = vshrl.u32 %v437, 7
      %v439 = vsub.s32 2, %v438
      %v440 = vrot.slane %v393, %v439
      %v441 = vlaneseq
      %v442 = vshrl.u32 %v441, 7
      %v443 = vsub.s32 3, %v442
      %v444 = vrot.slane %v393, %v443
      %v457 = vadd.f32 %v367, %v400
      %v458 = vadd.f32 %v368, %v404
      %v459 = vadd.f32 %v369, %v408
      %v460 = vadd.f32 %v370, %v412
      %v461 = vadd.f32 %v371, %v400
      %v462 = vadd.f32 %v372, %v404
      %v463 = vadd.f32 %v373, %v408
      %v464 = vadd.f32 %v374, %v412
      %v465 = vadd.f32 %v375, %v416
      %v466 = vadd.f32 %v376, %v420
      %v467 = vadd.f32 %v377, %v424
      %v468 = vadd.f32 %v378, %v428
      %v469 = vadd.f32 %v379, %v416
      %v470 = vadd.f32 %v380, %v420
      %v471 = vadd.f32 %v381, %v424
      %v472 = vadd.f32 %v382, %v428
      %v473 = vadd.f32 %v383, %v432
      %v474 = vadd.f32 %v384, %v436
      %v475 = vadd.f32 %v385, %v440
      %v476 = vadd.f32 %v386, %v444
      %v477 = vadd.f32 %v387, %v432
      %v478 = vadd.f32 %v388, %v436
      %v479 = vadd.f32 %v389, %v440
      %v480 = vadd.f32 %v390, %v444
      %v481 = vsub.f32 0.0, %v457
      %v482 = vsub.f32 0.0, %v458
      %v483 = vsub.f32 0.0, %v459
      %v484 = vsub.f32 0.0, %v460
      %v485 = vsub.f32 0.0, %v461
      %v486 = vsub.f32 0.0, %v462
      %v487 = vsub.f32 0.0, %v463
      %v488 = vsub.f32 0.0, %v464
      %v489 = vsub.f32 0.0, %v465
      %v490 = vsub.f32 0.0, %v466
      %v491 = vsub.f32 0.0, %v467
      %v492 = vsub.f32 0.0, %v468
      %v493 = vsub.f32 0.0, %v469
      %v494 = vsub.f32 0.0, %v470
      %v495 = vsub.f32 0.0, %v471
      %v496 = vsub.f32 0.0, %v472
      %v497 = vsub.f32 0.0, %v473
      %v498 = vsub.f32 0.0, %v474
      %v499 = vsub.f32 0.0, %v475
      %v500 = vsub.f32 0.0, %v476
      %v501 = vsub.f32 0.0, %v477
      %v502 = vsub.f32 0.0, %v478
      %v503 = vsub.f32 0.0, %v479
      %v504 = vsub.f32 0.0, %v480
      %v505 = vmul.f32 %v481, 1.442695
      %v506 = vpow.pop %v505
      %v507 = vmul.f32 %v482, 1.442695
      %v508 = vpow.pop %v507
      %v509 = vmul.f32 %v483, 1.442695
      %v510 = vpow.pop %v509
      %v511 = vmul.f32 %v484, 1.442695
      %v512 = vpow.pop %v511
      %v513 = vmul.f32 %v485, 1.442695
      %v514 = vpow.pop %v513
      %v515 = vmul.f32 %v486, 1.442695
      %v516 = vpow.pop %v515
      %v517 = vmul.f32 %v487, 1.442695
      %v518 = vpow.pop %v517
      %v519 = vmul.f32 %v488, 1.442695
      %v520 = vpow.pop %v519
      %v521 = vmul.f32 %v489, 1.442695
      %v522 = vpow.pop %v521
      %v523 = vmul.f32 %v490, 1.442695
      %v524 = vpow.pop %v523
      %v525 = vmul.f32 %v491, 1.442695
      %v526 = vpow.pop %v525
      %v527 = vmul.f32 %v492, 1.442695
      %v528 = vpow.pop %v527
      %v529 = vmul.f32 %v493, 1.442695
      %v530 = vpow.pop %v529
      %v531 = vmul.f32 %v494, 1.442695
      %v532 = vpow.pop %v531
      %v533 = vmul.f32 %v495, 1.442695
      %v534 = vpow.pop %v533
      %v535 = vmul.f32 %v496, 1.442695
      %v536 = vpow.pop %v535
      %v537 = vmul.f32 %v497, 1.442695
      %v538 = vpow.pop %v537
      %v539 = vmul.f32 %v498, 1.442695
      %v540 = vpow.pop %v539
      %v541 = vmul.f32 %v499, 1.442695
      %v542 = vpow.pop %v541
      %v543 = vmul.f32 %v500, 1.442695
      %v544 = vpow.pop %v543
      %v545 = vmul.f32 %v501, 1.442695
      %v546 = vpow.pop %v545
      %v547 = vmul.f32 %v502, 1.442695
      %v548 = vpow.pop %v547
      %v549 = vmul.f32 %v503, 1.442695
      %v550 = vpow.pop %v549
      %v551 = vmul.f32 %v504, 1.442695
      %v552 = vpow.pop %v551
      %v553 = vadd.f32 %v506, 1.0
      %v554 = vadd.f32 %v508, 1.0
      %v555 = vadd.f32 %v510, 1.0
      %v556 = vadd.f32 %v512, 1.0
      %v557 = vadd.f32 %v514, 1.0
      %v558 = vadd.f32 %v516, 1.0
      %v559 = vadd.f32 %v518, 1.0
      %v560 = vadd.f32 %v520, 1.0
      %v561 = vadd.f32 %v522, 1.0
      %v562 = vadd.f32 %v524, 1.0
      %v563 = vadd.f32 %v526, 1.0
      %v564 = vadd.f32 %v528, 1.0
      %v565 = vadd.f32 %v530, 1.0
      %v566 = vadd.f32 %v532, 1.0
      %v567 = vadd.f32 %v534, 1.0
      %v568 = vadd.f32 %v536, 1.0
      %v569 = vadd.f32 %v538, 1.0
      %v570 = vadd.f32 %v540, 1.0
      %v571 = vadd.f32 %v542, 1.0
      %v572 = vadd.f32 %v544, 1.0
      %v573 = vadd.f32 %v546, 1.0
      %v574 = vadd.f32 %v548, 1.0
      %v575 = vadd.f32 %v550, 1.0
      %v576 = vadd.f32 %v552, 1.0
      %v577 = vrcp.pop %v553
      %v578 = vmul.f32 %v457, %v577
      %v579 = vrcp.pop %v554
      %v580 = vmul.f32 %v458, %v579
      %v581 = vrcp.pop %v555
      %v582 = vmul.f32 %v459, %v581
      %v583 = vrcp.pop %v556
      %v584 = vmul.f32 %v460, %v583
      %v585 = vrcp.pop %v557
      %v586 = vmul.f32 %v461, %v585
      %v587 = vrcp.pop %v558
      %v588 = vmul.f32 %v462, %v587
      %v589 = vrcp.pop %v559
      %v590 = vmul.f32 %v463, %v589
      %v591 = vrcp.pop %v560
      %v592 = vmul.f32 %v464, %v591
      %v593 = vrcp.pop %v561
      %v594 = vmul.f32 %v465, %v593
      %v595 = vrcp.pop %v562
      %v596 = vmul.f32 %v466, %v595
      %v597 = vrcp.pop %v563
      %v598 = vmul.f32 %v467, %v597
      %v599 = vrcp.pop %v564
      %v600 = vmul.f32 %v468, %v599
      %v601 = vrcp.pop %v565
      %v602 = vmul.f32 %v469, %v601
      %v603 = vrcp.pop %v566
      %v604 = vmul.f32 %v470, %v603
      %v605 = vrcp.pop %v567
      %v606 = vmul.f32 %v471, %v605
      %v607 = vrcp.pop %v568
      %v608 = vmul.f32 %v472, %v607
      %v609 = vrcp.pop %v569
      %v610 = vmul.f32 %v473, %v609
      %v611 = vrcp.pop %v570
      %v612 = vmul.f32 %v474, %v611
      %v613 = vrcp.pop %v571
      %v614 = vmul.f32 %v475, %v613
      %v615 = vrcp.pop %v572
      %v616 = vmul.f32 %v476, %v615
      %v617 = vrcp.pop %v573
      %v618 = vmul.f32 %v477, %v617
      %v619 = vrcp.pop %v574
      %v620 = vmul.f32 %v478, %v619
      %v621 = vrcp.pop %v575
      %v622 = vmul.f32 %v479, %v621
      %v623 = vrcp.pop %v576
      %v624 = vmul.f32 %v480, %v623
      %625 = vst [vmem:[#allocation2] sm:$0xff] 0.0
      %626 = vst [vmem:[#allocation2 + $0x8] sm:$0xff] 0.0
      %627 = vst [vmem:[#allocation2 + $0x10] sm:$0xff] 0.0
      %628 = vst [vmem:[#allocation2 + $0x18] sm:$0xff] 0.0
      %vm629 = vcmask 523264
      %630 = vst.msk [vmem:[#allocation2 + $0x20] sm:$0xff] %vm629, 0.0
      %631 = vst [vmem:[#allocation2 + $0x28] sm:$0xff] 0.0
      %632 = vst [vmem:[#allocation2 + $0x30] sm:$0xff] 0.0
      %633 = vst [vmem:[#allocation2 + $0x38] sm:$0xff] 0.0
      %634 = vst [vmem:[#allocation2 + $0x40] sm:$0xff] 0.0
      %635 = vst.msk [vmem:[#allocation2 + $0x48] sm:$0xff] %vm629, 0.0
      %636 = vst [vmem:[#allocation2 + $0x50] sm:$0x3] 0.0
      %637 = vst [vmem:[#allocation2 + $0x58] sm:$0x3] 0.0
      %638 = vst [vmem:[#allocation2 + $0x60] sm:$0x3] 0.0
      %639 = vst [vmem:[#allocation2 + $0x68] sm:$0x3] 0.0
      %vm640 = vcmask 517120
      %641 = vst.msk [vmem:[#allocation2 + $0x70] sm:$0x3] %vm640, 0.0
      %642 = vst [vmem:[#allocation2 + $0x78] sm:$0xff] 0.0
      %643 = vst [vmem:[#allocation2 + $0x80] sm:$0xff] 0.0
      %644 = vst [vmem:[#allocation2 + $0x88] sm:$0xff] 0.0
      %645 = vst [vmem:[#allocation2 + $0x90] sm:$0xff] 0.0
      %646 = vst.msk [vmem:[#allocation2 + $0x98] sm:$0xff] %vm629, 0.0
      %647 = vst [vmem:[#allocation2 + $0xa0] sm:$0xff] 0.0
      %648 = vst [vmem:[#allocation2 + $0xa8] sm:$0xff] 0.0
      %649 = vst [vmem:[#allocation2 + $0xb0] sm:$0xff] 0.0
      %650 = vst [vmem:[#allocation2 + $0xb8] sm:$0xff] 0.0
      %651 = vst.msk [vmem:[#allocation2 + $0xc0] sm:$0xff] %vm629, 0.0
      %652 = vst [vmem:[#allocation2 + $0xc8] sm:$0x3] 0.0
      %653 = vst [vmem:[#allocation2 + $0xd0] sm:$0x3] 0.0
      %654 = vst [vmem:[#allocation2 + $0xd8] sm:$0x3] 0.0
      %655 = vst [vmem:[#allocation2 + $0xe0] sm:$0x3] 0.0
      %656 = vst.msk [vmem:[#allocation2 + $0xe8] sm:$0x3] %vm640, 0.0
      %657 = vst [vmem:[#allocation2 + $0xf0] sm:$0xff] 0.0
      %658 = vst [vmem:[#allocation2 + $0xf8] sm:$0xff] 0.0
      %659 = vst [vmem:[#allocation2 + $0x100] sm:$0xff] 0.0
      %660 = vst [vmem:[#allocation2 + $0x108] sm:$0xff] 0.0
      %661 = vst.msk [vmem:[#allocation2 + $0x110] sm:$0xff] %vm629, 0.0
      %662 = vst [vmem:[#allocation2 + $0x118] sm:$0xff] 0.0
      %663 = vst [vmem:[#allocation2 + $0x120] sm:$0xff] 0.0
      %664 = vst [vmem:[#allocation2 + $0x128] sm:$0xff] 0.0
      %665 = vst [vmem:[#allocation2 + $0x130] sm:$0xff] 0.0
      %666 = vst.msk [vmem:[#allocation2 + $0x138] sm:$0xff] %vm629, 0.0
      %667 = vst [vmem:[#allocation2 + $0x140] sm:$0x3] 0.0
      %668 = vst [vmem:[#allocation2 + $0x148] sm:$0x3] 0.0
      %669 = vst [vmem:[#allocation2 + $0x150] sm:$0x3] 0.0
      %670 = vst [vmem:[#allocation2 + $0x158] sm:$0x3] 0.0
      %671 = vst.msk [vmem:[#allocation2 + $0x160] sm:$0x3] %vm640, 0.0
      %vm696 = vcmask 1040384
      %v697 = vrot.slane %v578, 7
      %v698 = vrot.slane %v580, 7
      %v699 = vrot.slane %v582, 7
      %v700 = vrot.slane %v584, 7
      %v701 = vrot.slane %v586, 7
      %v702 = vsel %vm696, %v697, %v701
      %v703 = vrot.slane %v588, 7
      %v704 = vsel %vm696, %v698, %v703
      %v705 = vrot.slane %v590, 7
      %v706 = vsel %vm696, %v699, %v705
      %v707 = vrot.slane %v592, 7
      %v708 = vsel %vm696, %v700, %v707
      %v709 = vrot.slane %v594, 7
      %v710 = vrot.slane %v596, 7
      %v711 = vrot.slane %v598, 7
      %v712 = vrot.slane %v600, 7
      %v713 = vrot.slane %v602, 7
      %v714 = vsel %vm696, %v709, %v713
      %v715 = vrot.slane %v604, 7
      %v716 = vsel %vm696, %v710, %v715
      %v717 = vrot.slane %v606, 7
      %v718 = vsel %vm696, %v711, %v717
      %v719 = vrot.slane %v608, 7
      %v720 = vsel %vm696, %v712, %v719
      %v721 = vrot.slane %v610, 7
      %v722 = vrot.slane %v612, 7
      %v723 = vrot.slane %v614, 7
      %v724 = vrot.slane %v616, 7
      %v725 = vrot.slane %v618, 7
      %v726 = vsel %vm696, %v721, %v725
      %v727 = vrot.slane %v620, 7
      %v728 = vsel %vm696, %v722, %v727
      %v729 = vrot.slane %v622, 7
      %v730 = vsel %vm696, %v723, %v729
      %v731 = vrot.slane %v624, 7
      %v732 = vsel %vm696, %v724, %v731
      %733 = vrot.lane.b32.xlu0 %v697, 32
      %v734 = vpop.permute.xlu0 %733
      %735 = vrot.lane.b32.xlu0 %v698, 32
      %v736 = vpop.permute.xlu0 %735
      %737 = vrot.lane.b32.xlu0 %v699, 32
      %v738 = vpop.permute.xlu0 %737
      %739 = vrot.lane.b32.xlu0 %v700, 32
      %v740 = vpop.permute.xlu0 %739
      %741 = vrot.lane.b32.xlu0 %v702, 32
      %v742 = vpop.permute.xlu0 %741
      %743 = vrot.lane.b32.xlu0 %v704, 32
      %v744 = vpop.permute.xlu0 %743
      %745 = vrot.lane.b32.xlu0 %v706, 32
      %v746 = vpop.permute.xlu0 %745
      %747 = vrot.lane.b32.xlu0 %v708, 32
      %v748 = vpop.permute.xlu0 %747
      %749 = vrot.lane.b32.xlu0 %v701, 32
      %v750 = vpop.permute.xlu0 %749
      %751 = vrot.lane.b32.xlu0 %v703, 32
      %v752 = vpop.permute.xlu0 %751
      %753 = vrot.lane.b32.xlu0 %v705, 32
      %v754 = vpop.permute.xlu0 %753
      %755 = vrot.lane.b32.xlu0 %v707, 32
      %v756 = vpop.permute.xlu0 %755
      %757 = vrot.lane.b32.xlu0 %v709, 32
      %v758 = vpop.permute.xlu0 %757
      %759 = vrot.lane.b32.xlu0 %v710, 32
      %v760 = vpop.permute.xlu0 %759
      %761 = vrot.lane.b32.xlu0 %v711, 32
      %v762 = vpop.permute.xlu0 %761
      %763 = vrot.lane.b32.xlu0 %v712, 32
      %v764 = vpop.permute.xlu0 %763
      %765 = vrot.lane.b32.xlu0 %v714, 32
      %v766 = vpop.permute.xlu0 %765
      %767 = vrot.lane.b32.xlu0 %v716, 32
      %v768 = vpop.permute.xlu0 %767
      %769 = vrot.lane.b32.xlu0 %v718, 32
      %v770 = vpop.permute.xlu0 %769
      %771 = vrot.lane.b32.xlu0 %v720, 32
      %v772 = vpop.permute.xlu0 %771
      %773 = vrot.lane.b32.xlu0 %v713, 32
      %v774 = vpop.permute.xlu0 %773
      %775 = vrot.lane.b32.xlu0 %v715, 32
      %v776 = vpop.permute.xlu0 %775
      %777 = vrot.lane.b32.xlu0 %v717, 32
      %v778 = vpop.permute.xlu0 %777
      %779 = vrot.lane.b32.xlu0 %v719, 32
      %v780 = vpop.permute.xlu0 %779
      %781 = vrot.lane.b32.xlu0 %v721, 32
      %v782 = vpop.permute.xlu0 %781
      %783 = vrot.lane.b32.xlu0 %v722, 32
      %v784 = vpop.permute.xlu0 %783
      %785 = vrot.lane.b32.xlu0 %v723, 32
      %v786 = vpop.permute.xlu0 %785
      %787 = vrot.lane.b32.xlu0 %v724, 32
      %v788 = vpop.permute.xlu0 %787
      %789 = vrot.lane.b32.xlu0 %v726, 32
      %v790 = vpop.permute.xlu0 %789
      %791 = vrot.lane.b32.xlu0 %v728, 32
      %v792 = vpop.permute.xlu0 %791
      %793 = vrot.lane.b32.xlu0 %v730, 32
      %v794 = vpop.permute.xlu0 %793
      %795 = vrot.lane.b32.xlu0 %v732, 32
      %v796 = vpop.permute.xlu0 %795
      %797 = vrot.lane.b32.xlu0 %v725, 32
      %v798 = vpop.permute.xlu0 %797
      %799 = vrot.lane.b32.xlu0 %v727, 32
      %v800 = vpop.permute.xlu0 %799
      %801 = vrot.lane.b32.xlu0 %v729, 32
      %v802 = vpop.permute.xlu0 %801
      %803 = vrot.lane.b32.xlu0 %v731, 32
      %v804 = vpop.permute.xlu0 %803
      %vm805 = vcmask 261120
      %v806 = vsel %vm805, %v734, %v736
      %v807 = vsel %vm805, %v736, %v738
      %v808 = vsel %vm805, %v738, %v740
      %v809 = vsel %vm805, %v742, %v744
      %v810 = vsel %vm805, %v744, %v746
      %v811 = vsel %vm805, %v746, %v748
      %v812 = vsel %vm805, %v750, %v752
      %v813 = vsel %vm805, %v752, %v754
      %v814 = vsel %vm805, %v754, %v756
      %v815 = vsel %vm805, %v758, %v760
      %v816 = vsel %vm805, %v760, %v762
      %v817 = vsel %vm805, %v762, %v764
      %v818 = vsel %vm805, %v766, %v768
      %v819 = vsel %vm805, %v768, %v770
      %v820 = vsel %vm805, %v770, %v772
      %v821 = vsel %vm805, %v774, %v776
      %v822 = vsel %vm805, %v776, %v778
      %v823 = vsel %vm805, %v778, %v780
      %v824 = vsel %vm805, %v782, %v784
      %v825 = vsel %vm805, %v784, %v786
      %v826 = vsel %vm805, %v786, %v788
      %v827 = vsel %vm805, %v790, %v792
      %v828 = vsel %vm805, %v792, %v794
      %v829 = vsel %vm805, %v794, %v796
      %v830 = vsel %vm805, %v798, %v800
      %v831 = vsel %vm805, %v800, %v802
      %v832 = vsel %vm805, %v802, %v804
      %vm878 = vcmask 1047809
      %879 = vst.msk [vmem:[#allocation2] sm:$0xfe] %vm878, %v734
      %880 = vst [vmem:[#allocation2 + $0x8] sm:$0xfe] %v806
      %881 = vst [vmem:[#allocation2 + $0x10] sm:$0xfe] %v807
      %882 = vst [vmem:[#allocation2 + $0x18] sm:$0xfe] %v808
      %vm883 = vcmask 261121
      %884 = vst.msk [vmem:[#allocation2 + $0x20] sm:$0xfe] %vm883, %v740
      %vm885 = vcmask 1047808
      %886 = vst.msk [vmem:[#allocation2 + $0x28] sm:$0xff] %vm885, %v742
      %887 = vst [vmem:[#allocation2 + $0x30] sm:$0xff] %v809
      %888 = vst [vmem:[#allocation2 + $0x38] sm:$0xff] %v810
      %889 = vst [vmem:[#allocation2 + $0x40] sm:$0xff] %v811
      %890 = vst.msk [vmem:[#allocation2 + $0x48] sm:$0xff] %vm805, %v748
      %vm891 = vcmask 1040640
      %892 = vst.msk [vmem:[#allocation2 + $0x50] sm:$0x1] %vm891, %v750
      %893 = vst [vmem:[#allocation2 + $0x58] sm:$0x1] %v812
      %894 = vst [vmem:[#allocation2 + $0x60] sm:$0x1] %v813
      %895 = vst [vmem:[#allocation2 + $0x68] sm:$0x1] %v814
      %vm896 = vcmask 253952
      %897 = vst.msk [vmem:[#allocation2 + $0x70] sm:$0x1] %vm896, %v756
      %898 = vst.msk [vmem:[#allocation2 + $0x78] sm:$0xfe] %vm878, %v758
      %899 = vst [vmem:[#allocation2 + $0x80] sm:$0xfe] %v815
      %900 = vst [vmem:[#allocation2 + $0x88] sm:$0xfe] %v816
      %901 = vst [vmem:[#allocation2 + $0x90] sm:$0xfe] %v817
      %902 = vst.msk [vmem:[#allocation2 + $0x98] sm:$0xfe] %vm883, %v764
      %903 = vst.msk [vmem:[#allocation2 + $0xa0] sm:$0xff] %vm885, %v766
      %904 = vst [vmem:[#allocation2 + $0xa8] sm:$0xff] %v818
      %905 = vst [vmem:[#allocation2 + $0xb0] sm:$0xff] %v819
      %906 = vst [vmem:[#allocation2 + $0xb8] sm:$0xff] %v820
      %907 = vst.msk [vmem:[#allocation2 + $0xc0] sm:$0xff] %vm805, %v772
      %908 = vst.msk [vmem:[#allocation2 + $0xc8] sm:$0x1] %vm891, %v774
      %909 = vst [vmem:[#allocation2 + $0xd0] sm:$0x1] %v821
      %910 = vst [vmem:[#allocation2 + $0xd8] sm:$0x1] %v822
      %911 = vst [vmem:[#allocation2 + $0xe0] sm:$0x1] %v823
      %912 = vst.msk [vmem:[#allocation2 + $0xe8] sm:$0x1] %vm896, %v780
      %913 = vst.msk [vmem:[#allocation2 + $0xf0] sm:$0xfe] %vm878, %v782
      %914 = vst [vmem:[#allocation2 + $0xf8] sm:$0xfe] %v824
      %915 = vst [vmem:[#allocation2 + $0x100] sm:$0xfe] %v825
      %916 = vst [vmem:[#allocation2 + $0x108] sm:$0xfe] %v826
      %917 = vst.msk [vmem:[#allocation2 + $0x110] sm:$0xfe] %vm883, %v788
      %918 = vst.msk [vmem:[#allocation2 + $0x118] sm:$0xff] %vm885, %v790
      %919 = vst [vmem:[#allocation2 + $0x120] sm:$0xff] %v827
      %920 = vst [vmem:[#allocation2 + $0x128] sm:$0xff] %v828
      %921 = vst [vmem:[#allocation2 + $0x130] sm:$0xff] %v829
      %922 = vst.msk [vmem:[#allocation2 + $0x138] sm:$0xff] %vm805, %v796
      %923 = vst.msk [vmem:[#allocation2 + $0x140] sm:$0x1] %vm891, %v798
      %924 = vst [vmem:[#allocation2 + $0x148] sm:$0x1] %v830
      %925 = vst [vmem:[#allocation2 + $0x150] sm:$0x1] %v831
      %926 = vst [vmem:[#allocation2 + $0x158] sm:$0x1] %v832
      %927 = vst.msk [vmem:[#allocation2 + $0x160] sm:$0x1] %vm896, %v804
      %v928 = vld [vmem:[#allocation2] sm:$0xff]
      %v929 = vld [vmem:[#allocation2 + $0x8] sm:$0xff]
      %v930 = vld [vmem:[#allocation2 + $0x10] sm:$0xff]
      %v931 = vld [vmem:[#allocation2 + $0x18] sm:$0xff]
      %v932 = vld [vmem:[#allocation2 + $0x20] sm:$0xff]
      %v933 = vld [vmem:[#allocation2 + $0x28] sm:$0xff]
      %v934 = vld [vmem:[#allocation2 + $0x30] sm:$0xff]
      %v935 = vld [vmem:[#allocation2 + $0x38] sm:$0xff]
      %v936 = vld [vmem:[#allocation2 + $0x40] sm:$0xff]
      %v937 = vld [vmem:[#allocation2 + $0x48] sm:$0xff]
      %v938 = vld [vmem:[#allocation2 + $0x78] sm:$0xff]
      %v939 = vld [vmem:[#allocation2 + $0x80] sm:$0xff]
      %v940 = vld [vmem:[#allocation2 + $0x88] sm:$0xff]
      %v941 = vld [vmem:[#allocation2 + $0x90] sm:$0xff]
      %v942 = vld [vmem:[#allocation2 + $0x98] sm:$0xff]
      %v943 = vld [vmem:[#allocation2 + $0xa0] sm:$0xff]
      %v944 = vld [vmem:[#allocation2 + $0xa8] sm:$0xff]
      %v945 = vld [vmem:[#allocation2 + $0xb0] sm:$0xff]
      %v946 = vld [vmem:[#allocation2 + $0xb8] sm:$0xff]
      %v947 = vld [vmem:[#allocation2 + $0xc0] sm:$0xff]
      %v948 = vld [vmem:[#allocation2 + $0xf0] sm:$0xff]
      %v949 = vld [vmem:[#allocation2 + $0xf8] sm:$0xff]
      %v950 = vld [vmem:[#allocation2 + $0x100] sm:$0xff]
      %v951 = vld [vmem:[#allocation2 + $0x108] sm:$0xff]
      %v952 = vld [vmem:[#allocation2 + $0x110] sm:$0xff]
      %v953 = vld [vmem:[#allocation2 + $0x118] sm:$0xff]
      %v954 = vld [vmem:[#allocation2 + $0x120] sm:$0xff]
      %v955 = vld [vmem:[#allocation2 + $0x128] sm:$0xff]
      %v956 = vld [vmem:[#allocation2 + $0x130] sm:$0xff]
      %v957 = vld [vmem:[#allocation2 + $0x138] sm:$0xff]
      %v958 = vld [vmem:[%s3] sm:$0xff]
      %v959 = vld [vmem:[%s3 + $0x8] sm:$0xff]
      %v960 = vld [vmem:[%s3 + $0x10] sm:$0xff]
      %v961 = vld [vmem:[%s3 + $0x18] sm:$0xff]
      %v962 = vld [vmem:[%s3 + $0x20] sm:$0xff]
      %v963 = vld [vmem:[%s3 + $0x28] sm:$0xff]
      %v964 = vld [vmem:[%s3 + $0x30] sm:$0xff]
      %v965 = vld [vmem:[%s3 + $0x38] sm:$0xff]
      %v966 = vld [vmem:[%s3 + $0x40] sm:$0xff]
      %v967 = vld [vmem:[%s3 + $0x48] sm:$0xff]
      %v968 = vld [vmem:[%s3 + $0x50] sm:$0xff]
      %v969 = vld [vmem:[%s3 + $0x58] sm:$0xff]
      %v970 = vld [vmem:[%s3 + $0x60] sm:$0xff]
      %v971 = vld [vmem:[%s3 + $0x68] sm:$0xff]
      %v972 = vld [vmem:[%s3 + $0x70] sm:$0xff]
      %v973 = vld [vmem:[%s3 + $0x78] sm:$0xff]
      %v974 = vld [vmem:[%s3 + $0x80] sm:$0xff]
      %v975 = vld [vmem:[%s3 + $0x88] sm:$0xff]
      %v976 = vld [vmem:[%s3 + $0x90] sm:$0xff]
      %v977 = vld [vmem:[%s3 + $0x98] sm:$0xff]
      %v978 = vld [vmem:[%s3 + $0xa0] sm:$0xff]
      %v979 = vld [vmem:[%s3 + $0xa8] sm:$0xff]
      %v980 = vld [vmem:[%s3 + $0xb0] sm:$0xff]
      %v981 = vld [vmem:[%s3 + $0xb8] sm:$0xff]
      %v982 = vld [vmem:[%s3 + $0xc0] sm:$0xff]
      %v983 = vld [vmem:[%s3 + $0xc8] sm:$0xff]
      %v984 = vld [vmem:[%s3 + $0xd0] sm:$0xff]
      %v985 = vld [vmem:[%s3 + $0xd8] sm:$0xff]
      %v986 = vld [vmem:[%s3 + $0xe0] sm:$0xff]
      %v987 = vld [vmem:[%s3 + $0xe8] sm:$0xff]
      %v988 = vld [vmem:[%s3 + $0xf0] sm:$0xff]
      %v989 = vld [vmem:[%s3 + $0xf8] sm:$0xff]
      %v990 = vld [vmem:[%s3 + $0x100] sm:$0xff]
      %v991 = vld [vmem:[%s3 + $0x108] sm:$0xff]
      %v992 = vld [vmem:[%s3 + $0x110] sm:$0xff]
      %v993 = vld [vmem:[%s3 + $0x118] sm:$0xff]
      %v994 = vld [vmem:[%s3 + $0x120] sm:$0xff]
      %v995 = vld [vmem:[%s3 + $0x128] sm:$0xff]
      %v996 = vld [vmem:[%s3 + $0x130] sm:$0xff]
      %v997 = vld [vmem:[%s3 + $0x138] sm:$0xff]
      %v998 = vld [vmem:[%s3 + $0x140] sm:$0xff]
      %v999 = vld [vmem:[%s3 + $0x148] sm:$0xff]
      %v1000 = vld [vmem:[%s3 + $0x150] sm:$0xff]
      %v1001 = vld [vmem:[%s3 + $0x158] sm:$0xff]
      %v1002 = vld [vmem:[%s3 + $0x160] sm:$0xff]
      %v1003 = vld [vmem:[%s3 + $0x168] sm:$0xff]
      %v1004 = vld [vmem:[%s3 + $0x170] sm:$0xff]
      %v1005 = vld [vmem:[%s3 + $0x178] sm:$0xff]
      %v1006 = vld [vmem:[%s3 + $0x180] sm:$0xff]
      %v1007 = vld [vmem:[%s3 + $0x188] sm:$0xff]
      %v1008 = vld [vmem:[%s3 + $0x190] sm:$0xff]
      %v1009 = vld [vmem:[%s3 + $0x198] sm:$0xff]
      %v1010 = vld [vmem:[%s3 + $0x1a0] sm:$0xff]
      %v1011 = vld [vmem:[%s3 + $0x1a8] sm:$0xff]
      %v1012 = vld [vmem:[%s3 + $0x1b0] sm:$0xff]
      %v1013 = vld [vmem:[%s3 + $0x1b8] sm:$0xff]
      %v1014 = vld [vmem:[%s3 + $0x1c0] sm:$0xff]
      %v1015 = vld [vmem:[%s3 + $0x1c8] sm:$0xff]
      %v1016 = vld [vmem:[%s3 + $0x1d0] sm:$0xff]
      %v1017 = vld [vmem:[%s3 + $0x1d8] sm:$0xff]
      %v1018 = vld [vmem:[%s3 + $0x1e0] sm:$0xff]
      %v1019 = vld [vmem:[%s3 + $0x1e8] sm:$0xff]
      %v1020 = vld [vmem:[%s3 + $0x1f0] sm:$0xff]
      %v1021 = vld [vmem:[%s3 + $0x1f8] sm:$0xff]
      %v1022 = vld [vmem:[%s3 + $0x200] sm:$0xff]
      %v1023 = vld [vmem:[%s3 + $0x208] sm:$0xff]
      %v1024 = vld [vmem:[%s3 + $0x210] sm:$0xff]
      %v1025 = vld [vmem:[%s3 + $0x218] sm:$0xff]
      %v1026 = vld [vmem:[%s3 + $0x220] sm:$0xff]
      %v1027 = vld [vmem:[%s3 + $0x228] sm:$0xff]
      %v1028 = vld [vmem:[%s3 + $0x230] sm:$0xff]
      %v1029 = vld [vmem:[%s3 + $0x238] sm:$0xff]
      %v1030 = vld [vmem:[%s3 + $0x240] sm:$0xff]
      %v1031 = vld [vmem:[%s3 + $0x248] sm:$0xff]
      %v1032 = vld [vmem:[%s3 + $0x250] sm:$0xff]
      %v1033 = vld [vmem:[%s3 + $0x258] sm:$0xff]
      %v1034 = vld [vmem:[%s3 + $0x260] sm:$0xff]
      %v1035 = vld [vmem:[%s3 + $0x268] sm:$0xff]
      %v1036 = vld [vmem:[%s3 + $0x270] sm:$0xff]
      %v1037 = vld [vmem:[%s3 + $0x278] sm:$0xff]
      %v1038 = vld [vmem:[%s3 + $0x280] sm:$0xff]
      %v1039 = vld [vmem:[%s3 + $0x288] sm:$0xff]
      %v1040 = vld [vmem:[%s3 + $0x290] sm:$0xff]
      %v1041 = vld [vmem:[%s3 + $0x298] sm:$0xff]
      %v1042 = vld [vmem:[%s3 + $0x2a0] sm:$0xff]
      %v1043 = vld [vmem:[%s3 + $0x2a8] sm:$0xff]
      %v1044 = vld [vmem:[%s3 + $0x2b0] sm:$0xff]
      %v1045 = vld [vmem:[%s3 + $0x2b8] sm:$0xff]
      %v1046 = vld [vmem:[%s3 + $0x2c0] sm:$0xff]
      %v1047 = vld [vmem:[%s3 + $0x2c8] sm:$0xff]
      %v1048 = vld [vmem:[%s3 + $0x2d0] sm:$0xff]
      %v1049 = vld [vmem:[%s3 + $0x2d8] sm:$0xff]
      %v1050 = vld [vmem:[%s3 + $0x2e0] sm:$0xff]
      %v1051 = vld [vmem:[%s3 + $0x2e8] sm:$0xff]
      %v1052 = vld [vmem:[%s3 + $0x2f0] sm:$0xff]
      %v1053 = vld [vmem:[%s3 + $0x2f8] sm:$0xff]
      %v1054 = vld [vmem:[%s3 + $0x300] sm:$0xff]
      %v1055 = vld [vmem:[%s3 + $0x308] sm:$0xff]
      %v1056 = vld [vmem:[%s3 + $0x310] sm:$0xff]
      %v1057 = vld [vmem:[%s3 + $0x318] sm:$0xff]
      %v1058 = vld [vmem:[%s3 + $0x320] sm:$0xff]
      %v1059 = vld [vmem:[%s3 + $0x328] sm:$0xff]
      %v1060 = vld [vmem:[%s3 + $0x330] sm:$0xff]
      %v1061 = vld [vmem:[%s3 + $0x338] sm:$0xff]
      %v1062 = vld [vmem:[%s3 + $0x340] sm:$0xff]
      %v1063 = vld [vmem:[%s3 + $0x348] sm:$0xff]
      %v1064 = vld [vmem:[%s3 + $0x350] sm:$0xff]
      %v1065 = vld [vmem:[%s3 + $0x358] sm:$0xff]
      %v1066 = vld [vmem:[%s3 + $0x360] sm:$0xff]
      %v1067 = vld [vmem:[%s3 + $0x368] sm:$0xff]
      %v1068 = vld [vmem:[%s3 + $0x370] sm:$0xff]
      %v1069 = vld [vmem:[%s3 + $0x378] sm:$0xff]
      %v1070 = vld [vmem:[%s3 + $0x380] sm:$0xff]
      %v1071 = vld [vmem:[%s3 + $0x388] sm:$0xff]
      %v1072 = vld [vmem:[%s3 + $0x390] sm:$0xff]
      %v1073 = vld [vmem:[%s3 + $0x398] sm:$0xff]
      %v1074 = vld [vmem:[%s3 + $0x3a0] sm:$0xff]
      %v1075 = vld [vmem:[%s3 + $0x3a8] sm:$0xff]
      %v1076 = vld [vmem:[%s3 + $0x3b0] sm:$0xff]
      %v1077 = vld [vmem:[%s3 + $0x3b8] sm:$0xff]
      %v1078 = vld [vmem:[%s3 + $0x3c0] sm:$0xff]
      %v1079 = vld [vmem:[%s3 + $0x3c8] sm:$0xff]
      %v1080 = vld [vmem:[%s3 + $0x3d0] sm:$0xff]
      %v1081 = vld [vmem:[%s3 + $0x3d8] sm:$0xff]
      %v1082 = vld [vmem:[%s3 + $0x3e0] sm:$0xff]
      %v1083 = vld [vmem:[%s3 + $0x3e8] sm:$0xff]
      %v1084 = vld [vmem:[%s3 + $0x3f0] sm:$0xff]
      %v1085 = vld [vmem:[%s3 + $0x3f8] sm:$0xff]
      %v1086 = vld [vmem:[%s3 + $0x400] sm:$0xff]
      %v1087 = vld [vmem:[%s3 + $0x408] sm:$0xff]
      %v1088 = vld [vmem:[%s3 + $0x410] sm:$0xff]
      %v1089 = vld [vmem:[%s3 + $0x418] sm:$0xff]
      %v1090 = vld [vmem:[%s3 + $0x420] sm:$0xff]
      %v1091 = vld [vmem:[%s3 + $0x428] sm:$0xff]
      %v1092 = vld [vmem:[%s3 + $0x430] sm:$0xff]
      %v1093 = vld [vmem:[%s3 + $0x438] sm:$0xff]
      %v1094 = vld [vmem:[%s3 + $0x440] sm:$0xff]
      %v1095 = vld [vmem:[%s3 + $0x448] sm:$0xff]
      %v1096 = vld [vmem:[%s3 + $0x450] sm:$0xff]
      %v1097 = vld [vmem:[%s3 + $0x458] sm:$0xff]
      %v1098 = vld [vmem:[%s3 + $0x460] sm:$0xff]
      %v1099 = vld [vmem:[%s3 + $0x468] sm:$0xff]
      %v1100 = vld [vmem:[%s3 + $0x470] sm:$0xff]
      %v1101 = vld [vmem:[%s3 + $0x478] sm:$0xff]
      %v1102 = vld [vmem:[%s3 + $0x480] sm:$0xff]
      %v1103 = vld [vmem:[%s3 + $0x488] sm:$0xff]
      %v1104 = vld [vmem:[%s3 + $0x490] sm:$0xff]
      %v1105 = vld [vmem:[%s3 + $0x498] sm:$0xff]
      %v1106 = vld [vmem:[%s3 + $0x4a0] sm:$0xff]
      %v1107 = vld [vmem:[%s3 + $0x4a8] sm:$0xff]
      %v1108 = vld [vmem:[%s3 + $0x4b0] sm:$0xff]
      %v1109 = vld [vmem:[%s3 + $0x4b8] sm:$0xff]
      %v1110 = vld [vmem:[%s3 + $0x4c0] sm:$0xff]
      %v1111 = vld [vmem:[%s3 + $0x4c8] sm:$0xff]
      %v1112 = vld [vmem:[%s3 + $0x4d0] sm:$0xff]
      %v1113 = vld [vmem:[%s3 + $0x4d8] sm:$0xff]
      %v1114 = vld [vmem:[%s3 + $0x4e0] sm:$0xff]
      %v1115 = vld [vmem:[%s3 + $0x4e8] sm:$0xff]
      %v1116 = vld [vmem:[%s3 + $0x4f0] sm:$0xff]
      %v1117 = vld [vmem:[%s3 + $0x4f8] sm:$0xff]
      %v1118 = vld [vmem:[%s3 + $0x500] sm:$0xff]
      %v1119 = vld [vmem:[%s3 + $0x508] sm:$0xff]
      %v1120 = vld [vmem:[%s3 + $0x510] sm:$0xff]
      %v1121 = vld [vmem:[%s3 + $0x518] sm:$0xff]
      %v1122 = vld [vmem:[%s3 + $0x520] sm:$0xff]
      %v1123 = vld [vmem:[%s3 + $0x528] sm:$0xff]
      %v1124 = vld [vmem:[%s3 + $0x530] sm:$0xff]
      %v1125 = vld [vmem:[%s3 + $0x538] sm:$0xff]
      %v1126 = vld [vmem:[%s3 + $0x540] sm:$0xff]
      %v1127 = vld [vmem:[%s3 + $0x548] sm:$0xff]
      %v1128 = vld [vmem:[%s3 + $0x550] sm:$0xff]
      %v1129 = vld [vmem:[%s3 + $0x558] sm:$0xff]
      %v1130 = vld [vmem:[%s3 + $0x560] sm:$0xff]
      %v1131 = vld [vmem:[%s3 + $0x568] sm:$0xff]
      %v1132 = vld [vmem:[%s3 + $0x570] sm:$0xff]
      %v1133 = vld [vmem:[%s3 + $0x578] sm:$0xff]
      %v1134 = vld [vmem:[%s3 + $0x580] sm:$0xff]
      %v1135 = vld [vmem:[%s3 + $0x588] sm:$0xff]
      %v1136 = vld [vmem:[%s3 + $0x590] sm:$0xff]
      %v1137 = vld [vmem:[%s3 + $0x598] sm:$0xff]
      %v1138 = vld [vmem:[%s3 + $0x5a0] sm:$0xff]
      %v1139 = vld [vmem:[%s3 + $0x5a8] sm:$0xff]
      %v1140 = vld [vmem:[%s3 + $0x5b0] sm:$0xff]
      %v1141 = vld [vmem:[%s3 + $0x5b8] sm:$0xff]
      %v1142 = vld [vmem:[%s3 + $0x5c0] sm:$0xff]
      %v1143 = vld [vmem:[%s3 + $0x5c8] sm:$0xff]
      %v1144 = vld [vmem:[%s3 + $0x5d0] sm:$0xff]
      %v1145 = vld [vmem:[%s3 + $0x5d8] sm:$0xff]
      %v1146 = vld [vmem:[%s3 + $0x5e0] sm:$0xff]
      %v1147 = vld [vmem:[%s3 + $0x5e8] sm:$0xff]
      %v1148 = vld [vmem:[%s3 + $0x5f0] sm:$0xff]
      %v1149 = vld [vmem:[%s3 + $0x5f8] sm:$0xff]
      %v1150 = vld [vmem:[%s3 + $0x600] sm:$0xff]
      %v1151 = vld [vmem:[%s3 + $0x608] sm:$0xff]
      %v1152 = vld [vmem:[%s3 + $0x610] sm:$0xff]
      %v1153 = vld [vmem:[%s3 + $0x618] sm:$0xff]
      %v1154 = vld [vmem:[%s3 + $0x620] sm:$0xff]
      %v1155 = vld [vmem:[%s3 + $0x628] sm:$0xff]
      %v1156 = vld [vmem:[%s3 + $0x630] sm:$0xff]
      %v1157 = vld [vmem:[%s3 + $0x638] sm:$0xff]
      %v1158 = vld [vmem:[%s3 + $0x640] sm:$0xff]
      %v1159 = vld [vmem:[%s3 + $0x648] sm:$0xff]
      %v1160 = vld [vmem:[%s3 + $0x650] sm:$0xff]
      %v1161 = vld [vmem:[%s3 + $0x658] sm:$0xff]
      %v1162 = vld [vmem:[%s3 + $0x660] sm:$0xff]
      %v1163 = vld [vmem:[%s3 + $0x668] sm:$0xff]
      %v1164 = vld [vmem:[%s3 + $0x670] sm:$0xff]
      %v1165 = vld [vmem:[%s3 + $0x678] sm:$0xff]
      %v1166 = vld [vmem:[%s3 + $0x680] sm:$0xff]
      %v1167 = vld [vmem:[%s3 + $0x688] sm:$0xff]
      %v1168 = vld [vmem:[%s3 + $0x690] sm:$0xff]
      %v1169 = vld [vmem:[%s3 + $0x698] sm:$0xff]
      %v1170 = vld [vmem:[%s3 + $0x6a0] sm:$0xff]
      %v1171 = vld [vmem:[%s3 + $0x6a8] sm:$0xff]
      %v1172 = vld [vmem:[%s3 + $0x6b0] sm:$0xff]
      %v1173 = vld [vmem:[%s3 + $0x6b8] sm:$0xff]
      %v1174 = vld [vmem:[%s3 + $0x6c0] sm:$0xff]
      %v1175 = vld [vmem:[%s3 + $0x6c8] sm:$0xff]
      %v1176 = vld [vmem:[%s3 + $0x6d0] sm:$0xff]
      %v1177 = vld [vmem:[%s3 + $0x6d8] sm:$0xff]
      %v1178 = vld [vmem:[%s3 + $0x6e0] sm:$0xff]
      %v1179 = vld [vmem:[%s3 + $0x6e8] sm:$0xff]
      %v1180 = vld [vmem:[%s3 + $0x6f0] sm:$0xff]
      %v1181 = vld [vmem:[%s3 + $0x6f8] sm:$0xff]
      %v1182 = vld [vmem:[%s3 + $0x700] sm:$0xff]
      %v1183 = vld [vmem:[%s3 + $0x708] sm:$0xff]
      %v1184 = vld [vmem:[%s3 + $0x710] sm:$0xff]
      %v1185 = vld [vmem:[%s3 + $0x718] sm:$0xff]
      %v1186 = vld [vmem:[%s3 + $0x720] sm:$0xff]
      %v1187 = vld [vmem:[%s3 + $0x728] sm:$0xff]
      %v1188 = vld [vmem:[%s3 + $0x730] sm:$0xff]
      %v1189 = vld [vmem:[%s3 + $0x738] sm:$0xff]
      %v1190 = vld [vmem:[%s3 + $0x740] sm:$0xff]
      %v1191 = vld [vmem:[%s3 + $0x748] sm:$0xff]
      %v1192 = vld [vmem:[%s3 + $0x750] sm:$0xff]
      %v1193 = vld [vmem:[%s3 + $0x758] sm:$0xff]
      %v1194 = vld [vmem:[%s3 + $0x760] sm:$0xff]
      %v1195 = vld [vmem:[%s3 + $0x768] sm:$0xff]
      %v1196 = vld [vmem:[%s3 + $0x770] sm:$0xff]
      %v1197 = vld [vmem:[%s3 + $0x778] sm:$0xff]
      %v1198 = vld [vmem:[%s3 + $0x780] sm:$0xff]
      %v1199 = vld [vmem:[%s3 + $0x788] sm:$0xff]
      %v1200 = vld [vmem:[%s3 + $0x790] sm:$0xff]
      %v1201 = vld [vmem:[%s3 + $0x798] sm:$0xff]
      %v1202 = vld [vmem:[%s3 + $0x7a0] sm:$0xff]
      %v1203 = vld [vmem:[%s3 + $0x7a8] sm:$0xff]
      %v1204 = vld [vmem:[%s3 + $0x7b0] sm:$0xff]
      %v1205 = vld [vmem:[%s3 + $0x7b8] sm:$0xff]
      %v1206 = vld [vmem:[%s3 + $0x7c0] sm:$0xff]
      %v1207 = vld [vmem:[%s3 + $0x7c8] sm:$0xff]
      %v1208 = vld [vmem:[%s3 + $0x7d0] sm:$0xff]
      %v1209 = vld [vmem:[%s3 + $0x7d8] sm:$0xff]
      %v1210 = vld [vmem:[%s3 + $0x7e0] sm:$0xff]
      %v1211 = vld [vmem:[%s3 + $0x7e8] sm:$0xff]
      %v1212 = vld [vmem:[%s3 + $0x7f0] sm:$0xff]
      %v1213 = vld [vmem:[%s3 + $0x7f8] sm:$0xff]
      %v1214 = vld [vmem:[%s3 + $0x800] sm:$0xff]
      %v1215 = vld [vmem:[%s3 + $0x808] sm:$0xff]
      %v1216 = vld [vmem:[%s3 + $0x810] sm:$0xff]
      %v1217 = vld [vmem:[%s3 + $0x818] sm:$0xff]
      %v1218 = vld [vmem:[%s3 + $0x820] sm:$0xff]
      %v1219 = vld [vmem:[%s3 + $0x828] sm:$0xff]
      %v1220 = vld [vmem:[%s3 + $0x830] sm:$0xff]
      %v1221 = vld [vmem:[%s3 + $0x838] sm:$0xff]
      %v1222 = vld [vmem:[%s3 + $0x840] sm:$0xff]
      %v1223 = vld [vmem:[%s3 + $0x848] sm:$0xff]
      %v1224 = vld [vmem:[%s3 + $0x850] sm:$0xff]
      %v1225 = vld [vmem:[%s3 + $0x858] sm:$0xff]
      %v1226 = vld [vmem:[%s3 + $0x860] sm:$0xff]
      %v1227 = vld [vmem:[%s3 + $0x868] sm:$0xff]
      %v1228 = vld [vmem:[%s3 + $0x870] sm:$0xff]
      %v1229 = vld [vmem:[%s3 + $0x878] sm:$0xff]
      %v1230 = vld [vmem:[%s3 + $0x880] sm:$0xff]
      %v1231 = vld [vmem:[%s3 + $0x888] sm:$0xff]
      %v1232 = vld [vmem:[%s3 + $0x890] sm:$0xff]
      %v1233 = vld [vmem:[%s3 + $0x898] sm:$0xff]
      %v1234 = vld [vmem:[%s3 + $0x8a0] sm:$0xff]
      %v1235 = vld [vmem:[%s3 + $0x8a8] sm:$0xff]
      %v1236 = vld [vmem:[%s3 + $0x8b0] sm:$0xff]
      %v1237 = vld [vmem:[%s3 + $0x8b8] sm:$0xff]
      %v1238 = vld [vmem:[%s3 + $0x8c0] sm:$0xff]
      %v1239 = vld [vmem:[%s3 + $0x8c8] sm:$0xff]
      %v1240 = vld [vmem:[%s3 + $0x8d0] sm:$0xff]
      %v1241 = vld [vmem:[%s3 + $0x8d8] sm:$0xff]
      %v1242 = vld [vmem:[%s3 + $0x8e0] sm:$0xff]
      %v1243 = vld [vmem:[%s3 + $0x8e8] sm:$0xff]
      %v1244 = vld [vmem:[%s3 + $0x8f0] sm:$0xff]
      %v1245 = vld [vmem:[%s3 + $0x8f8] sm:$0xff]
      %v1246 = vld [vmem:[#allocation2] sm:$0xfe]
      %v1247 = vld [vmem:[#allocation2 + $0x8] sm:$0xfe]
      %v1248 = vld [vmem:[#allocation2 + $0x10] sm:$0xfe]
      %v1249 = vld [vmem:[#allocation2 + $0x18] sm:$0xfe]
      %v1250 = vld [vmem:[#allocation2 + $0x20] sm:$0xfe]
      %v1251 = vld [vmem:[#allocation2 + $0x50] sm:$0x1]
      %v1252 = vld [vmem:[#allocation2 + $0x58] sm:$0x1]
      %v1253 = vld [vmem:[#allocation2 + $0x60] sm:$0x1]
      %v1254 = vld [vmem:[#allocation2 + $0x68] sm:$0x1]
      %v1255 = vld [vmem:[#allocation2 + $0x70] sm:$0x1]
      %v1256 = vld [vmem:[#allocation2 + $0x78] sm:$0xfe]
      %v1257 = vld [vmem:[#allocation2 + $0x80] sm:$0xfe]
      %v1258 = vld [vmem:[#allocation2 + $0x88] sm:$0xfe]
      %v1259 = vld [vmem:[#allocation2 + $0x90] sm:$0xfe]
      %v1260 = vld [vmem:[#allocation2 + $0x98] sm:$0xfe]
      %v1261 = vld [vmem:[#allocation2 + $0xc8] sm:$0x1]
      %v1262 = vld [vmem:[#allocation2 + $0xd0] sm:$0x1]
      %v1263 = vld [vmem:[#allocation2 + $0xd8] sm:$0x1]
      %v1264 = vld [vmem:[#allocation2 + $0xe0] sm:$0x1]
      %v1265 = vld [vmem:[#allocation2 + $0xe8] sm:$0x1]
      %v1266 = vld [vmem:[#allocation2 + $0xf0] sm:$0xfe]
      %v1267 = vld [vmem:[#allocation2 + $0xf8] sm:$0xfe]
      %v1268 = vld [vmem:[#allocation2 + $0x100] sm:$0xfe]
      %v1269 = vld [vmem:[#allocation2 + $0x108] sm:$0xfe]
      %v1270 = vld [vmem:[#allocation2 + $0x110] sm:$0xfe]
      %v1271 = vld [vmem:[#allocation2 + $0x140] sm:$0x1]
      %v1272 = vld [vmem:[#allocation2 + $0x148] sm:$0x1]
      %v1273 = vld [vmem:[#allocation2 + $0x150] sm:$0x1]
      %v1274 = vld [vmem:[#allocation2 + $0x158] sm:$0x1]
      %v1275 = vld [vmem:[#allocation2 + $0x160] sm:$0x1]
      %vm1321 = vcmask 1046528
      %v1322 = vrot.slane %v1246, 1
      %v1323 = vrot.slane %v933, 1
      %v1324 = vsel %vm1321, %v1322, %v1323
      %v1325 = vrot.slane %v1247, 1
      %v1326 = vrot.slane %v934, 1
      %v1327 = vsel %vm1321, %v1325, %v1326
      %v1328 = vrot.slane %v1248, 1
      %v1329 = vrot.slane %v935, 1
      %v1330 = vsel %vm1321, %v1328, %v1329
      %v1331 = vrot.slane %v1249, 1
      %v1332 = vrot.slane %v936, 1
      %v1333 = vsel %vm1321, %v1331, %v1332
      %v1334 = vrot.slane %v1250, 1
      %v1335 = vrot.slane %v937, 1
      %v1336 = vsel %vm1321, %v1334, %v1335
      %v1337 = vrot.slane %v1251, 1
      %v1338 = vsel %vm1321, %v1323, %v1337
      %v1339 = vrot.slane %v1252, 1
      %v1340 = vsel %vm1321, %v1326, %v1339
      %v1341 = vrot.slane %v1253, 1
      %v1342 = vsel %vm1321, %v1329, %v1341
      %v1343 = vrot.slane %v1254, 1
      %v1344 = vsel %vm1321, %v1332, %v1343
      %v1345 = vrot.slane %v1255, 1
      %v1346 = vsel %vm1321, %v1335, %v1345
      %v1347 = vrot.slane %v1256, 1
      %v1348 = vrot.slane %v943, 1
      %v1349 = vsel %vm1321, %v1347, %v1348
      %v1350 = vrot.slane %v1257, 1
      %v1351 = vrot.slane %v944, 1
      %v1352 = vsel %vm1321, %v1350, %v1351
      %v1353 = vrot.slane %v1258, 1
      %v1354 = vrot.slane %v945, 1
      %v1355 = vsel %vm1321, %v1353, %v1354
      %v1356 = vrot.slane %v1259, 1
      %v1357 = vrot.slane %v946, 1
      %v1358 = vsel %vm1321, %v1356, %v1357
      %v1359 = vrot.slane %v1260, 1
      %v1360 = vrot.slane %v947, 1
      %v1361 = vsel %vm1321, %v1359, %v1360
      %v1362 = vrot.slane %v1261, 1
      %v1363 = vsel %vm1321, %v1348, %v1362
      %v1364 = vrot.slane %v1262, 1
      %v1365 = vsel %vm1321, %v1351, %v1364
      %v1366 = vrot.slane %v1263, 1
      %v1367 = vsel %vm1321, %v1354, %v1366
      %v1368 = vrot.slane %v1264, 1
      %v1369 = vsel %vm1321, %v1357, %v1368
      %v1370 = vrot.slane %v1265, 1
      %v1371 = vsel %vm1321, %v1360, %v1370
      %v1372 = vrot.slane %v1266, 1
      %v1373 = vrot.slane %v953, 1
      %v1374 = vsel %vm1321, %v1372, %v1373
      %v1375 = vrot.slane %v1267, 1
      %v1376 = vrot.slane %v954, 1
      %v1377 = vsel %vm1321, %v1375, %v1376
      %v1378 = vrot.slane %v1268, 1
      %v1379 = vrot.slane %v955, 1
      %v1380 = vsel %vm1321, %v1378, %v1379
      %v1381 = vrot.slane %v1269, 1
      %v1382 = vrot.slane %v956, 1
      %v1383 = vsel %vm1321, %v1381, %v1382
      %v1384 = vrot.slane %v1270, 1
      %v1385 = vrot.slane %v957, 1
      %v1386 = vsel %vm1321, %v1384, %v1385
      %v1387 = vrot.slane %v1271, 1
      %v1388 = vsel %vm1321, %v1373, %v1387
      %v1389 = vrot.slane %v1272, 1
      %v1390 = vsel %vm1321, %v1376, %v1389
      %v1391 = vrot.slane %v1273, 1
      %v1392 = vsel %vm1321, %v1379, %v1391
      %v1393 = vrot.slane %v1274, 1
      %v1394 = vsel %vm1321, %v1382, %v1393
      %v1395 = vrot.slane %v1275, 1
      %v1396 = vsel %vm1321, %v1385, %v1395
      %s1421 = scalar_lea.vmem %s3, 2304
      %v1422 = vld [vmem:[%s1421] sm:$0xff]
      %v1423 = vld [vmem:[%s1421 + $0x8] sm:$0xff]
      %v1424 = vld [vmem:[%s1421 + $0x10] sm:$0xff]
      %v1425 = vld [vmem:[%s1421 + $0x18] sm:$0xff]
      %v1426 = vld [vmem:[%s1421 + $0x20] sm:$0xff]
      %v1427 = vld [vmem:[%s1421 + $0x28] sm:$0xff]
      %v1428 = vld [vmem:[%s1421 + $0x30] sm:$0xff]
      %v1429 = vld [vmem:[%s1421 + $0x38] sm:$0xff]
      %v1430 = vld [vmem:[%s1421 + $0x40] sm:$0xff]
      %v1431 = vld [vmem:[%s1421 + $0x48] sm:$0xff]
      %v1432 = vld [vmem:[%s1421 + $0x50] sm:$0xff]
      %v1433 = vld [vmem:[%s1421 + $0x58] sm:$0xff]
      %v1434 = vld [vmem:[%s1421 + $0x60] sm:$0xff]
      %v1435 = vld [vmem:[%s1421 + $0x68] sm:$0xff]
      %v1436 = vld [vmem:[%s1421 + $0x70] sm:$0xff]
      %v1437 = vld [vmem:[%s1421 + $0x78] sm:$0xff]
      %v1438 = vld [vmem:[%s1421 + $0x80] sm:$0xff]
      %v1439 = vld [vmem:[%s1421 + $0x88] sm:$0xff]
      %v1440 = vld [vmem:[%s1421 + $0x90] sm:$0xff]
      %v1441 = vld [vmem:[%s1421 + $0x98] sm:$0xff]
      %v1442 = vld [vmem:[%s1421 + $0xa0] sm:$0xff]
      %v1443 = vld [vmem:[%s1421 + $0xa8] sm:$0xff]
      %v1444 = vld [vmem:[%s1421 + $0xb0] sm:$0xff]
      %v1445 = vld [vmem:[%s1421 + $0xb8] sm:$0xff]
      %v1446 = vld [vmem:[%s1421 + $0xc0] sm:$0xff]
      %v1447 = vld [vmem:[%s1421 + $0xc8] sm:$0xff]
      %v1448 = vld [vmem:[%s1421 + $0xd0] sm:$0xff]
      %v1449 = vld [vmem:[%s1421 + $0xd8] sm:$0xff]
      %v1450 = vld [vmem:[%s1421 + $0xe0] sm:$0xff]
      %v1451 = vld [vmem:[%s1421 + $0xe8] sm:$0xff]
      %v1452 = vld [vmem:[%s1421 + $0xf0] sm:$0xff]
      %v1453 = vld [vmem:[%s1421 + $0xf8] sm:$0xff]
      %v1454 = vld [vmem:[%s1421 + $0x100] sm:$0xff]
      %v1455 = vld [vmem:[%s1421 + $0x108] sm:$0xff]
      %v1456 = vld [vmem:[%s1421 + $0x110] sm:$0xff]
      %v1457 = vld [vmem:[%s1421 + $0x118] sm:$0xff]
      %v1458 = vld [vmem:[%s1421 + $0x120] sm:$0xff]
      %v1459 = vld [vmem:[%s1421 + $0x128] sm:$0xff]
      %v1460 = vld [vmem:[%s1421 + $0x130] sm:$0xff]
      %v1461 = vld [vmem:[%s1421 + $0x138] sm:$0xff]
      %v1462 = vld [vmem:[%s1421 + $0x140] sm:$0xff]
      %v1463 = vld [vmem:[%s1421 + $0x148] sm:$0xff]
      %v1464 = vld [vmem:[%s1421 + $0x150] sm:$0xff]
      %v1465 = vld [vmem:[%s1421 + $0x158] sm:$0xff]
      %v1466 = vld [vmem:[%s1421 + $0x160] sm:$0xff]
      %v1467 = vld [vmem:[%s1421 + $0x168] sm:$0xff]
      %v1468 = vld [vmem:[%s1421 + $0x170] sm:$0xff]
      %v1469 = vld [vmem:[%s1421 + $0x178] sm:$0xff]
      %v1470 = vld [vmem:[%s1421 + $0x180] sm:$0xff]
      %v1471 = vld [vmem:[%s1421 + $0x188] sm:$0xff]
      %v1472 = vld [vmem:[%s1421 + $0x190] sm:$0xff]
      %v1473 = vld [vmem:[%s1421 + $0x198] sm:$0xff]
      %v1474 = vld [vmem:[%s1421 + $0x1a0] sm:$0xff]
      %v1475 = vld [vmem:[%s1421 + $0x1a8] sm:$0xff]
      %v1476 = vld [vmem:[%s1421 + $0x1b0] sm:$0xff]
      %v1477 = vld [vmem:[%s1421 + $0x1b8] sm:$0xff]
      %v1478 = vld [vmem:[%s1421 + $0x1c0] sm:$0xff]
      %v1479 = vld [vmem:[%s1421 + $0x1c8] sm:$0xff]
      %v1480 = vld [vmem:[%s1421 + $0x1d0] sm:$0xff]
      %v1481 = vld [vmem:[%s1421 + $0x1d8] sm:$0xff]
      %v1482 = vld [vmem:[%s1421 + $0x1e0] sm:$0xff]
      %v1483 = vld [vmem:[%s1421 + $0x1e8] sm:$0xff]
      %v1484 = vld [vmem:[%s1421 + $0x1f0] sm:$0xff]
      %v1485 = vld [vmem:[%s1421 + $0x1f8] sm:$0xff]
      %v1486 = vld [vmem:[%s1421 + $0x200] sm:$0xff]
      %v1487 = vld [vmem:[%s1421 + $0x208] sm:$0xff]
      %v1488 = vld [vmem:[%s1421 + $0x210] sm:$0xff]
      %v1489 = vld [vmem:[%s1421 + $0x218] sm:$0xff]
      %v1490 = vld [vmem:[%s1421 + $0x220] sm:$0xff]
      %v1491 = vld [vmem:[%s1421 + $0x228] sm:$0xff]
      %v1492 = vld [vmem:[%s1421 + $0x230] sm:$0xff]
      %v1493 = vld [vmem:[%s1421 + $0x238] sm:$0xff]
      %v1494 = vld [vmem:[%s1421 + $0x240] sm:$0xff]
      %v1495 = vld [vmem:[%s1421 + $0x248] sm:$0xff]
      %v1496 = vld [vmem:[%s1421 + $0x250] sm:$0xff]
      %v1497 = vld [vmem:[%s1421 + $0x258] sm:$0xff]
      %v1498 = vld [vmem:[%s1421 + $0x260] sm:$0xff]
      %v1499 = vld [vmem:[%s1421 + $0x268] sm:$0xff]
      %v1500 = vld [vmem:[%s1421 + $0x270] sm:$0xff]
      %v1501 = vld [vmem:[%s1421 + $0x278] sm:$0xff]
      %v1502 = vld [vmem:[%s1421 + $0x280] sm:$0xff]
      %v1503 = vld [vmem:[%s1421 + $0x288] sm:$0xff]
      %v1504 = vld [vmem:[%s1421 + $0x290] sm:$0xff]
      %v1505 = vld [vmem:[%s1421 + $0x298] sm:$0xff]
      %v1506 = vld [vmem:[%s1421 + $0x2a0] sm:$0xff]
      %v1507 = vld [vmem:[%s1421 + $0x2a8] sm:$0xff]
      %v1508 = vld [vmem:[%s1421 + $0x2b0] sm:$0xff]
      %v1509 = vld [vmem:[%s1421 + $0x2b8] sm:$0xff]
      %v1510 = vld [vmem:[%s1421 + $0x2c0] sm:$0xff]
      %v1511 = vld [vmem:[%s1421 + $0x2c8] sm:$0xff]
      %v1512 = vld [vmem:[%s1421 + $0x2d0] sm:$0xff]
      %v1513 = vld [vmem:[%s1421 + $0x2d8] sm:$0xff]
      %v1514 = vld [vmem:[%s1421 + $0x2e0] sm:$0xff]
      %v1515 = vld [vmem:[%s1421 + $0x2e8] sm:$0xff]
      %v1516 = vld [vmem:[%s1421 + $0x2f0] sm:$0xff]
      %v1517 = vld [vmem:[%s1421 + $0x2f8] sm:$0xff]
      %v1518 = vld [vmem:[%s1421 + $0x300] sm:$0xff]
      %v1519 = vld [vmem:[%s1421 + $0x308] sm:$0xff]
      %v1520 = vld [vmem:[%s1421 + $0x310] sm:$0xff]
      %v1521 = vld [vmem:[%s1421 + $0x318] sm:$0xff]
      %v1522 = vld [vmem:[%s1421 + $0x320] sm:$0xff]
      %v1523 = vld [vmem:[%s1421 + $0x328] sm:$0xff]
      %v1524 = vld [vmem:[%s1421 + $0x330] sm:$0xff]
      %v1525 = vld [vmem:[%s1421 + $0x338] sm:$0xff]
      %v1526 = vld [vmem:[%s1421 + $0x340] sm:$0xff]
      %v1527 = vld [vmem:[%s1421 + $0x348] sm:$0xff]
      %v1528 = vld [vmem:[%s1421 + $0x350] sm:$0xff]
      %v1529 = vld [vmem:[%s1421 + $0x358] sm:$0xff]
      %v1530 = vld [vmem:[%s1421 + $0x360] sm:$0xff]
      %v1531 = vld [vmem:[%s1421 + $0x368] sm:$0xff]
      %v1532 = vld [vmem:[%s1421 + $0x370] sm:$0xff]
      %v1533 = vld [vmem:[%s1421 + $0x378] sm:$0xff]
      %v1534 = vld [vmem:[%s1421 + $0x380] sm:$0xff]
      %v1535 = vld [vmem:[%s1421 + $0x388] sm:$0xff]
      %v1536 = vld [vmem:[%s1421 + $0x390] sm:$0xff]
      %v1537 = vld [vmem:[%s1421 + $0x398] sm:$0xff]
      %v1538 = vld [vmem:[%s1421 + $0x3a0] sm:$0xff]
      %v1539 = vld [vmem:[%s1421 + $0x3a8] sm:$0xff]
      %v1540 = vld [vmem:[%s1421 + $0x3b0] sm:$0xff]
      %v1541 = vld [vmem:[%s1421 + $0x3b8] sm:$0xff]
      %v1542 = vld [vmem:[%s1421 + $0x3c0] sm:$0xff]
      %v1543 = vld [vmem:[%s1421 + $0x3c8] sm:$0xff]
      %v1544 = vld [vmem:[%s1421 + $0x3d0] sm:$0xff]
      %v1545 = vld [vmem:[%s1421 + $0x3d8] sm:$0xff]
      %v1546 = vld [vmem:[%s1421 + $0x3e0] sm:$0xff]
      %v1547 = vld [vmem:[%s1421 + $0x3e8] sm:$0xff]
      %v1548 = vld [vmem:[%s1421 + $0x3f0] sm:$0xff]
      %v1549 = vld [vmem:[%s1421 + $0x3f8] sm:$0xff]
      %v1550 = vld [vmem:[%s1421 + $0x400] sm:$0xff]
      %v1551 = vld [vmem:[%s1421 + $0x408] sm:$0xff]
      %v1552 = vld [vmem:[%s1421 + $0x410] sm:$0xff]
      %v1553 = vld [vmem:[%s1421 + $0x418] sm:$0xff]
      %v1554 = vld [vmem:[%s1421 + $0x420] sm:$0xff]
      %v1555 = vld [vmem:[%s1421 + $0x428] sm:$0xff]
      %v1556 = vld [vmem:[%s1421 + $0x430] sm:$0xff]
      %v1557 = vld [vmem:[%s1421 + $0x438] sm:$0xff]
      %v1558 = vld [vmem:[%s1421 + $0x440] sm:$0xff]
      %v1559 = vld [vmem:[%s1421 + $0x448] sm:$0xff]
      %v1560 = vld [vmem:[%s1421 + $0x450] sm:$0xff]
      %v1561 = vld [vmem:[%s1421 + $0x458] sm:$0xff]
      %v1562 = vld [vmem:[%s1421 + $0x460] sm:$0xff]
      %v1563 = vld [vmem:[%s1421 + $0x468] sm:$0xff]
      %v1564 = vld [vmem:[%s1421 + $0x470] sm:$0xff]
      %v1565 = vld [vmem:[%s1421 + $0x478] sm:$0xff]
      %v1566 = vld [vmem:[%s1421 + $0x480] sm:$0xff]
      %v1567 = vld [vmem:[%s1421 + $0x488] sm:$0xff]
      %v1568 = vld [vmem:[%s1421 + $0x490] sm:$0xff]
      %v1569 = vld [vmem:[%s1421 + $0x498] sm:$0xff]
      %v1570 = vld [vmem:[%s1421 + $0x4a0] sm:$0xff]
      %v1571 = vld [vmem:[%s1421 + $0x4a8] sm:$0xff]
      %v1572 = vld [vmem:[%s1421 + $0x4b0] sm:$0xff]
      %v1573 = vld [vmem:[%s1421 + $0x4b8] sm:$0xff]
      %v1574 = vld [vmem:[%s1421 + $0x4c0] sm:$0xff]
      %v1575 = vld [vmem:[%s1421 + $0x4c8] sm:$0xff]
      %v1576 = vld [vmem:[%s1421 + $0x4d0] sm:$0xff]
      %v1577 = vld [vmem:[%s1421 + $0x4d8] sm:$0xff]
      %v1578 = vld [vmem:[%s1421 + $0x4e0] sm:$0xff]
      %v1579 = vld [vmem:[%s1421 + $0x4e8] sm:$0xff]
      %v1580 = vld [vmem:[%s1421 + $0x4f0] sm:$0xff]
      %v1581 = vld [vmem:[%s1421 + $0x4f8] sm:$0xff]
      %v1582 = vld [vmem:[%s1421 + $0x500] sm:$0xff]
      %v1583 = vld [vmem:[%s1421 + $0x508] sm:$0xff]
      %v1584 = vld [vmem:[%s1421 + $0x510] sm:$0xff]
      %v1585 = vld [vmem:[%s1421 + $0x518] sm:$0xff]
      %v1586 = vld [vmem:[%s1421 + $0x520] sm:$0xff]
      %v1587 = vld [vmem:[%s1421 + $0x528] sm:$0xff]
      %v1588 = vld [vmem:[%s1421 + $0x530] sm:$0xff]
      %v1589 = vld [vmem:[%s1421 + $0x538] sm:$0xff]
      %v1590 = vld [vmem:[%s1421 + $0x540] sm:$0xff]
      %v1591 = vld [vmem:[%s1421 + $0x548] sm:$0xff]
      %v1592 = vld [vmem:[%s1421 + $0x550] sm:$0xff]
      %v1593 = vld [vmem:[%s1421 + $0x558] sm:$0xff]
      %v1594 = vld [vmem:[%s1421 + $0x560] sm:$0xff]
      %v1595 = vld [vmem:[%s1421 + $0x568] sm:$0xff]
      %v1596 = vld [vmem:[%s1421 + $0x570] sm:$0xff]
      %v1597 = vld [vmem:[%s1421 + $0x578] sm:$0xff]
      %v1598 = vld [vmem:[%s1421 + $0x580] sm:$0xff]
      %v1599 = vld [vmem:[%s1421 + $0x588] sm:$0xff]
      %v1600 = vld [vmem:[%s1421 + $0x590] sm:$0xff]
      %v1601 = vld [vmem:[%s1421 + $0x598] sm:$0xff]
      %v1602 = vld [vmem:[%s1421 + $0x5a0] sm:$0xff]
      %v1603 = vld [vmem:[%s1421 + $0x5a8] sm:$0xff]
      %v1604 = vld [vmem:[%s1421 + $0x5b0] sm:$0xff]
      %v1605 = vld [vmem:[%s1421 + $0x5b8] sm:$0xff]
      %v1606 = vld [vmem:[%s1421 + $0x5c0] sm:$0xff]
      %v1607 = vld [vmem:[%s1421 + $0x5c8] sm:$0xff]
      %v1608 = vld [vmem:[%s1421 + $0x5d0] sm:$0xff]
      %v1609 = vld [vmem:[%s1421 + $0x5d8] sm:$0xff]
      %v1610 = vld [vmem:[%s1421 + $0x5e0] sm:$0xff]
      %v1611 = vld [vmem:[%s1421 + $0x5e8] sm:$0xff]
      %v1612 = vld [vmem:[%s1421 + $0x5f0] sm:$0xff]
      %v1613 = vld [vmem:[%s1421 + $0x5f8] sm:$0xff]
      %v1614 = vld [vmem:[%s1421 + $0x600] sm:$0xff]
      %v1615 = vld [vmem:[%s1421 + $0x608] sm:$0xff]
      %v1616 = vld [vmem:[%s1421 + $0x610] sm:$0xff]
      %v1617 = vld [vmem:[%s1421 + $0x618] sm:$0xff]
      %v1618 = vld [vmem:[%s1421 + $0x620] sm:$0xff]
      %v1619 = vld [vmem:[%s1421 + $0x628] sm:$0xff]
      %v1620 = vld [vmem:[%s1421 + $0x630] sm:$0xff]
      %v1621 = vld [vmem:[%s1421 + $0x638] sm:$0xff]
      %v1622 = vld [vmem:[%s1421 + $0x640] sm:$0xff]
      %v1623 = vld [vmem:[%s1421 + $0x648] sm:$0xff]
      %v1624 = vld [vmem:[%s1421 + $0x650] sm:$0xff]
      %v1625 = vld [vmem:[%s1421 + $0x658] sm:$0xff]
      %v1626 = vld [vmem:[%s1421 + $0x660] sm:$0xff]
      %v1627 = vld [vmem:[%s1421 + $0x668] sm:$0xff]
      %v1628 = vld [vmem:[%s1421 + $0x670] sm:$0xff]
      %v1629 = vld [vmem:[%s1421 + $0x678] sm:$0xff]
      %v1630 = vld [vmem:[%s1421 + $0x680] sm:$0xff]
      %v1631 = vld [vmem:[%s1421 + $0x688] sm:$0xff]
      %v1632 = vld [vmem:[%s1421 + $0x690] sm:$0xff]
      %v1633 = vld [vmem:[%s1421 + $0x698] sm:$0xff]
      %v1634 = vld [vmem:[%s1421 + $0x6a0] sm:$0xff]
      %v1635 = vld [vmem:[%s1421 + $0x6a8] sm:$0xff]
      %v1636 = vld [vmem:[%s1421 + $0x6b0] sm:$0xff]
      %v1637 = vld [vmem:[%s1421 + $0x6b8] sm:$0xff]
      %v1638 = vld [vmem:[%s1421 + $0x6c0] sm:$0xff]
      %v1639 = vld [vmem:[%s1421 + $0x6c8] sm:$0xff]
      %v1640 = vld [vmem:[%s1421 + $0x6d0] sm:$0xff]
      %v1641 = vld [vmem:[%s1421 + $0x6d8] sm:$0xff]
      %v1642 = vld [vmem:[%s1421 + $0x6e0] sm:$0xff]
      %v1643 = vld [vmem:[%s1421 + $0x6e8] sm:$0xff]
      %v1644 = vld [vmem:[%s1421 + $0x6f0] sm:$0xff]
      %v1645 = vld [vmem:[%s1421 + $0x6f8] sm:$0xff]
      %v1646 = vld [vmem:[%s1421 + $0x700] sm:$0xff]
      %v1647 = vld [vmem:[%s1421 + $0x708] sm:$0xff]
      %v1648 = vld [vmem:[%s1421 + $0x710] sm:$0xff]
      %v1649 = vld [vmem:[%s1421 + $0x718] sm:$0xff]
      %v1650 = vld [vmem:[%s1421 + $0x720] sm:$0xff]
      %v1651 = vld [vmem:[%s1421 + $0x728] sm:$0xff]
      %v1652 = vld [vmem:[%s1421 + $0x730] sm:$0xff]
      %v1653 = vld [vmem:[%s1421 + $0x738] sm:$0xff]
      %v1654 = vld [vmem:[%s1421 + $0x740] sm:$0xff]
      %v1655 = vld [vmem:[%s1421 + $0x748] sm:$0xff]
      %v1656 = vld [vmem:[%s1421 + $0x750] sm:$0xff]
      %v1657 = vld [vmem:[%s1421 + $0x758] sm:$0xff]
      %v1658 = vld [vmem:[%s1421 + $0x760] sm:$0xff]
      %v1659 = vld [vmem:[%s1421 + $0x768] sm:$0xff]
      %v1660 = vld [vmem:[%s1421 + $0x770] sm:$0xff]
      %v1661 = vld [vmem:[%s1421 + $0x778] sm:$0xff]
      %v1662 = vld [vmem:[%s1421 + $0x780] sm:$0xff]
      %v1663 = vld [vmem:[%s1421 + $0x788] sm:$0xff]
      %v1664 = vld [vmem:[%s1421 + $0x790] sm:$0xff]
      %v1665 = vld [vmem:[%s1421 + $0x798] sm:$0xff]
      %v1666 = vld [vmem:[%s1421 + $0x7a0] sm:$0xff]
      %v1667 = vld [vmem:[%s1421 + $0x7a8] sm:$0xff]
      %v1668 = vld [vmem:[%s1421 + $0x7b0] sm:$0xff]
      %v1669 = vld [vmem:[%s1421 + $0x7b8] sm:$0xff]
      %v1670 = vld [vmem:[%s1421 + $0x7c0] sm:$0xff]
      %v1671 = vld [vmem:[%s1421 + $0x7c8] sm:$0xff]
      %v1672 = vld [vmem:[%s1421 + $0x7d0] sm:$0xff]
      %v1673 = vld [vmem:[%s1421 + $0x7d8] sm:$0xff]
      %v1674 = vld [vmem:[%s1421 + $0x7e0] sm:$0xff]
      %v1675 = vld [vmem:[%s1421 + $0x7e8] sm:$0xff]
      %v1676 = vld [vmem:[%s1421 + $0x7f0] sm:$0xff]
      %v1677 = vld [vmem:[%s1421 + $0x7f8] sm:$0xff]
      %v1678 = vld [vmem:[%s1421 + $0x800] sm:$0xff]
      %v1679 = vld [vmem:[%s1421 + $0x808] sm:$0xff]
      %v1680 = vld [vmem:[%s1421 + $0x810] sm:$0xff]
      %v1681 = vld [vmem:[%s1421 + $0x818] sm:$0xff]
      %v1682 = vld [vmem:[%s1421 + $0x820] sm:$0xff]
      %v1683 = vld [vmem:[%s1421 + $0x828] sm:$0xff]
      %v1684 = vld [vmem:[%s1421 + $0x830] sm:$0xff]
      %v1685 = vld [vmem:[%s1421 + $0x838] sm:$0xff]
      %v1686 = vld [vmem:[%s1421 + $0x840] sm:$0xff]
      %v1687 = vld [vmem:[%s1421 + $0x848] sm:$0xff]
      %v1688 = vld [vmem:[%s1421 + $0x850] sm:$0xff]
      %v1689 = vld [vmem:[%s1421 + $0x858] sm:$0xff]
      %v1690 = vld [vmem:[%s1421 + $0x860] sm:$0xff]
      %v1691 = vld [vmem:[%s1421 + $0x868] sm:$0xff]
      %v1692 = vld [vmem:[%s1421 + $0x870] sm:$0xff]
      %v1693 = vld [vmem:[%s1421 + $0x878] sm:$0xff]
      %v1694 = vld [vmem:[%s1421 + $0x880] sm:$0xff]
      %v1695 = vld [vmem:[%s1421 + $0x888] sm:$0xff]
      %v1696 = vld [vmem:[%s1421 + $0x890] sm:$0xff]
      %v1697 = vld [vmem:[%s1421 + $0x898] sm:$0xff]
      %v1698 = vld [vmem:[%s1421 + $0x8a0] sm:$0xff]
      %v1699 = vld [vmem:[%s1421 + $0x8a8] sm:$0xff]
      %v1700 = vld [vmem:[%s1421 + $0x8b0] sm:$0xff]
      %v1701 = vld [vmem:[%s1421 + $0x8b8] sm:$0xff]
      %v1702 = vld [vmem:[%s1421 + $0x8c0] sm:$0xff]
      %v1703 = vld [vmem:[%s1421 + $0x8c8] sm:$0xff]
      %v1704 = vld [vmem:[%s1421 + $0x8d0] sm:$0xff]
      %v1705 = vld [vmem:[%s1421 + $0x8d8] sm:$0xff]
      %v1706 = vld [vmem:[%s1421 + $0x8e0] sm:$0xff]
      %v1707 = vld [vmem:[%s1421 + $0x8e8] sm:$0xff]
      %v1708 = vld [vmem:[%s1421 + $0x8f0] sm:$0xff]
      %v1709 = vld [vmem:[%s1421 + $0x8f8] sm:$0xff]
      %v1710 = vsel %vm629, %v1336, 0
      %v1712 = vsel %vm629, %v1346, 0
      %v1714 = vsel %vm629, %v1361, 0
      %v1716 = vsel %vm629, %v1371, 0
      %v1718 = vsel %vm629, %v1386, 0
      %v1720 = vsel %vm629, %v1396, 0
      %1722 = vmatprep.subr.mxu0 %v1483
      %1723 = vmatpush1.msra.mxu0 %v1482
      %1724 = vmatprep.subr.mxu0 %v1479
      %1725 = vmatpush1.msra.mxu0 %v1478
      %1726 = vmatprep.subr.mxu0 %v1475
      %1727 = vmatpush1.msra.mxu0 %v1474
      %1728 = vmatprep.subr.mxu0 %v1471
      %1729 = vmatpush1.msra.mxu0 %v1470
      %1730 = vmatprep.subr.mxu0 %v1467
      %1731 = vmatpush1.msra.mxu0 %v1466
      %1732 = vmatprep.subr.mxu0 %v1463
      %1733 = vmatpush1.msra.mxu0 %v1462
      %1734 = vmatprep.subr.mxu0 %v1459
      %1735 = vmatpush1.msra.mxu0 %v1458
      %1736 = vmatprep.subr.mxu0 %v1455
      %1737 = vmatpush1.msra.mxu0 %v1454
      %1738 = vmatprep.subr.mxu0 %v1451
      %1739 = vmatpush1.msra.mxu0 %v1450
      %1740 = vmatprep.subr.mxu0 %v1447
      %1741 = vmatpush1.msra.mxu0 %v1446
      %1742 = vmatprep.subr.mxu0 %v1443
      %1743 = vmatpush1.msra.mxu0 %v1442
      %1744 = vmatprep.subr.mxu0 %v1439
      %1745 = vmatpush1.msra.mxu0 %v1438
      %1746 = vmatprep.subr.mxu0 %v1435
      %1747 = vmatpush1.msra.mxu0 %v1434
      %1748 = vmatprep.subr.mxu0 %v1431
      %1749 = vmatpush1.msra.mxu0 %v1430
      %1750 = vmatprep.subr.mxu0 %v1427
      %1751 = vmatpush1.msra.mxu0 %v1426
      %1752 = vmatprep.subr.mxu0 %v1423
      %1753 = vmatpush1.msra.mxu0 %v1422
      %1754 = vmatprep.subr.mxu0 %v1547
      %1755 = vmatpush2.msra.mxu0 %v1546
      %1756 = vmatprep.subr.mxu0 %v1543
      %1757 = vmatpush2.msra.mxu0 %v1542
      %1758 = vmatprep.subr.mxu0 %v1539
      %1759 = vmatpush2.msra.mxu0 %v1538
      %1760 = vmatprep.subr.mxu0 %v1535
      %1761 = vmatpush2.msra.mxu0 %v1534
      %1762 = vmatprep.subr.mxu0 %v1531
      %1763 = vmatpush2.msra.mxu0 %v1530
      %1764 = vmatprep.subr.mxu0 %v1527
      %1765 = vmatpush2.msra.mxu0 %v1526
      %1766 = vmatprep.subr.mxu0 %v1523
      %1767 = vmatpush2.msra.mxu0 %v1522
      %1768 = vmatprep.subr.mxu0 %v1519
      %1769 = vmatpush2.msra.mxu0 %v1518
      %1770 = vmatprep.subr.mxu0 %v1515
      %1771 = vmatpush2.msra.mxu0 %v1514
      %1772 = vmatprep.subr.mxu0 %v1511
      %1773 = vmatpush2.msra.mxu0 %v1510
      %1774 = vmatprep.subr.mxu0 %v1507
      %1775 = vmatpush2.msra.mxu0 %v1506
      %1776 = vmatprep.subr.mxu0 %v1503
      %1777 = vmatpush2.msra.mxu0 %v1502
      %1778 = vmatprep.subr.mxu0 %v1499
      %1779 = vmatpush2.msra.mxu0 %v1498
      %1780 = vmatprep.subr.mxu0 %v1495
      %1781 = vmatpush2.msra.mxu0 %v1494
      %1782 = vmatprep.subr.mxu0 %v1491
      %1783 = vmatpush2.msra.mxu0 %v1490
      %1784 = vmatprep.subr.mxu0 %v1487
      %1785 = vmatpush2.msra.mxu0 %v1486
      %1786 = vmatprep.mubr.f32.mxu0 %v1327
      %1787 = vmatmul.mubr.f32.gmra.mxu0 %v1324
      %v1788 = vpop.f32.mrf.mxu0
      %v1789 = vadd.f32 0.0, %v1788
      %v1790 = vpop.f32.mrf.mxu0
      %v1791 = vadd.f32 0.0, %v1790
      %1792 = vmatprep.mubr.f32.mxu0 %v1340
      %1793 = vmatmul.mubr.f32.gmra.mxu0 %v1338
      %v1794 = vpop.f32.mrf.mxu0
      %v1795 = vadd.f32 0.0, %v1794
      %v1796 = vpop.f32.mrf.mxu0
      %v1797 = vadd.f32 0.0, %v1796
      %1798 = vmatprep.mubr.f32.mxu0 %v1352
      %1799 = vmatmul.mubr.f32.gmra.mxu0 %v1349
      %v1800 = vpop.f32.mrf.mxu0
      %v1801 = vadd.f32 0.0, %v1800
      %v1802 = vpop.f32.mrf.mxu0
      %v1803 = vadd.f32 0.0, %v1802
      %1804 = vmatprep.mubr.f32.mxu0 %v1365
      %1805 = vmatmul.mubr.f32.gmra.mxu0 %v1363
      %v1806 = vpop.f32.mrf.mxu0
      %v1807 = vadd.f32 0.0, %v1806
      %v1808 = vpop.f32.mrf.mxu0
      %v1809 = vadd.f32 0.0, %v1808
      %1810 = vmatprep.mubr.f32.mxu0 %v1377
      %1811 = vmatmul.mubr.f32.gmra.mxu0 %v1374
      %v1812 = vpop.f32.mrf.mxu0
      %v1813 = vadd.f32 0.0, %v1812
      %v1814 = vpop.f32.mrf.mxu0
      %v1815 = vadd.f32 0.0, %v1814
      %1816 = vmatprep.mubr.f32.mxu0 %v1390
      %1817 = vmatmul.mubr.f32.gmra.mxu0 %v1388
      %v1818 = vpop.f32.mrf.mxu0
      %v1819 = vadd.f32 0.0, %v1818
      %v1820 = vpop.f32.mrf.mxu0
      %v1821 = vadd.f32 0.0, %v1820
      %1822 = vdwg.mxu0
      %1823 = vmatprep.subr.mxu0 %v1611
      %1824 = vmatpush1.msra.mxu0 %v1610
      %1825 = vmatprep.subr.mxu0 %v1607
      %1826 = vmatpush1.msra.mxu0 %v1606
      %1827 = vmatprep.subr.mxu0 %v1603
      %1828 = vmatpush1.msra.mxu0 %v1602
      %1829 = vmatprep.subr.mxu0 %v1599
      %1830 = vmatpush1.msra.mxu0 %v1598
      %1831 = vmatprep.subr.mxu0 %v1595
      %1832 = vmatpush1.msra.mxu0 %v1594
      %1833 = vmatprep.subr.mxu0 %v1591
      %1834 = vmatpush1.msra.mxu0 %v1590
      %1835 = vmatprep.subr.mxu0 %v1587
      %1836 = vmatpush1.msra.mxu0 %v1586
      %1837 = vmatprep.subr.mxu0 %v1583
      %1838 = vmatpush1.msra.mxu0 %v1582
      %1839 = vmatprep.subr.mxu0 %v1579
      %1840 = vmatpush1.msra.mxu0 %v1578
      %1841 = vmatprep.subr.mxu0 %v1575
      %1842 = vmatpush1.msra.mxu0 %v1574
      %1843 = vmatprep.subr.mxu0 %v1571
      %1844 = vmatpush1.msra.mxu0 %v1570
      %1845 = vmatprep.subr.mxu0 %v1567
      %1846 = vmatpush1.msra.mxu0 %v1566
      %1847 = vmatprep.subr.mxu0 %v1563
      %1848 = vmatpush1.msra.mxu0 %v1562
      %1849 = vmatprep.subr.mxu0 %v1559
      %1850 = vmatpush1.msra.mxu0 %v1558
      %1851 = vmatprep.subr.mxu0 %v1555
      %1852 = vmatpush1.msra.mxu0 %v1554
      %1853 = vmatprep.subr.mxu0 %v1551
      %1854 = vmatpush1.msra.mxu0 %v1550
      %1855 = vmatprep.subr.mxu0 %v1675
      %1856 = vmatpush2.msra.mxu0 %v1674
      %1857 = vmatprep.subr.mxu0 %v1671
      %1858 = vmatpush2.msra.mxu0 %v1670
      %1859 = vmatprep.subr.mxu0 %v1667
      %1860 = vmatpush2.msra.mxu0 %v1666
      %1861 = vmatprep.subr.mxu0 %v1663
      %1862 = vmatpush2.msra.mxu0 %v1662
      %1863 = vmatprep.subr.mxu0 %v1659
      %1864 = vmatpush2.msra.mxu0 %v1658
      %1865 = vmatprep.subr.mxu0 %v1655
      %1866 = vmatpush2.msra.mxu0 %v1654
      %1867 = vmatprep.subr.mxu0 %v1651
      %1868 = vmatpush2.msra.mxu0 %v1650
      %1869 = vmatprep.subr.mxu0 %v1647
      %1870 = vmatpush2.msra.mxu0 %v1646
      %1871 = vmatprep.subr.mxu0 %v1643
      %1872 = vmatpush2.msra.mxu0 %v1642
      %1873 = vmatprep.subr.mxu0 %v1639
      %1874 = vmatpush2.msra.mxu0 %v1638
      %1875 = vmatprep.subr.mxu0 %v1635
      %1876 = vmatpush2.msra.mxu0 %v1634
      %1877 = vmatprep.subr.mxu0 %v1631
      %1878 = vmatpush2.msra.mxu0 %v1630
      %1879 = vmatprep.subr.mxu0 %v1627
      %1880 = vmatpush2.msra.mxu0 %v1626
      %1881 = vmatprep.subr.mxu0 %v1623
      %1882 = vmatpush2.msra.mxu0 %v1622
      %1883 = vmatprep.subr.mxu0 %v1619
      %1884 = vmatpush2.msra.mxu0 %v1618
      %1885 = vmatprep.subr.mxu0 %v1615
      %1886 = vmatpush2.msra.mxu0 %v1614
      %1887 = vmatprep.mubr.f32.mxu0 %v1333
      %1888 = vmatmul.mubr.f32.gmra.mxu0 %v1330
      %v1889 = vpop.f32.mrf.mxu0
      %v1890 = vadd.f32 %v1789, %v1889
      %v1891 = vpop.f32.mrf.mxu0
      %v1892 = vadd.f32 %v1791, %v1891
      %1893 = vmatprep.mubr.f32.mxu0 %v1344
      %1894 = vmatmul.mubr.f32.gmra.mxu0 %v1342
      %v1895 = vpop.f32.mrf.mxu0
      %v1896 = vadd.f32 %v1795, %v1895
      %v1897 = vpop.f32.mrf.mxu0
      %v1898 = vadd.f32 %v1797, %v1897
      %1899 = vmatprep.mubr.f32.mxu0 %v1358
      %1900 = vmatmul.mubr.f32.gmra.mxu0 %v1355
      %v1901 = vpop.f32.mrf.mxu0
      %v1902 = vadd.f32 %v1801, %v1901
      %v1903 = vpop.f32.mrf.mxu0
      %v1904 = vadd.f32 %v1803, %v1903
      %1905 = vmatprep.mubr.f32.mxu0 %v1369
      %1906 = vmatmul.mubr.f32.gmra.mxu0 %v1367
      %v1907 = vpop.f32.mrf.mxu0
      %v1908 = vadd.f32 %v1807, %v1907
      %v1909 = vpop.f32.mrf.mxu0
      %v1910 = vadd.f32 %v1809, %v1909
      %1911 = vmatprep.mubr.f32.mxu0 %v1383
      %1912 = vmatmul.mubr.f32.gmra.mxu0 %v1380
      %v1913 = vpop.f32.mrf.mxu0
      %v1914 = vadd.f32 %v1813, %v1913
      %v1915 = vpop.f32.mrf.mxu0
      %v1916 = vadd.f32 %v1815, %v1915
      %1917 = vmatprep.mubr.f32.mxu0 %v1394
      %1918 = vmatmul.mubr.f32.gmra.mxu0 %v1392
      %v1919 = vpop.f32.mrf.mxu0
      %v1920 = vadd.f32 %v1819, %v1919
      %v1921 = vpop.f32.mrf.mxu0
      %v1922 = vadd.f32 %v1821, %v1921
      %1923 = vdwg.mxu0
      %1924 = vmatprep.subr.mxu0 0.0
      %1925 = vmatpush1.msra.mxu0 0.0
      %1926 = vmatprep.subr.mxu0 0.0
      %1927 = vmatpush1.msra.mxu0 0.0
      %1928 = vmatprep.subr.mxu0 0.0
      %1929 = vmatpush1.msra.mxu0 0.0
      %1930 = vmatprep.subr.mxu0 0.0
      %1931 = vmatpush1.msra.mxu0 0.0
      %1932 = vmatprep.subr.mxu0 0.0
      %1933 = vmatpush1.msra.mxu0 0.0
      %1934 = vmatprep.subr.mxu0 0.0
      %1935 = vmatpush1.msra.mxu0 0.0
      %1936 = vmatprep.subr.mxu0 0.0
      %1937 = vmatpush1.msra.mxu0 0.0
      %1938 = vmatprep.subr.mxu0 0.0
      %1939 = vmatpush1.msra.mxu0 0.0
      %1940 = vmatprep.subr.mxu0 %v1707
      %1941 = vmatpush1.msra.mxu0 %v1706
      %1942 = vmatprep.subr.mxu0 %v1703
      %1943 = vmatpush1.msra.mxu0 %v1702
      %1944 = vmatprep.subr.mxu0 %v1699
      %1945 = vmatpush1.msra.mxu0 %v1698
      %1946 = vmatprep.subr.mxu0 %v1695
      %1947 = vmatpush1.msra.mxu0 %v1694
      %1948 = vmatprep.subr.mxu0 %v1691
      %1949 = vmatpush1.msra.mxu0 %v1690
      %1950 = vmatprep.subr.mxu0 %v1687
      %1951 = vmatpush1.msra.mxu0 %v1686
      %1952 = vmatprep.subr.mxu0 %v1683
      %1953 = vmatpush1.msra.mxu0 %v1682
      %1954 = vmatprep.subr.mxu0 %v1679
      %1955 = vmatpush1.msra.mxu0 %v1678
      %1956 = vmatprep.subr.mxu0 0.0
      %1957 = vmatpush2.msra.mxu0 0.0
      %1958 = vmatprep.subr.mxu0 0.0
      %1959 = vmatpush2.msra.mxu0 0.0
      %1960 = vmatprep.subr.mxu0 0.0
      %1961 = vmatpush2.msra.mxu0 0.0
      %1962 = vmatprep.subr.mxu0 0.0
      %1963 = vmatpush2.msra.mxu0 0.0
      %1964 = vmatprep.subr.mxu0 0.0
      %1965 = vmatpush2.msra.mxu0 0.0
      %1966 = vmatprep.subr.mxu0 0.0
      %1967 = vmatpush2.msra.mxu0 0.0
      %1968 = vmatprep.subr.mxu0 0.0
      %1969 = vmatpush2.msra.mxu0 0.0
      %1970 = vmatprep.subr.mxu0 0.0
      %1971 = vmatpush2.msra.mxu0 0.0
      %1972 = vmatprep.subr.mxu0 0.0
      %1973 = vmatpush2.msra.mxu0 0.0
      %1974 = vmatprep.subr.mxu0 0.0
      %1975 = vmatpush2.msra.mxu0 0.0
      %1976 = vmatprep.subr.mxu0 0.0
      %1977 = vmatpush2.msra.mxu0 0.0
      %1978 = vmatprep.subr.mxu0 0.0
      %1979 = vmatpush2.msra.mxu0 0.0
      %1980 = vmatprep.subr.mxu0 0.0
      %1981 = vmatpush2.msra.mxu0 0.0
      %1982 = vmatprep.subr.mxu0 0.0
      %1983 = vmatpush2.msra.mxu0 0.0
      %1984 = vmatprep.subr.mxu0 0.0
      %1985 = vmatpush2.msra.mxu0 0.0
      %1986 = vmatprep.subr.mxu0 0.0
      %1987 = vmatpush2.msra.mxu0 0.0
      %1988 = vmatprep.mubr.f32.mxu0 0.0
      %1989 = vmatmul.mubr.f32.gmra.mxu0 %v1710
      %v1990 = vpop.f32.mrf.mxu0
      %v1991 = vadd.f32 %v1890, %v1990
      %v1992 = vpop.f32.mrf.mxu0
      %v1993 = vadd.f32 %v1892, %v1992
      %1994 = vmatprep.mubr.f32.mxu0 0.0
      %1995 = vmatmul.mubr.f32.gmra.mxu0 %v1712
      %v1996 = vpop.f32.mrf.mxu0
      %v1997 = vadd.f32 %v1896, %v1996
      %v1998 = vpop.f32.mrf.mxu0
      %v1999 = vadd.f32 %v1898, %v1998
      %2000 = vmatprep.mubr.f32.mxu0 0.0
      %2001 = vmatmul.mubr.f32.gmra.mxu0 %v1714
      %v2002 = vpop.f32.mrf.mxu0
      %v2003 = vadd.f32 %v1902, %v2002
      %v2004 = vpop.f32.mrf.mxu0
      %v2005 = vadd.f32 %v1904, %v2004
      %2006 = vmatprep.mubr.f32.mxu0 0.0
      %2007 = vmatmul.mubr.f32.gmra.mxu0 %v1716
      %v2008 = vpop.f32.mrf.mxu0
      %v2009 = vadd.f32 %v1908, %v2008
      %v2010 = vpop.f32.mrf.mxu0
      %v2011 = vadd.f32 %v1910, %v2010
      %2012 = vmatprep.mubr.f32.mxu0 0.0
      %2013 = vmatmul.mubr.f32.gmra.mxu0 %v1718
      %v2014 = vpop.f32.mrf.mxu0
      %v2015 = vadd.f32 %v1914, %v2014
      %v2016 = vpop.f32.mrf.mxu0
      %v2017 = vadd.f32 %v1916, %v2016
      %2018 = vmatprep.mubr.f32.mxu0 0.0
      %2019 = vmatmul.mubr.f32.gmra.mxu0 %v1720
      %v2020 = vpop.f32.mrf.mxu0
      %v2021 = vadd.f32 %v1920, %v2020
      %v2022 = vpop.f32.mrf.mxu0
      %v2023 = vadd.f32 %v1922, %v2022
      %2024 = vdwg.mxu0
      %2025 = vmatprep.subr.mxu0 %v1485
      %2026 = vmatpush1.msra.mxu0 %v1484
      %2027 = vmatprep.subr.mxu0 %v1481
      %2028 = vmatpush1.msra.mxu0 %v1480
      %2029 = vmatprep.subr.mxu0 %v1477
      %2030 = vmatpush1.msra.mxu0 %v1476
      %2031 = vmatprep.subr.mxu0 %v1473
      %2032 = vmatpush1.msra.mxu0 %v1472
      %2033 = vmatprep.subr.mxu0 %v1469
      %2034 = vmatpush1.msra.mxu0 %v1468
      %2035 = vmatprep.subr.mxu0 %v1465
      %2036 = vmatpush1.msra.mxu0 %v1464
      %2037 = vmatprep.subr.mxu0 %v1461
      %2038 = vmatpush1.msra.mxu0 %v1460
      %2039 = vmatprep.subr.mxu0 %v1457
      %2040 = vmatpush1.msra.mxu0 %v1456
      %2041 = vmatprep.subr.mxu0 %v1453
      %2042 = vmatpush1.msra.mxu0 %v1452
      %2043 = vmatprep.subr.mxu0 %v1449
      %2044 = vmatpush1.msra.mxu0 %v1448
      %2045 = vmatprep.subr.mxu0 %v1445
      %2046 = vmatpush1.msra.mxu0 %v1444
      %2047 = vmatprep.subr.mxu0 %v1441
      %2048 = vmatpush1.msra.mxu0 %v1440
      %2049 = vmatprep.subr.mxu0 %v1437
      %2050 = vmatpush1.msra.mxu0 %v1436
      %2051 = vmatprep.subr.mxu0 %v1433
      %2052 = vmatpush1.msra.mxu0 %v1432
      %2053 = vmatprep.subr.mxu0 %v1429
      %2054 = vmatpush1.msra.mxu0 %v1428
      %2055 = vmatprep.subr.mxu0 %v1425
      %2056 = vmatpush1.msra.mxu0 %v1424
      %2057 = vmatprep.subr.mxu0 %v1549
      %2058 = vmatpush2.msra.mxu0 %v1548
      %2059 = vmatprep.subr.mxu0 %v1545
      %2060 = vmatpush2.msra.mxu0 %v1544
      %2061 = vmatprep.subr.mxu0 %v1541
      %2062 = vmatpush2.msra.mxu0 %v1540
      %2063 = vmatprep.subr.mxu0 %v1537
      %2064 = vmatpush2.msra.mxu0 %v1536
      %2065 = vmatprep.subr.mxu0 %v1533
      %2066 = vmatpush2.msra.mxu0 %v1532
      %2067 = vmatprep.subr.mxu0 %v1529
      %2068 = vmatpush2.msra.mxu0 %v1528
      %2069 = vmatprep.subr.mxu0 %v1525
      %2070 = vmatpush2.msra.mxu0 %v1524
      %2071 = vmatprep.subr.mxu0 %v1521
      %2072 = vmatpush2.msra.mxu0 %v1520
      %2073 = vmatprep.subr.mxu0 %v1517
      %2074 = vmatpush2.msra.mxu0 %v1516
      %2075 = vmatprep.subr.mxu0 %v1513
      %2076 = vmatpush2.msra.mxu0 %v1512
      %2077 = vmatprep.subr.mxu0 %v1509
      %2078 = vmatpush2.msra.mxu0 %v1508
      %2079 = vmatprep.subr.mxu0 %v1505
      %2080 = vmatpush2.msra.mxu0 %v1504
      %2081 = vmatprep.subr.mxu0 %v1501
      %2082 = vmatpush2.msra.mxu0 %v1500
      %2083 = vmatprep.subr.mxu0 %v1497
      %2084 = vmatpush2.msra.mxu0 %v1496
      %2085 = vmatprep.subr.mxu0 %v1493
      %2086 = vmatpush2.msra.mxu0 %v1492
      %2087 = vmatprep.subr.mxu0 %v1489
      %2088 = vmatpush2.msra.mxu0 %v1488
      %2089 = vmatprep.mubr.f32.mxu0 %v1327
      %2090 = vmatmul.mubr.f32.gmra.mxu0 %v1324
      %v2091 = vpop.f32.mrf.mxu0
      %v2092 = vadd.f32 0.0, %v2091
      %v2093 = vpop.f32.mrf.mxu0
      %v2094 = vadd.f32 0.0, %v2093
      %2095 = vmatprep.mubr.f32.mxu0 %v1340
      %2096 = vmatmul.mubr.f32.gmra.mxu0 %v1338
      %v2097 = vpop.f32.mrf.mxu0
      %v2098 = vadd.f32 0.0, %v2097
      %v2099 = vpop.f32.mrf.mxu0
      %v2100 = vadd.f32 0.0, %v2099
      %2101 = vmatprep.mubr.f32.mxu0 %v1352
      %2102 = vmatmul.mubr.f32.gmra.mxu0 %v1349
      %v2103 = vpop.f32.mrf.mxu0
      %v2104 = vadd.f32 0.0, %v2103
      %v2105 = vpop.f32.mrf.mxu0
      %v2106 = vadd.f32 0.0, %v2105
      %2107 = vmatprep.mubr.f32.mxu0 %v1365
      %2108 = vmatmul.mubr.f32.gmra.mxu0 %v1363
      %v2109 = vpop.f32.mrf.mxu0
      %v2110 = vadd.f32 0.0, %v2109
      %v2111 = vpop.f32.mrf.mxu0
      %v2112 = vadd.f32 0.0, %v2111
      %2113 = vmatprep.mubr.f32.mxu0 %v1377
      %2114 = vmatmul.mubr.f32.gmra.mxu0 %v1374
      %v2115 = vpop.f32.mrf.mxu0
      %v2116 = vadd.f32 0.0, %v2115
      %v2117 = vpop.f32.mrf.mxu0
      %v2118 = vadd.f32 0.0, %v2117
      %2119 = vmatprep.mubr.f32.mxu0 %v1390
      %2120 = vmatmul.mubr.f32.gmra.mxu0 %v1388
      %v2121 = vpop.f32.mrf.mxu0
      %v2122 = vadd.f32 0.0, %v2121
      %v2123 = vpop.f32.mrf.mxu0
      %v2124 = vadd.f32 0.0, %v2123
      %2125 = vdwg.mxu0
      %2126 = vmatprep.subr.mxu0 %v1613
      %2127 = vmatpush1.msra.mxu0 %v1612
      %2128 = vmatprep.subr.mxu0 %v1609
      %2129 = vmatpush1.msra.mxu0 %v1608
      %2130 = vmatprep.subr.mxu0 %v1605
      %2131 = vmatpush1.msra.mxu0 %v1604
      %2132 = vmatprep.subr.mxu0 %v1601
      %2133 = vmatpush1.msra.mxu0 %v1600
      %2134 = vmatprep.subr.mxu0 %v1597
      %2135 = vmatpush1.msra.mxu0 %v1596
      %2136 = vmatprep.subr.mxu0 %v1593
      %2137 = vmatpush1.msra.mxu0 %v1592
      %2138 = vmatprep.subr.mxu0 %v1589
      %2139 = vmatpush1.msra.mxu0 %v1588
      %2140 = vmatprep.subr.mxu0 %v1585
      %2141 = vmatpush1.msra.mxu0 %v1584
      %2142 = vmatprep.subr.mxu0 %v1581
      %2143 = vmatpush1.msra.mxu0 %v1580
      %2144 = vmatprep.subr.mxu0 %v1577
      %2145 = vmatpush1.msra.mxu0 %v1576
      %2146 = vmatprep.subr.mxu0 %v1573
      %2147 = vmatpush1.msra.mxu0 %v1572
      %2148 = vmatprep.subr.mxu0 %v1569
      %2149 = vmatpush1.msra.mxu0 %v1568
      %2150 = vmatprep.subr.mxu0 %v1565
      %2151 = vmatpush1.msra.mxu0 %v1564
      %2152 = vmatprep.subr.mxu0 %v1561
      %2153 = vmatpush1.msra.mxu0 %v1560
      %2154 = vmatprep.subr.mxu0 %v1557
      %2155 = vmatpush1.msra.mxu0 %v1556
      %2156 = vmatprep.subr.mxu0 %v1553
      %2157 = vmatpush1.msra.mxu0 %v1552
      %2158 = vmatprep.subr.mxu0 %v1677
      %2159 = vmatpush2.msra.mxu0 %v1676
      %2160 = vmatprep.subr.mxu0 %v1673
      %2161 = vmatpush2.msra.mxu0 %v1672
      %2162 = vmatprep.subr.mxu0 %v1669
      %2163 = vmatpush2.msra.mxu0 %v1668
      %2164 = vmatprep.subr.mxu0 %v1665
      %2165 = vmatpush2.msra.mxu0 %v1664
      %2166 = vmatprep.subr.mxu0 %v1661
      %2167 = vmatpush2.msra.mxu0 %v1660
      %2168 = vmatprep.subr.mxu0 %v1657
      %2169 = vmatpush2.msra.mxu0 %v1656
      %2170 = vmatprep.subr.mxu0 %v1653
      %2171 = vmatpush2.msra.mxu0 %v1652
      %2172 = vmatprep.subr.mxu0 %v1649
      %2173 = vmatpush2.msra.mxu0 %v1648
      %2174 = vmatprep.subr.mxu0 %v1645
      %2175 = vmatpush2.msra.mxu0 %v1644
      %2176 = vmatprep.subr.mxu0 %v1641
      %2177 = vmatpush2.msra.mxu0 %v1640
      %2178 = vmatprep.subr.mxu0 %v1637
      %2179 = vmatpush2.msra.mxu0 %v1636
      %2180 = vmatprep.subr.mxu0 %v1633
      %2181 = vmatpush2.msra.mxu0 %v1632
      %2182 = vmatprep.subr.mxu0 %v1629
      %2183 = vmatpush2.msra.mxu0 %v1628
      %2184 = vmatprep.subr.mxu0 %v1625
      %2185 = vmatpush2.msra.mxu0 %v1624
      %2186 = vmatprep.subr.mxu0 %v1621
      %2187 = vmatpush2.msra.mxu0 %v1620
      %2188 = vmatprep.subr.mxu0 %v1617
      %2189 = vmatpush2.msra.mxu0 %v1616
      %2190 = vmatprep.mubr.f32.mxu0 %v1333
      %2191 = vmatmul.mubr.f32.gmra.mxu0 %v1330
      %v2192 = vpop.f32.mrf.mxu0
      %v2193 = vadd.f32 %v2092, %v2192
      %v2194 = vpop.f32.mrf.mxu0
      %v2195 = vadd.f32 %v2094, %v2194
      %2196 = vmatprep.mubr.f32.mxu0 %v1344
      %2197 = vmatmul.mubr.f32.gmra.mxu0 %v1342
      %v2198 = vpop.f32.mrf.mxu0
      %v2199 = vadd.f32 %v2098, %v2198
      %v2200 = vpop.f32.mrf.mxu0
      %v2201 = vadd.f32 %v2100, %v2200
      %2202 = vmatprep.mubr.f32.mxu0 %v1358
      %2203 = vmatmul.mubr.f32.gmra.mxu0 %v1355
      %v2204 = vpop.f32.mrf.mxu0
      %v2205 = vadd.f32 %v2104, %v2204
      %v2206 = vpop.f32.mrf.mxu0
      %v2207 = vadd.f32 %v2106, %v2206
      %2208 = vmatprep.mubr.f32.mxu0 %v1369
      %2209 = vmatmul.mubr.f32.gmra.mxu0 %v1367
      %v2210 = vpop.f32.mrf.mxu0
      %v2211 = vadd.f32 %v2110, %v2210
      %v2212 = vpop.f32.mrf.mxu0
      %v2213 = vadd.f32 %v2112, %v2212
      %2214 = vmatprep.mubr.f32.mxu0 %v1383
      %2215 = vmatmul.mubr.f32.gmra.mxu0 %v1380
      %v2216 = vpop.f32.mrf.mxu0
      %v2217 = vadd.f32 %v2116, %v2216
      %v2218 = vpop.f32.mrf.mxu0
      %v2219 = vadd.f32 %v2118, %v2218
      %2220 = vmatprep.mubr.f32.mxu0 %v1394
      %2221 = vmatmul.mubr.f32.gmra.mxu0 %v1392
      %v2222 = vpop.f32.mrf.mxu0
      %v2223 = vadd.f32 %v2122, %v2222
      %v2224 = vpop.f32.mrf.mxu0
      %v2225 = vadd.f32 %v2124, %v2224
      %2226 = vdwg.mxu0
      %2227 = vmatprep.subr.mxu0 0.0
      %2228 = vmatpush1.msra.mxu0 0.0
      %2229 = vmatprep.subr.mxu0 0.0
      %2230 = vmatpush1.msra.mxu0 0.0
      %2231 = vmatprep.subr.mxu0 0.0
      %2232 = vmatpush1.msra.mxu0 0.0
      %2233 = vmatprep.subr.mxu0 0.0
      %2234 = vmatpush1.msra.mxu0 0.0
      %2235 = vmatprep.subr.mxu0 0.0
      %2236 = vmatpush1.msra.mxu0 0.0
      %2237 = vmatprep.subr.mxu0 0.0
      %2238 = vmatpush1.msra.mxu0 0.0
      %2239 = vmatprep.subr.mxu0 0.0
      %2240 = vmatpush1.msra.mxu0 0.0
      %2241 = vmatprep.subr.mxu0 0.0
      %2242 = vmatpush1.msra.mxu0 0.0
      %2243 = vmatprep.subr.mxu0 %v1709
      %2244 = vmatpush1.msra.mxu0 %v1708
      %2245 = vmatprep.subr.mxu0 %v1705
      %2246 = vmatpush1.msra.mxu0 %v1704
      %2247 = vmatprep.subr.mxu0 %v1701
      %2248 = vmatpush1.msra.mxu0 %v1700
      %2249 = vmatprep.subr.mxu0 %v1697
      %2250 = vmatpush1.msra.mxu0 %v1696
      %2251 = vmatprep.subr.mxu0 %v1693
      %2252 = vmatpush1.msra.mxu0 %v1692
      %2253 = vmatprep.subr.mxu0 %v1689
      %2254 = vmatpush1.msra.mxu0 %v1688
      %2255 = vmatprep.subr.mxu0 %v1685
      %2256 = vmatpush1.msra.mxu0 %v1684
      %2257 = vmatprep.subr.mxu0 %v1681
      %2258 = vmatpush1.msra.mxu0 %v1680
      %2259 = vmatprep.subr.mxu0 0.0
      %2260 = vmatpush2.msra.mxu0 0.0
      %2261 = vmatprep.subr.mxu0 0.0
      %2262 = vmatpush2.msra.mxu0 0.0
      %2263 = vmatprep.subr.mxu0 0.0
      %2264 = vmatpush2.msra.mxu0 0.0
      %2265 = vmatprep.subr.mxu0 0.0
      %2266 = vmatpush2.msra.mxu0 0.0
      %2267 = vmatprep.subr.mxu0 0.0
      %2268 = vmatpush2.msra.mxu0 0.0
      %2269 = vmatprep.subr.mxu0 0.0
      %2270 = vmatpush2.msra.mxu0 0.0
      %2271 = vmatprep.subr.mxu0 0.0
      %2272 = vmatpush2.msra.mxu0 0.0
      %2273 = vmatprep.subr.mxu0 0.0
      %2274 = vmatpush2.msra.mxu0 0.0
      %2275 = vmatprep.subr.mxu0 0.0
      %2276 = vmatpush2.msra.mxu0 0.0
      %2277 = vmatprep.subr.mxu0 0.0
      %2278 = vmatpush2.msra.mxu0 0.0
      %2279 = vmatprep.subr.mxu0 0.0
      %2280 = vmatpush2.msra.mxu0 0.0
      %2281 = vmatprep.subr.mxu0 0.0
      %2282 = vmatpush2.msra.mxu0 0.0
      %2283 = vmatprep.subr.mxu0 0.0
      %2284 = vmatpush2.msra.mxu0 0.0
      %2285 = vmatprep.subr.mxu0 0.0
      %2286 = vmatpush2.msra.mxu0 0.0
      %2287 = vmatprep.subr.mxu0 0.0
      %2288 = vmatpush2.msra.mxu0 0.0
      %2289 = vmatprep.subr.mxu0 0.0
      %2290 = vmatpush2.msra.mxu0 0.0
      %2291 = vmatprep.mubr.f32.mxu0 0.0
      %2292 = vmatmul.mubr.f32.gmra.mxu0 %v1710
      %v2293 = vpop.f32.mrf.mxu0
      %v2294 = vadd.f32 %v2193, %v2293
      %v2295 = vpop.f32.mrf.mxu0
      %v2296 = vadd.f32 %v2195, %v2295
      %2297 = vmatprep.mubr.f32.mxu0 0.0
      %2298 = vmatmul.mubr.f32.gmra.mxu0 %v1712
      %v2299 = vpop.f32.mrf.mxu0
      %v2300 = vadd.f32 %v2199, %v2299
      %v2301 = vpop.f32.mrf.mxu0
      %v2302 = vadd.f32 %v2201, %v2301
      %2303 = vmatprep.mubr.f32.mxu0 0.0
      %2304 = vmatmul.mubr.f32.gmra.mxu0 %v1714
      %v2305 = vpop.f32.mrf.mxu0
      %v2306 = vadd.f32 %v2205, %v2305
      %v2307 = vpop.f32.mrf.mxu0
      %v2308 = vadd.f32 %v2207, %v2307
      %2309 = vmatprep.mubr.f32.mxu0 0.0
      %2310 = vmatmul.mubr.f32.gmra.mxu0 %v1716
      %v2311 = vpop.f32.mrf.mxu0
      %v2312 = vadd.f32 %v2211, %v2311
      %v2313 = vpop.f32.mrf.mxu0
      %v2314 = vadd.f32 %v2213, %v2313
      %2315 = vmatprep.mubr.f32.mxu0 0.0
      %2316 = vmatmul.mubr.f32.gmra.mxu0 %v1718
      %v2317 = vpop.f32.mrf.mxu0
      %v2318 = vadd.f32 %v2217, %v2317
      %v2319 = vpop.f32.mrf.mxu0
      %v2320 = vadd.f32 %v2219, %v2319
      %2321 = vmatprep.mubr.f32.mxu0 0.0
      %2322 = vmatmul.mubr.f32.gmra.mxu0 %v1720
      %v2323 = vpop.f32.mrf.mxu0
      %v2324 = vadd.f32 %v2223, %v2323
      %v2325 = vpop.f32.mrf.mxu0
      %v2326 = vadd.f32 %v2225, %v2325
      %2327 = vdwg.mxu0
      %v2329 = vsel %vm629, %v932, 0
      %v2331 = vsel %vm629, %v937, 0
      %v2334 = vsel %vm629, %v942, 0
      %v2336 = vsel %vm629, %v947, 0
      %v2339 = vsel %vm629, %v952, 0
      %v2341 = vsel %vm629, %v957, 0
      %2343 = vmatprep.subr.mxu0 %v1019
      %2344 = vmatpush1.msra.mxu0 %v1018
      %2345 = vmatprep.subr.mxu0 %v1015
      %2346 = vmatpush1.msra.mxu0 %v1014
      %2347 = vmatprep.subr.mxu0 %v1011
      %2348 = vmatpush1.msra.mxu0 %v1010
      %2349 = vmatprep.subr.mxu0 %v1007
      %2350 = vmatpush1.msra.mxu0 %v1006
      %2351 = vmatprep.subr.mxu0 %v1003
      %2352 = vmatpush1.msra.mxu0 %v1002
      %2353 = vmatprep.subr.mxu0 %v999
      %2354 = vmatpush1.msra.mxu0 %v998
      %2355 = vmatprep.subr.mxu0 %v995
      %2356 = vmatpush1.msra.mxu0 %v994
      %2357 = vmatprep.subr.mxu0 %v991
      %2358 = vmatpush1.msra.mxu0 %v990
      %2359 = vmatprep.subr.mxu0 %v987
      %2360 = vmatpush1.msra.mxu0 %v986
      %2361 = vmatprep.subr.mxu0 %v983
      %2362 = vmatpush1.msra.mxu0 %v982
      %2363 = vmatprep.subr.mxu0 %v979
      %2364 = vmatpush1.msra.mxu0 %v978
      %2365 = vmatprep.subr.mxu0 %v975
      %2366 = vmatpush1.msra.mxu0 %v974
      %2367 = vmatprep.subr.mxu0 %v971
      %2368 = vmatpush1.msra.mxu0 %v970
      %2369 = vmatprep.subr.mxu0 %v967
      %2370 = vmatpush1.msra.mxu0 %v966
      %2371 = vmatprep.subr.mxu0 %v963
      %2372 = vmatpush1.msra.mxu0 %v962
      %2373 = vmatprep.subr.mxu0 %v959
      %2374 = vmatpush1.msra.mxu0 %v958
      %2375 = vmatprep.subr.mxu0 %v1083
      %2376 = vmatpush2.msra.mxu0 %v1082
      %2377 = vmatprep.subr.mxu0 %v1079
      %2378 = vmatpush2.msra.mxu0 %v1078
      %2379 = vmatprep.subr.mxu0 %v1075
      %2380 = vmatpush2.msra.mxu0 %v1074
      %2381 = vmatprep.subr.mxu0 %v1071
      %2382 = vmatpush2.msra.mxu0 %v1070
      %2383 = vmatprep.subr.mxu0 %v1067
      %2384 = vmatpush2.msra.mxu0 %v1066
      %2385 = vmatprep.subr.mxu0 %v1063
      %2386 = vmatpush2.msra.mxu0 %v1062
      %2387 = vmatprep.subr.mxu0 %v1059
      %2388 = vmatpush2.msra.mxu0 %v1058
      %2389 = vmatprep.subr.mxu0 %v1055
      %2390 = vmatpush2.msra.mxu0 %v1054
      %2391 = vmatprep.subr.mxu0 %v1051
      %2392 = vmatpush2.msra.mxu0 %v1050
      %2393 = vmatprep.subr.mxu0 %v1047
      %2394 = vmatpush2.msra.mxu0 %v1046
      %2395 = vmatprep.subr.mxu0 %v1043
      %2396 = vmatpush2.msra.mxu0 %v1042
      %2397 = vmatprep.subr.mxu0 %v1039
      %2398 = vmatpush2.msra.mxu0 %v1038
      %2399 = vmatprep.subr.mxu0 %v1035
      %2400 = vmatpush2.msra.mxu0 %v1034
      %2401 = vmatprep.subr.mxu0 %v1031
      %2402 = vmatpush2.msra.mxu0 %v1030
      %2403 = vmatprep.subr.mxu0 %v1027
      %2404 = vmatpush2.msra.mxu0 %v1026
      %2405 = vmatprep.subr.mxu0 %v1023
      %2406 = vmatpush2.msra.mxu0 %v1022
      %2407 = vmatprep.mubr.f32.mxu0 %v929
      %2408 = vmatmul.mubr.f32.gmra.mxu0 %v928
      %v2409 = vpop.f32.mrf.mxu0
      %v2410 = vadd.f32 %v1991, %v2409
      %v2411 = vpop.f32.mrf.mxu0
      %v2412 = vadd.f32 %v1993, %v2411
      %2413 = vmatprep.mubr.f32.mxu0 %v934
      %2414 = vmatmul.mubr.f32.gmra.mxu0 %v933
      %v2415 = vpop.f32.mrf.mxu0
      %v2416 = vadd.f32 %v1997, %v2415
      %v2417 = vpop.f32.mrf.mxu0
      %v2418 = vadd.f32 %v1999, %v2417
      %2419 = vmatprep.mubr.f32.mxu0 %v939
      %2420 = vmatmul.mubr.f32.gmra.mxu0 %v938
      %v2421 = vpop.f32.mrf.mxu0
      %v2422 = vadd.f32 %v2003, %v2421
      %v2423 = vpop.f32.mrf.mxu0
      %v2424 = vadd.f32 %v2005, %v2423
      %2425 = vmatprep.mubr.f32.mxu0 %v944
      %2426 = vmatmul.mubr.f32.gmra.mxu0 %v943
      %v2427 = vpop.f32.mrf.mxu0
      %v2428 = vadd.f32 %v2009, %v2427
      %v2429 = vpop.f32.mrf.mxu0
      %v2430 = vadd.f32 %v2011, %v2429
      %2431 = vmatprep.mubr.f32.mxu0 %v949
      %2432 = vmatmul.mubr.f32.gmra.mxu0 %v948
      %v2433 = vpop.f32.mrf.mxu0
      %v2434 = vadd.f32 %v2015, %v2433
      %v2435 = vpop.f32.mrf.mxu0
      %v2436 = vadd.f32 %v2017, %v2435
      %2437 = vmatprep.mubr.f32.mxu0 %v954
      %2438 = vmatmul.mubr.f32.gmra.mxu0 %v953
      %v2439 = vpop.f32.mrf.mxu0
      %v2440 = vadd.f32 %v2021, %v2439
      %v2441 = vpop.f32.mrf.mxu0
      %v2442 = vadd.f32 %v2023, %v2441
      %2443 = vdwg.mxu0
      %2444 = vmatprep.subr.mxu0 %v1147
      %2445 = vmatpush1.msra.mxu0 %v1146
      %2446 = vmatprep.subr.mxu0 %v1143
      %2447 = vmatpush1.msra.mxu0 %v1142
      %2448 = vmatprep.subr.mxu0 %v1139
      %2449 = vmatpush1.msra.mxu0 %v1138
      %2450 = vmatprep.subr.mxu0 %v1135
      %2451 = vmatpush1.msra.mxu0 %v1134
      %2452 = vmatprep.subr.mxu0 %v1131
      %2453 = vmatpush1.msra.mxu0 %v1130
      %2454 = vmatprep.subr.mxu0 %v1127
      %2455 = vmatpush1.msra.mxu0 %v1126
      %2456 = vmatprep.subr.mxu0 %v1123
      %2457 = vmatpush1.msra.mxu0 %v1122
      %2458 = vmatprep.subr.mxu0 %v1119
      %2459 = vmatpush1.msra.mxu0 %v1118
      %2460 = vmatprep.subr.mxu0 %v1115
      %2461 = vmatpush1.msra.mxu0 %v1114
      %2462 = vmatprep.subr.mxu0 %v1111
      %2463 = vmatpush1.msra.mxu0 %v1110
      %2464 = vmatprep.subr.mxu0 %v1107
      %2465 = vmatpush1.msra.mxu0 %v1106
      %2466 = vmatprep.subr.mxu0 %v1103
      %2467 = vmatpush1.msra.mxu0 %v1102
      %2468 = vmatprep.subr.mxu0 %v1099
      %2469 = vmatpush1.msra.mxu0 %v1098
      %2470 = vmatprep.subr.mxu0 %v1095
      %2471 = vmatpush1.msra.mxu0 %v1094
      %2472 = vmatprep.subr.mxu0 %v1091
      %2473 = vmatpush1.msra.mxu0 %v1090
      %2474 = vmatprep.subr.mxu0 %v1087
      %2475 = vmatpush1.msra.mxu0 %v1086
      %2476 = vmatprep.subr.mxu0 %v1211
      %2477 = vmatpush2.msra.mxu0 %v1210
      %2478 = vmatprep.subr.mxu0 %v1207
      %2479 = vmatpush2.msra.mxu0 %v1206
      %2480 = vmatprep.subr.mxu0 %v1203
      %2481 = vmatpush2.msra.mxu0 %v1202
      %2482 = vmatprep.subr.mxu0 %v1199
      %2483 = vmatpush2.msra.mxu0 %v1198
      %2484 = vmatprep.subr.mxu0 %v1195
      %2485 = vmatpush2.msra.mxu0 %v1194
      %2486 = vmatprep.subr.mxu0 %v1191
      %2487 = vmatpush2.msra.mxu0 %v1190
      %2488 = vmatprep.subr.mxu0 %v1187
      %2489 = vmatpush2.msra.mxu0 %v1186
      %2490 = vmatprep.subr.mxu0 %v1183
      %2491 = vmatpush2.msra.mxu0 %v1182
      %2492 = vmatprep.subr.mxu0 %v1179
      %2493 = vmatpush2.msra.mxu0 %v1178
      %2494 = vmatprep.subr.mxu0 %v1175
      %2495 = vmatpush2.msra.mxu0 %v1174
      %2496 = vmatprep.subr.mxu0 %v1171
      %2497 = vmatpush2.msra.mxu0 %v1170
      %2498 = vmatprep.subr.mxu0 %v1167
      %2499 = vmatpush2.msra.mxu0 %v1166
      %2500 = vmatprep.subr.mxu0 %v1163
      %2501 = vmatpush2.msra.mxu0 %v1162
      %2502 = vmatprep.subr.mxu0 %v1159
      %2503 = vmatpush2.msra.mxu0 %v1158
      %2504 = vmatprep.subr.mxu0 %v1155
      %2505 = vmatpush2.msra.mxu0 %v1154
      %2506 = vmatprep.subr.mxu0 %v1151
      %2507 = vmatpush2.msra.mxu0 %v1150
      %2508 = vmatprep.mubr.f32.mxu0 %v931
      %2509 = vmatmul.mubr.f32.gmra.mxu0 %v930
      %v2510 = vpop.f32.mrf.mxu0
      %v2511 = vadd.f32 %v2410, %v2510
      %v2512 = vpop.f32.mrf.mxu0
      %v2513 = vadd.f32 %v2412, %v2512
      %2514 = vmatprep.mubr.f32.mxu0 %v936
      %2515 = vmatmul.mubr.f32.gmra.mxu0 %v935
      %v2516 = vpop.f32.mrf.mxu0
      %v2517 = vadd.f32 %v2416, %v2516
      %v2518 = vpop.f32.mrf.mxu0
      %v2519 = vadd.f32 %v2418, %v2518
      %2520 = vmatprep.mubr.f32.mxu0 %v941
      %2521 = vmatmul.mubr.f32.gmra.mxu0 %v940
      %v2522 = vpop.f32.mrf.mxu0
      %v2523 = vadd.f32 %v2422, %v2522
      %v2524 = vpop.f32.mrf.mxu0
      %v2525 = vadd.f32 %v2424, %v2524
      %2526 = vmatprep.mubr.f32.mxu0 %v946
      %2527 = vmatmul.mubr.f32.gmra.mxu0 %v945
      %v2528 = vpop.f32.mrf.mxu0
      %v2529 = vadd.f32 %v2428, %v2528
      %v2530 = vpop.f32.mrf.mxu0
      %v2531 = vadd.f32 %v2430, %v2530
      %2532 = vmatprep.mubr.f32.mxu0 %v951
      %2533 = vmatmul.mubr.f32.gmra.mxu0 %v950
      %v2534 = vpop.f32.mrf.mxu0
      %v2535 = vadd.f32 %v2434, %v2534
      %v2536 = vpop.f32.mrf.mxu0
      %v2537 = vadd.f32 %v2436, %v2536
      %2538 = vmatprep.mubr.f32.mxu0 %v956
      %2539 = vmatmul.mubr.f32.gmra.mxu0 %v955
      %v2540 = vpop.f32.mrf.mxu0
      %v2541 = vadd.f32 %v2440, %v2540
      %v2542 = vpop.f32.mrf.mxu0
      %v2543 = vadd.f32 %v2442, %v2542
      %2544 = vdwg.mxu0
      %2545 = vmatprep.subr.mxu0 0.0
      %2546 = vmatpush1.msra.mxu0 0.0
      %2547 = vmatprep.subr.mxu0 0.0
      %2548 = vmatpush1.msra.mxu0 0.0
      %2549 = vmatprep.subr.mxu0 0.0
      %2550 = vmatpush1.msra.mxu0 0.0
      %2551 = vmatprep.subr.mxu0 0.0
      %2552 = vmatpush1.msra.mxu0 0.0
      %2553 = vmatprep.subr.mxu0 0.0
      %2554 = vmatpush1.msra.mxu0 0.0
      %2555 = vmatprep.subr.mxu0 0.0
      %2556 = vmatpush1.msra.mxu0 0.0
      %2557 = vmatprep.subr.mxu0 0.0
      %2558 = vmatpush1.msra.mxu0 0.0
      %2559 = vmatprep.subr.mxu0 0.0
      %2560 = vmatpush1.msra.mxu0 0.0
      %2561 = vmatprep.subr.mxu0 %v1243
      %2562 = vmatpush1.msra.mxu0 %v1242
      %2563 = vmatprep.subr.mxu0 %v1239
      %2564 = vmatpush1.msra.mxu0 %v1238
      %2565 = vmatprep.subr.mxu0 %v1235
      %2566 = vmatpush1.msra.mxu0 %v1234
      %2567 = vmatprep.subr.mxu0 %v1231
      %2568 = vmatpush1.msra.mxu0 %v1230
      %2569 = vmatprep.subr.mxu0 %v1227
      %2570 = vmatpush1.msra.mxu0 %v1226
      %2571 = vmatprep.subr.mxu0 %v1223
      %2572 = vmatpush1.msra.mxu0 %v1222
      %2573 = vmatprep.subr.mxu0 %v1219
      %2574 = vmatpush1.msra.mxu0 %v1218
      %2575 = vmatprep.subr.mxu0 %v1215
      %2576 = vmatpush1.msra.mxu0 %v1214
      %2577 = vmatprep.subr.mxu0 0.0
      %2578 = vmatpush2.msra.mxu0 0.0
      %2579 = vmatprep.subr.mxu0 0.0
      %2580 = vmatpush2.msra.mxu0 0.0
      %2581 = vmatprep.subr.mxu0 0.0
      %2582 = vmatpush2.msra.mxu0 0.0
      %2583 = vmatprep.subr.mxu0 0.0
      %2584 = vmatpush2.msra.mxu0 0.0
      %2585 = vmatprep.subr.mxu0 0.0
      %2586 = vmatpush2.msra.mxu0 0.0
      %2587 = vmatprep.subr.mxu0 0.0
      %2588 = vmatpush2.msra.mxu0 0.0
      %2589 = vmatprep.subr.mxu0 0.0
      %2590 = vmatpush2.msra.mxu0 0.0
      %2591 = vmatprep.subr.mxu0 0.0
      %2592 = vmatpush2.msra.mxu0 0.0
      %2593 = vmatprep.subr.mxu0 0.0
      %2594 = vmatpush2.msra.mxu0 0.0
      %2595 = vmatprep.subr.mxu0 0.0
      %2596 = vmatpush2.msra.mxu0 0.0
      %2597 = vmatprep.subr.mxu0 0.0
      %2598 = vmatpush2.msra.mxu0 0.0
      %2599 = vmatprep.subr.mxu0 0.0
      %2600 = vmatpush2.msra.mxu0 0.0
      %2601 = vmatprep.subr.mxu0 0.0
      %2602 = vmatpush2.msra.mxu0 0.0
      %2603 = vmatprep.subr.mxu0 0.0
      %2604 = vmatpush2.msra.mxu0 0.0
      %2605 = vmatprep.subr.mxu0 0.0
      %2606 = vmatpush2.msra.mxu0 0.0
      %2607 = vmatprep.subr.mxu0 0.0
      %2608 = vmatpush2.msra.mxu0 0.0
      %2609 = vmatprep.mubr.f32.mxu0 0.0
      %2610 = vmatmul.mubr.f32.gmra.mxu0 %v2329
      %v2611 = vpop.f32.mrf.mxu0
      %v2612 = vadd.f32 %v2511, %v2611
      %v2613 = vpop.f32.mrf.mxu0
      %v2614 = vadd.f32 %v2513, %v2613
      %2615 = vmatprep.mubr.f32.mxu0 0.0
      %2616 = vmatmul.mubr.f32.gmra.mxu0 %v2331
      %v2617 = vpop.f32.mrf.mxu0
      %v2618 = vadd.f32 %v2517, %v2617
      %v2619 = vpop.f32.mrf.mxu0
      %v2620 = vadd.f32 %v2519, %v2619
      %2621 = vmatprep.mubr.f32.mxu0 0.0
      %2622 = vmatmul.mubr.f32.gmra.mxu0 %v2334
      %v2623 = vpop.f32.mrf.mxu0
      %v2624 = vadd.f32 %v2523, %v2623
      %v2625 = vpop.f32.mrf.mxu0
      %v2626 = vadd.f32 %v2525, %v2625
      %2627 = vmatprep.mubr.f32.mxu0 0.0
      %2628 = vmatmul.mubr.f32.gmra.mxu0 %v2336
      %v2629 = vpop.f32.mrf.mxu0
      %v2630 = vadd.f32 %v2529, %v2629
      %v2631 = vpop.f32.mrf.mxu0
      %v2632 = vadd.f32 %v2531, %v2631
      %2633 = vmatprep.mubr.f32.mxu0 0.0
      %2634 = vmatmul.mubr.f32.gmra.mxu0 %v2339
      %v2635 = vpop.f32.mrf.mxu0
      %v2636 = vadd.f32 %v2535, %v2635
      %v2637 = vpop.f32.mrf.mxu0
      %v2638 = vadd.f32 %v2537, %v2637
      %2639 = vmatprep.mubr.f32.mxu0 0.0
      %2640 = vmatmul.mubr.f32.gmra.mxu0 %v2341
      %v2641 = vpop.f32.mrf.mxu0
      %v2642 = vadd.f32 %v2541, %v2641
      %v2643 = vpop.f32.mrf.mxu0
      %v2644 = vadd.f32 %v2543, %v2643
      %2645 = vdwg.mxu0
      %2646 = vmatprep.subr.mxu0 %v1021
      %2647 = vmatpush1.msra.mxu0 %v1020
      %2648 = vmatprep.subr.mxu0 %v1017
      %2649 = vmatpush1.msra.mxu0 %v1016
      %2650 = vmatprep.subr.mxu0 %v1013
      %2651 = vmatpush1.msra.mxu0 %v1012
      %2652 = vmatprep.subr.mxu0 %v1009
      %2653 = vmatpush1.msra.mxu0 %v1008
      %2654 = vmatprep.subr.mxu0 %v1005
      %2655 = vmatpush1.msra.mxu0 %v1004
      %2656 = vmatprep.subr.mxu0 %v1001
      %2657 = vmatpush1.msra.mxu0 %v1000
      %2658 = vmatprep.subr.mxu0 %v997
      %2659 = vmatpush1.msra.mxu0 %v996
      %2660 = vmatprep.subr.mxu0 %v993
      %2661 = vmatpush1.msra.mxu0 %v992
      %2662 = vmatprep.subr.mxu0 %v989
      %2663 = vmatpush1.msra.mxu0 %v988
      %2664 = vmatprep.subr.mxu0 %v985
      %2665 = vmatpush1.msra.mxu0 %v984
      %2666 = vmatprep.subr.mxu0 %v981
      %2667 = vmatpush1.msra.mxu0 %v980
      %2668 = vmatprep.subr.mxu0 %v977
      %2669 = vmatpush1.msra.mxu0 %v976
      %2670 = vmatprep.subr.mxu0 %v973
      %2671 = vmatpush1.msra.mxu0 %v972
      %2672 = vmatprep.subr.mxu0 %v969
      %2673 = vmatpush1.msra.mxu0 %v968
      %2674 = vmatprep.subr.mxu0 %v965
      %2675 = vmatpush1.msra.mxu0 %v964
      %2676 = vmatprep.subr.mxu0 %v961
      %2677 = vmatpush1.msra.mxu0 %v960
      %2678 = vmatprep.subr.mxu0 %v1085
      %2679 = vmatpush2.msra.mxu0 %v1084
      %2680 = vmatprep.subr.mxu0 %v1081
      %2681 = vmatpush2.msra.mxu0 %v1080
      %2682 = vmatprep.subr.mxu0 %v1077
      %2683 = vmatpush2.msra.mxu0 %v1076
      %2684 = vmatprep.subr.mxu0 %v1073
      %2685 = vmatpush2.msra.mxu0 %v1072
      %2686 = vmatprep.subr.mxu0 %v1069
      %2687 = vmatpush2.msra.mxu0 %v1068
      %2688 = vmatprep.subr.mxu0 %v1065
      %2689 = vmatpush2.msra.mxu0 %v1064
      %2690 = vmatprep.subr.mxu0 %v1061
      %2691 = vmatpush2.msra.mxu0 %v1060
      %2692 = vmatprep.subr.mxu0 %v1057
      %2693 = vmatpush2.msra.mxu0 %v1056
      %2694 = vmatprep.subr.mxu0 %v1053
      %2695 = vmatpush2.msra.mxu0 %v1052
      %2696 = vmatprep.subr.mxu0 %v1049
      %2697 = vmatpush2.msra.mxu0 %v1048
      %2698 = vmatprep.subr.mxu0 %v1045
      %2699 = vmatpush2.msra.mxu0 %v1044
      %2700 = vmatprep.subr.mxu0 %v1041
      %2701 = vmatpush2.msra.mxu0 %v1040
      %2702 = vmatprep.subr.mxu0 %v1037
      %2703 = vmatpush2.msra.mxu0 %v1036
      %2704 = vmatprep.subr.mxu0 %v1033
      %2705 = vmatpush2.msra.mxu0 %v1032
      %2706 = vmatprep.subr.mxu0 %v1029
      %2707 = vmatpush2.msra.mxu0 %v1028
      %2708 = vmatprep.subr.mxu0 %v1025
      %2709 = vmatpush2.msra.mxu0 %v1024
      %2710 = vmatprep.mubr.f32.mxu0 %v929
      %2711 = vmatmul.mubr.f32.gmra.mxu0 %v928
      %v2712 = vpop.f32.mrf.mxu0
      %v2713 = vadd.f32 %v2294, %v2712
      %v2714 = vpop.f32.mrf.mxu0
      %v2715 = vadd.f32 %v2296, %v2714
      %2716 = vmatprep.mubr.f32.mxu0 %v934
      %2717 = vmatmul.mubr.f32.gmra.mxu0 %v933
      %v2718 = vpop.f32.mrf.mxu0
      %v2719 = vadd.f32 %v2300, %v2718
      %v2720 = vpop.f32.mrf.mxu0
      %v2721 = vadd.f32 %v2302, %v2720
      %2722 = vmatprep.mubr.f32.mxu0 %v939
      %2723 = vmatmul.mubr.f32.gmra.mxu0 %v938
      %v2724 = vpop.f32.mrf.mxu0
      %v2725 = vadd.f32 %v2306, %v2724
      %v2726 = vpop.f32.mrf.mxu0
      %v2727 = vadd.f32 %v2308, %v2726
      %2728 = vmatprep.mubr.f32.mxu0 %v944
      %2729 = vmatmul.mubr.f32.gmra.mxu0 %v943
      %v2730 = vpop.f32.mrf.mxu0
      %v2731 = vadd.f32 %v2312, %v2730
      %v2732 = vpop.f32.mrf.mxu0
      %v2733 = vadd.f32 %v2314, %v2732
      %2734 = vmatprep.mubr.f32.mxu0 %v949
      %2735 = vmatmul.mubr.f32.gmra.mxu0 %v948
      %v2736 = vpop.f32.mrf.mxu0
      %v2737 = vadd.f32 %v2318, %v2736
      %v2738 = vpop.f32.mrf.mxu0
      %v2739 = vadd.f32 %v2320, %v2738
      %2740 = vmatprep.mubr.f32.mxu0 %v954
      %2741 = vmatmul.mubr.f32.gmra.mxu0 %v953
      %v2742 = vpop.f32.mrf.mxu0
      %v2743 = vadd.f32 %v2324, %v2742
      %v2744 = vpop.f32.mrf.mxu0
      %v2745 = vadd.f32 %v2326, %v2744
      %2746 = vdwg.mxu0
      %2747 = vmatprep.subr.mxu0 %v1149
      %2748 = vmatpush1.msra.mxu0 %v1148
      %2749 = vmatprep.subr.mxu0 %v1145
      %2750 = vmatpush1.msra.mxu0 %v1144
      %2751 = vmatprep.subr.mxu0 %v1141
      %2752 = vmatpush1.msra.mxu0 %v1140
      %2753 = vmatprep.subr.mxu0 %v1137
      %2754 = vmatpush1.msra.mxu0 %v1136
      %2755 = vmatprep.subr.mxu0 %v1133
      %2756 = vmatpush1.msra.mxu0 %v1132
      %2757 = vmatprep.subr.mxu0 %v1129
      %2758 = vmatpush1.msra.mxu0 %v1128
      %2759 = vmatprep.subr.mxu0 %v1125
      %2760 = vmatpush1.msra.mxu0 %v1124
      %2761 = vmatprep.subr.mxu0 %v1121
      %2762 = vmatpush1.msra.mxu0 %v1120
      %2763 = vmatprep.subr.mxu0 %v1117
      %2764 = vmatpush1.msra.mxu0 %v1116
      %2765 = vmatprep.subr.mxu0 %v1113
      %2766 = vmatpush1.msra.mxu0 %v1112
      %2767 = vmatprep.subr.mxu0 %v1109
      %2768 = vmatpush1.msra.mxu0 %v1108
      %2769 = vmatprep.subr.mxu0 %v1105
      %2770 = vmatpush1.msra.mxu0 %v1104
      %2771 = vmatprep.subr.mxu0 %v1101
      %2772 = vmatpush1.msra.mxu0 %v1100
      %2773 = vmatprep.subr.mxu0 %v1097
      %2774 = vmatpush1.msra.mxu0 %v1096
      %2775 = vmatprep.subr.mxu0 %v1093
      %2776 = vmatpush1.msra.mxu0 %v1092
      %2777 = vmatprep.subr.mxu0 %v1089
      %2778 = vmatpush1.msra.mxu0 %v1088
      %2779 = vmatprep.subr.mxu0 %v1213
      %2780 = vmatpush2.msra.mxu0 %v1212
      %2781 = vmatprep.subr.mxu0 %v1209
      %2782 = vmatpush2.msra.mxu0 %v1208
      %2783 = vmatprep.subr.mxu0 %v1205
      %2784 = vmatpush2.msra.mxu0 %v1204
      %2785 = vmatprep.subr.mxu0 %v1201
      %2786 = vmatpush2.msra.mxu0 %v1200
      %2787 = vmatprep.subr.mxu0 %v1197
      %2788 = vmatpush2.msra.mxu0 %v1196
      %2789 = vmatprep.subr.mxu0 %v1193
      %2790 = vmatpush2.msra.mxu0 %v1192
      %2791 = vmatprep.subr.mxu0 %v1189
      %2792 = vmatpush2.msra.mxu0 %v1188
      %2793 = vmatprep.subr.mxu0 %v1185
      %2794 = vmatpush2.msra.mxu0 %v1184
      %2795 = vmatprep.subr.mxu0 %v1181
      %2796 = vmatpush2.msra.mxu0 %v1180
      %2797 = vmatprep.subr.mxu0 %v1177
      %2798 = vmatpush2.msra.mxu0 %v1176
      %2799 = vmatprep.subr.mxu0 %v1173
      %2800 = vmatpush2.msra.mxu0 %v1172
      %2801 = vmatprep.subr.mxu0 %v1169
      %2802 = vmatpush2.msra.mxu0 %v1168
      %2803 = vmatprep.subr.mxu0 %v1165
      %2804 = vmatpush2.msra.mxu0 %v1164
      %2805 = vmatprep.subr.mxu0 %v1161
      %2806 = vmatpush2.msra.mxu0 %v1160
      %2807 = vmatprep.subr.mxu0 %v1157
      %2808 = vmatpush2.msra.mxu0 %v1156
      %2809 = vmatprep.subr.mxu0 %v1153
      %2810 = vmatpush2.msra.mxu0 %v1152
      %2811 = vmatprep.mubr.f32.mxu0 %v931
      %2812 = vmatmul.mubr.f32.gmra.mxu0 %v930
      %v2813 = vpop.f32.mrf.mxu0
      %v2814 = vadd.f32 %v2713, %v2813
      %v2815 = vpop.f32.mrf.mxu0
      %v2816 = vadd.f32 %v2715, %v2815
      %2817 = vmatprep.mubr.f32.mxu0 %v936
      %2818 = vmatmul.mubr.f32.gmra.mxu0 %v935
      %v2819 = vpop.f32.mrf.mxu0
      %v2820 = vadd.f32 %v2719, %v2819
      %v2821 = vpop.f32.mrf.mxu0
      %v2822 = vadd.f32 %v2721, %v2821
      %2823 = vmatprep.mubr.f32.mxu0 %v941
      %2824 = vmatmul.mubr.f32.gmra.mxu0 %v940
      %v2825 = vpop.f32.mrf.mxu0
      %v2826 = vadd.f32 %v2725, %v2825
      %v2827 = vpop.f32.mrf.mxu0
      %v2828 = vadd.f32 %v2727, %v2827
      %2829 = vmatprep.mubr.f32.mxu0 %v946
      %2830 = vmatmul.mubr.f32.gmra.mxu0 %v945
      %v2831 = vpop.f32.mrf.mxu0
      %v2832 = vadd.f32 %v2731, %v2831
      %v2833 = vpop.f32.mrf.mxu0
      %v2834 = vadd.f32 %v2733, %v2833
      %2835 = vmatprep.mubr.f32.mxu0 %v951
      %2836 = vmatmul.mubr.f32.gmra.mxu0 %v950
      %v2837 = vpop.f32.mrf.mxu0
      %v2838 = vadd.f32 %v2737, %v2837
      %v2839 = vpop.f32.mrf.mxu0
      %v2840 = vadd.f32 %v2739, %v2839
      %2841 = vmatprep.mubr.f32.mxu0 %v956
      %2842 = vmatmul.mubr.f32.gmra.mxu0 %v955
      %v2843 = vpop.f32.mrf.mxu0
      %v2844 = vadd.f32 %v2743, %v2843
      %v2845 = vpop.f32.mrf.mxu0
      %v2846 = vadd.f32 %v2745, %v2845
      %2847 = vdwg.mxu0
      %2848 = vmatprep.subr.mxu0 0.0
      %2849 = vmatpush1.msra.mxu0 0.0
      %2850 = vmatprep.subr.mxu0 0.0
      %2851 = vmatpush1.msra.mxu0 0.0
      %2852 = vmatprep.subr.mxu0 0.0
      %2853 = vmatpush1.msra.mxu0 0.0
      %2854 = vmatprep.subr.mxu0 0.0
      %2855 = vmatpush1.msra.mxu0 0.0
      %2856 = vmatprep.subr.mxu0 0.0
      %2857 = vmatpush1.msra.mxu0 0.0
      %2858 = vmatprep.subr.mxu0 0.0
      %2859 = vmatpush1.msra.mxu0 0.0
      %2860 = vmatprep.subr.mxu0 0.0
      %2861 = vmatpush1.msra.mxu0 0.0
      %2862 = vmatprep.subr.mxu0 0.0
      %2863 = vmatpush1.msra.mxu0 0.0
      %2864 = vmatprep.subr.mxu0 %v1245
      %2865 = vmatpush1.msra.mxu0 %v1244
      %2866 = vmatprep.subr.mxu0 %v1241
      %2867 = vmatpush1.msra.mxu0 %v1240
      %2868 = vmatprep.subr.mxu0 %v1237
      %2869 = vmatpush1.msra.mxu0 %v1236
      %2870 = vmatprep.subr.mxu0 %v1233
      %2871 = vmatpush1.msra.mxu0 %v1232
      %2872 = vmatprep.subr.mxu0 %v1229
      %2873 = vmatpush1.msra.mxu0 %v1228
      %2874 = vmatprep.subr.mxu0 %v1225
      %2875 = vmatpush1.msra.mxu0 %v1224
      %2876 = vmatprep.subr.mxu0 %v1221
      %2877 = vmatpush1.msra.mxu0 %v1220
      %2878 = vmatprep.subr.mxu0 %v1217
      %2879 = vmatpush1.msra.mxu0 %v1216
      %2880 = vmatprep.subr.mxu0 0.0
      %2881 = vmatpush2.msra.mxu0 0.0
      %2882 = vmatprep.subr.mxu0 0.0
      %2883 = vmatpush2.msra.mxu0 0.0
      %2884 = vmatprep.subr.mxu0 0.0
      %2885 = vmatpush2.msra.mxu0 0.0
      %2886 = vmatprep.subr.mxu0 0.0
      %2887 = vmatpush2.msra.mxu0 0.0
      %2888 = vmatprep.subr.mxu0 0.0
      %2889 = vmatpush2.msra.mxu0 0.0
      %2890 = vmatprep.subr.mxu0 0.0
      %2891 = vmatpush2.msra.mxu0 0.0
      %2892 = vmatprep.subr.mxu0 0.0
      %2893 = vmatpush2.msra.mxu0 0.0
      %2894 = vmatprep.subr.mxu0 0.0
      %2895 = vmatpush2.msra.mxu0 0.0
      %2896 = vmatprep.subr.mxu0 0.0
      %2897 = vmatpush2.msra.mxu0 0.0
      %2898 = vmatprep.subr.mxu0 0.0
      %2899 = vmatpush2.msra.mxu0 0.0
      %2900 = vmatprep.subr.mxu0 0.0
      %2901 = vmatpush2.msra.mxu0 0.0
      %2902 = vmatprep.subr.mxu0 0.0
      %2903 = vmatpush2.msra.mxu0 0.0
      %2904 = vmatprep.subr.mxu0 0.0
      %2905 = vmatpush2.msra.mxu0 0.0
      %2906 = vmatprep.subr.mxu0 0.0
      %2907 = vmatpush2.msra.mxu0 0.0
      %2908 = vmatprep.subr.mxu0 0.0
      %2909 = vmatpush2.msra.mxu0 0.0
      %2910 = vmatprep.subr.mxu0 0.0
      %2911 = vmatpush2.msra.mxu0 0.0
      %2912 = vmatprep.mubr.f32.mxu0 0.0
      %2913 = vmatmul.mubr.f32.gmra.mxu0 %v2329
      %v2914 = vpop.f32.mrf.mxu0
      %v2915 = vadd.f32 %v2814, %v2914
      %v2916 = vpop.f32.mrf.mxu0
      %v2917 = vadd.f32 %v2816, %v2916
      %2918 = vmatprep.mubr.f32.mxu0 0.0
      %2919 = vmatmul.mubr.f32.gmra.mxu0 %v2331
      %v2920 = vpop.f32.mrf.mxu0
      %v2921 = vadd.f32 %v2820, %v2920
      %v2922 = vpop.f32.mrf.mxu0
      %v2923 = vadd.f32 %v2822, %v2922
      %2924 = vmatprep.mubr.f32.mxu0 0.0
      %2925 = vmatmul.mubr.f32.gmra.mxu0 %v2334
      %v2926 = vpop.f32.mrf.mxu0
      %v2927 = vadd.f32 %v2826, %v2926
      %v2928 = vpop.f32.mrf.mxu0
      %v2929 = vadd.f32 %v2828, %v2928
      %2930 = vmatprep.mubr.f32.mxu0 0.0
      %2931 = vmatmul.mubr.f32.gmra.mxu0 %v2336
      %v2932 = vpop.f32.mrf.mxu0
      %v2933 = vadd.f32 %v2832, %v2932
      %v2934 = vpop.f32.mrf.mxu0
      %v2935 = vadd.f32 %v2834, %v2934
      %2936 = vmatprep.mubr.f32.mxu0 0.0
      %2937 = vmatmul.mubr.f32.gmra.mxu0 %v2339
      %v2938 = vpop.f32.mrf.mxu0
      %v2939 = vadd.f32 %v2838, %v2938
      %v2940 = vpop.f32.mrf.mxu0
      %v2941 = vadd.f32 %v2840, %v2940
      %2942 = vmatprep.mubr.f32.mxu0 0.0
      %2943 = vmatmul.mubr.f32.gmra.mxu0 %v2341
      %v2944 = vpop.f32.mrf.mxu0
      %v2945 = vadd.f32 %v2844, %v2944
      %v2946 = vpop.f32.mrf.mxu0
      %v2947 = vadd.f32 %v2846, %v2946
      %2948 = vdwg.mxu0
      %v2949 = vld [vmem:[#allocation2] sm:$0xfc]
      %v2950 = vld [vmem:[#allocation2 + $0x8] sm:$0xfc]
      %v2951 = vld [vmem:[#allocation2 + $0x10] sm:$0xfc]
      %v2952 = vld [vmem:[#allocation2 + $0x18] sm:$0xfc]
      %v2953 = vld [vmem:[#allocation2 + $0x20] sm:$0xfc]
      %v2954 = vld [vmem:[#allocation2 + $0x50] sm:$0x3]
      %v2955 = vld [vmem:[#allocation2 + $0x58] sm:$0x3]
      %v2956 = vld [vmem:[#allocation2 + $0x60] sm:$0x3]
      %v2957 = vld [vmem:[#allocation2 + $0x68] sm:$0x3]
      %v2958 = vld [vmem:[#allocation2 + $0x70] sm:$0x3]
      %v2959 = vld [vmem:[#allocation2 + $0x78] sm:$0xfc]
      %v2960 = vld [vmem:[#allocation2 + $0x80] sm:$0xfc]
      %v2961 = vld [vmem:[#allocation2 + $0x88] sm:$0xfc]
      %v2962 = vld [vmem:[#allocation2 + $0x90] sm:$0xfc]
      %v2963 = vld [vmem:[#allocation2 + $0x98] sm:$0xfc]
      %v2964 = vld [vmem:[#allocation2 + $0xc8] sm:$0x3]
      %v2965 = vld [vmem:[#allocation2 + $0xd0] sm:$0x3]
      %v2966 = vld [vmem:[#allocation2 + $0xd8] sm:$0x3]
      %v2967 = vld [vmem:[#allocation2 + $0xe0] sm:$0x3]
      %v2968 = vld [vmem:[#allocation2 + $0xe8] sm:$0x3]
      %v2969 = vld [vmem:[#allocation2 + $0xf0] sm:$0xfc]
      %v2970 = vld [vmem:[#allocation2 + $0xf8] sm:$0xfc]
      %v2971 = vld [vmem:[#allocation2 + $0x100] sm:$0xfc]
      %v2972 = vld [vmem:[#allocation2 + $0x108] sm:$0xfc]
      %v2973 = vld [vmem:[#allocation2 + $0x110] sm:$0xfc]
      %v2974 = vld [vmem:[#allocation2 + $0x140] sm:$0x3]
      %v2975 = vld [vmem:[#allocation2 + $0x148] sm:$0x3]
      %v2976 = vld [vmem:[#allocation2 + $0x150] sm:$0x3]
      %v2977 = vld [vmem:[#allocation2 + $0x158] sm:$0x3]
      %v2978 = vld [vmem:[#allocation2 + $0x160] sm:$0x3]
      %vm3009 = vcmask 1045504
      %v3010 = vrot.slane %v2949, 2
      %v3011 = vrot.slane %v933, 2
      %v3012 = vsel %vm3009, %v3010, %v3011
      %v3013 = vrot.slane %v2950, 2
      %v3014 = vrot.slane %v934, 2
      %v3015 = vsel %vm3009, %v3013, %v3014
      %v3016 = vrot.slane %v2951, 2
      %v3017 = vrot.slane %v935, 2
      %v3018 = vsel %vm3009, %v3016, %v3017
      %v3019 = vrot.slane %v2952, 2
      %v3020 = vrot.slane %v936, 2
      %v3021 = vsel %vm3009, %v3019, %v3020
      %v3022 = vrot.slane %v2953, 2
      %v3023 = vrot.slane %v937, 2
      %v3024 = vsel %vm3009, %v3022, %v3023
      %v3025 = vrot.slane %v2954, 2
      %v3026 = vsel %vm3009, %v3011, %v3025
      %v3027 = vrot.slane %v2955, 2
      %v3028 = vsel %vm3009, %v3014, %v3027
      %v3029 = vrot.slane %v2956, 2
      %v3030 = vsel %vm3009, %v3017, %v3029
      %v3031 = vrot.slane %v2957, 2
      %v3032 = vsel %vm3009, %v3020, %v3031
      %v3033 = vrot.slane %v2958, 2
      %v3034 = vsel %vm3009, %v3023, %v3033
      %v3035 = vrot.slane %v2959, 2
      %v3036 = vrot.slane %v943, 2
      %v3037 = vsel %vm3009, %v3035, %v3036
      %v3038 = vrot.slane %v2960, 2
      %v3039 = vrot.slane %v944, 2
      %v3040 = vsel %vm3009, %v3038, %v3039
      %v3041 = vrot.slane %v2961, 2
      %v3042 = vrot.slane %v945, 2
      %v3043 = vsel %vm3009, %v3041, %v3042
      %v3044 = vrot.slane %v2962, 2
      %v3045 = vrot.slane %v946, 2
      %v3046 = vsel %vm3009, %v3044, %v3045
      %v3047 = vrot.slane %v2963, 2
      %v3048 = vrot.slane %v947, 2
      %v3049 = vsel %vm3009, %v3047, %v3048
      %v3050 = vrot.slane %v2964, 2
      %v3051 = vsel %vm3009, %v3036, %v3050
      %v3052 = vrot.slane %v2965, 2
      %v3053 = vsel %vm3009, %v3039, %v3052
      %v3054 = vrot.slane %v2966, 2
      %v3055 = vsel %vm3009, %v3042, %v3054
      %v3056 = vrot.slane %v2967, 2
      %v3057 = vsel %vm3009, %v3045, %v3056
      %v3058 = vrot.slane %v2968, 2
      %v3059 = vsel %vm3009, %v3048, %v3058
      %v3060 = vrot.slane %v2969, 2
      %v3061 = vrot.slane %v953, 2
      %v3062 = vsel %vm3009, %v3060, %v3061
      %v3063 = vrot.slane %v2970, 2
      %v3064 = vrot.slane %v954, 2
      %v3065 = vsel %vm3009, %v3063, %v3064
      %v3066 = vrot.slane %v2971, 2
      %v3067 = vrot.slane %v955, 2
      %v3068 = vsel %vm3009, %v3066, %v3067
      %v3069 = vrot.slane %v2972, 2
      %v3070 = vrot.slane %v956, 2
      %v3071 = vsel %vm3009, %v3069, %v3070
      %v3072 = vrot.slane %v2973, 2
      %v3073 = vrot.slane %v957, 2
      %v3074 = vsel %vm3009, %v3072, %v3073
      %v3075 = vrot.slane %v2974, 2
      %v3076 = vsel %vm3009, %v3061, %v3075
      %v3077 = vrot.slane %v2975, 2
      %v3078 = vsel %vm3009, %v3064, %v3077
      %v3079 = vrot.slane %v2976, 2
      %v3080 = vsel %vm3009, %v3067, %v3079
      %v3081 = vrot.slane %v2977, 2
      %v3082 = vsel %vm3009, %v3070, %v3081
      %v3083 = vrot.slane %v2978, 2
      %v3084 = vsel %vm3009, %v3073, %v3083
      %s3109 = scalar_lea.vmem %s3, 4608
      %v3110 = vld [vmem:[%s3109] sm:$0xff]
      %v3111 = vld [vmem:[%s3109 + $0x8] sm:$0xff]
      %v3112 = vld [vmem:[%s3109 + $0x10] sm:$0xff]
      %v3113 = vld [vmem:[%s3109 + $0x18] sm:$0xff]
      %v3114 = vld [vmem:[%s3109 + $0x20] sm:$0xff]
      %v3115 = vld [vmem:[%s3109 + $0x28] sm:$0xff]
      %v3116 = vld [vmem:[%s3109 + $0x30] sm:$0xff]
      %v3117 = vld [vmem:[%s3109 + $0x38] sm:$0xff]
      %v3118 = vld [vmem:[%s3109 + $0x40] sm:$0xff]
      %v3119 = vld [vmem:[%s3109 + $0x48] sm:$0xff]
      %v3120 = vld [vmem:[%s3109 + $0x50] sm:$0xff]
      %v3121 = vld [vmem:[%s3109 + $0x58] sm:$0xff]
      %v3122 = vld [vmem:[%s3109 + $0x60] sm:$0xff]
      %v3123 = vld [vmem:[%s3109 + $0x68] sm:$0xff]
      %v3124 = vld [vmem:[%s3109 + $0x70] sm:$0xff]
      %v3125 = vld [vmem:[%s3109 + $0x78] sm:$0xff]
      %v3126 = vld [vmem:[%s3109 + $0x80] sm:$0xff]
      %v3127 = vld [vmem:[%s3109 + $0x88] sm:$0xff]
      %v3128 = vld [vmem:[%s3109 + $0x90] sm:$0xff]
      %v3129 = vld [vmem:[%s3109 + $0x98] sm:$0xff]
      %v3130 = vld [vmem:[%s3109 + $0xa0] sm:$0xff]
      %v3131 = vld [vmem:[%s3109 + $0xa8] sm:$0xff]
      %v3132 = vld [vmem:[%s3109 + $0xb0] sm:$0xff]
      %v3133 = vld [vmem:[%s3109 + $0xb8] sm:$0xff]
      %v3134 = vld [vmem:[%s3109 + $0xc0] sm:$0xff]
      %v3135 = vld [vmem:[%s3109 + $0xc8] sm:$0xff]
      %v3136 = vld [vmem:[%s3109 + $0xd0] sm:$0xff]
      %v3137 = vld [vmem:[%s3109 + $0xd8] sm:$0xff]
      %v3138 = vld [vmem:[%s3109 + $0xe0] sm:$0xff]
      %v3139 = vld [vmem:[%s3109 + $0xe8] sm:$0xff]
      %v3140 = vld [vmem:[%s3109 + $0xf0] sm:$0xff]
      %v3141 = vld [vmem:[%s3109 + $0xf8] sm:$0xff]
      %v3142 = vld [vmem:[%s3109 + $0x100] sm:$0xff]
      %v3143 = vld [vmem:[%s3109 + $0x108] sm:$0xff]
      %v3144 = vld [vmem:[%s3109 + $0x110] sm:$0xff]
      %v3145 = vld [vmem:[%s3109 + $0x118] sm:$0xff]
      %v3146 = vld [vmem:[%s3109 + $0x120] sm:$0xff]
      %v3147 = vld [vmem:[%s3109 + $0x128] sm:$0xff]
      %v3148 = vld [vmem:[%s3109 + $0x130] sm:$0xff]
      %v3149 = vld [vmem:[%s3109 + $0x138] sm:$0xff]
      %v3150 = vld [vmem:[%s3109 + $0x140] sm:$0xff]
      %v3151 = vld [vmem:[%s3109 + $0x148] sm:$0xff]
      %v3152 = vld [vmem:[%s3109 + $0x150] sm:$0xff]
      %v3153 = vld [vmem:[%s3109 + $0x158] sm:$0xff]
      %v3154 = vld [vmem:[%s3109 + $0x160] sm:$0xff]
      %v3155 = vld [vmem:[%s3109 + $0x168] sm:$0xff]
      %v3156 = vld [vmem:[%s3109 + $0x170] sm:$0xff]
      %v3157 = vld [vmem:[%s3109 + $0x178] sm:$0xff]
      %v3158 = vld [vmem:[%s3109 + $0x180] sm:$0xff]
      %v3159 = vld [vmem:[%s3109 + $0x188] sm:$0xff]
      %v3160 = vld [vmem:[%s3109 + $0x190] sm:$0xff]
      %v3161 = vld [vmem:[%s3109 + $0x198] sm:$0xff]
      %v3162 = vld [vmem:[%s3109 + $0x1a0] sm:$0xff]
      %v3163 = vld [vmem:[%s3109 + $0x1a8] sm:$0xff]
      %v3164 = vld [vmem:[%s3109 + $0x1b0] sm:$0xff]
      %v3165 = vld [vmem:[%s3109 + $0x1b8] sm:$0xff]
      %v3166 = vld [vmem:[%s3109 + $0x1c0] sm:$0xff]
      %v3167 = vld [vmem:[%s3109 + $0x1c8] sm:$0xff]
      %v3168 = vld [vmem:[%s3109 + $0x1d0] sm:$0xff]
      %v3169 = vld [vmem:[%s3109 + $0x1d8] sm:$0xff]
      %v3170 = vld [vmem:[%s3109 + $0x1e0] sm:$0xff]
      %v3171 = vld [vmem:[%s3109 + $0x1e8] sm:$0xff]
      %v3172 = vld [vmem:[%s3109 + $0x1f0] sm:$0xff]
      %v3173 = vld [vmem:[%s3109 + $0x1f8] sm:$0xff]
      %v3174 = vld [vmem:[%s3109 + $0x200] sm:$0xff]
      %v3175 = vld [vmem:[%s3109 + $0x208] sm:$0xff]
      %v3176 = vld [vmem:[%s3109 + $0x210] sm:$0xff]
      %v3177 = vld [vmem:[%s3109 + $0x218] sm:$0xff]
      %v3178 = vld [vmem:[%s3109 + $0x220] sm:$0xff]
      %v3179 = vld [vmem:[%s3109 + $0x228] sm:$0xff]
      %v3180 = vld [vmem:[%s3109 + $0x230] sm:$0xff]
      %v3181 = vld [vmem:[%s3109 + $0x238] sm:$0xff]
      %v3182 = vld [vmem:[%s3109 + $0x240] sm:$0xff]
      %v3183 = vld [vmem:[%s3109 + $0x248] sm:$0xff]
      %v3184 = vld [vmem:[%s3109 + $0x250] sm:$0xff]
      %v3185 = vld [vmem:[%s3109 + $0x258] sm:$0xff]
      %v3186 = vld [vmem:[%s3109 + $0x260] sm:$0xff]
      %v3187 = vld [vmem:[%s3109 + $0x268] sm:$0xff]
      %v3188 = vld [vmem:[%s3109 + $0x270] sm:$0xff]
      %v3189 = vld [vmem:[%s3109 + $0x278] sm:$0xff]
      %v3190 = vld [vmem:[%s3109 + $0x280] sm:$0xff]
      %v3191 = vld [vmem:[%s3109 + $0x288] sm:$0xff]
      %v3192 = vld [vmem:[%s3109 + $0x290] sm:$0xff]
      %v3193 = vld [vmem:[%s3109 + $0x298] sm:$0xff]
      %v3194 = vld [vmem:[%s3109 + $0x2a0] sm:$0xff]
      %v3195 = vld [vmem:[%s3109 + $0x2a8] sm:$0xff]
      %v3196 = vld [vmem:[%s3109 + $0x2b0] sm:$0xff]
      %v3197 = vld [vmem:[%s3109 + $0x2b8] sm:$0xff]
      %v3198 = vld [vmem:[%s3109 + $0x2c0] sm:$0xff]
      %v3199 = vld [vmem:[%s3109 + $0x2c8] sm:$0xff]
      %v3200 = vld [vmem:[%s3109 + $0x2d0] sm:$0xff]
      %v3201 = vld [vmem:[%s3109 + $0x2d8] sm:$0xff]
      %v3202 = vld [vmem:[%s3109 + $0x2e0] sm:$0xff]
      %v3203 = vld [vmem:[%s3109 + $0x2e8] sm:$0xff]
      %v3204 = vld [vmem:[%s3109 + $0x2f0] sm:$0xff]
      %v3205 = vld [vmem:[%s3109 + $0x2f8] sm:$0xff]
      %v3206 = vld [vmem:[%s3109 + $0x300] sm:$0xff]
      %v3207 = vld [vmem:[%s3109 + $0x308] sm:$0xff]
      %v3208 = vld [vmem:[%s3109 + $0x310] sm:$0xff]
      %v3209 = vld [vmem:[%s3109 + $0x318] sm:$0xff]
      %v3210 = vld [vmem:[%s3109 + $0x320] sm:$0xff]
      %v3211 = vld [vmem:[%s3109 + $0x328] sm:$0xff]
      %v3212 = vld [vmem:[%s3109 + $0x330] sm:$0xff]
      %v3213 = vld [vmem:[%s3109 + $0x338] sm:$0xff]
      %v3214 = vld [vmem:[%s3109 + $0x340] sm:$0xff]
      %v3215 = vld [vmem:[%s3109 + $0x348] sm:$0xff]
      %v3216 = vld [vmem:[%s3109 + $0x350] sm:$0xff]
      %v3217 = vld [vmem:[%s3109 + $0x358] sm:$0xff]
      %v3218 = vld [vmem:[%s3109 + $0x360] sm:$0xff]
      %v3219 = vld [vmem:[%s3109 + $0x368] sm:$0xff]
      %v3220 = vld [vmem:[%s3109 + $0x370] sm:$0xff]
      %v3221 = vld [vmem:[%s3109 + $0x378] sm:$0xff]
      %v3222 = vld [vmem:[%s3109 + $0x380] sm:$0xff]
      %v3223 = vld [vmem:[%s3109 + $0x388] sm:$0xff]
      %v3224 = vld [vmem:[%s3109 + $0x390] sm:$0xff]
      %v3225 = vld [vmem:[%s3109 + $0x398] sm:$0xff]
      %v3226 = vld [vmem:[%s3109 + $0x3a0] sm:$0xff]
      %v3227 = vld [vmem:[%s3109 + $0x3a8] sm:$0xff]
      %v3228 = vld [vmem:[%s3109 + $0x3b0] sm:$0xff]
      %v3229 = vld [vmem:[%s3109 + $0x3b8] sm:$0xff]
      %v3230 = vld [vmem:[%s3109 + $0x3c0] sm:$0xff]
      %v3231 = vld [vmem:[%s3109 + $0x3c8] sm:$0xff]
      %v3232 = vld [vmem:[%s3109 + $0x3d0] sm:$0xff]
      %v3233 = vld [vmem:[%s3109 + $0x3d8] sm:$0xff]
      %v3234 = vld [vmem:[%s3109 + $0x3e0] sm:$0xff]
      %v3235 = vld [vmem:[%s3109 + $0x3e8] sm:$0xff]
      %v3236 = vld [vmem:[%s3109 + $0x3f0] sm:$0xff]
      %v3237 = vld [vmem:[%s3109 + $0x3f8] sm:$0xff]
      %v3238 = vld [vmem:[%s3109 + $0x400] sm:$0xff]
      %v3239 = vld [vmem:[%s3109 + $0x408] sm:$0xff]
      %v3240 = vld [vmem:[%s3109 + $0x410] sm:$0xff]
      %v3241 = vld [vmem:[%s3109 + $0x418] sm:$0xff]
      %v3242 = vld [vmem:[%s3109 + $0x420] sm:$0xff]
      %v3243 = vld [vmem:[%s3109 + $0x428] sm:$0xff]
      %v3244 = vld [vmem:[%s3109 + $0x430] sm:$0xff]
      %v3245 = vld [vmem:[%s3109 + $0x438] sm:$0xff]
      %v3246 = vld [vmem:[%s3109 + $0x440] sm:$0xff]
      %v3247 = vld [vmem:[%s3109 + $0x448] sm:$0xff]
      %v3248 = vld [vmem:[%s3109 + $0x450] sm:$0xff]
      %v3249 = vld [vmem:[%s3109 + $0x458] sm:$0xff]
      %v3250 = vld [vmem:[%s3109 + $0x460] sm:$0xff]
      %v3251 = vld [vmem:[%s3109 + $0x468] sm:$0xff]
      %v3252 = vld [vmem:[%s3109 + $0x470] sm:$0xff]
      %v3253 = vld [vmem:[%s3109 + $0x478] sm:$0xff]
      %v3254 = vld [vmem:[%s3109 + $0x480] sm:$0xff]
      %v3255 = vld [vmem:[%s3109 + $0x488] sm:$0xff]
      %v3256 = vld [vmem:[%s3109 + $0x490] sm:$0xff]
      %v3257 = vld [vmem:[%s3109 + $0x498] sm:$0xff]
      %v3258 = vld [vmem:[%s3109 + $0x4a0] sm:$0xff]
      %v3259 = vld [vmem:[%s3109 + $0x4a8] sm:$0xff]
      %v3260 = vld [vmem:[%s3109 + $0x4b0] sm:$0xff]
      %v3261 = vld [vmem:[%s3109 + $0x4b8] sm:$0xff]
      %v3262 = vld [vmem:[%s3109 + $0x4c0] sm:$0xff]
      %v3263 = vld [vmem:[%s3109 + $0x4c8] sm:$0xff]
      %v3264 = vld [vmem:[%s3109 + $0x4d0] sm:$0xff]
      %v3265 = vld [vmem:[%s3109 + $0x4d8] sm:$0xff]
      %v3266 = vld [vmem:[%s3109 + $0x4e0] sm:$0xff]
      %v3267 = vld [vmem:[%s3109 + $0x4e8] sm:$0xff]
      %v3268 = vld [vmem:[%s3109 + $0x4f0] sm:$0xff]
      %v3269 = vld [vmem:[%s3109 + $0x4f8] sm:$0xff]
      %v3270 = vld [vmem:[%s3109 + $0x500] sm:$0xff]
      %v3271 = vld [vmem:[%s3109 + $0x508] sm:$0xff]
      %v3272 = vld [vmem:[%s3109 + $0x510] sm:$0xff]
      %v3273 = vld [vmem:[%s3109 + $0x518] sm:$0xff]
      %v3274 = vld [vmem:[%s3109 + $0x520] sm:$0xff]
      %v3275 = vld [vmem:[%s3109 + $0x528] sm:$0xff]
      %v3276 = vld [vmem:[%s3109 + $0x530] sm:$0xff]
      %v3277 = vld [vmem:[%s3109 + $0x538] sm:$0xff]
      %v3278 = vld [vmem:[%s3109 + $0x540] sm:$0xff]
      %v3279 = vld [vmem:[%s3109 + $0x548] sm:$0xff]
      %v3280 = vld [vmem:[%s3109 + $0x550] sm:$0xff]
      %v3281 = vld [vmem:[%s3109 + $0x558] sm:$0xff]
      %v3282 = vld [vmem:[%s3109 + $0x560] sm:$0xff]
      %v3283 = vld [vmem:[%s3109 + $0x568] sm:$0xff]
      %v3284 = vld [vmem:[%s3109 + $0x570] sm:$0xff]
      %v3285 = vld [vmem:[%s3109 + $0x578] sm:$0xff]
      %v3286 = vld [vmem:[%s3109 + $0x580] sm:$0xff]
      %v3287 = vld [vmem:[%s3109 + $0x588] sm:$0xff]
      %v3288 = vld [vmem:[%s3109 + $0x590] sm:$0xff]
      %v3289 = vld [vmem:[%s3109 + $0x598] sm:$0xff]
      %v3290 = vld [vmem:[%s3109 + $0x5a0] sm:$0xff]
      %v3291 = vld [vmem:[%s3109 + $0x5a8] sm:$0xff]
      %v3292 = vld [vmem:[%s3109 + $0x5b0] sm:$0xff]
      %v3293 = vld [vmem:[%s3109 + $0x5b8] sm:$0xff]
      %v3294 = vld [vmem:[%s3109 + $0x5c0] sm:$0xff]
      %v3295 = vld [vmem:[%s3109 + $0x5c8] sm:$0xff]
      %v3296 = vld [vmem:[%s3109 + $0x5d0] sm:$0xff]
      %v3297 = vld [vmem:[%s3109 + $0x5d8] sm:$0xff]
      %v3298 = vld [vmem:[%s3109 + $0x5e0] sm:$0xff]
      %v3299 = vld [vmem:[%s3109 + $0x5e8] sm:$0xff]
      %v3300 = vld [vmem:[%s3109 + $0x5f0] sm:$0xff]
      %v3301 = vld [vmem:[%s3109 + $0x5f8] sm:$0xff]
      %v3302 = vld [vmem:[%s3109 + $0x600] sm:$0xff]
      %v3303 = vld [vmem:[%s3109 + $0x608] sm:$0xff]
      %v3304 = vld [vmem:[%s3109 + $0x610] sm:$0xff]
      %v3305 = vld [vmem:[%s3109 + $0x618] sm:$0xff]
      %v3306 = vld [vmem:[%s3109 + $0x620] sm:$0xff]
      %v3307 = vld [vmem:[%s3109 + $0x628] sm:$0xff]
      %v3308 = vld [vmem:[%s3109 + $0x630] sm:$0xff]
      %v3309 = vld [vmem:[%s3109 + $0x638] sm:$0xff]
      %v3310 = vld [vmem:[%s3109 + $0x640] sm:$0xff]
      %v3311 = vld [vmem:[%s3109 + $0x648] sm:$0xff]
      %v3312 = vld [vmem:[%s3109 + $0x650] sm:$0xff]
      %v3313 = vld [vmem:[%s3109 + $0x658] sm:$0xff]
      %v3314 = vld [vmem:[%s3109 + $0x660] sm:$0xff]
      %v3315 = vld [vmem:[%s3109 + $0x668] sm:$0xff]
      %v3316 = vld [vmem:[%s3109 + $0x670] sm:$0xff]
      %v3317 = vld [vmem:[%s3109 + $0x678] sm:$0xff]
      %v3318 = vld [vmem:[%s3109 + $0x680] sm:$0xff]
      %v3319 = vld [vmem:[%s3109 + $0x688] sm:$0xff]
      %v3320 = vld [vmem:[%s3109 + $0x690] sm:$0xff]
      %v3321 = vld [vmem:[%s3109 + $0x698] sm:$0xff]
      %v3322 = vld [vmem:[%s3109 + $0x6a0] sm:$0xff]
      %v3323 = vld [vmem:[%s3109 + $0x6a8] sm:$0xff]
      %v3324 = vld [vmem:[%s3109 + $0x6b0] sm:$0xff]
      %v3325 = vld [vmem:[%s3109 + $0x6b8] sm:$0xff]
      %v3326 = vld [vmem:[%s3109 + $0x6c0] sm:$0xff]
      %v3327 = vld [vmem:[%s3109 + $0x6c8] sm:$0xff]
      %v3328 = vld [vmem:[%s3109 + $0x6d0] sm:$0xff]
      %v3329 = vld [vmem:[%s3109 + $0x6d8] sm:$0xff]
      %v3330 = vld [vmem:[%s3109 + $0x6e0] sm:$0xff]
      %v3331 = vld [vmem:[%s3109 + $0x6e8] sm:$0xff]
      %v3332 = vld [vmem:[%s3109 + $0x6f0] sm:$0xff]
      %v3333 = vld [vmem:[%s3109 + $0x6f8] sm:$0xff]
      %v3334 = vld [vmem:[%s3109 + $0x700] sm:$0xff]
      %v3335 = vld [vmem:[%s3109 + $0x708] sm:$0xff]
      %v3336 = vld [vmem:[%s3109 + $0x710] sm:$0xff]
      %v3337 = vld [vmem:[%s3109 + $0x718] sm:$0xff]
      %v3338 = vld [vmem:[%s3109 + $0x720] sm:$0xff]
      %v3339 = vld [vmem:[%s3109 + $0x728] sm:$0xff]
      %v3340 = vld [vmem:[%s3109 + $0x730] sm:$0xff]
      %v3341 = vld [vmem:[%s3109 + $0x738] sm:$0xff]
      %v3342 = vld [vmem:[%s3109 + $0x740] sm:$0xff]
      %v3343 = vld [vmem:[%s3109 + $0x748] sm:$0xff]
      %v3344 = vld [vmem:[%s3109 + $0x750] sm:$0xff]
      %v3345 = vld [vmem:[%s3109 + $0x758] sm:$0xff]
      %v3346 = vld [vmem:[%s3109 + $0x760] sm:$0xff]
      %v3347 = vld [vmem:[%s3109 + $0x768] sm:$0xff]
      %v3348 = vld [vmem:[%s3109 + $0x770] sm:$0xff]
      %v3349 = vld [vmem:[%s3109 + $0x778] sm:$0xff]
      %v3350 = vld [vmem:[%s3109 + $0x780] sm:$0xff]
      %v3351 = vld [vmem:[%s3109 + $0x788] sm:$0xff]
      %v3352 = vld [vmem:[%s3109 + $0x790] sm:$0xff]
      %v3353 = vld [vmem:[%s3109 + $0x798] sm:$0xff]
      %v3354 = vld [vmem:[%s3109 + $0x7a0] sm:$0xff]
      %v3355 = vld [vmem:[%s3109 + $0x7a8] sm:$0xff]
      %v3356 = vld [vmem:[%s3109 + $0x7b0] sm:$0xff]
      %v3357 = vld [vmem:[%s3109 + $0x7b8] sm:$0xff]
      %v3358 = vld [vmem:[%s3109 + $0x7c0] sm:$0xff]
      %v3359 = vld [vmem:[%s3109 + $0x7c8] sm:$0xff]
      %v3360 = vld [vmem:[%s3109 + $0x7d0] sm:$0xff]
      %v3361 = vld [vmem:[%s3109 + $0x7d8] sm:$0xff]
      %v3362 = vld [vmem:[%s3109 + $0x7e0] sm:$0xff]
      %v3363 = vld [vmem:[%s3109 + $0x7e8] sm:$0xff]
      %v3364 = vld [vmem:[%s3109 + $0x7f0] sm:$0xff]
      %v3365 = vld [vmem:[%s3109 + $0x7f8] sm:$0xff]
      %v3366 = vld [vmem:[%s3109 + $0x800] sm:$0xff]
      %v3367 = vld [vmem:[%s3109 + $0x808] sm:$0xff]
      %v3368 = vld [vmem:[%s3109 + $0x810] sm:$0xff]
      %v3369 = vld [vmem:[%s3109 + $0x818] sm:$0xff]
      %v3370 = vld [vmem:[%s3109 + $0x820] sm:$0xff]
      %v3371 = vld [vmem:[%s3109 + $0x828] sm:$0xff]
      %v3372 = vld [vmem:[%s3109 + $0x830] sm:$0xff]
      %v3373 = vld [vmem:[%s3109 + $0x838] sm:$0xff]
      %v3374 = vld [vmem:[%s3109 + $0x840] sm:$0xff]
      %v3375 = vld [vmem:[%s3109 + $0x848] sm:$0xff]
      %v3376 = vld [vmem:[%s3109 + $0x850] sm:$0xff]
      %v3377 = vld [vmem:[%s3109 + $0x858] sm:$0xff]
      %v3378 = vld [vmem:[%s3109 + $0x860] sm:$0xff]
      %v3379 = vld [vmem:[%s3109 + $0x868] sm:$0xff]
      %v3380 = vld [vmem:[%s3109 + $0x870] sm:$0xff]
      %v3381 = vld [vmem:[%s3109 + $0x878] sm:$0xff]
      %v3382 = vld [vmem:[%s3109 + $0x880] sm:$0xff]
      %v3383 = vld [vmem:[%s3109 + $0x888] sm:$0xff]
      %v3384 = vld [vmem:[%s3109 + $0x890] sm:$0xff]
      %v3385 = vld [vmem:[%s3109 + $0x898] sm:$0xff]
      %v3386 = vld [vmem:[%s3109 + $0x8a0] sm:$0xff]
      %v3387 = vld [vmem:[%s3109 + $0x8a8] sm:$0xff]
      %v3388 = vld [vmem:[%s3109 + $0x8b0] sm:$0xff]
      %v3389 = vld [vmem:[%s3109 + $0x8b8] sm:$0xff]
      %v3390 = vld [vmem:[%s3109 + $0x8c0] sm:$0xff]
      %v3391 = vld [vmem:[%s3109 + $0x8c8] sm:$0xff]
      %v3392 = vld [vmem:[%s3109 + $0x8d0] sm:$0xff]
      %v3393 = vld [vmem:[%s3109 + $0x8d8] sm:$0xff]
      %v3394 = vld [vmem:[%s3109 + $0x8e0] sm:$0xff]
      %v3395 = vld [vmem:[%s3109 + $0x8e8] sm:$0xff]
      %v3396 = vld [vmem:[%s3109 + $0x8f0] sm:$0xff]
      %v3397 = vld [vmem:[%s3109 + $0x8f8] sm:$0xff]
      %v3398 = vsel %vm629, %v3024, 0
      %v3400 = vsel %vm629, %v3034, 0
      %v3402 = vsel %vm629, %v3049, 0
      %v3404 = vsel %vm629, %v3059, 0
      %v3406 = vsel %vm629, %v3074, 0
      %v3408 = vsel %vm629, %v3084, 0
      %3410 = vmatprep.subr.mxu0 %v3171
      %3411 = vmatpush1.msra.mxu0 %v3170
      %3412 = vmatprep.subr.mxu0 %v3167
      %3413 = vmatpush1.msra.mxu0 %v3166
      %3414 = vmatprep.subr.mxu0 %v3163
      %3415 = vmatpush1.msra.mxu0 %v3162
      %3416 = vmatprep.subr.mxu0 %v3159
      %3417 = vmatpush1.msra.mxu0 %v3158
      %3418 = vmatprep.subr.mxu0 %v3155
      %3419 = vmatpush1.msra.mxu0 %v3154
      %3420 = vmatprep.subr.mxu0 %v3151
      %3421 = vmatpush1.msra.mxu0 %v3150
      %3422 = vmatprep.subr.mxu0 %v3147
      %3423 = vmatpush1.msra.mxu0 %v3146
      %3424 = vmatprep.subr.mxu0 %v3143
      %3425 = vmatpush1.msra.mxu0 %v3142
      %3426 = vmatprep.subr.mxu0 %v3139
      %3427 = vmatpush1.msra.mxu0 %v3138
      %3428 = vmatprep.subr.mxu0 %v3135
      %3429 = vmatpush1.msra.mxu0 %v3134
      %3430 = vmatprep.subr.mxu0 %v3131
      %3431 = vmatpush1.msra.mxu0 %v3130
      %3432 = vmatprep.subr.mxu0 %v3127
      %3433 = vmatpush1.msra.mxu0 %v3126
      %3434 = vmatprep.subr.mxu0 %v3123
      %3435 = vmatpush1.msra.mxu0 %v3122
      %3436 = vmatprep.subr.mxu0 %v3119
      %3437 = vmatpush1.msra.mxu0 %v3118
      %3438 = vmatprep.subr.mxu0 %v3115
      %3439 = vmatpush1.msra.mxu0 %v3114
      %3440 = vmatprep.subr.mxu0 %v3111
      %3441 = vmatpush1.msra.mxu0 %v3110
      %3442 = vmatprep.subr.mxu0 %v3235
      %3443 = vmatpush2.msra.mxu0 %v3234
      %3444 = vmatprep.subr.mxu0 %v3231
      %3445 = vmatpush2.msra.mxu0 %v3230
      %3446 = vmatprep.subr.mxu0 %v3227
      %3447 = vmatpush2.msra.mxu0 %v3226
      %3448 = vmatprep.subr.mxu0 %v3223
      %3449 = vmatpush2.msra.mxu0 %v3222
      %3450 = vmatprep.subr.mxu0 %v3219
      %3451 = vmatpush2.msra.mxu0 %v3218
      %3452 = vmatprep.subr.mxu0 %v3215
      %3453 = vmatpush2.msra.mxu0 %v3214
      %3454 = vmatprep.subr.mxu0 %v3211
      %3455 = vmatpush2.msra.mxu0 %v3210
      %3456 = vmatprep.subr.mxu0 %v3207
      %3457 = vmatpush2.msra.mxu0 %v3206
      %3458 = vmatprep.subr.mxu0 %v3203
      %3459 = vmatpush2.msra.mxu0 %v3202
      %3460 = vmatprep.subr.mxu0 %v3199
      %3461 = vmatpush2.msra.mxu0 %v3198
      %3462 = vmatprep.subr.mxu0 %v3195
      %3463 = vmatpush2.msra.mxu0 %v3194
      %3464 = vmatprep.subr.mxu0 %v3191
      %3465 = vmatpush2.msra.mxu0 %v3190
      %3466 = vmatprep.subr.mxu0 %v3187
      %3467 = vmatpush2.msra.mxu0 %v3186
      %3468 = vmatprep.subr.mxu0 %v3183
      %3469 = vmatpush2.msra.mxu0 %v3182
      %3470 = vmatprep.subr.mxu0 %v3179
      %3471 = vmatpush2.msra.mxu0 %v3178
      %3472 = vmatprep.subr.mxu0 %v3175
      %3473 = vmatpush2.msra.mxu0 %v3174
      %3474 = vmatprep.mubr.f32.mxu0 %v3015
      %3475 = vmatmul.mubr.f32.gmra.mxu0 %v3012
      %v3476 = vpop.f32.mrf.mxu0
      %v3477 = vadd.f32 0.0, %v3476
      %v3478 = vpop.f32.mrf.mxu0
      %v3479 = vadd.f32 0.0, %v3478
      %3480 = vmatprep.mubr.f32.mxu0 %v3028
      %3481 = vmatmul.mubr.f32.gmra.mxu0 %v3026
      %v3482 = vpop.f32.mrf.mxu0
      %v3483 = vadd.f32 0.0, %v3482
      %v3484 = vpop.f32.mrf.mxu0
      %v3485 = vadd.f32 0.0, %v3484
      %3486 = vmatprep.mubr.f32.mxu0 %v3040
      %3487 = vmatmul.mubr.f32.gmra.mxu0 %v3037
      %v3488 = vpop.f32.mrf.mxu0
      %v3489 = vadd.f32 0.0, %v3488
      %v3490 = vpop.f32.mrf.mxu0
      %v3491 = vadd.f32 0.0, %v3490
      %3492 = vmatprep.mubr.f32.mxu0 %v3053
      %3493 = vmatmul.mubr.f32.gmra.mxu0 %v3051
      %v3494 = vpop.f32.mrf.mxu0
      %v3495 = vadd.f32 0.0, %v3494
      %v3496 = vpop.f32.mrf.mxu0
      %v3497 = vadd.f32 0.0, %v3496
      %3498 = vmatprep.mubr.f32.mxu0 %v3065
      %3499 = vmatmul.mubr.f32.gmra.mxu0 %v3062
      %v3500 = vpop.f32.mrf.mxu0
      %v3501 = vadd.f32 0.0, %v3500
      %v3502 = vpop.f32.mrf.mxu0
      %v3503 = vadd.f32 0.0, %v3502
      %3504 = vmatprep.mubr.f32.mxu0 %v3078
      %3505 = vmatmul.mubr.f32.gmra.mxu0 %v3076
      %v3506 = vpop.f32.mrf.mxu0
      %v3507 = vadd.f32 0.0, %v3506
      %v3508 = vpop.f32.mrf.mxu0
      %v3509 = vadd.f32 0.0, %v3508
      %3510 = vdwg.mxu0
      %3511 = vmatprep.subr.mxu0 %v3299
      %3512 = vmatpush1.msra.mxu0 %v3298
      %3513 = vmatprep.subr.mxu0 %v3295
      %3514 = vmatpush1.msra.mxu0 %v3294
      %3515 = vmatprep.subr.mxu0 %v3291
      %3516 = vmatpush1.msra.mxu0 %v3290
      %3517 = vmatprep.subr.mxu0 %v3287
      %3518 = vmatpush1.msra.mxu0 %v3286
      %3519 = vmatprep.subr.mxu0 %v3283
      %3520 = vmatpush1.msra.mxu0 %v3282
      %3521 = vmatprep.subr.mxu0 %v3279
      %3522 = vmatpush1.msra.mxu0 %v3278
      %3523 = vmatprep.subr.mxu0 %v3275
      %3524 = vmatpush1.msra.mxu0 %v3274
      %3525 = vmatprep.subr.mxu0 %v3271
      %3526 = vmatpush1.msra.mxu0 %v3270
      %3527 = vmatprep.subr.mxu0 %v3267
      %3528 = vmatpush1.msra.mxu0 %v3266
      %3529 = vmatprep.subr.mxu0 %v3263
      %3530 = vmatpush1.msra.mxu0 %v3262
      %3531 = vmatprep.subr.mxu0 %v3259
      %3532 = vmatpush1.msra.mxu0 %v3258
      %3533 = vmatprep.subr.mxu0 %v3255
      %3534 = vmatpush1.msra.mxu0 %v3254
      %3535 = vmatprep.subr.mxu0 %v3251
      %3536 = vmatpush1.msra.mxu0 %v3250
      %3537 = vmatprep.subr.mxu0 %v3247
      %3538 = vmatpush1.msra.mxu0 %v3246
      %3539 = vmatprep.subr.mxu0 %v3243
      %3540 = vmatpush1.msra.mxu0 %v3242
      %3541 = vmatprep.subr.mxu0 %v3239
      %3542 = vmatpush1.msra.mxu0 %v3238
      %3543 = vmatprep.subr.mxu0 %v3363
      %3544 = vmatpush2.msra.mxu0 %v3362
      %3545 = vmatprep.subr.mxu0 %v3359
      %3546 = vmatpush2.msra.mxu0 %v3358
      %3547 = vmatprep.subr.mxu0 %v3355
      %3548 = vmatpush2.msra.mxu0 %v3354
      %3549 = vmatprep.subr.mxu0 %v3351
      %3550 = vmatpush2.msra.mxu0 %v3350
      %3551 = vmatprep.subr.mxu0 %v3347
      %3552 = vmatpush2.msra.mxu0 %v3346
      %3553 = vmatprep.subr.mxu0 %v3343
      %3554 = vmatpush2.msra.mxu0 %v3342
      %3555 = vmatprep.subr.mxu0 %v3339
      %3556 = vmatpush2.msra.mxu0 %v3338
      %3557 = vmatprep.subr.mxu0 %v3335
      %3558 = vmatpush2.msra.mxu0 %v3334
      %3559 = vmatprep.subr.mxu0 %v3331
      %3560 = vmatpush2.msra.mxu0 %v3330
      %3561 = vmatprep.subr.mxu0 %v3327
      %3562 = vmatpush2.msra.mxu0 %v3326
      %3563 = vmatprep.subr.mxu0 %v3323
      %3564 = vmatpush2.msra.mxu0 %v3322
      %3565 = vmatprep.subr.mxu0 %v3319
      %3566 = vmatpush2.msra.mxu0 %v3318
      %3567 = vmatprep.subr.mxu0 %v3315
      %3568 = vmatpush2.msra.mxu0 %v3314
      %3569 = vmatprep.subr.mxu0 %v3311
      %3570 = vmatpush2.msra.mxu0 %v3310
      %3571 = vmatprep.subr.mxu0 %v3307
      %3572 = vmatpush2.msra.mxu0 %v3306
      %3573 = vmatprep.subr.mxu0 %v3303
      %3574 = vmatpush2.msra.mxu0 %v3302
      %3575 = vmatprep.mubr.f32.mxu0 %v3021
      %3576 = vmatmul.mubr.f32.gmra.mxu0 %v3018
      %v3577 = vpop.f32.mrf.mxu0
      %v3578 = vadd.f32 %v3477, %v3577
      %v3579 = vpop.f32.mrf.mxu0
      %v3580 = vadd.f32 %v3479, %v3579
      %3581 = vmatprep.mubr.f32.mxu0 %v3032
      %3582 = vmatmul.mubr.f32.gmra.mxu0 %v3030
      %v3583 = vpop.f32.mrf.mxu0
      %v3584 = vadd.f32 %v3483, %v3583
      %v3585 = vpop.f32.mrf.mxu0
      %v3586 = vadd.f32 %v3485, %v3585
      %3587 = vmatprep.mubr.f32.mxu0 %v3046
      %3588 = vmatmul.mubr.f32.gmra.mxu0 %v3043
      %v3589 = vpop.f32.mrf.mxu0
      %v3590 = vadd.f32 %v3489, %v3589
      %v3591 = vpop.f32.mrf.mxu0
      %v3592 = vadd.f32 %v3491, %v3591
      %3593 = vmatprep.mubr.f32.mxu0 %v3057
      %3594 = vmatmul.mubr.f32.gmra.mxu0 %v3055
      %v3595 = vpop.f32.mrf.mxu0
      %v3596 = vadd.f32 %v3495, %v3595
      %v3597 = vpop.f32.mrf.mxu0
      %v3598 = vadd.f32 %v3497, %v3597
      %3599 = vmatprep.mubr.f32.mxu0 %v3071
      %3600 = vmatmul.mubr.f32.gmra.mxu0 %v3068
      %v3601 = vpop.f32.mrf.mxu0
      %v3602 = vadd.f32 %v3501, %v3601
      %v3603 = vpop.f32.mrf.mxu0
      %v3604 = vadd.f32 %v3503, %v3603
      %3605 = vmatprep.mubr.f32.mxu0 %v3082
      %3606 = vmatmul.mubr.f32.gmra.mxu0 %v3080
      %v3607 = vpop.f32.mrf.mxu0
      %v3608 = vadd.f32 %v3507, %v3607
      %v3609 = vpop.f32.mrf.mxu0
      %v3610 = vadd.f32 %v3509, %v3609
      %3611 = vdwg.mxu0
      %3612 = vmatprep.subr.mxu0 0.0
      %3613 = vmatpush1.msra.mxu0 0.0
      %3614 = vmatprep.subr.mxu0 0.0
      %3615 = vmatpush1.msra.mxu0 0.0
      %3616 = vmatprep.subr.mxu0 0.0
      %3617 = vmatpush1.msra.mxu0 0.0
      %3618 = vmatprep.subr.mxu0 0.0
      %3619 = vmatpush1.msra.mxu0 0.0
      %3620 = vmatprep.subr.mxu0 0.0
      %3621 = vmatpush1.msra.mxu0 0.0
      %3622 = vmatprep.subr.mxu0 0.0
      %3623 = vmatpush1.msra.mxu0 0.0
      %3624 = vmatprep.subr.mxu0 0.0
      %3625 = vmatpush1.msra.mxu0 0.0
      %3626 = vmatprep.subr.mxu0 0.0
      %3627 = vmatpush1.msra.mxu0 0.0
      %3628 = vmatprep.subr.mxu0 %v3395
      %3629 = vmatpush1.msra.mxu0 %v3394
      %3630 = vmatprep.subr.mxu0 %v3391
      %3631 = vmatpush1.msra.mxu0 %v3390
      %3632 = vmatprep.subr.mxu0 %v3387
      %3633 = vmatpush1.msra.mxu0 %v3386
      %3634 = vmatprep.subr.mxu0 %v3383
      %3635 = vmatpush1.msra.mxu0 %v3382
      %3636 = vmatprep.subr.mxu0 %v3379
      %3637 = vmatpush1.msra.mxu0 %v3378
      %3638 = vmatprep.subr.mxu0 %v3375
      %3639 = vmatpush1.msra.mxu0 %v3374
      %3640 = vmatprep.subr.mxu0 %v3371
      %3641 = vmatpush1.msra.mxu0 %v3370
      %3642 = vmatprep.subr.mxu0 %v3367
      %3643 = vmatpush1.msra.mxu0 %v3366
      %3644 = vmatprep.subr.mxu0 0.0
      %3645 = vmatpush2.msra.mxu0 0.0
      %3646 = vmatprep.subr.mxu0 0.0
      %3647 = vmatpush2.msra.mxu0 0.0
      %3648 = vmatprep.subr.mxu0 0.0
      %3649 = vmatpush2.msra.mxu0 0.0
      %3650 = vmatprep.subr.mxu0 0.0
      %3651 = vmatpush2.msra.mxu0 0.0
      %3652 = vmatprep.subr.mxu0 0.0
      %3653 = vmatpush2.msra.mxu0 0.0
      %3654 = vmatprep.subr.mxu0 0.0
      %3655 = vmatpush2.msra.mxu0 0.0
      %3656 = vmatprep.subr.mxu0 0.0
      %3657 = vmatpush2.msra.mxu0 0.0
      %3658 = vmatprep.subr.mxu0 0.0
      %3659 = vmatpush2.msra.mxu0 0.0
      %3660 = vmatprep.subr.mxu0 0.0
      %3661 = vmatpush2.msra.mxu0 0.0
      %3662 = vmatprep.subr.mxu0 0.0
      %3663 = vmatpush2.msra.mxu0 0.0
      %3664 = vmatprep.subr.mxu0 0.0
      %3665 = vmatpush2.msra.mxu0 0.0
      %3666 = vmatprep.subr.mxu0 0.0
      %3667 = vmatpush2.msra.mxu0 0.0
      %3668 = vmatprep.subr.mxu0 0.0
      %3669 = vmatpush2.msra.mxu0 0.0
      %3670 = vmatprep.subr.mxu0 0.0
      %3671 = vmatpush2.msra.mxu0 0.0
      %3672 = vmatprep.subr.mxu0 0.0
      %3673 = vmatpush2.msra.mxu0 0.0
      %3674 = vmatprep.subr.mxu0 0.0
      %3675 = vmatpush2.msra.mxu0 0.0
      %3676 = vmatprep.mubr.f32.mxu0 0.0
      %3677 = vmatmul.mubr.f32.gmra.mxu0 %v3398
      %v3678 = vpop.f32.mrf.mxu0
      %v3679 = vadd.f32 %v3578, %v3678
      %v3680 = vpop.f32.mrf.mxu0
      %v3681 = vadd.f32 %v3580, %v3680
      %3682 = vmatprep.mubr.f32.mxu0 0.0
      %3683 = vmatmul.mubr.f32.gmra.mxu0 %v3400
      %v3684 = vpop.f32.mrf.mxu0
      %v3685 = vadd.f32 %v3584, %v3684
      %v3686 = vpop.f32.mrf.mxu0
      %v3687 = vadd.f32 %v3586, %v3686
      %3688 = vmatprep.mubr.f32.mxu0 0.0
      %3689 = vmatmul.mubr.f32.gmra.mxu0 %v3402
      %v3690 = vpop.f32.mrf.mxu0
      %v3691 = vadd.f32 %v3590, %v3690
      %v3692 = vpop.f32.mrf.mxu0
      %v3693 = vadd.f32 %v3592, %v3692
      %3694 = vmatprep.mubr.f32.mxu0 0.0
      %3695 = vmatmul.mubr.f32.gmra.mxu0 %v3404
      %v3696 = vpop.f32.mrf.mxu0
      %v3697 = vadd.f32 %v3596, %v3696
      %v3698 = vpop.f32.mrf.mxu0
      %v3699 = vadd.f32 %v3598, %v3698
      %3700 = vmatprep.mubr.f32.mxu0 0.0
      %3701 = vmatmul.mubr.f32.gmra.mxu0 %v3406
      %v3702 = vpop.f32.mrf.mxu0
      %v3703 = vadd.f32 %v3602, %v3702
      %v3704 = vpop.f32.mrf.mxu0
      %v3705 = vadd.f32 %v3604, %v3704
      %3706 = vmatprep.mubr.f32.mxu0 0.0
      %3707 = vmatmul.mubr.f32.gmra.mxu0 %v3408
      %v3708 = vpop.f32.mrf.mxu0
      %v3709 = vadd.f32 %v3608, %v3708
      %v3710 = vpop.f32.mrf.mxu0
      %v3711 = vadd.f32 %v3610, %v3710
      %3712 = vdwg.mxu0
      %3713 = vmatprep.subr.mxu0 %v3173
      %3714 = vmatpush1.msra.mxu0 %v3172
      %3715 = vmatprep.subr.mxu0 %v3169
      %3716 = vmatpush1.msra.mxu0 %v3168
      %3717 = vmatprep.subr.mxu0 %v3165
      %3718 = vmatpush1.msra.mxu0 %v3164
      %3719 = vmatprep.subr.mxu0 %v3161
      %3720 = vmatpush1.msra.mxu0 %v3160
      %3721 = vmatprep.subr.mxu0 %v3157
      %3722 = vmatpush1.msra.mxu0 %v3156
      %3723 = vmatprep.subr.mxu0 %v3153
      %3724 = vmatpush1.msra.mxu0 %v3152
      %3725 = vmatprep.subr.mxu0 %v3149
      %3726 = vmatpush1.msra.mxu0 %v3148
      %3727 = vmatprep.subr.mxu0 %v3145
      %3728 = vmatpush1.msra.mxu0 %v3144
      %3729 = vmatprep.subr.mxu0 %v3141
      %3730 = vmatpush1.msra.mxu0 %v3140
      %3731 = vmatprep.subr.mxu0 %v3137
      %3732 = vmatpush1.msra.mxu0 %v3136
      %3733 = vmatprep.subr.mxu0 %v3133
      %3734 = vmatpush1.msra.mxu0 %v3132
      %3735 = vmatprep.subr.mxu0 %v3129
      %3736 = vmatpush1.msra.mxu0 %v3128
      %3737 = vmatprep.subr.mxu0 %v3125
      %3738 = vmatpush1.msra.mxu0 %v3124
      %3739 = vmatprep.subr.mxu0 %v3121
      %3740 = vmatpush1.msra.mxu0 %v3120
      %3741 = vmatprep.subr.mxu0 %v3117
      %3742 = vmatpush1.msra.mxu0 %v3116
      %3743 = vmatprep.subr.mxu0 %v3113
      %3744 = vmatpush1.msra.mxu0 %v3112
      %3745 = vmatprep.subr.mxu0 %v3237
      %3746 = vmatpush2.msra.mxu0 %v3236
      %3747 = vmatprep.subr.mxu0 %v3233
      %3748 = vmatpush2.msra.mxu0 %v3232
      %3749 = vmatprep.subr.mxu0 %v3229
      %3750 = vmatpush2.msra.mxu0 %v3228
      %3751 = vmatprep.subr.mxu0 %v3225
      %3752 = vmatpush2.msra.mxu0 %v3224
      %3753 = vmatprep.subr.mxu0 %v3221
      %3754 = vmatpush2.msra.mxu0 %v3220
      %3755 = vmatprep.subr.mxu0 %v3217
      %3756 = vmatpush2.msra.mxu0 %v3216
      %3757 = vmatprep.subr.mxu0 %v3213
      %3758 = vmatpush2.msra.mxu0 %v3212
      %3759 = vmatprep.subr.mxu0 %v3209
      %3760 = vmatpush2.msra.mxu0 %v3208
      %3761 = vmatprep.subr.mxu0 %v3205
      %3762 = vmatpush2.msra.mxu0 %v3204
      %3763 = vmatprep.subr.mxu0 %v3201
      %3764 = vmatpush2.msra.mxu0 %v3200
      %3765 = vmatprep.subr.mxu0 %v3197
      %3766 = vmatpush2.msra.mxu0 %v3196
      %3767 = vmatprep.subr.mxu0 %v3193
      %3768 = vmatpush2.msra.mxu0 %v3192
      %3769 = vmatprep.subr.mxu0 %v3189
      %3770 = vmatpush2.msra.mxu0 %v3188
      %3771 = vmatprep.subr.mxu0 %v3185
      %3772 = vmatpush2.msra.mxu0 %v3184
      %3773 = vmatprep.subr.mxu0 %v3181
      %3774 = vmatpush2.msra.mxu0 %v3180
      %3775 = vmatprep.subr.mxu0 %v3177
      %3776 = vmatpush2.msra.mxu0 %v3176
      %3777 = vmatprep.mubr.f32.mxu0 %v3015
      %3778 = vmatmul.mubr.f32.gmra.mxu0 %v3012
      %v3779 = vpop.f32.mrf.mxu0
      %v3780 = vadd.f32 0.0, %v3779
      %v3781 = vpop.f32.mrf.mxu0
      %v3782 = vadd.f32 0.0, %v3781
      %3783 = vmatprep.mubr.f32.mxu0 %v3028
      %3784 = vmatmul.mubr.f32.gmra.mxu0 %v3026
      %v3785 = vpop.f32.mrf.mxu0
      %v3786 = vadd.f32 0.0, %v3785
      %v3787 = vpop.f32.mrf.mxu0
      %v3788 = vadd.f32 0.0, %v3787
      %3789 = vmatprep.mubr.f32.mxu0 %v3040
      %3790 = vmatmul.mubr.f32.gmra.mxu0 %v3037
      %v3791 = vpop.f32.mrf.mxu0
      %v3792 = vadd.f32 0.0, %v3791
      %v3793 = vpop.f32.mrf.mxu0
      %v3794 = vadd.f32 0.0, %v3793
      %3795 = vmatprep.mubr.f32.mxu0 %v3053
      %3796 = vmatmul.mubr.f32.gmra.mxu0 %v3051
      %v3797 = vpop.f32.mrf.mxu0
      %v3798 = vadd.f32 0.0, %v3797
      %v3799 = vpop.f32.mrf.mxu0
      %v3800 = vadd.f32 0.0, %v3799
      %3801 = vmatprep.mubr.f32.mxu0 %v3065
      %3802 = vmatmul.mubr.f32.gmra.mxu0 %v3062
      %v3803 = vpop.f32.mrf.mxu0
      %v3804 = vadd.f32 0.0, %v3803
      %v3805 = vpop.f32.mrf.mxu0
      %v3806 = vadd.f32 0.0, %v3805
      %3807 = vmatprep.mubr.f32.mxu0 %v3078
      %3808 = vmatmul.mubr.f32.gmra.mxu0 %v3076
      %v3809 = vpop.f32.mrf.mxu0
      %v3810 = vadd.f32 0.0, %v3809
      %v3811 = vpop.f32.mrf.mxu0
      %v3812 = vadd.f32 0.0, %v3811
      %3813 = vdwg.mxu0
      %3814 = vmatprep.subr.mxu0 %v3301
      %3815 = vmatpush1.msra.mxu0 %v3300
      %3816 = vmatprep.subr.mxu0 %v3297
      %3817 = vmatpush1.msra.mxu0 %v3296
      %3818 = vmatprep.subr.mxu0 %v3293
      %3819 = vmatpush1.msra.mxu0 %v3292
      %3820 = vmatprep.subr.mxu0 %v3289
      %3821 = vmatpush1.msra.mxu0 %v3288
      %3822 = vmatprep.subr.mxu0 %v3285
      %3823 = vmatpush1.msra.mxu0 %v3284
      %3824 = vmatprep.subr.mxu0 %v3281
      %3825 = vmatpush1.msra.mxu0 %v3280
      %3826 = vmatprep.subr.mxu0 %v3277
      %3827 = vmatpush1.msra.mxu0 %v3276
      %3828 = vmatprep.subr.mxu0 %v3273
      %3829 = vmatpush1.msra.mxu0 %v3272
      %3830 = vmatprep.subr.mxu0 %v3269
      %3831 = vmatpush1.msra.mxu0 %v3268
      %3832 = vmatprep.subr.mxu0 %v3265
      %3833 = vmatpush1.msra.mxu0 %v3264
      %3834 = vmatprep.subr.mxu0 %v3261
      %3835 = vmatpush1.msra.mxu0 %v3260
      %3836 = vmatprep.subr.mxu0 %v3257
      %3837 = vmatpush1.msra.mxu0 %v3256
      %3838 = vmatprep.subr.mxu0 %v3253
      %3839 = vmatpush1.msra.mxu0 %v3252
      %3840 = vmatprep.subr.mxu0 %v3249
      %3841 = vmatpush1.msra.mxu0 %v3248
      %3842 = vmatprep.subr.mxu0 %v3245
      %3843 = vmatpush1.msra.mxu0 %v3244
      %3844 = vmatprep.subr.mxu0 %v3241
      %3845 = vmatpush1.msra.mxu0 %v3240
      %3846 = vmatprep.subr.mxu0 %v3365
      %3847 = vmatpush2.msra.mxu0 %v3364
      %3848 = vmatprep.subr.mxu0 %v3361
      %3849 = vmatpush2.msra.mxu0 %v3360
      %3850 = vmatprep.subr.mxu0 %v3357
      %3851 = vmatpush2.msra.mxu0 %v3356
      %3852 = vmatprep.subr.mxu0 %v3353
      %3853 = vmatpush2.msra.mxu0 %v3352
      %3854 = vmatprep.subr.mxu0 %v3349
      %3855 = vmatpush2.msra.mxu0 %v3348
      %3856 = vmatprep.subr.mxu0 %v3345
      %3857 = vmatpush2.msra.mxu0 %v3344
      %3858 = vmatprep.subr.mxu0 %v3341
      %3859 = vmatpush2.msra.mxu0 %v3340
      %3860 = vmatprep.subr.mxu0 %v3337
      %3861 = vmatpush2.msra.mxu0 %v3336
      %3862 = vmatprep.subr.mxu0 %v3333
      %3863 = vmatpush2.msra.mxu0 %v3332
      %3864 = vmatprep.subr.mxu0 %v3329
      %3865 = vmatpush2.msra.mxu0 %v3328
      %3866 = vmatprep.subr.mxu0 %v3325
      %3867 = vmatpush2.msra.mxu0 %v3324
      %3868 = vmatprep.subr.mxu0 %v3321
      %3869 = vmatpush2.msra.mxu0 %v3320
      %3870 = vmatprep.subr.mxu0 %v3317
      %3871 = vmatpush2.msra.mxu0 %v3316
      %3872 = vmatprep.subr.mxu0 %v3313
      %3873 = vmatpush2.msra.mxu0 %v3312
      %3874 = vmatprep.subr.mxu0 %v3309
      %3875 = vmatpush2.msra.mxu0 %v3308
      %3876 = vmatprep.subr.mxu0 %v3305
      %3877 = vmatpush2.msra.mxu0 %v3304
      %3878 = vmatprep.mubr.f32.mxu0 %v3021
      %3879 = vmatmul.mubr.f32.gmra.mxu0 %v3018
      %v3880 = vpop.f32.mrf.mxu0
      %v3881 = vadd.f32 %v3780, %v3880
      %v3882 = vpop.f32.mrf.mxu0
      %v3883 = vadd.f32 %v3782, %v3882
      %3884 = vmatprep.mubr.f32.mxu0 %v3032
      %3885 = vmatmul.mubr.f32.gmra.mxu0 %v3030
      %v3886 = vpop.f32.mrf.mxu0
      %v3887 = vadd.f32 %v3786, %v3886
      %v3888 = vpop.f32.mrf.mxu0
      %v3889 = vadd.f32 %v3788, %v3888
      %3890 = vmatprep.mubr.f32.mxu0 %v3046
      %3891 = vmatmul.mubr.f32.gmra.mxu0 %v3043
      %v3892 = vpop.f32.mrf.mxu0
      %v3893 = vadd.f32 %v3792, %v3892
      %v3894 = vpop.f32.mrf.mxu0
      %v3895 = vadd.f32 %v3794, %v3894
      %3896 = vmatprep.mubr.f32.mxu0 %v3057
      %3897 = vmatmul.mubr.f32.gmra.mxu0 %v3055
      %v3898 = vpop.f32.mrf.mxu0
      %v3899 = vadd.f32 %v3798, %v3898
      %v3900 = vpop.f32.mrf.mxu0
      %v3901 = vadd.f32 %v3800, %v3900
      %3902 = vmatprep.mubr.f32.mxu0 %v3071
      %3903 = vmatmul.mubr.f32.gmra.mxu0 %v3068
      %v3904 = vpop.f32.mrf.mxu0
      %v3905 = vadd.f32 %v3804, %v3904
      %v3906 = vpop.f32.mrf.mxu0
      %v3907 = vadd.f32 %v3806, %v3906
      %3908 = vmatprep.mubr.f32.mxu0 %v3082
      %3909 = vmatmul.mubr.f32.gmra.mxu0 %v3080
      %v3910 = vpop.f32.mrf.mxu0
      %v3911 = vadd.f32 %v3810, %v3910
      %v3912 = vpop.f32.mrf.mxu0
      %v3913 = vadd.f32 %v3812, %v3912
      %3914 = vdwg.mxu0
      %3915 = vmatprep.subr.mxu0 0.0
      %3916 = vmatpush1.msra.mxu0 0.0
      %3917 = vmatprep.subr.mxu0 0.0
      %3918 = vmatpush1.msra.mxu0 0.0
      %3919 = vmatprep.subr.mxu0 0.0
      %3920 = vmatpush1.msra.mxu0 0.0
      %3921 = vmatprep.subr.mxu0 0.0
      %3922 = vmatpush1.msra.mxu0 0.0
      %3923 = vmatprep.subr.mxu0 0.0
      %3924 = vmatpush1.msra.mxu0 0.0
      %3925 = vmatprep.subr.mxu0 0.0
      %3926 = vmatpush1.msra.mxu0 0.0
      %3927 = vmatprep.subr.mxu0 0.0
      %3928 = vmatpush1.msra.mxu0 0.0
      %3929 = vmatprep.subr.mxu0 0.0
      %3930 = vmatpush1.msra.mxu0 0.0
      %3931 = vmatprep.subr.mxu0 %v3397
      %3932 = vmatpush1.msra.mxu0 %v3396
      %3933 = vmatprep.subr.mxu0 %v3393
      %3934 = vmatpush1.msra.mxu0 %v3392
      %3935 = vmatprep.subr.mxu0 %v3389
      %3936 = vmatpush1.msra.mxu0 %v3388
      %3937 = vmatprep.subr.mxu0 %v3385
      %3938 = vmatpush1.msra.mxu0 %v3384
      %3939 = vmatprep.subr.mxu0 %v3381
      %3940 = vmatpush1.msra.mxu0 %v3380
      %3941 = vmatprep.subr.mxu0 %v3377
      %3942 = vmatpush1.msra.mxu0 %v3376
      %3943 = vmatprep.subr.mxu0 %v3373
      %3944 = vmatpush1.msra.mxu0 %v3372
      %3945 = vmatprep.subr.mxu0 %v3369
      %3946 = vmatpush1.msra.mxu0 %v3368
      %3947 = vmatprep.subr.mxu0 0.0
      %3948 = vmatpush2.msra.mxu0 0.0
      %3949 = vmatprep.subr.mxu0 0.0
      %3950 = vmatpush2.msra.mxu0 0.0
      %3951 = vmatprep.subr.mxu0 0.0
      %3952 = vmatpush2.msra.mxu0 0.0
      %3953 = vmatprep.subr.mxu0 0.0
      %3954 = vmatpush2.msra.mxu0 0.0
      %3955 = vmatprep.subr.mxu0 0.0
      %3956 = vmatpush2.msra.mxu0 0.0
      %3957 = vmatprep.subr.mxu0 0.0
      %3958 = vmatpush2.msra.mxu0 0.0
      %3959 = vmatprep.subr.mxu0 0.0
      %3960 = vmatpush2.msra.mxu0 0.0
      %3961 = vmatprep.subr.mxu0 0.0
      %3962 = vmatpush2.msra.mxu0 0.0
      %3963 = vmatprep.subr.mxu0 0.0
      %3964 = vmatpush2.msra.mxu0 0.0
      %3965 = vmatprep.subr.mxu0 0.0
      %3966 = vmatpush2.msra.mxu0 0.0
      %3967 = vmatprep.subr.mxu0 0.0
      %3968 = vmatpush2.msra.mxu0 0.0
      %3969 = vmatprep.subr.mxu0 0.0
      %3970 = vmatpush2.msra.mxu0 0.0
      %3971 = vmatprep.subr.mxu0 0.0
      %3972 = vmatpush2.msra.mxu0 0.0
      %3973 = vmatprep.subr.mxu0 0.0
      %3974 = vmatpush2.msra.mxu0 0.0
      %3975 = vmatprep.subr.mxu0 0.0
      %3976 = vmatpush2.msra.mxu0 0.0
      %3977 = vmatprep.subr.mxu0 0.0
      %3978 = vmatpush2.msra.mxu0 0.0
      %3979 = vmatprep.mubr.f32.mxu0 0.0
      %3980 = vmatmul.mubr.f32.gmra.mxu0 %v3398
      %v3981 = vpop.f32.mrf.mxu0
      %v3982 = vadd.f32 %v3881, %v3981
      %v3983 = vpop.f32.mrf.mxu0
      %v3984 = vadd.f32 %v3883, %v3983
      %3985 = vmatprep.mubr.f32.mxu0 0.0
      %3986 = vmatmul.mubr.f32.gmra.mxu0 %v3400
      %v3987 = vpop.f32.mrf.mxu0
      %v3988 = vadd.f32 %v3887, %v3987
      %v3989 = vpop.f32.mrf.mxu0
      %v3990 = vadd.f32 %v3889, %v3989
      %3991 = vmatprep.mubr.f32.mxu0 0.0
      %3992 = vmatmul.mubr.f32.gmra.mxu0 %v3402
      %v3993 = vpop.f32.mrf.mxu0
      %v3994 = vadd.f32 %v3893, %v3993
      %v3995 = vpop.f32.mrf.mxu0
      %v3996 = vadd.f32 %v3895, %v3995
      %3997 = vmatprep.mubr.f32.mxu0 0.0
      %3998 = vmatmul.mubr.f32.gmra.mxu0 %v3404
      %v3999 = vpop.f32.mrf.mxu0
      %v4000 = vadd.f32 %v3899, %v3999
      %v4001 = vpop.f32.mrf.mxu0
      %v4002 = vadd.f32 %v3901, %v4001
      %4003 = vmatprep.mubr.f32.mxu0 0.0
      %4004 = vmatmul.mubr.f32.gmra.mxu0 %v3406
      %v4005 = vpop.f32.mrf.mxu0
      %v4006 = vadd.f32 %v3905, %v4005
      %v4007 = vpop.f32.mrf.mxu0
      %v4008 = vadd.f32 %v3907, %v4007
      %4009 = vmatprep.mubr.f32.mxu0 0.0
      %4010 = vmatmul.mubr.f32.gmra.mxu0 %v3408
      %v4011 = vpop.f32.mrf.mxu0
      %v4012 = vadd.f32 %v3911, %v4011
      %v4013 = vpop.f32.mrf.mxu0
      %v4014 = vadd.f32 %v3913, %v4013
      %4015 = vdwg.mxu0
      %v4016 = vadd.f32 %v2612, %v3679
      %v4017 = vadd.f32 %v2614, %v3681
      %v4018 = vadd.f32 %v2915, %v3982
      %v4019 = vadd.f32 %v2917, %v3984
      %v4020 = vadd.f32 %v2618, %v3685
      %v4021 = vadd.f32 %v2620, %v3687
      %v4022 = vadd.f32 %v2921, %v3988
      %v4023 = vadd.f32 %v2923, %v3990
      %v4024 = vadd.f32 %v2624, %v3691
      %v4025 = vadd.f32 %v2626, %v3693
      %v4026 = vadd.f32 %v2927, %v3994
      %v4027 = vadd.f32 %v2929, %v3996
      %v4028 = vadd.f32 %v2630, %v3697
      %v4029 = vadd.f32 %v2632, %v3699
      %v4030 = vadd.f32 %v2933, %v4000
      %v4031 = vadd.f32 %v2935, %v4002
      %v4032 = vadd.f32 %v2636, %v3703
      %v4033 = vadd.f32 %v2638, %v3705
      %v4034 = vadd.f32 %v2939, %v4006
      %v4035 = vadd.f32 %v2941, %v4008
      %v4036 = vadd.f32 %v2642, %v3709
      %v4037 = vadd.f32 %v2644, %v3711
      %v4038 = vadd.f32 %v2945, %v4012
      %v4039 = vadd.f32 %v2947, %v4014
      %v4040 = vld [vmem:[%s4] sm:$0xf]
      %v4042 = vlaneseq
      %v4043 = vshrl.u32 %v4042, 7
      %v4044 = vsub.s32 0, %v4043
      %v4045 = vrot.slane %v4040, %v4044
      %v4046 = vlaneseq
      %v4047 = vshrl.u32 %v4046, 7
      %v4048 = vsub.s32 1, %v4047
      %v4049 = vrot.slane %v4040, %v4048
      %v4050 = vlaneseq
      %v4051 = vshrl.u32 %v4050, 7
      %v4052 = vsub.s32 2, %v4051
      %v4053 = vrot.slane %v4040, %v4052
      %v4054 = vlaneseq
      %v4055 = vshrl.u32 %v4054, 7
      %v4056 = vsub.s32 3, %v4055
      %v4057 = vrot.slane %v4040, %v4056
      %v4062 = vadd.f32 %v4016, %v4045
      %v4063 = vadd.f32 %v4017, %v4049
      %v4064 = vadd.f32 %v4018, %v4053
      %v4065 = vadd.f32 %v4019, %v4057
      %v4066 = vadd.f32 %v4020, %v4045
      %v4067 = vadd.f32 %v4021, %v4049
      %v4068 = vadd.f32 %v4022, %v4053
      %v4069 = vadd.f32 %v4023, %v4057
      %v4070 = vadd.f32 %v4024, %v4045
      %v4071 = vadd.f32 %v4025, %v4049
      %v4072 = vadd.f32 %v4026, %v4053
      %v4073 = vadd.f32 %v4027, %v4057
      %v4074 = vadd.f32 %v4028, %v4045
      %v4075 = vadd.f32 %v4029, %v4049
      %v4076 = vadd.f32 %v4030, %v4053
      %v4077 = vadd.f32 %v4031, %v4057
      %v4078 = vadd.f32 %v4032, %v4045
      %v4079 = vadd.f32 %v4033, %v4049
      %v4080 = vadd.f32 %v4034, %v4053
      %v4081 = vadd.f32 %v4035, %v4057
      %v4082 = vadd.f32 %v4036, %v4045
      %v4083 = vadd.f32 %v4037, %v4049
      %v4084 = vadd.f32 %v4038, %v4053
      %v4085 = vadd.f32 %v4039, %v4057
      %4086 = vst [vmem:[%s275] sm:$0xff] %v4062
      %4087 = vst [vmem:[%s275 + $0x8] sm:$0xff] %v4063
      %4088 = vst [vmem:[%s275 + $0x10] sm:$0xff] %v4064
      %4089 = vst [vmem:[%s275 + $0x18] sm:$0xff] %v4065
      %4090 = vst [vmem:[%s275 + $0x20] sm:$0xff] %v4066
      %4091 = vst [vmem:[%s275 + $0x28] sm:$0xff] %v4067
      %4092 = vst [vmem:[%s275 + $0x30] sm:$0xff] %v4068
      %4093 = vst [vmem:[%s275 + $0x38] sm:$0xff] %v4069
      %4094 = vst [vmem:[%s275 + $0x40] sm:$0xff] %v4070
      %4095 = vst [vmem:[%s275 + $0x48] sm:$0xff] %v4071
      %4096 = vst [vmem:[%s275 + $0x50] sm:$0xff] %v4072
      %4097 = vst [vmem:[%s275 + $0x58] sm:$0xff] %v4073
      %4098 = vst [vmem:[%s275 + $0x60] sm:$0xff] %v4074
      %4099 = vst [vmem:[%s275 + $0x68] sm:$0xff] %v4075
      %4100 = vst [vmem:[%s275 + $0x70] sm:$0xff] %v4076
      %4101 = vst [vmem:[%s275 + $0x78] sm:$0xff] %v4077
      %4102 = vst [vmem:[%s275 + $0x80] sm:$0xff] %v4078
      %4103 = vst [vmem:[%s275 + $0x88] sm:$0xff] %v4079
      %4104 = vst [vmem:[%s275 + $0x90] sm:$0xff] %v4080
      %4105 = vst [vmem:[%s275 + $0x98] sm:$0xff] %v4081
      %4106 = vst [vmem:[%s275 + $0xa0] sm:$0xff] %v4082
      %4107 = vst [vmem:[%s275 + $0xa8] sm:$0xff] %v4083
      %4108 = vst [vmem:[%s275 + $0xb0] sm:$0xff] %v4084
      %4109 = vst [vmem:[%s275 + $0xb8] sm:$0xff] %v4085
      %s4110 = smul.u32 3, %s16
      %p4111 = scmp.lt.s32.totalorder %s4110, 5
      %s4112 = scalar_select %p4111, %s4110, 5
      %s4113 = smul.addr %s4112, 8
      %s4114 = smul.addr %s4113, 8
      %s4115 = scalar_lea.vmem %s5, %s4114
      // Predicated region
      $region41: #{resnet_block_forward.2} parent=39 // pred_check
        %p4116 = pneg %p154
      $region42: #{resnet_block_forward.2} parent=39 // pred_check_branch
        %4118 = sbr.rel (%p4116) target = $region44
      $region43: #{resnet_block_forward.2} parent=39 // pred_region
        %s4119 = smul.u32 3, %s16
      $region44: #{resnet_block_forward.2} parent=39 // pred_fallthru
        _
    $region40: #{resnet_block_forward.2} parent=5 // pred_fallthru
      _
    %p4120 = scmp.le.s32.totalorder 2, %s11
    // Predicated region
    $region45: #{resnet_block_forward.2} parent=5 // pred_check
      %p4121 = pneg %p4120
    $region46: #{resnet_block_forward.2} parent=5 // pred_check_branch
      %4123 = sbr.rel (%p4121) target = $region48
    $region47: #{resnet_block_forward.2} parent=5 // pred_region
      %s4124 = ssub.s32 %s11, 2
      // Predicated region
      $region49: #{resnet_block_forward.2} parent=47 // pred_check
        %p4125 = pneg %p160
      $region50: #{resnet_block_forward.2} parent=47 // pred_check_branch
        %4127 = sbr.rel (%p4125) target = $region52
      $region51: #{resnet_block_forward.2} parent=47 // pred_region
        %s4128 = smul.u32 3, %s17
        %p4129 = scmp.lt.s32.totalorder %s4128, 5
        %s4130 = scalar_select %p4129, %s4128, 5
        %s4131 = smul.addr %s4130, 8
        %s4132 = smul.addr %s4131, 8
        %s4133 = scalar_lea.vmem %s5, %s4132
      $region52: #{resnet_block_forward.2} parent=47 // pred_fallthru
        _
    $region48: #{resnet_block_forward.2} parent=5 // pred_fallthru
      _
  $region6: #{resnet_block_forward.2} parent=0 // loop_footer
    %s15 = sadd.s32 1, %s11
  $region7: #{resnet_block_forward.2} parent=0 // loop_footer_branch
    %10 = sbr.rel target = $region3
  $region8: #{resnet_block_forward.2} parent=0 // loop_exit
    _

// kernel: resnet_block_forward.3
$region0: #{resnet_block_forward.3}
  #allocation0 [shape = 'u32[]', space=smem, size = 0x4, offset = 0x4, fixed_abs, tag = 'smem constant byte address 0x4 - core index']
  #allocation1 [shape = 'u32[144,128]{1,0:T(1,128)}', space=vmem, size = 0x12000, scoped, tag = 'internal scratch']
  #allocation2 [shape = 'f32[3,18,576]{2,1,0:T(8,128)}', space=vmem, size = 0x2d000, scoped, tag = 'scratch operand']
  %s0 = inlined_call_operand.vmem [shape: f32[6,16,512], index: 0, kind: input, shape index: {}]
  %s1 = inlined_call_operand.vmem [shape: f32[6,1,512], index: 1, kind: input, shape index: {}]
  %s2 = inlined_call_operand.vmem [shape: f32[6,1,512], index: 2, kind: input, shape index: {}]
  %s3 = inlined_call_operand.vmem [shape: f32[3,576,512], index: 3, kind: input, shape index: {}]
  %s4 = inlined_call_operand.vmem [shape: f32[1,512], index: 4, kind: input, shape index: {}]
  %s5 = inlined_call_operand.vmem [shape: f32[6,16,512], index: 5, kind: input, shape index: {}]
  %s6 = inlined_call_operand.vmem [shape: f32[6,16,512], index: 6, kind: output, shape index: {}]
  %s7 = sld [smem:[#allocation0]]
  $region57: #{resnet_block_forward.3} parent=0
    _
  %s9 = ssub.s32 1, %s7
  %s10 = scalar_select 0, %s9, %s7
  loop: start=0, step=1, limit=4
  $region2: #{resnet_block_forward.3} parent=0 // loop_pre_header
    _
  $region3: #{resnet_block_forward.3} parent=0 // loop_header
    %s12 = sphi 0, %s16
    %p13 = scmp.ge.s32.totalorder %s12, 4
    %s22 = sphi 0, %s24
    %s25 = sphi 0, %s22
    %s26 = sphi 0, %s25
    %s42 = sphi 0, %s26
    %s48 = sphi 0, %s50
    %s51 = sphi 0, %s48
    %s52 = sphi 0, %s51
    %s68 = sphi 0, %s52
    %s74 = sphi 0, %s76
    %s77 = sphi 0, %s74
    %s78 = sphi 0, %s77
    %s94 = sphi 0, %s78
    %s98 = sphi 0, %s98
    %s100 = sphi 0, %s98
    %s101 = sphi 0, %s100
    %s115 = sphi 0, %s101
    %s119 = sphi 0, %s119
    %s121 = sphi 0, %s119
    %s122 = sphi 0, %s121
    %s136 = sphi 0, %s122
    %s142 = sphi 0, %s144
    %s145 = sphi 0, %s142
    %s146 = sphi 0, %s145
    %s162 = sphi 0, %s146
    %s168 = sphi 0, %s170
    %s171 = sphi 0, %s168
    %s172 = sphi 0, %s171
    %s188 = sphi 0, %s172
  $region4: #{resnet_block_forward.3} parent=0 // loop_header_branch
    %15 = sbr.rel (%p13) target = $region8
  $region5: #{resnet_block_forward.3} parent=0 // loop_body
    %s17 = ssub.s32 %s12, 1
    %s18 = ssub.s32 %s12, 2
    %s19 = sadd.s32 %s12, 1
    %s20 = ssub.s32 %s12, %s19
    %p21 = scmp.eq.s32.totalorder %s20, 0
    %s23 = sadd.s32 %s22, 1
    %s24 = scalar_select %p21, %s22, %s23
    %p27 = pneg %p21
    %p28 = scmp.eq.s32.totalorder %s12, 1
    %p29 = por %p27, %p28
    %p30 = scmp.ne.s32.totalorder %s22, %s25
    %p31 = scmp.eq.s32.totalorder %s12, 0
    %p32 = por %p30, %p31
    %p33 = scmp.ne.s32.totalorder %s22, %s25
    %p34 = scmp.eq.s32.totalorder %s17, 1
    %p35 = por %p33, %p34
    %p36 = scmp.ne.s32.totalorder %s25, %s26
    %p37 = scmp.eq.s32.totalorder %s17, 0
    %p38 = por %p36, %p37
    %p39 = scmp.ne.s32.totalorder %s25, %s26
    %p40 = scmp.eq.s32.totalorder %s18, 1
    %p41 = por %p39, %p40
    %p43 = scmp.ne.s32.totalorder %s26, %s42
    %p44 = scmp.eq.s32.totalorder %s18, 0
    %p45 = por %p43, %p44
    %s46 = ssub.s32 %s12, %s19
    %p47 = scmp.eq.s32.totalorder %s46, 0
    %s49 = sadd.s32 %s48, 1
    %s50 = scalar_select %p47, %s48, %s49
    %p53 = pneg %p47
    %p54 = scmp.eq.s32.totalorder %s12, 1
    %p55 = por %p53, %p54
    %p56 = scmp.ne.s32.totalorder %s48, %s51
    %p57 = scmp.eq.s32.totalorder %s12, 0
    %p58 = por %p56, %p57
    %p59 = scmp.ne.s32.totalorder %s48, %s51
    %p60 = scmp.eq.s32.totalorder %s17, 1
    %p61 = por %p59, %p60
    %p62 = scmp.ne.s32.totalorder %s51, %s52
    %p63 = scmp.eq.s32.totalorder %s17, 0
    %p64 = por %p62, %p63
    %p65 = scmp.ne.s32.totalorder %s51, %s52
    %p66 = scmp.eq.s32.totalorder %s18, 1
    %p67 = por %p65, %p66
    %p69 = scmp.ne.s32.totalorder %s52, %s68
    %p70 = scmp.eq.s32.totalorder %s18, 0
    %p71 = por %p69, %p70
    %s72 = ssub.s32 %s12, %s19
    %p73 = scmp.eq.s32.totalorder %s72, 0
    %s75 = sadd.s32 %s74, 1
    %s76 = scalar_select %p73, %s74, %s75
    %p79 = pneg %p73
    %p80 = scmp.eq.s32.totalorder %s12, 1
    %p81 = por %p79, %p80
    %p82 = scmp.ne.s32.totalorder %s74, %s77
    %p83 = scmp.eq.s32.totalorder %s12, 0
    %p84 = por %p82, %p83
    %p85 = scmp.ne.s32.totalorder %s74, %s77
    %p86 = scmp.eq.s32.totalorder %s17, 1
    %p87 = por %p85, %p86
    %p88 = scmp.ne.s32.totalorder %s77, %s78
    %p89 = scmp.eq.s32.totalorder %s17, 0
    %p90 = por %p88, %p89
    %p91 = scmp.ne.s32.totalorder %s77, %s78
    %p92 = scmp.eq.s32.totalorder %s18, 1
    %p93 = por %p91, %p92
    %p95 = scmp.ne.s32.totalorder %s78, %s94
    %p96 = scmp.eq.s32.totalorder %s18, 0
    %p97 = por %p95, %p96
    %s99 = sadd.s32 %s98, 1
    %p102 = scmp.eq.s32.totalorder %s12, 1
    %p103 = scmp.ne.s32.totalorder %s98, %s100
    %p104 = scmp.eq.s32.totalorder %s12, 0
    %p105 = por %p103, %p104
    %p106 = scmp.ne.s32.totalorder %s98, %s100
    %p107 = scmp.eq.s32.totalorder %s17, 1
    %p108 = por %p106, %p107
    %p109 = scmp.ne.s32.totalorder %s100, %s101
    %p110 = scmp.eq.s32.totalorder %s17, 0
    %p111 = por %p109, %p110
    %p112 = scmp.ne.s32.totalorder %s100, %s101
    %p113 = scmp.eq.s32.totalorder %s18, 1
    %p114 = por %p112, %p113
    %p116 = scmp.ne.s32.totalorder %s101, %s115
    %p117 = scmp.eq.s32.totalorder %s18, 0
    %p118 = por %p116, %p117
    %s120 = sadd.s32 %s119, 1
    %p123 = scmp.eq.s32.totalorder %s12, 1
    %p124 = scmp.ne.s32.totalorder %s119, %s121
    %p125 = scmp.eq.s32.totalorder %s12, 0
    %p126 = por %p124, %p125
    %p127 = scmp.ne.s32.totalorder %s119, %s121
    %p128 = scmp.eq.s32.totalorder %s17, 1
    %p129 = por %p127, %p128
    %p130 = scmp.ne.s32.totalorder %s121, %s122
    %p131 = scmp.eq.s32.totalorder %s17, 0
    %p132 = por %p130, %p131
    %p133 = scmp.ne.s32.totalorder %s121, %s122
    %p134 = scmp.eq.s32.totalorder %s18, 1
    %p135 = por %p133, %p134
    %p137 = scmp.ne.s32.totalorder %s122, %s136
    %p138 = scmp.eq.s32.totalorder %s18, 0
    %p139 = por %p137, %p138
    %s140 = ssub.s32 %s12, %s19
    %p141 = scmp.eq.s32.totalorder %s140, 0
    %s143 = sadd.s32 %s142, 1
    %s144 = scalar_select %p141, %s142, %s143
    %p147 = pneg %p141
    %p148 = scmp.eq.s32.totalorder %s12, 1
    %p149 = por %p147, %p148
    %p150 = scmp.ne.s32.totalorder %s142, %s145
    %p151 = scmp.eq.s32.totalorder %s12, 0
    %p152 = por %p150, %p151
    %p153 = scmp.ne.s32.totalorder %s142, %s145
    %p154 = scmp.eq.s32.totalorder %s17, 1
    %p155 = por %p153, %p154
    %p156 = scmp.ne.s32.totalorder %s145, %s146
    %p157 = scmp.eq.s32.totalorder %s17, 0
    %p158 = por %p156, %p157
    %p159 = scmp.ne.s32.totalorder %s145, %s146
    %p160 = scmp.eq.s32.totalorder %s18, 1
    %p161 = por %p159, %p160
    %p163 = scmp.ne.s32.totalorder %s146, %s162
    %p164 = scmp.eq.s32.totalorder %s18, 0
    %p165 = por %p163, %p164
    %s166 = ssub.s32 %s12, %s19
    %p167 = scmp.eq.s32.totalorder %s166, 0
    %s169 = sadd.s32 %s168, 1
    %s170 = scalar_select %p167, %s168, %s169
    %p173 = pneg %p167
    %p174 = scmp.eq.s32.totalorder %s12, 1
    %p175 = por %p173, %p174
    %p176 = scmp.ne.s32.totalorder %s168, %s171
    %p177 = scmp.eq.s32.totalorder %s12, 0
    %p178 = por %p176, %p177
    %p179 = scmp.ne.s32.totalorder %s168, %s171
    %p180 = scmp.eq.s32.totalorder %s17, 1
    %p181 = por %p179, %p180
    %p182 = scmp.ne.s32.totalorder %s171, %s172
    %p183 = scmp.eq.s32.totalorder %s17, 0
    %p184 = por %p182, %p183
    %p185 = scmp.ne.s32.totalorder %s171, %s172
    %p186 = scmp.eq.s32.totalorder %s18, 1
    %p187 = por %p185, %p186
    %p189 = scmp.ne.s32.totalorder %s172, %s188
    %p190 = scmp.eq.s32.totalorder %s18, 0
    %p191 = por %p189, %p190
    %p192 = scmp.le.s32.totalorder 1, %s12
    %p193 = scmp.lt.s32.totalorder %s12, 3
    %p194 = pnand %p192, %p193
    %p195 = pneg %p194
    // Predicated region
    $region9: #{resnet_block_forward.3} parent=5 // pred_check
      _
    $region10: #{resnet_block_forward.3} parent=5 // pred_check_branch
      %197 = sbr.rel (%p194) target = $region12
    $region11: #{resnet_block_forward.3} parent=5 // pred_region
      %s198 = ssub.s32 %s12, 1
      // Predicated region
      $region13: #{resnet_block_forward.3} parent=11 // pred_check
        %p199 = pneg %p111
      $region14: #{resnet_block_forward.3} parent=11 // pred_check_branch
        %201 = sbr.rel (%p199) target = $region16
      $region15: #{resnet_block_forward.3} parent=11 // pred_region
        _
      $region16: #{resnet_block_forward.3} parent=11 // pred_fallthru
        _
      // Predicated region
      $region17: #{resnet_block_forward.3} parent=11 // pred_check
        %p202 = pneg %p132
      $region18: #{resnet_block_forward.3} parent=11 // pred_check_branch
        %204 = sbr.rel (%p202) target = $region20
      $region19: #{resnet_block_forward.3} parent=11 // pred_region
        _
      $region20: #{resnet_block_forward.3} parent=11 // pred_fallthru
        _
    $region12: #{resnet_block_forward.3} parent=5 // pred_fallthru
      _
    %p205 = scmp.lt.s32.totalorder %s12, 2
    // Predicated region
    $region21: #{resnet_block_forward.3} parent=5 // pred_check
      %p206 = pneg %p205
    $region22: #{resnet_block_forward.3} parent=5 // pred_check_branch
      %208 = sbr.rel (%p206) target = $region24
    $region23: #{resnet_block_forward.3} parent=5 // pred_region
      // Predicated region
      $region25: #{resnet_block_forward.3} parent=23 // pred_check
        %p209 = pneg %p32
      $region26: #{resnet_block_forward.3} parent=23 // pred_check_branch
        %211 = sbr.rel (%p209) target = $region28
      $region27: #{resnet_block_forward.3} parent=23 // pred_region
        %s212 = smul.u32 3, %s12
        %p213 = scmp.lt.s32.totalorder %s212, 5
        %s214 = scalar_select %p213, %s212, 5
        %s215 = smul.addr %s214, 8
        %s216 = smul.addr %s215, 8
        %s217 = scalar_lea.vmem %s0, %s216
        %s218 = smul.u32 3, %s12
      $region28: #{resnet_block_forward.3} parent=23 // pred_fallthru
        _
      // Predicated region
      $region29: #{resnet_block_forward.3} parent=23 // pred_check
        %p219 = pneg %p58
      $region30: #{resnet_block_forward.3} parent=23 // pred_check_branch
        %221 = sbr.rel (%p219) target = $region32
      $region31: #{resnet_block_forward.3} parent=23 // pred_region
        %s222 = smul.u32 3, %s12
        %p223 = scmp.lt.s32.totalorder %s222, 5
        %s224 = scalar_select %p223, %s222, 5
        %s225 = smul.addr %s224, 4
        %s226 = scalar_lea.vmem %s1, %s225
        %s227 = smul.u32 3, %s12
      $region32: #{resnet_block_forward.3} parent=23 // pred_fallthru
        _
      // Predicated region
      $region33: #{resnet_block_forward.3} parent=23 // pred_check
        %p228 = pneg %p84
      $region34: #{resnet_block_forward.3} parent=23 // pred_check_branch
        %230 = sbr.rel (%p228) target = $region36
      $region35: #{resnet_block_forward.3} parent=23 // pred_region
        %s231 = smul.u32 3, %s12
        %p232 = scmp.lt.s32.totalorder %s231, 5
        %s233 = scalar_select %p232, %s231, 5
        %s234 = smul.addr %s233, 4
        %s235 = scalar_lea.vmem %s2, %s234
        %s236 = smul.u32 3, %s12
      $region36: #{resnet_block_forward.3} parent=23 // pred_fallthru
        _
      // Predicated region
      $region37: #{resnet_block_forward.3} parent=23 // pred_check
        %p237 = pneg %p152
      $region38: #{resnet_block_forward.3} parent=23 // pred_check_branch
        %239 = sbr.rel (%p237) target = $region40
      $region39: #{resnet_block_forward.3} parent=23 // pred_region
        %s240 = smul.u32 3, %s12
        %p241 = scmp.lt.s32.totalorder %s240, 5
        %s242 = scalar_select %p241, %s240, 5
        %s243 = smul.addr %s242, 8
        %s244 = smul.addr %s243, 8
        %s245 = scalar_lea.vmem %s5, %s244
        %s246 = smul.u32 3, %s12
      $region40: #{resnet_block_forward.3} parent=23 // pred_fallthru
        _
    $region24: #{resnet_block_forward.3} parent=5 // pred_fallthru
      _
    %p247 = scmp.le.s32.totalorder 1, %s12
    %p248 = scmp.lt.s32.totalorder %s12, 3
    %p249 = pnand %p247, %p248
    %p250 = pneg %p249
    // Predicated region
    $region41: #{resnet_block_forward.3} parent=5 // pred_check
      _
    $region42: #{resnet_block_forward.3} parent=5 // pred_check_branch
      %252 = sbr.rel (%p249) target = $region44
    $region43: #{resnet_block_forward.3} parent=5 // pred_region
      %s253 = ssub.s32 %s12, 1
      %s254 = smul.u32 3, %s17
      %p255 = scmp.lt.s32.totalorder %s254, 5
      %s256 = scalar_select %p255, %s254, 5
      %s257 = smul.addr %s256, 8
      %s258 = smul.addr %s257, 8
      %s259 = scalar_lea.vmem %s0, %s258
      %p260 = pneg %p38
      %p261 = pneg %p35
      %s262 = smul.u32 3, %s17
      %p263 = scmp.lt.s32.totalorder %s262, 5
      %s264 = scalar_select %p263, %s262, 5
      %s265 = smul.addr %s264, 4
      %s266 = scalar_lea.vmem %s1, %s265
      %p267 = pneg %p64
      %p268 = pneg %p61
      %s269 = smul.u32 3, %s17
      %p270 = scmp.lt.s32.totalorder %s269, 5
      %s271 = scalar_select %p270, %s269, 5
      %s272 = smul.addr %s271, 4
      %s273 = scalar_lea.vmem %s2, %s272
      %p274 = pneg %p90
      %p275 = pneg %p87
      %p276 = pneg %p111
      %p277 = pneg %p108
      %p278 = pneg %p132
      %p279 = pneg %p129
      %s280 = smul.u32 3, %s17
      %p281 = scmp.lt.s32.totalorder %s280, 5
      %s282 = scalar_select %p281, %s280, 5
      %s283 = smul.addr %s282, 8
      %s284 = smul.addr %s283, 8
      %s285 = scalar_lea.vmem %s5, %s284
      %p286 = pneg %p158
      %p287 = pneg %p155
      %p288 = pneg %p184
      %p289 = pneg %p181
      %s290 = smul.u32 3, %s17
      %p291 = scmp.lt.s32.totalorder %s290, 5
      %s292 = scalar_select %p291, %s290, 5
      %s293 = smul.addr %s292, 8
      %s294 = smul.addr %s293, 8
      %s295 = scalar_lea.vmem %s6, %s294
      %s296 = smul.u32 3, %s17
      %p297 = scmp.lt.s32.totalorder %s296, 5
      %s298 = scalar_select %p297, %s296, 5
      %s299 = smul.addr %s298, 8
      %s300 = smul.addr %s299, 8
      %s301 = scalar_lea.vmem %s0, %s300
      %s302 = smul.u32 3, %s17
      %s303 = smul.u32 3, %s17
      %p304 = scmp.lt.s32.totalorder %s303, 5
      %s305 = scalar_select %p304, %s303, 5
      %s306 = smul.addr %s305, 4
      %s307 = scalar_lea.vmem %s1, %s306
      %s308 = smul.u32 3, %s17
      %s309 = smul.u32 3, %s17
      %p310 = scmp.lt.s32.totalorder %s309, 5
      %s311 = scalar_select %p310, %s309, 5
      %s312 = smul.addr %s311, 4
      %s313 = scalar_lea.vmem %s2, %s312
      %s314 = smul.u32 3, %s17
      %s315 = smul.u32 3, %s17
      %p316 = scmp.lt.s32.totalorder %s315, 5
      %s317 = scalar_select %p316, %s315, 5
      %s318 = smul.addr %s317, 8
      %s319 = smul.addr %s318, 8
      %s320 = scalar_lea.vmem %s5, %s319
      %s321 = smul.u32 3, %s17
      %s322 = smul.u32 3, %s17
      %p323 = scmp.lt.s32.totalorder %s322, 5
      %s324 = scalar_select %p323, %s322, 5
      %s325 = smul.addr %s324, 8
      %s326 = smul.addr %s325, 8
      %s327 = scalar_lea.vmem %s6, %s326
      %s328 = smul.u32 3, %s17
      %v329 = vld [vmem:[%s301] sm:$0xff]
      %v330 = vld [vmem:[%s301 + $0x8] sm:$0xff]
      %v331 = vld [vmem:[%s301 + $0x10] sm:$0xff]
      %v332 = vld [vmem:[%s301 + $0x18] sm:$0xff]
      %v333 = vld [vmem:[%s301 + $0x20] sm:$0xff]
      %v334 = vld [vmem:[%s301 + $0x28] sm:$0xff]
      %v335 = vld [vmem:[%s301 + $0x30] sm:$0xff]
      %v336 = vld [vmem:[%s301 + $0x38] sm:$0xff]
      %v337 = vld [vmem:[%s301 + $0x40] sm:$0xff]
      %v338 = vld [vmem:[%s301 + $0x48] sm:$0xff]
      %v339 = vld [vmem:[%s301 + $0x50] sm:$0xff]
      %v340 = vld [vmem:[%s301 + $0x58] sm:$0xff]
      %v341 = vld [vmem:[%s301 + $0x60] sm:$0xff]
      %v342 = vld [vmem:[%s301 + $0x68] sm:$0xff]
      %v343 = vld [vmem:[%s301 + $0x70] sm:$0xff]
      %v344 = vld [vmem:[%s301 + $0x78] sm:$0xff]
      %v345 = vld [vmem:[%s301 + $0x80] sm:$0xff]
      %v346 = vld [vmem:[%s301 + $0x88] sm:$0xff]
      %v347 = vld [vmem:[%s301 + $0x90] sm:$0xff]
      %v348 = vld [vmem:[%s301 + $0x98] sm:$0xff]
      %v349 = vld [vmem:[%s301 + $0xa0] sm:$0xff]
      %v350 = vld [vmem:[%s301 + $0xa8] sm:$0xff]
      %v351 = vld [vmem:[%s301 + $0xb0] sm:$0xff]
      %v352 = vld [vmem:[%s301 + $0xb8] sm:$0xff]
      %v353 = vld [vmem:[%s307] sm:$0xf]
      %v354 = vld [vmem:[%s307 + $0x4] sm:$0xf]
      %v355 = vld [vmem:[%s307 + $0x8] sm:$0xf]
      %v359 = vlaneseq
      %v360 = vshrl.u32 %v359, 7
      %v361 = vsub.s32 0, %v360
      %v362 = vrot.slane %v353, %v361
      %v363 = vlaneseq
      %v364 = vshrl.u32 %v363, 7
      %v365 = vsub.s32 1, %v364
      %v366 = vrot.slane %v353, %v365
      %v367 = vlaneseq
      %v368 = vshrl.u32 %v367, 7
      %v369 = vsub.s32 2, %v368
      %v370 = vrot.slane %v353, %v369
      %v371 = vlaneseq
      %v372 = vshrl.u32 %v371, 7
      %v373 = vsub.s32 3, %v372
      %v374 = vrot.slane %v353, %v373
      %v375 = vlaneseq
      %v376 = vshrl.u32 %v375, 7
      %v377 = vsub.s32 0, %v376
      %v378 = vrot.slane %v354, %v377
      %v379 = vlaneseq
      %v380 = vshrl.u32 %v379, 7
      %v381 = vsub.s32 1, %v380
      %v382 = vrot.slane %v354, %v381
      %v383 = vlaneseq
      %v384 = vshrl.u32 %v383, 7
      %v385 = vsub.s32 2, %v384
      %v386 = vrot.slane %v354, %v385
      %v387 = vlaneseq
      %v388 = vshrl.u32 %v387, 7
      %v389 = vsub.s32 3, %v388
      %v390 = vrot.slane %v354, %v389
      %v391 = vlaneseq
      %v392 = vshrl.u32 %v391, 7
      %v393 = vsub.s32 0, %v392
      %v394 = vrot.slane %v355, %v393
      %v395 = vlaneseq
      %v396 = vshrl.u32 %v395, 7
      %v397 = vsub.s32 1, %v396
      %v398 = vrot.slane %v355, %v397
      %v399 = vlaneseq
      %v400 = vshrl.u32 %v399, 7
      %v401 = vsub.s32 2, %v400
      %v402 = vrot.slane %v355, %v401
      %v403 = vlaneseq
      %v404 = vshrl.u32 %v403, 7
      %v405 = vsub.s32 3, %v404
      %v406 = vrot.slane %v355, %v405
      %v419 = vmul.f32 %v329, %v362
      %v420 = vmul.f32 %v330, %v366
      %v421 = vmul.f32 %v331, %v370
      %v422 = vmul.f32 %v332, %v374
      %v423 = vmul.f32 %v333, %v362
      %v424 = vmul.f32 %v334, %v366
      %v425 = vmul.f32 %v335, %v370
      %v426 = vmul.f32 %v336, %v374
      %v427 = vmul.f32 %v337, %v378
      %v428 = vmul.f32 %v338, %v382
      %v429 = vmul.f32 %v339, %v386
      %v430 = vmul.f32 %v340, %v390
      %v431 = vmul.f32 %v341, %v378
      %v432 = vmul.f32 %v342, %v382
      %v433 = vmul.f32 %v343, %v386
      %v434 = vmul.f32 %v344, %v390
      %v435 = vmul.f32 %v345, %v394
      %v436 = vmul.f32 %v346, %v398
      %v437 = vmul.f32 %v347, %v402
      %v438 = vmul.f32 %v348, %v406
      %v439 = vmul.f32 %v349, %v394
      %v440 = vmul.f32 %v350, %v398
      %v441 = vmul.f32 %v351, %v402
      %v442 = vmul.f32 %v352, %v406
      %v443 = vld [vmem:[%s313] sm:$0xf]
      %v444 = vld [vmem:[%s313 + $0x4] sm:$0xf]
      %v445 = vld [vmem:[%s313 + $0x8] sm:$0xf]
      %v449 = vlaneseq
      %v450 = vshrl.u32 %v449, 7
      %v451 = vsub.s32 0, %v450
      %v452 = vrot.slane %v443, %v451
      %v453 = vlaneseq
      %v454 = vshrl.u32 %v453, 7
      %v455 = vsub.s32 1, %v454
      %v456 = vrot.slane %v443, %v455
      %v457 = vlaneseq
      %v458 = vshrl.u32 %v457, 7
      %v459 = vsub.s32 2, %v458
      %v460 = vrot.slane %v443, %v459
      %v461 = vlaneseq
      %v462 = vshrl.u32 %v461, 7
      %v463 = vsub.s32 3, %v462
      %v464 = vrot.slane %v443, %v463
      %v465 = vlaneseq
      %v466 = vshrl.u32 %v465, 7
      %v467 = vsub.s32 0, %v466
      %v468 = vrot.slane %v444, %v467
      %v469 = vlaneseq
      %v470 = vshrl.u32 %v469, 7
      %v471 = vsub.s32 1, %v470
      %v472 = vrot.slane %v444, %v471
      %v473 = vlaneseq
      %v474 = vshrl.u32 %v473, 7
      %v475 = vsub.s32 2, %v474
      %v476 = vrot.slane %v444, %v475
      %v477 = vlaneseq
      %v478 = vshrl.u32 %v477, 7
      %v479 = vsub.s32 3, %v478
      %v480 = vrot.slane %v444, %v479
      %v481 = vlaneseq
      %v482 = vshrl.u32 %v481, 7
      %v483 = vsub.s32 0, %v482
      %v484 = vrot.slane %v445, %v483
      %v485 = vlaneseq
      %v486 = vshrl.u32 %v485, 7
      %v487 = vsub.s32 1, %v486
      %v488 = vrot.slane %v445, %v487
      %v489 = vlaneseq
      %v490 = vshrl.u32 %v489, 7
      %v491 = vsub.s32 2, %v490
      %v492 = vrot.slane %v445, %v491
      %v493 = vlaneseq
      %v494 = vshrl.u32 %v493, 7
      %v495 = vsub.s32 3, %v494
      %v496 = vrot.slane %v445, %v495
      %v509 = vadd.f32 %v419, %v452
      %v510 = vadd.f32 %v420, %v456
      %v511 = vadd.f32 %v421, %v460
      %v512 = vadd.f32 %v422, %v464
      %v513 = vadd.f32 %v423, %v452
      %v514 = vadd.f32 %v424, %v456
      %v515 = vadd.f32 %v425, %v460
      %v516 = vadd.f32 %v426, %v464
      %v517 = vadd.f32 %v427, %v468
      %v518 = vadd.f32 %v428, %v472
      %v519 = vadd.f32 %v429, %v476
      %v520 = vadd.f32 %v430, %v480
      %v521 = vadd.f32 %v431, %v468
      %v522 = vadd.f32 %v432, %v472
      %v523 = vadd.f32 %v433, %v476
      %v524 = vadd.f32 %v434, %v480
      %v525 = vadd.f32 %v435, %v484
      %v526 = vadd.f32 %v436, %v488
      %v527 = vadd.f32 %v437, %v492
      %v528 = vadd.f32 %v438, %v496
      %v529 = vadd.f32 %v439, %v484
      %v530 = vadd.f32 %v440, %v488
      %v531 = vadd.f32 %v441, %v492
      %v532 = vadd.f32 %v442, %v496
      %v533 = vsub.f32 0.0, %v509
      %v534 = vsub.f32 0.0, %v510
      %v535 = vsub.f32 0.0, %v511
      %v536 = vsub.f32 0.0, %v512
      %v537 = vsub.f32 0.0, %v513
      %v538 = vsub.f32 0.0, %v514
      %v539 = vsub.f32 0.0, %v515
      %v540 = vsub.f32 0.0, %v516
      %v541 = vsub.f32 0.0, %v517
      %v542 = vsub.f32 0.0, %v518
      %v543 = vsub.f32 0.0, %v519
      %v544 = vsub.f32 0.0, %v520
      %v545 = vsub.f32 0.0, %v521
      %v546 = vsub.f32 0.0, %v522
      %v547 = vsub.f32 0.0, %v523
      %v548 = vsub.f32 0.0, %v524
      %v549 = vsub.f32 0.0, %v525
      %v550 = vsub.f32 0.0, %v526
      %v551 = vsub.f32 0.0, %v527
      %v552 = vsub.f32 0.0, %v528
      %v553 = vsub.f32 0.0, %v529
      %v554 = vsub.f32 0.0, %v530
      %v555 = vsub.f32 0.0, %v531
      %v556 = vsub.f32 0.0, %v532
      %v557 = vmul.f32 %v533, 1.442695
      %v558 = vpow.pop %v557
      %v559 = vmul.f32 %v534, 1.442695
      %v560 = vpow.pop %v559
      %v561 = vmul.f32 %v535, 1.442695
      %v562 = vpow.pop %v561
      %v563 = vmul.f32 %v536, 1.442695
      %v564 = vpow.pop %v563
      %v565 = vmul.f32 %v537, 1.442695
      %v566 = vpow.pop %v565
      %v567 = vmul.f32 %v538, 1.442695
      %v568 = vpow.pop %v567
      %v569 = vmul.f32 %v539, 1.442695
      %v570 = vpow.pop %v569
      %v571 = vmul.f32 %v540, 1.442695
      %v572 = vpow.pop %v571
      %v573 = vmul.f32 %v541, 1.442695
      %v574 = vpow.pop %v573
      %v575 = vmul.f32 %v542, 1.442695
      %v576 = vpow.pop %v575
      %v577 = vmul.f32 %v543, 1.442695
      %v578 = vpow.pop %v577
      %v579 = vmul.f32 %v544, 1.442695
      %v580 = vpow.pop %v579
      %v581 = vmul.f32 %v545, 1.442695
      %v582 = vpow.pop %v581
      %v583 = vmul.f32 %v546, 1.442695
      %v584 = vpow.pop %v583
      %v585 = vmul.f32 %v547, 1.442695
      %v586 = vpow.pop %v585
      %v587 = vmul.f32 %v548, 1.442695
      %v588 = vpow.pop %v587
      %v589 = vmul.f32 %v549, 1.442695
      %v590 = vpow.pop %v589
      %v591 = vmul.f32 %v550, 1.442695
      %v592 = vpow.pop %v591
      %v593 = vmul.f32 %v551, 1.442695
      %v594 = vpow.pop %v593
      %v595 = vmul.f32 %v552, 1.442695
      %v596 = vpow.pop %v595
      %v597 = vmul.f32 %v553, 1.442695
      %v598 = vpow.pop %v597
      %v599 = vmul.f32 %v554, 1.442695
      %v600 = vpow.pop %v599
      %v601 = vmul.f32 %v555, 1.442695
      %v602 = vpow.pop %v601
      %v603 = vmul.f32 %v556, 1.442695
      %v604 = vpow.pop %v603
      %v605 = vadd.f32 %v558, 1.0
      %v606 = vadd.f32 %v560, 1.0
      %v607 = vadd.f32 %v562, 1.0
      %v608 = vadd.f32 %v564, 1.0
      %v609 = vadd.f32 %v566, 1.0
      %v610 = vadd.f32 %v568, 1.0
      %v611 = vadd.f32 %v570, 1.0
      %v612 = vadd.f32 %v572, 1.0
      %v613 = vadd.f32 %v574, 1.0
      %v614 = vadd.f32 %v576, 1.0
      %v615 = vadd.f32 %v578, 1.0
      %v616 = vadd.f32 %v580, 1.0
      %v617 = vadd.f32 %v582, 1.0
      %v618 = vadd.f32 %v584, 1.0
      %v619 = vadd.f32 %v586, 1.0
      %v620 = vadd.f32 %v588, 1.0
      %v621 = vadd.f32 %v590, 1.0
      %v622 = vadd.f32 %v592, 1.0
      %v623 = vadd.f32 %v594, 1.0
      %v624 = vadd.f32 %v596, 1.0
      %v625 = vadd.f32 %v598, 1.0
      %v626 = vadd.f32 %v600, 1.0
      %v627 = vadd.f32 %v602, 1.0
      %v628 = vadd.f32 %v604, 1.0
      %v629 = vrcp.pop %v605
      %v630 = vmul.f32 %v509, %v629
      %v631 = vrcp.pop %v606
      %v632 = vmul.f32 %v510, %v631
      %v633 = vrcp.pop %v607
      %v634 = vmul.f32 %v511, %v633
      %v635 = vrcp.pop %v608
      %v636 = vmul.f32 %v512, %v635
      %v637 = vrcp.pop %v609
      %v638 = vmul.f32 %v513, %v637
      %v639 = vrcp.pop %v610
      %v640 = vmul.f32 %v514, %v639
      %v641 = vrcp.pop %v611
      %v642 = vmul.f32 %v515, %v641
      %v643 = vrcp.pop %v612
      %v644 = vmul.f32 %v516, %v643
      %v645 = vrcp.pop %v613
      %v646 = vmul.f32 %v517, %v645
      %v647 = vrcp.pop %v614
      %v648 = vmul.f32 %v518, %v647
      %v649 = vrcp.pop %v615
      %v650 = vmul.f32 %v519, %v649
      %v651 = vrcp.pop %v616
      %v652 = vmul.f32 %v520, %v651
      %v653 = vrcp.pop %v617
      %v654 = vmul.f32 %v521, %v653
      %v655 = vrcp.pop %v618
      %v656 = vmul.f32 %v522, %v655
      %v657 = vrcp.pop %v619
      %v658 = vmul.f32 %v523, %v657
      %v659 = vrcp.pop %v620
      %v660 = vmul.f32 %v524, %v659
      %v661 = vrcp.pop %v621
      %v662 = vmul.f32 %v525, %v661
      %v663 = vrcp.pop %v622
      %v664 = vmul.f32 %v526, %v663
      %v665 = vrcp.pop %v623
      %v666 = vmul.f32 %v527, %v665
      %v667 = vrcp.pop %v624
      %v668 = vmul.f32 %v528, %v667
      %v669 = vrcp.pop %v625
      %v670 = vmul.f32 %v529, %v669
      %v671 = vrcp.pop %v626
      %v672 = vmul.f32 %v530, %v671
      %v673 = vrcp.pop %v627
      %v674 = vmul.f32 %v531, %v673
      %v675 = vrcp.pop %v628
      %v676 = vmul.f32 %v532, %v675
      %677 = vst [vmem:[#allocation2] sm:$0xff] 0.0
      %678 = vst [vmem:[#allocation2 + $0x8] sm:$0xff] 0.0
      %679 = vst [vmem:[#allocation2 + $0x10] sm:$0xff] 0.0
      %680 = vst [vmem:[#allocation2 + $0x18] sm:$0xff] 0.0
      %vm681 = vcmask 523264
      %682 = vst.msk [vmem:[#allocation2 + $0x20] sm:$0xff] %vm681, 0.0
      %683 = vst [vmem:[#allocation2 + $0x28] sm:$0xff] 0.0
      %684 = vst [vmem:[#allocation2 + $0x30] sm:$0xff] 0.0
      %685 = vst [vmem:[#allocation2 + $0x38] sm:$0xff] 0.0
      %686 = vst [vmem:[#allocation2 + $0x40] sm:$0xff] 0.0
      %687 = vst.msk [vmem:[#allocation2 + $0x48] sm:$0xff] %vm681, 0.0
      %688 = vst [vmem:[#allocation2 + $0x50] sm:$0x3] 0.0
      %689 = vst [vmem:[#allocation2 + $0x58] sm:$0x3] 0.0
      %690 = vst [vmem:[#allocation2 + $0x60] sm:$0x3] 0.0
      %691 = vst [vmem:[#allocation2 + $0x68] sm:$0x3] 0.0
      %vm692 = vcmask 517120
      %693 = vst.msk [vmem:[#allocation2 + $0x70] sm:$0x3] %vm692, 0.0
      %694 = vst [vmem:[#allocation2 + $0x78] sm:$0xff] 0.0
      %695 = vst [vmem:[#allocation2 + $0x80] sm:$0xff] 0.0
      %696 = vst [vmem:[#allocation2 + $0x88] sm:$0xff] 0.0
      %697 = vst [vmem:[#allocation2 + $0x90] sm:$0xff] 0.0
      %698 = vst.msk [vmem:[#allocation2 + $0x98] sm:$0xff] %vm681, 0.0
      %699 = vst [vmem:[#allocation2 + $0xa0] sm:$0xff] 0.0
      %700 = vst [vmem:[#allocation2 + $0xa8] sm:$0xff] 0.0
      %701 = vst [vmem:[#allocation2 + $0xb0] sm:$0xff] 0.0
      %702 = vst [vmem:[#allocation2 + $0xb8] sm:$0xff] 0.0
      %703 = vst.msk [vmem:[#allocation2 + $0xc0] sm:$0xff] %vm681, 0.0
      %704 = vst [vmem:[#allocation2 + $0xc8] sm:$0x3] 0.0
      %705 = vst [vmem:[#allocation2 + $0xd0] sm:$0x3] 0.0
      %706 = vst [vmem:[#allocation2 + $0xd8] sm:$0x3] 0.0
      %707 = vst [vmem:[#allocation2 + $0xe0] sm:$0x3] 0.0
      %708 = vst.msk [vmem:[#allocation2 + $0xe8] sm:$0x3] %vm692, 0.0
      %709 = vst [vmem:[#allocation2 + $0xf0] sm:$0xff] 0.0
      %710 = vst [vmem:[#allocation2 + $0xf8] sm:$0xff] 0.0
      %711 = vst [vmem:[#allocation2 + $0x100] sm:$0xff] 0.0
      %712 = vst [vmem:[#allocation2 + $0x108] sm:$0xff] 0.0
      %713 = vst.msk [vmem:[#allocation2 + $0x110] sm:$0xff] %vm681, 0.0
      %714 = vst [vmem:[#allocation2 + $0x118] sm:$0xff] 0.0
      %715 = vst [vmem:[#allocation2 + $0x120] sm:$0xff] 0.0
      %716 = vst [vmem:[#allocation2 + $0x128] sm:$0xff] 0.0
      %717 = vst [vmem:[#allocation2 + $0x130] sm:$0xff] 0.0
      %718 = vst.msk [vmem:[#allocation2 + $0x138] sm:$0xff] %vm681, 0.0
      %719 = vst [vmem:[#allocation2 + $0x140] sm:$0x3] 0.0
      %720 = vst [vmem:[#allocation2 + $0x148] sm:$0x3] 0.0
      %721 = vst [vmem:[#allocation2 + $0x150] sm:$0x3] 0.0
      %722 = vst [vmem:[#allocation2 + $0x158] sm:$0x3] 0.0
      %723 = vst.msk [vmem:[#allocation2 + $0x160] sm:$0x3] %vm692, 0.0
      %vm748 = vcmask 1040384
      %v749 = vrot.slane %v630, 7
      %v750 = vrot.slane %v632, 7
      %v751 = vrot.slane %v634, 7
      %v752 = vrot.slane %v636, 7
      %v753 = vrot.slane %v638, 7
      %v754 = vsel %vm748, %v749, %v753
      %v755 = vrot.slane %v640, 7
      %v756 = vsel %vm748, %v750, %v755
      %v757 = vrot.slane %v642, 7
      %v758 = vsel %vm748, %v751, %v757
      %v759 = vrot.slane %v644, 7
      %v760 = vsel %vm748, %v752, %v759
      %v761 = vrot.slane %v646, 7
      %v762 = vrot.slane %v648, 7
      %v763 = vrot.slane %v650, 7
      %v764 = vrot.slane %v652, 7
      %v765 = vrot.slane %v654, 7
      %v766 = vsel %vm748, %v761, %v765
      %v767 = vrot.slane %v656, 7
      %v768 = vsel %vm748, %v762, %v767
      %v769 = vrot.slane %v658, 7
      %v770 = vsel %vm748, %v763, %v769
      %v771 = vrot.slane %v660, 7
      %v772 = vsel %vm748, %v764, %v771
      %v773 = vrot.slane %v662, 7
      %v774 = vrot.slane %v664, 7
      %v775 = vrot.slane %v666, 7
      %v776 = vrot.slane %v668, 7
      %v777 = vrot.slane %v670, 7
      %v778 = vsel %vm748, %v773, %v777
      %v779 = vrot.slane %v672, 7
      %v780 = vsel %vm748, %v774, %v779
      %v781 = vrot.slane %v674, 7
      %v782 = vsel %vm748, %v775, %v781
      %v783 = vrot.slane %v676, 7
      %v784 = vsel %vm748, %v776, %v783
      %785 = vrot.lane.b32.xlu0 %v749, 32
      %v786 = vpop.permute.xlu0 %785
      %787 = vrot.lane.b32.xlu0 %v750, 32
      %v788 = vpop.permute.xlu0 %787
      %789 = vrot.lane.b32.xlu0 %v751, 32
      %v790 = vpop.permute.xlu0 %789
      %791 = vrot.lane.b32.xlu0 %v752, 32
      %v792 = vpop.permute.xlu0 %791
      %793 = vrot.lane.b32.xlu0 %v754, 32
      %v794 = vpop.permute.xlu0 %793
      %795 = vrot.lane.b32.xlu0 %v756, 32
      %v796 = vpop.permute.xlu0 %795
      %797 = vrot.lane.b32.xlu0 %v758, 32
      %v798 = vpop.permute.xlu0 %797
      %799 = vrot.lane.b32.xlu0 %v760, 32
      %v800 = vpop.permute.xlu0 %799
      %801 = vrot.lane.b32.xlu0 %v753, 32
      %v802 = vpop.permute.xlu0 %801
      %803 = vrot.lane.b32.xlu0 %v755, 32
      %v804 = vpop.permute.xlu0 %803
      %805 = vrot.lane.b32.xlu0 %v757, 32
      %v806 = vpop.permute.xlu0 %805
      %807 = vrot.lane.b32.xlu0 %v759, 32
      %v808 = vpop.permute.xlu0 %807
      %809 = vrot.lane.b32.xlu0 %v761, 32
      %v810 = vpop.permute.xlu0 %809
      %811 = vrot.lane.b32.xlu0 %v762, 32
      %v812 = vpop.permute.xlu0 %811
      %813 = vrot.lane.b32.xlu0 %v763, 32
      %v814 = vpop.permute.xlu0 %813
      %815 = vrot.lane.b32.xlu0 %v764, 32
      %v816 = vpop.permute.xlu0 %815
      %817 = vrot.lane.b32.xlu0 %v766, 32
      %v818 = vpop.permute.xlu0 %817
      %819 = vrot.lane.b32.xlu0 %v768, 32
      %v820 = vpop.permute.xlu0 %819
      %821 = vrot.lane.b32.xlu0 %v770, 32
      %v822 = vpop.permute.xlu0 %821
      %823 = vrot.lane.b32.xlu0 %v772, 32
      %v824 = vpop.permute.xlu0 %823
      %825 = vrot.lane.b32.xlu0 %v765, 32
      %v826 = vpop.permute.xlu0 %825
      %827 = vrot.lane.b32.xlu0 %v767, 32
      %v828 = vpop.permute.xlu0 %827
      %829 = vrot.lane.b32.xlu0 %v769, 32
      %v830 = vpop.permute.xlu0 %829
      %831 = vrot.lane.b32.xlu0 %v771, 32
      %v832 = vpop.permute.xlu0 %831
      %833 = vrot.lane.b32.xlu0 %v773, 32
      %v834 = vpop.permute.xlu0 %833
      %835 = vrot.lane.b32.xlu0 %v774, 32
      %v836 = vpop.permute.xlu0 %835
      %837 = vrot.lane.b32.xlu0 %v775, 32
      %v838 = vpop.permute.xlu0 %837
      %839 = vrot.lane.b32.xlu0 %v776, 32
      %v840 = vpop.permute.xlu0 %839
      %841 = vrot.lane.b32.xlu0 %v778, 32
      %v842 = vpop.permute.xlu0 %841
      %843 = vrot.lane.b32.xlu0 %v780, 32
      %v844 = vpop.permute.xlu0 %843
      %845 = vrot.lane.b32.xlu0 %v782, 32
      %v846 = vpop.permute.xlu0 %845
      %847 = vrot.lane.b32.xlu0 %v784, 32
      %v848 = vpop.permute.xlu0 %847
      %849 = vrot.lane.b32.xlu0 %v777, 32
      %v850 = vpop.permute.xlu0 %849
      %851 = vrot.lane.b32.xlu0 %v779, 32
      %v852 = vpop.permute.xlu0 %851
      %853 = vrot.lane.b32.xlu0 %v781, 32
      %v854 = vpop.permute.xlu0 %853
      %855 = vrot.lane.b32.xlu0 %v783, 32
      %v856 = vpop.permute.xlu0 %855
      %vm857 = vcmask 261120
      %v858 = vsel %vm857, %v786, %v788
      %v859 = vsel %vm857, %v788, %v790
      %v860 = vsel %vm857, %v790, %v792
      %v861 = vsel %vm857, %v794, %v796
      %v862 = vsel %vm857, %v796, %v798
      %v863 = vsel %vm857, %v798, %v800
      %v864 = vsel %vm857, %v802, %v804
      %v865 = vsel %vm857, %v804, %v806
      %v866 = vsel %vm857, %v806, %v808
      %v867 = vsel %vm857, %v810, %v812
      %v868 = vsel %vm857, %v812, %v814
      %v869 = vsel %vm857, %v814, %v816
      %v870 = vsel %vm857, %v818, %v820
      %v871 = vsel %vm857, %v820, %v822
      %v872 = vsel %vm857, %v822, %v824
      %v873 = vsel %vm857, %v826, %v828
      %v874 = vsel %vm857, %v828, %v830
      %v875 = vsel %vm857, %v830, %v832
      %v876 = vsel %vm857, %v834, %v836
      %v877 = vsel %vm857, %v836, %v838
      %v878 = vsel %vm857, %v838, %v840
      %v879 = vsel %vm857, %v842, %v844
      %v880 = vsel %vm857, %v844, %v846
      %v881 = vsel %vm857, %v846, %v848
      %v882 = vsel %vm857, %v850, %v852
      %v883 = vsel %vm857, %v852, %v854
      %v884 = vsel %vm857, %v854, %v856
      %vm930 = vcmask 1047809
      %931 = vst.msk [vmem:[#allocation2] sm:$0xfe] %vm930, %v786
      %932 = vst [vmem:[#allocation2 + $0x8] sm:$0xfe] %v858
      %933 = vst [vmem:[#allocation2 + $0x10] sm:$0xfe] %v859
      %934 = vst [vmem:[#allocation2 + $0x18] sm:$0xfe] %v860
      %vm935 = vcmask 261121
      %936 = vst.msk [vmem:[#allocation2 + $0x20] sm:$0xfe] %vm935, %v792
      %vm937 = vcmask 1047808
      %938 = vst.msk [vmem:[#allocation2 + $0x28] sm:$0xff] %vm937, %v794
      %939 = vst [vmem:[#allocation2 + $0x30] sm:$0xff] %v861
      %940 = vst [vmem:[#allocation2 + $0x38] sm:$0xff] %v862
      %941 = vst [vmem:[#allocation2 + $0x40] sm:$0xff] %v863
      %942 = vst.msk [vmem:[#allocation2 + $0x48] sm:$0xff] %vm857, %v800
      %vm943 = vcmask 1040640
      %944 = vst.msk [vmem:[#allocation2 + $0x50] sm:$0x1] %vm943, %v802
      %945 = vst [vmem:[#allocation2 + $0x58] sm:$0x1] %v864
      %946 = vst [vmem:[#allocation2 + $0x60] sm:$0x1] %v865
      %947 = vst [vmem:[#allocation2 + $0x68] sm:$0x1] %v866
      %vm948 = vcmask 253952
      %949 = vst.msk [vmem:[#allocation2 + $0x70] sm:$0x1] %vm948, %v808
      %950 = vst.msk [vmem:[#allocation2 + $0x78] sm:$0xfe] %vm930, %v810
      %951 = vst [vmem:[#allocation2 + $0x80] sm:$0xfe] %v867
      %952 = vst [vmem:[#allocation2 + $0x88] sm:$0xfe] %v868
      %953 = vst [vmem:[#allocation2 + $0x90] sm:$0xfe] %v869
      %954 = vst.msk [vmem:[#allocation2 + $0x98] sm:$0xfe] %vm935, %v816
      %955 = vst.msk [vmem:[#allocation2 + $0xa0] sm:$0xff] %vm937, %v818
      %956 = vst [vmem:[#allocation2 + $0xa8] sm:$0xff] %v870
      %957 = vst [vmem:[#allocation2 + $0xb0] sm:$0xff] %v871
      %958 = vst [vmem:[#allocation2 + $0xb8] sm:$0xff] %v872
      %959 = vst.msk [vmem:[#allocation2 + $0xc0] sm:$0xff] %vm857, %v824
      %960 = vst.msk [vmem:[#allocation2 + $0xc8] sm:$0x1] %vm943, %v826
      %961 = vst [vmem:[#allocation2 + $0xd0] sm:$0x1] %v873
      %962 = vst [vmem:[#allocation2 + $0xd8] sm:$0x1] %v874
      %963 = vst [vmem:[#allocation2 + $0xe0] sm:$0x1] %v875
      %964 = vst.msk [vmem:[#allocation2 + $0xe8] sm:$0x1] %vm948, %v832
      %965 = vst.msk [vmem:[#allocation2 + $0xf0] sm:$0xfe] %vm930, %v834
      %966 = vst [vmem:[#allocation2 + $0xf8] sm:$0xfe] %v876
      %967 = vst [vmem:[#allocation2 + $0x100] sm:$0xfe] %v877
      %968 = vst [vmem:[#allocation2 + $0x108] sm:$0xfe] %v878
      %969 = vst.msk [vmem:[#allocation2 + $0x110] sm:$0xfe] %vm935, %v840
      %970 = vst.msk [vmem:[#allocation2 + $0x118] sm:$0xff] %vm937, %v842
      %971 = vst [vmem:[#allocation2 + $0x120] sm:$0xff] %v879
      %972 = vst [vmem:[#allocation2 + $0x128] sm:$0xff] %v880
      %973 = vst [vmem:[#allocation2 + $0x130] sm:$0xff] %v881
      %974 = vst.msk [vmem:[#allocation2 + $0x138] sm:$0xff] %vm857, %v848
      %975 = vst.msk [vmem:[#allocation2 + $0x140] sm:$0x1] %vm943, %v850
      %976 = vst [vmem:[#allocation2 + $0x148] sm:$0x1] %v882
      %977 = vst [vmem:[#allocation2 + $0x150] sm:$0x1] %v883
      %978 = vst [vmem:[#allocation2 + $0x158] sm:$0x1] %v884
      %979 = vst.msk [vmem:[#allocation2 + $0x160] sm:$0x1] %vm948, %v856
      %v980 = vld [vmem:[#allocation2] sm:$0xff]
      %v981 = vld [vmem:[#allocation2 + $0x8] sm:$0xff]
      %v982 = vld [vmem:[#allocation2 + $0x10] sm:$0xff]
      %v983 = vld [vmem:[#allocation2 + $0x18] sm:$0xff]
      %v984 = vld [vmem:[#allocation2 + $0x20] sm:$0xff]
      %v985 = vld [vmem:[#allocation2 + $0x28] sm:$0xff]
      %v986 = vld [vmem:[#allocation2 + $0x30] sm:$0xff]
      %v987 = vld [vmem:[#allocation2 + $0x38] sm:$0xff]
      %v988 = vld [vmem:[#allocation2 + $0x40] sm:$0xff]
      %v989 = vld [vmem:[#allocation2 + $0x48] sm:$0xff]
      %v990 = vld [vmem:[#allocation2 + $0x78] sm:$0xff]
      %v991 = vld [vmem:[#allocation2 + $0x80] sm:$0xff]
      %v992 = vld [vmem:[#allocation2 + $0x88] sm:$0xff]
      %v993 = vld [vmem:[#allocation2 + $0x90] sm:$0xff]
      %v994 = vld [vmem:[#allocation2 + $0x98] sm:$0xff]
      %v995 = vld [vmem:[#allocation2 + $0xa0] sm:$0xff]
      %v996 = vld [vmem:[#allocation2 + $0xa8] sm:$0xff]
      %v997 = vld [vmem:[#allocation2 + $0xb0] sm:$0xff]
      %v998 = vld [vmem:[#allocation2 + $0xb8] sm:$0xff]
      %v999 = vld [vmem:[#allocation2 + $0xc0] sm:$0xff]
      %v1000 = vld [vmem:[#allocation2 + $0xf0] sm:$0xff]
      %v1001 = vld [vmem:[#allocation2 + $0xf8] sm:$0xff]
      %v1002 = vld [vmem:[#allocation2 + $0x100] sm:$0xff]
      %v1003 = vld [vmem:[#allocation2 + $0x108] sm:$0xff]
      %v1004 = vld [vmem:[#allocation2 + $0x110] sm:$0xff]
      %v1005 = vld [vmem:[#allocation2 + $0x118] sm:$0xff]
      %v1006 = vld [vmem:[#allocation2 + $0x120] sm:$0xff]
      %v1007 = vld [vmem:[#allocation2 + $0x128] sm:$0xff]
      %v1008 = vld [vmem:[#allocation2 + $0x130] sm:$0xff]
      %v1009 = vld [vmem:[#allocation2 + $0x138] sm:$0xff]
      %v1010 = vld [vmem:[%s3] sm:$0xff]
      %v1011 = vld [vmem:[%s3 + $0x8] sm:$0xff]
      %v1012 = vld [vmem:[%s3 + $0x10] sm:$0xff]
      %v1013 = vld [vmem:[%s3 + $0x18] sm:$0xff]
      %v1014 = vld [vmem:[%s3 + $0x20] sm:$0xff]
      %v1015 = vld [vmem:[%s3 + $0x28] sm:$0xff]
      %v1016 = vld [vmem:[%s3 + $0x30] sm:$0xff]
      %v1017 = vld [vmem:[%s3 + $0x38] sm:$0xff]
      %v1018 = vld [vmem:[%s3 + $0x40] sm:$0xff]
      %v1019 = vld [vmem:[%s3 + $0x48] sm:$0xff]
      %v1020 = vld [vmem:[%s3 + $0x50] sm:$0xff]
      %v1021 = vld [vmem:[%s3 + $0x58] sm:$0xff]
      %v1022 = vld [vmem:[%s3 + $0x60] sm:$0xff]
      %v1023 = vld [vmem:[%s3 + $0x68] sm:$0xff]
      %v1024 = vld [vmem:[%s3 + $0x70] sm:$0xff]
      %v1025 = vld [vmem:[%s3 + $0x78] sm:$0xff]
      %v1026 = vld [vmem:[%s3 + $0x80] sm:$0xff]
      %v1027 = vld [vmem:[%s3 + $0x88] sm:$0xff]
      %v1028 = vld [vmem:[%s3 + $0x90] sm:$0xff]
      %v1029 = vld [vmem:[%s3 + $0x98] sm:$0xff]
      %v1030 = vld [vmem:[%s3 + $0xa0] sm:$0xff]
      %v1031 = vld [vmem:[%s3 + $0xa8] sm:$0xff]
      %v1032 = vld [vmem:[%s3 + $0xb0] sm:$0xff]
      %v1033 = vld [vmem:[%s3 + $0xb8] sm:$0xff]
      %v1034 = vld [vmem:[%s3 + $0xc0] sm:$0xff]
      %v1035 = vld [vmem:[%s3 + $0xc8] sm:$0xff]
      %v1036 = vld [vmem:[%s3 + $0xd0] sm:$0xff]
      %v1037 = vld [vmem:[%s3 + $0xd8] sm:$0xff]
      %v1038 = vld [vmem:[%s3 + $0xe0] sm:$0xff]
      %v1039 = vld [vmem:[%s3 + $0xe8] sm:$0xff]
      %v1040 = vld [vmem:[%s3 + $0xf0] sm:$0xff]
      %v1041 = vld [vmem:[%s3 + $0xf8] sm:$0xff]
      %v1042 = vld [vmem:[%s3 + $0x100] sm:$0xff]
      %v1043 = vld [vmem:[%s3 + $0x108] sm:$0xff]
      %v1044 = vld [vmem:[%s3 + $0x110] sm:$0xff]
      %v1045 = vld [vmem:[%s3 + $0x118] sm:$0xff]
      %v1046 = vld [vmem:[%s3 + $0x120] sm:$0xff]
      %v1047 = vld [vmem:[%s3 + $0x128] sm:$0xff]
      %v1048 = vld [vmem:[%s3 + $0x130] sm:$0xff]
      %v1049 = vld [vmem:[%s3 + $0x138] sm:$0xff]
      %v1050 = vld [vmem:[%s3 + $0x140] sm:$0xff]
      %v1051 = vld [vmem:[%s3 + $0x148] sm:$0xff]
      %v1052 = vld [vmem:[%s3 + $0x150] sm:$0xff]
      %v1053 = vld [vmem:[%s3 + $0x158] sm:$0xff]
      %v1054 = vld [vmem:[%s3 + $0x160] sm:$0xff]
      %v1055 = vld [vmem:[%s3 + $0x168] sm:$0xff]
      %v1056 = vld [vmem:[%s3 + $0x170] sm:$0xff]
      %v1057 = vld [vmem:[%s3 + $0x178] sm:$0xff]
      %v1058 = vld [vmem:[%s3 + $0x180] sm:$0xff]
      %v1059 = vld [vmem:[%s3 + $0x188] sm:$0xff]
      %v1060 = vld [vmem:[%s3 + $0x190] sm:$0xff]
      %v1061 = vld [vmem:[%s3 + $0x198] sm:$0xff]
      %v1062 = vld [vmem:[%s3 + $0x1a0] sm:$0xff]
      %v1063 = vld [vmem:[%s3 + $0x1a8] sm:$0xff]
      %v1064 = vld [vmem:[%s3 + $0x1b0] sm:$0xff]
      %v1065 = vld [vmem:[%s3 + $0x1b8] sm:$0xff]
      %v1066 = vld [vmem:[%s3 + $0x1c0] sm:$0xff]
      %v1067 = vld [vmem:[%s3 + $0x1c8] sm:$0xff]
      %v1068 = vld [vmem:[%s3 + $0x1d0] sm:$0xff]
      %v1069 = vld [vmem:[%s3 + $0x1d8] sm:$0xff]
      %v1070 = vld [vmem:[%s3 + $0x1e0] sm:$0xff]
      %v1071 = vld [vmem:[%s3 + $0x1e8] sm:$0xff]
      %v1072 = vld [vmem:[%s3 + $0x1f0] sm:$0xff]
      %v1073 = vld [vmem:[%s3 + $0x1f8] sm:$0xff]
      %v1074 = vld [vmem:[%s3 + $0x200] sm:$0xff]
      %v1075 = vld [vmem:[%s3 + $0x208] sm:$0xff]
      %v1076 = vld [vmem:[%s3 + $0x210] sm:$0xff]
      %v1077 = vld [vmem:[%s3 + $0x218] sm:$0xff]
      %v1078 = vld [vmem:[%s3 + $0x220] sm:$0xff]
      %v1079 = vld [vmem:[%s3 + $0x228] sm:$0xff]
      %v1080 = vld [vmem:[%s3 + $0x230] sm:$0xff]
      %v1081 = vld [vmem:[%s3 + $0x238] sm:$0xff]
      %v1082 = vld [vmem:[%s3 + $0x240] sm:$0xff]
      %v1083 = vld [vmem:[%s3 + $0x248] sm:$0xff]
      %v1084 = vld [vmem:[%s3 + $0x250] sm:$0xff]
      %v1085 = vld [vmem:[%s3 + $0x258] sm:$0xff]
      %v1086 = vld [vmem:[%s3 + $0x260] sm:$0xff]
      %v1087 = vld [vmem:[%s3 + $0x268] sm:$0xff]
      %v1088 = vld [vmem:[%s3 + $0x270] sm:$0xff]
      %v1089 = vld [vmem:[%s3 + $0x278] sm:$0xff]
      %v1090 = vld [vmem:[%s3 + $0x280] sm:$0xff]
      %v1091 = vld [vmem:[%s3 + $0x288] sm:$0xff]
      %v1092 = vld [vmem:[%s3 + $0x290] sm:$0xff]
      %v1093 = vld [vmem:[%s3 + $0x298] sm:$0xff]
      %v1094 = vld [vmem:[%s3 + $0x2a0] sm:$0xff]
      %v1095 = vld [vmem:[%s3 + $0x2a8] sm:$0xff]
      %v1096 = vld [vmem:[%s3 + $0x2b0] sm:$0xff]
      %v1097 = vld [vmem:[%s3 + $0x2b8] sm:$0xff]
      %v1098 = vld [vmem:[%s3 + $0x2c0] sm:$0xff]
      %v1099 = vld [vmem:[%s3 + $0x2c8] sm:$0xff]
      %v1100 = vld [vmem:[%s3 + $0x2d0] sm:$0xff]
      %v1101 = vld [vmem:[%s3 + $0x2d8] sm:$0xff]
      %v1102 = vld [vmem:[%s3 + $0x2e0] sm:$0xff]
      %v1103 = vld [vmem:[%s3 + $0x2e8] sm:$0xff]
      %v1104 = vld [vmem:[%s3 + $0x2f0] sm:$0xff]
      %v1105 = vld [vmem:[%s3 + $0x2f8] sm:$0xff]
      %v1106 = vld [vmem:[%s3 + $0x300] sm:$0xff]
      %v1107 = vld [vmem:[%s3 + $0x308] sm:$0xff]
      %v1108 = vld [vmem:[%s3 + $0x310] sm:$0xff]
      %v1109 = vld [vmem:[%s3 + $0x318] sm:$0xff]
      %v1110 = vld [vmem:[%s3 + $0x320] sm:$0xff]
      %v1111 = vld [vmem:[%s3 + $0x328] sm:$0xff]
      %v1112 = vld [vmem:[%s3 + $0x330] sm:$0xff]
      %v1113 = vld [vmem:[%s3 + $0x338] sm:$0xff]
      %v1114 = vld [vmem:[%s3 + $0x340] sm:$0xff]
      %v1115 = vld [vmem:[%s3 + $0x348] sm:$0xff]
      %v1116 = vld [vmem:[%s3 + $0x350] sm:$0xff]
      %v1117 = vld [vmem:[%s3 + $0x358] sm:$0xff]
      %v1118 = vld [vmem:[%s3 + $0x360] sm:$0xff]
      %v1119 = vld [vmem:[%s3 + $0x368] sm:$0xff]
      %v1120 = vld [vmem:[%s3 + $0x370] sm:$0xff]
      %v1121 = vld [vmem:[%s3 + $0x378] sm:$0xff]
      %v1122 = vld [vmem:[%s3 + $0x380] sm:$0xff]
      %v1123 = vld [vmem:[%s3 + $0x388] sm:$0xff]
      %v1124 = vld [vmem:[%s3 + $0x390] sm:$0xff]
      %v1125 = vld [vmem:[%s3 + $0x398] sm:$0xff]
      %v1126 = vld [vmem:[%s3 + $0x3a0] sm:$0xff]
      %v1127 = vld [vmem:[%s3 + $0x3a8] sm:$0xff]
      %v1128 = vld [vmem:[%s3 + $0x3b0] sm:$0xff]
      %v1129 = vld [vmem:[%s3 + $0x3b8] sm:$0xff]
      %v1130 = vld [vmem:[%s3 + $0x3c0] sm:$0xff]
      %v1131 = vld [vmem:[%s3 + $0x3c8] sm:$0xff]
      %v1132 = vld [vmem:[%s3 + $0x3d0] sm:$0xff]
      %v1133 = vld [vmem:[%s3 + $0x3d8] sm:$0xff]
      %v1134 = vld [vmem:[%s3 + $0x3e0] sm:$0xff]
      %v1135 = vld [vmem:[%s3 + $0x3e8] sm:$0xff]
      %v1136 = vld [vmem:[%s3 + $0x3f0] sm:$0xff]
      %v1137 = vld [vmem:[%s3 + $0x3f8] sm:$0xff]
      %v1138 = vld [vmem:[%s3 + $0x400] sm:$0xff]
      %v1139 = vld [vmem:[%s3 + $0x408] sm:$0xff]
      %v1140 = vld [vmem:[%s3 + $0x410] sm:$0xff]
      %v1141 = vld [vmem:[%s3 + $0x418] sm:$0xff]
      %v1142 = vld [vmem:[%s3 + $0x420] sm:$0xff]
      %v1143 = vld [vmem:[%s3 + $0x428] sm:$0xff]
      %v1144 = vld [vmem:[%s3 + $0x430] sm:$0xff]
      %v1145 = vld [vmem:[%s3 + $0x438] sm:$0xff]
      %v1146 = vld [vmem:[%s3 + $0x440] sm:$0xff]
      %v1147 = vld [vmem:[%s3 + $0x448] sm:$0xff]
      %v1148 = vld [vmem:[%s3 + $0x450] sm:$0xff]
      %v1149 = vld [vmem:[%s3 + $0x458] sm:$0xff]
      %v1150 = vld [vmem:[%s3 + $0x460] sm:$0xff]
      %v1151 = vld [vmem:[%s3 + $0x468] sm:$0xff]
      %v1152 = vld [vmem:[%s3 + $0x470] sm:$0xff]
      %v1153 = vld [vmem:[%s3 + $0x478] sm:$0xff]
      %v1154 = vld [vmem:[%s3 + $0x480] sm:$0xff]
      %v1155 = vld [vmem:[%s3 + $0x488] sm:$0xff]
      %v1156 = vld [vmem:[%s3 + $0x490] sm:$0xff]
      %v1157 = vld [vmem:[%s3 + $0x498] sm:$0xff]
      %v1158 = vld [vmem:[%s3 + $0x4a0] sm:$0xff]
      %v1159 = vld [vmem:[%s3 + $0x4a8] sm:$0xff]
      %v1160 = vld [vmem:[%s3 + $0x4b0] sm:$0xff]
      %v1161 = vld [vmem:[%s3 + $0x4b8] sm:$0xff]
      %v1162 = vld [vmem:[%s3 + $0x4c0] sm:$0xff]
      %v1163 = vld [vmem:[%s3 + $0x4c8] sm:$0xff]
      %v1164 = vld [vmem:[%s3 + $0x4d0] sm:$0xff]
      %v1165 = vld [vmem:[%s3 + $0x4d8] sm:$0xff]
      %v1166 = vld [vmem:[%s3 + $0x4e0] sm:$0xff]
      %v1167 = vld [vmem:[%s3 + $0x4e8] sm:$0xff]
      %v1168 = vld [vmem:[%s3 + $0x4f0] sm:$0xff]
      %v1169 = vld [vmem:[%s3 + $0x4f8] sm:$0xff]
      %v1170 = vld [vmem:[%s3 + $0x500] sm:$0xff]
      %v1171 = vld [vmem:[%s3 + $0x508] sm:$0xff]
      %v1172 = vld [vmem:[%s3 + $0x510] sm:$0xff]
      %v1173 = vld [vmem:[%s3 + $0x518] sm:$0xff]
      %v1174 = vld [vmem:[%s3 + $0x520] sm:$0xff]
      %v1175 = vld [vmem:[%s3 + $0x528] sm:$0xff]
      %v1176 = vld [vmem:[%s3 + $0x530] sm:$0xff]
      %v1177 = vld [vmem:[%s3 + $0x538] sm:$0xff]
      %v1178 = vld [vmem:[%s3 + $0x540] sm:$0xff]
      %v1179 = vld [vmem:[%s3 + $0x548] sm:$0xff]
      %v1180 = vld [vmem:[%s3 + $0x550] sm:$0xff]
      %v1181 = vld [vmem:[%s3 + $0x558] sm:$0xff]
      %v1182 = vld [vmem:[%s3 + $0x560] sm:$0xff]
      %v1183 = vld [vmem:[%s3 + $0x568] sm:$0xff]
      %v1184 = vld [vmem:[%s3 + $0x570] sm:$0xff]
      %v1185 = vld [vmem:[%s3 + $0x578] sm:$0xff]
      %v1186 = vld [vmem:[%s3 + $0x580] sm:$0xff]
      %v1187 = vld [vmem:[%s3 + $0x588] sm:$0xff]
      %v1188 = vld [vmem:[%s3 + $0x590] sm:$0xff]
      %v1189 = vld [vmem:[%s3 + $0x598] sm:$0xff]
      %v1190 = vld [vmem:[%s3 + $0x5a0] sm:$0xff]
      %v1191 = vld [vmem:[%s3 + $0x5a8] sm:$0xff]
      %v1192 = vld [vmem:[%s3 + $0x5b0] sm:$0xff]
      %v1193 = vld [vmem:[%s3 + $0x5b8] sm:$0xff]
      %v1194 = vld [vmem:[%s3 + $0x5c0] sm:$0xff]
      %v1195 = vld [vmem:[%s3 + $0x5c8] sm:$0xff]
      %v1196 = vld [vmem:[%s3 + $0x5d0] sm:$0xff]
      %v1197 = vld [vmem:[%s3 + $0x5d8] sm:$0xff]
      %v1198 = vld [vmem:[%s3 + $0x5e0] sm:$0xff]
      %v1199 = vld [vmem:[%s3 + $0x5e8] sm:$0xff]
      %v1200 = vld [vmem:[%s3 + $0x5f0] sm:$0xff]
      %v1201 = vld [vmem:[%s3 + $0x5f8] sm:$0xff]
      %v1202 = vld [vmem:[%s3 + $0x600] sm:$0xff]
      %v1203 = vld [vmem:[%s3 + $0x608] sm:$0xff]
      %v1204 = vld [vmem:[%s3 + $0x610] sm:$0xff]
      %v1205 = vld [vmem:[%s3 + $0x618] sm:$0xff]
      %v1206 = vld [vmem:[%s3 + $0x620] sm:$0xff]
      %v1207 = vld [vmem:[%s3 + $0x628] sm:$0xff]
      %v1208 = vld [vmem:[%s3 + $0x630] sm:$0xff]
      %v1209 = vld [vmem:[%s3 + $0x638] sm:$0xff]
      %v1210 = vld [vmem:[%s3 + $0x640] sm:$0xff]
      %v1211 = vld [vmem:[%s3 + $0x648] sm:$0xff]
      %v1212 = vld [vmem:[%s3 + $0x650] sm:$0xff]
      %v1213 = vld [vmem:[%s3 + $0x658] sm:$0xff]
      %v1214 = vld [vmem:[%s3 + $0x660] sm:$0xff]
      %v1215 = vld [vmem:[%s3 + $0x668] sm:$0xff]
      %v1216 = vld [vmem:[%s3 + $0x670] sm:$0xff]
      %v1217 = vld [vmem:[%s3 + $0x678] sm:$0xff]
      %v1218 = vld [vmem:[%s3 + $0x680] sm:$0xff]
      %v1219 = vld [vmem:[%s3 + $0x688] sm:$0xff]
      %v1220 = vld [vmem:[%s3 + $0x690] sm:$0xff]
      %v1221 = vld [vmem:[%s3 + $0x698] sm:$0xff]
      %v1222 = vld [vmem:[%s3 + $0x6a0] sm:$0xff]
      %v1223 = vld [vmem:[%s3 + $0x6a8] sm:$0xff]
      %v1224 = vld [vmem:[%s3 + $0x6b0] sm:$0xff]
      %v1225 = vld [vmem:[%s3 + $0x6b8] sm:$0xff]
      %v1226 = vld [vmem:[%s3 + $0x6c0] sm:$0xff]
      %v1227 = vld [vmem:[%s3 + $0x6c8] sm:$0xff]
      %v1228 = vld [vmem:[%s3 + $0x6d0] sm:$0xff]
      %v1229 = vld [vmem:[%s3 + $0x6d8] sm:$0xff]
      %v1230 = vld [vmem:[%s3 + $0x6e0] sm:$0xff]
      %v1231 = vld [vmem:[%s3 + $0x6e8] sm:$0xff]
      %v1232 = vld [vmem:[%s3 + $0x6f0] sm:$0xff]
      %v1233 = vld [vmem:[%s3 + $0x6f8] sm:$0xff]
      %v1234 = vld [vmem:[%s3 + $0x700] sm:$0xff]
      %v1235 = vld [vmem:[%s3 + $0x708] sm:$0xff]
      %v1236 = vld [vmem:[%s3 + $0x710] sm:$0xff]
      %v1237 = vld [vmem:[%s3 + $0x718] sm:$0xff]
      %v1238 = vld [vmem:[%s3 + $0x720] sm:$0xff]
      %v1239 = vld [vmem:[%s3 + $0x728] sm:$0xff]
      %v1240 = vld [vmem:[%s3 + $0x730] sm:$0xff]
      %v1241 = vld [vmem:[%s3 + $0x738] sm:$0xff]
      %v1242 = vld [vmem:[%s3 + $0x740] sm:$0xff]
      %v1243 = vld [vmem:[%s3 + $0x748] sm:$0xff]
      %v1244 = vld [vmem:[%s3 + $0x750] sm:$0xff]
      %v1245 = vld [vmem:[%s3 + $0x758] sm:$0xff]
      %v1246 = vld [vmem:[%s3 + $0x760] sm:$0xff]
      %v1247 = vld [vmem:[%s3 + $0x768] sm:$0xff]
      %v1248 = vld [vmem:[%s3 + $0x770] sm:$0xff]
      %v1249 = vld [vmem:[%s3 + $0x778] sm:$0xff]
      %v1250 = vld [vmem:[%s3 + $0x780] sm:$0xff]
      %v1251 = vld [vmem:[%s3 + $0x788] sm:$0xff]
      %v1252 = vld [vmem:[%s3 + $0x790] sm:$0xff]
      %v1253 = vld [vmem:[%s3 + $0x798] sm:$0xff]
      %v1254 = vld [vmem:[%s3 + $0x7a0] sm:$0xff]
      %v1255 = vld [vmem:[%s3 + $0x7a8] sm:$0xff]
      %v1256 = vld [vmem:[%s3 + $0x7b0] sm:$0xff]
      %v1257 = vld [vmem:[%s3 + $0x7b8] sm:$0xff]
      %v1258 = vld [vmem:[%s3 + $0x7c0] sm:$0xff]
      %v1259 = vld [vmem:[%s3 + $0x7c8] sm:$0xff]
      %v1260 = vld [vmem:[%s3 + $0x7d0] sm:$0xff]
      %v1261 = vld [vmem:[%s3 + $0x7d8] sm:$0xff]
      %v1262 = vld [vmem:[%s3 + $0x7e0] sm:$0xff]
      %v1263 = vld [vmem:[%s3 + $0x7e8] sm:$0xff]
      %v1264 = vld [vmem:[%s3 + $0x7f0] sm:$0xff]
      %v1265 = vld [vmem:[%s3 + $0x7f8] sm:$0xff]
      %v1266 = vld [vmem:[%s3 + $0x800] sm:$0xff]
      %v1267 = vld [vmem:[%s3 + $0x808] sm:$0xff]
      %v1268 = vld [vmem:[%s3 + $0x810] sm:$0xff]
      %v1269 = vld [vmem:[%s3 + $0x818] sm:$0xff]
      %v1270 = vld [vmem:[%s3 + $0x820] sm:$0xff]
      %v1271 = vld [vmem:[%s3 + $0x828] sm:$0xff]
      %v1272 = vld [vmem:[%s3 + $0x830] sm:$0xff]
      %v1273 = vld [vmem:[%s3 + $0x838] sm:$0xff]
      %v1274 = vld [vmem:[%s3 + $0x840] sm:$0xff]
      %v1275 = vld [vmem:[%s3 + $0x848] sm:$0xff]
      %v1276 = vld [vmem:[%s3 + $0x850] sm:$0xff]
      %v1277 = vld [vmem:[%s3 + $0x858] sm:$0xff]
      %v1278 = vld [vmem:[%s3 + $0x860] sm:$0xff]
      %v1279 = vld [vmem:[%s3 + $0x868] sm:$0xff]
      %v1280 = vld [vmem:[%s3 + $0x870] sm:$0xff]
      %v1281 = vld [vmem:[%s3 + $0x878] sm:$0xff]
      %v1282 = vld [vmem:[%s3 + $0x880] sm:$0xff]
      %v1283 = vld [vmem:[%s3 + $0x888] sm:$0xff]
      %v1284 = vld [vmem:[%s3 + $0x890] sm:$0xff]
      %v1285 = vld [vmem:[%s3 + $0x898] sm:$0xff]
      %v1286 = vld [vmem:[%s3 + $0x8a0] sm:$0xff]
      %v1287 = vld [vmem:[%s3 + $0x8a8] sm:$0xff]
      %v1288 = vld [vmem:[%s3 + $0x8b0] sm:$0xff]
      %v1289 = vld [vmem:[%s3 + $0x8b8] sm:$0xff]
      %v1290 = vld [vmem:[%s3 + $0x8c0] sm:$0xff]
      %v1291 = vld [vmem:[%s3 + $0x8c8] sm:$0xff]
      %v1292 = vld [vmem:[%s3 + $0x8d0] sm:$0xff]
      %v1293 = vld [vmem:[%s3 + $0x8d8] sm:$0xff]
      %v1294 = vld [vmem:[%s3 + $0x8e0] sm:$0xff]
      %v1295 = vld [vmem:[%s3 + $0x8e8] sm:$0xff]
      %v1296 = vld [vmem:[%s3 + $0x8f0] sm:$0xff]
      %v1297 = vld [vmem:[%s3 + $0x8f8] sm:$0xff]
      %v1298 = vld [vmem:[#allocation2] sm:$0xfe]
      %v1299 = vld [vmem:[#allocation2 + $0x8] sm:$0xfe]
      %v1300 = vld [vmem:[#allocation2 + $0x10] sm:$0xfe]
      %v1301 = vld [vmem:[#allocation2 + $0x18] sm:$0xfe]
      %v1302 = vld [vmem:[#allocation2 + $0x20] sm:$0xfe]
      %v1303 = vld [vmem:[#allocation2 + $0x50] sm:$0x1]
      %v1304 = vld [vmem:[#allocation2 + $0x58] sm:$0x1]
      %v1305 = vld [vmem:[#allocation2 + $0x60] sm:$0x1]
      %v1306 = vld [vmem:[#allocation2 + $0x68] sm:$0x1]
      %v1307 = vld [vmem:[#allocation2 + $0x70] sm:$0x1]
      %v1308 = vld [vmem:[#allocation2 + $0x78] sm:$0xfe]
      %v1309 = vld [vmem:[#allocation2 + $0x80] sm:$0xfe]
      %v1310 = vld [vmem:[#allocation2 + $0x88] sm:$0xfe]
      %v1311 = vld [vmem:[#allocation2 + $0x90] sm:$0xfe]
      %v1312 = vld [vmem:[#allocation2 + $0x98] sm:$0xfe]
      %v1313 = vld [vmem:[#allocation2 + $0xc8] sm:$0x1]
      %v1314 = vld [vmem:[#allocation2 + $0xd0] sm:$0x1]
      %v1315 = vld [vmem:[#allocation2 + $0xd8] sm:$0x1]
      %v1316 = vld [vmem:[#allocation2 + $0xe0] sm:$0x1]
      %v1317 = vld [vmem:[#allocation2 + $0xe8] sm:$0x1]
      %v1318 = vld [vmem:[#allocation2 + $0xf0] sm:$0xfe]
      %v1319 = vld [vmem:[#allocation2 + $0xf8] sm:$0xfe]
      %v1320 = vld [vmem:[#allocation2 + $0x100] sm:$0xfe]
      %v1321 = vld [vmem:[#allocation2 + $0x108] sm:$0xfe]
      %v1322 = vld [vmem:[#allocation2 + $0x110] sm:$0xfe]
      %v1323 = vld [vmem:[#allocation2 + $0x140] sm:$0x1]
      %v1324 = vld [vmem:[#allocation2 + $0x148] sm:$0x1]
      %v1325 = vld [vmem:[#allocation2 + $0x150] sm:$0x1]
      %v1326 = vld [vmem:[#allocation2 + $0x158] sm:$0x1]
      %v1327 = vld [vmem:[#allocation2 + $0x160] sm:$0x1]
      %vm1373 = vcmask 1046528
      %v1374 = vrot.slane %v1298, 1
      %v1375 = vrot.slane %v985, 1
      %v1376 = vsel %vm1373, %v1374, %v1375
      %v1377 = vrot.slane %v1299, 1
      %v1378 = vrot.slane %v986, 1
      %v1379 = vsel %vm1373, %v1377, %v1378
      %v1380 = vrot.slane %v1300, 1
      %v1381 = vrot.slane %v987, 1
      %v1382 = vsel %vm1373, %v1380, %v1381
      %v1383 = vrot.slane %v1301, 1
      %v1384 = vrot.slane %v988, 1
      %v1385 = vsel %vm1373, %v1383, %v1384
      %v1386 = vrot.slane %v1302, 1
      %v1387 = vrot.slane %v989, 1
      %v1388 = vsel %vm1373, %v1386, %v1387
      %v1389 = vrot.slane %v1303, 1
      %v1390 = vsel %vm1373, %v1375, %v1389
      %v1391 = vrot.slane %v1304, 1
      %v1392 = vsel %vm1373, %v1378, %v1391
      %v1393 = vrot.slane %v1305, 1
      %v1394 = vsel %vm1373, %v1381, %v1393
      %v1395 = vrot.slane %v1306, 1
      %v1396 = vsel %vm1373, %v1384, %v1395
      %v1397 = vrot.slane %v1307, 1
      %v1398 = vsel %vm1373, %v1387, %v1397
      %v1399 = vrot.slane %v1308, 1
      %v1400 = vrot.slane %v995, 1
      %v1401 = vsel %vm1373, %v1399, %v1400
      %v1402 = vrot.slane %v1309, 1
      %v1403 = vrot.slane %v996, 1
      %v1404 = vsel %vm1373, %v1402, %v1403
      %v1405 = vrot.slane %v1310, 1
      %v1406 = vrot.slane %v997, 1
      %v1407 = vsel %vm1373, %v1405, %v1406
      %v1408 = vrot.slane %v1311, 1
      %v1409 = vrot.slane %v998, 1
      %v1410 = vsel %vm1373, %v1408, %v1409
      %v1411 = vrot.slane %v1312, 1
      %v1412 = vrot.slane %v999, 1
      %v1413 = vsel %vm1373, %v1411, %v1412
      %v1414 = vrot.slane %v1313, 1
      %v1415 = vsel %vm1373, %v1400, %v1414
      %v1416 = vrot.slane %v1314, 1
      %v1417 = vsel %vm1373, %v1403, %v1416
      %v1418 = vrot.slane %v1315, 1
      %v1419 = vsel %vm1373, %v1406, %v1418
      %v1420 = vrot.slane %v1316, 1
      %v1421 = vsel %vm1373, %v1409, %v1420
      %v1422 = vrot.slane %v1317, 1
      %v1423 = vsel %vm1373, %v1412, %v1422
      %v1424 = vrot.slane %v1318, 1
      %v1425 = vrot.slane %v1005, 1
      %v1426 = vsel %vm1373, %v1424, %v1425
      %v1427 = vrot.slane %v1319, 1
      %v1428 = vrot.slane %v1006, 1
      %v1429 = vsel %vm1373, %v1427, %v1428
      %v1430 = vrot.slane %v1320, 1
      %v1431 = vrot.slane %v1007, 1
      %v1432 = vsel %vm1373, %v1430, %v1431
      %v1433 = vrot.slane %v1321, 1
      %v1434 = vrot.slane %v1008, 1
      %v1435 = vsel %vm1373, %v1433, %v1434
      %v1436 = vrot.slane %v1322, 1
      %v1437 = vrot.slane %v1009, 1
      %v1438 = vsel %vm1373, %v1436, %v1437
      %v1439 = vrot.slane %v1323, 1
      %v1440 = vsel %vm1373, %v1425, %v1439
      %v1441 = vrot.slane %v1324, 1
      %v1442 = vsel %vm1373, %v1428, %v1441
      %v1443 = vrot.slane %v1325, 1
      %v1444 = vsel %vm1373, %v1431, %v1443
      %v1445 = vrot.slane %v1326, 1
      %v1446 = vsel %vm1373, %v1434, %v1445
      %v1447 = vrot.slane %v1327, 1
      %v1448 = vsel %vm1373, %v1437, %v1447
      %s1473 = scalar_lea.vmem %s3, 2304
      %v1474 = vld [vmem:[%s1473] sm:$0xff]
      %v1475 = vld [vmem:[%s1473 + $0x8] sm:$0xff]
      %v1476 = vld [vmem:[%s1473 + $0x10] sm:$0xff]
      %v1477 = vld [vmem:[%s1473 + $0x18] sm:$0xff]
      %v1478 = vld [vmem:[%s1473 + $0x20] sm:$0xff]
      %v1479 = vld [vmem:[%s1473 + $0x28] sm:$0xff]
      %v1480 = vld [vmem:[%s1473 + $0x30] sm:$0xff]
      %v1481 = vld [vmem:[%s1473 + $0x38] sm:$0xff]
      %v1482 = vld [vmem:[%s1473 + $0x40] sm:$0xff]
      %v1483 = vld [vmem:[%s1473 + $0x48] sm:$0xff]
      %v1484 = vld [vmem:[%s1473 + $0x50] sm:$0xff]
      %v1485 = vld [vmem:[%s1473 + $0x58] sm:$0xff]
      %v1486 = vld [vmem:[%s1473 + $0x60] sm:$0xff]
      %v1487 = vld [vmem:[%s1473 + $0x68] sm:$0xff]
      %v1488 = vld [vmem:[%s1473 + $0x70] sm:$0xff]
      %v1489 = vld [vmem:[%s1473 + $0x78] sm:$0xff]
      %v1490 = vld [vmem:[%s1473 + $0x80] sm:$0xff]
      %v1491 = vld [vmem:[%s1473 + $0x88] sm:$0xff]
      %v1492 = vld [vmem:[%s1473 + $0x90] sm:$0xff]
      %v1493 = vld [vmem:[%s1473 + $0x98] sm:$0xff]
      %v1494 = vld [vmem:[%s1473 + $0xa0] sm:$0xff]
      %v1495 = vld [vmem:[%s1473 + $0xa8] sm:$0xff]
      %v1496 = vld [vmem:[%s1473 + $0xb0] sm:$0xff]
      %v1497 = vld [vmem:[%s1473 + $0xb8] sm:$0xff]
      %v1498 = vld [vmem:[%s1473 + $0xc0] sm:$0xff]
      %v1499 = vld [vmem:[%s1473 + $0xc8] sm:$0xff]
      %v1500 = vld [vmem:[%s1473 + $0xd0] sm:$0xff]
      %v1501 = vld [vmem:[%s1473 + $0xd8] sm:$0xff]
      %v1502 = vld [vmem:[%s1473 + $0xe0] sm:$0xff]
      %v1503 = vld [vmem:[%s1473 + $0xe8] sm:$0xff]
      %v1504 = vld [vmem:[%s1473 + $0xf0] sm:$0xff]
      %v1505 = vld [vmem:[%s1473 + $0xf8] sm:$0xff]
      %v1506 = vld [vmem:[%s1473 + $0x100] sm:$0xff]
      %v1507 = vld [vmem:[%s1473 + $0x108] sm:$0xff]
      %v1508 = vld [vmem:[%s1473 + $0x110] sm:$0xff]
      %v1509 = vld [vmem:[%s1473 + $0x118] sm:$0xff]
      %v1510 = vld [vmem:[%s1473 + $0x120] sm:$0xff]
      %v1511 = vld [vmem:[%s1473 + $0x128] sm:$0xff]
      %v1512 = vld [vmem:[%s1473 + $0x130] sm:$0xff]
      %v1513 = vld [vmem:[%s1473 + $0x138] sm:$0xff]
      %v1514 = vld [vmem:[%s1473 + $0x140] sm:$0xff]
      %v1515 = vld [vmem:[%s1473 + $0x148] sm:$0xff]
      %v1516 = vld [vmem:[%s1473 + $0x150] sm:$0xff]
      %v1517 = vld [vmem:[%s1473 + $0x158] sm:$0xff]
      %v1518 = vld [vmem:[%s1473 + $0x160] sm:$0xff]
      %v1519 = vld [vmem:[%s1473 + $0x168] sm:$0xff]
      %v1520 = vld [vmem:[%s1473 + $0x170] sm:$0xff]
      %v1521 = vld [vmem:[%s1473 + $0x178] sm:$0xff]
      %v1522 = vld [vmem:[%s1473 + $0x180] sm:$0xff]
      %v1523 = vld [vmem:[%s1473 + $0x188] sm:$0xff]
      %v1524 = vld [vmem:[%s1473 + $0x190] sm:$0xff]
      %v1525 = vld [vmem:[%s1473 + $0x198] sm:$0xff]
      %v1526 = vld [vmem:[%s1473 + $0x1a0] sm:$0xff]
      %v1527 = vld [vmem:[%s1473 + $0x1a8] sm:$0xff]
      %v1528 = vld [vmem:[%s1473 + $0x1b0] sm:$0xff]
      %v1529 = vld [vmem:[%s1473 + $0x1b8] sm:$0xff]
      %v1530 = vld [vmem:[%s1473 + $0x1c0] sm:$0xff]
      %v1531 = vld [vmem:[%s1473 + $0x1c8] sm:$0xff]
      %v1532 = vld [vmem:[%s1473 + $0x1d0] sm:$0xff]
      %v1533 = vld [vmem:[%s1473 + $0x1d8] sm:$0xff]
      %v1534 = vld [vmem:[%s1473 + $0x1e0] sm:$0xff]
      %v1535 = vld [vmem:[%s1473 + $0x1e8] sm:$0xff]
      %v1536 = vld [vmem:[%s1473 + $0x1f0] sm:$0xff]
      %v1537 = vld [vmem:[%s1473 + $0x1f8] sm:$0xff]
      %v1538 = vld [vmem:[%s1473 + $0x200] sm:$0xff]
      %v1539 = vld [vmem:[%s1473 + $0x208] sm:$0xff]
      %v1540 = vld [vmem:[%s1473 + $0x210] sm:$0xff]
      %v1541 = vld [vmem:[%s1473 + $0x218] sm:$0xff]
      %v1542 = vld [vmem:[%s1473 + $0x220] sm:$0xff]
      %v1543 = vld [vmem:[%s1473 + $0x228] sm:$0xff]
      %v1544 = vld [vmem:[%s1473 + $0x230] sm:$0xff]
      %v1545 = vld [vmem:[%s1473 + $0x238] sm:$0xff]
      %v1546 = vld [vmem:[%s1473 + $0x240] sm:$0xff]
      %v1547 = vld [vmem:[%s1473 + $0x248] sm:$0xff]
      %v1548 = vld [vmem:[%s1473 + $0x250] sm:$0xff]
      %v1549 = vld [vmem:[%s1473 + $0x258] sm:$0xff]
      %v1550 = vld [vmem:[%s1473 + $0x260] sm:$0xff]
      %v1551 = vld [vmem:[%s1473 + $0x268] sm:$0xff]
      %v1552 = vld [vmem:[%s1473 + $0x270] sm:$0xff]
      %v1553 = vld [vmem:[%s1473 + $0x278] sm:$0xff]
      %v1554 = vld [vmem:[%s1473 + $0x280] sm:$0xff]
      %v1555 = vld [vmem:[%s1473 + $0x288] sm:$0xff]
      %v1556 = vld [vmem:[%s1473 + $0x290] sm:$0xff]
      %v1557 = vld [vmem:[%s1473 + $0x298] sm:$0xff]
      %v1558 = vld [vmem:[%s1473 + $0x2a0] sm:$0xff]
      %v1559 = vld [vmem:[%s1473 + $0x2a8] sm:$0xff]
      %v1560 = vld [vmem:[%s1473 + $0x2b0] sm:$0xff]
      %v1561 = vld [vmem:[%s1473 + $0x2b8] sm:$0xff]
      %v1562 = vld [vmem:[%s1473 + $0x2c0] sm:$0xff]
      %v1563 = vld [vmem:[%s1473 + $0x2c8] sm:$0xff]
      %v1564 = vld [vmem:[%s1473 + $0x2d0] sm:$0xff]
      %v1565 = vld [vmem:[%s1473 + $0x2d8] sm:$0xff]
      %v1566 = vld [vmem:[%s1473 + $0x2e0] sm:$0xff]
      %v1567 = vld [vmem:[%s1473 + $0x2e8] sm:$0xff]
      %v1568 = vld [vmem:[%s1473 + $0x2f0] sm:$0xff]
      %v1569 = vld [vmem:[%s1473 + $0x2f8] sm:$0xff]
      %v1570 = vld [vmem:[%s1473 + $0x300] sm:$0xff]
      %v1571 = vld [vmem:[%s1473 + $0x308] sm:$0xff]
      %v1572 = vld [vmem:[%s1473 + $0x310] sm:$0xff]
      %v1573 = vld [vmem:[%s1473 + $0x318] sm:$0xff]
      %v1574 = vld [vmem:[%s1473 + $0x320] sm:$0xff]
      %v1575 = vld [vmem:[%s1473 + $0x328] sm:$0xff]
      %v1576 = vld [vmem:[%s1473 + $0x330] sm:$0xff]
      %v1577 = vld [vmem:[%s1473 + $0x338] sm:$0xff]
      %v1578 = vld [vmem:[%s1473 + $0x340] sm:$0xff]
      %v1579 = vld [vmem:[%s1473 + $0x348] sm:$0xff]
      %v1580 = vld [vmem:[%s1473 + $0x350] sm:$0xff]
      %v1581 = vld [vmem:[%s1473 + $0x358] sm:$0xff]
      %v1582 = vld [vmem:[%s1473 + $0x360] sm:$0xff]
      %v1583 = vld [vmem:[%s1473 + $0x368] sm:$0xff]
      %v1584 = vld [vmem:[%s1473 + $0x370] sm:$0xff]
      %v1585 = vld [vmem:[%s1473 + $0x378] sm:$0xff]
      %v1586 = vld [vmem:[%s1473 + $0x380] sm:$0xff]
      %v1587 = vld [vmem:[%s1473 + $0x388] sm:$0xff]
      %v1588 = vld [vmem:[%s1473 + $0x390] sm:$0xff]
      %v1589 = vld [vmem:[%s1473 + $0x398] sm:$0xff]
      %v1590 = vld [vmem:[%s1473 + $0x3a0] sm:$0xff]
      %v1591 = vld [vmem:[%s1473 + $0x3a8] sm:$0xff]
      %v1592 = vld [vmem:[%s1473 + $0x3b0] sm:$0xff]
      %v1593 = vld [vmem:[%s1473 + $0x3b8] sm:$0xff]
      %v1594 = vld [vmem:[%s1473 + $0x3c0] sm:$0xff]
      %v1595 = vld [vmem:[%s1473 + $0x3c8] sm:$0xff]
      %v1596 = vld [vmem:[%s1473 + $0x3d0] sm:$0xff]
      %v1597 = vld [vmem:[%s1473 + $0x3d8] sm:$0xff]
      %v1598 = vld [vmem:[%s1473 + $0x3e0] sm:$0xff]
      %v1599 = vld [vmem:[%s1473 + $0x3e8] sm:$0xff]
      %v1600 = vld [vmem:[%s1473 + $0x3f0] sm:$0xff]
      %v1601 = vld [vmem:[%s1473 + $0x3f8] sm:$0xff]
      %v1602 = vld [vmem:[%s1473 + $0x400] sm:$0xff]
      %v1603 = vld [vmem:[%s1473 + $0x408] sm:$0xff]
      %v1604 = vld [vmem:[%s1473 + $0x410] sm:$0xff]
      %v1605 = vld [vmem:[%s1473 + $0x418] sm:$0xff]
      %v1606 = vld [vmem:[%s1473 + $0x420] sm:$0xff]
      %v1607 = vld [vmem:[%s1473 + $0x428] sm:$0xff]
      %v1608 = vld [vmem:[%s1473 + $0x430] sm:$0xff]
      %v1609 = vld [vmem:[%s1473 + $0x438] sm:$0xff]
      %v1610 = vld [vmem:[%s1473 + $0x440] sm:$0xff]
      %v1611 = vld [vmem:[%s1473 + $0x448] sm:$0xff]
      %v1612 = vld [vmem:[%s1473 + $0x450] sm:$0xff]
      %v1613 = vld [vmem:[%s1473 + $0x458] sm:$0xff]
      %v1614 = vld [vmem:[%s1473 + $0x460] sm:$0xff]
      %v1615 = vld [vmem:[%s1473 + $0x468] sm:$0xff]
      %v1616 = vld [vmem:[%s1473 + $0x470] sm:$0xff]
      %v1617 = vld [vmem:[%s1473 + $0x478] sm:$0xff]
      %v1618 = vld [vmem:[%s1473 + $0x480] sm:$0xff]
      %v1619 = vld [vmem:[%s1473 + $0x488] sm:$0xff]
      %v1620 = vld [vmem:[%s1473 + $0x490] sm:$0xff]
      %v1621 = vld [vmem:[%s1473 + $0x498] sm:$0xff]
      %v1622 = vld [vmem:[%s1473 + $0x4a0] sm:$0xff]
      %v1623 = vld [vmem:[%s1473 + $0x4a8] sm:$0xff]
      %v1624 = vld [vmem:[%s1473 + $0x4b0] sm:$0xff]
      %v1625 = vld [vmem:[%s1473 + $0x4b8] sm:$0xff]
      %v1626 = vld [vmem:[%s1473 + $0x4c0] sm:$0xff]
      %v1627 = vld [vmem:[%s1473 + $0x4c8] sm:$0xff]
      %v1628 = vld [vmem:[%s1473 + $0x4d0] sm:$0xff]
      %v1629 = vld [vmem:[%s1473 + $0x4d8] sm:$0xff]
      %v1630 = vld [vmem:[%s1473 + $0x4e0] sm:$0xff]
      %v1631 = vld [vmem:[%s1473 + $0x4e8] sm:$0xff]
      %v1632 = vld [vmem:[%s1473 + $0x4f0] sm:$0xff]
      %v1633 = vld [vmem:[%s1473 + $0x4f8] sm:$0xff]
      %v1634 = vld [vmem:[%s1473 + $0x500] sm:$0xff]
      %v1635 = vld [vmem:[%s1473 + $0x508] sm:$0xff]
      %v1636 = vld [vmem:[%s1473 + $0x510] sm:$0xff]
      %v1637 = vld [vmem:[%s1473 + $0x518] sm:$0xff]
      %v1638 = vld [vmem:[%s1473 + $0x520] sm:$0xff]
      %v1639 = vld [vmem:[%s1473 + $0x528] sm:$0xff]
      %v1640 = vld [vmem:[%s1473 + $0x530] sm:$0xff]
      %v1641 = vld [vmem:[%s1473 + $0x538] sm:$0xff]
      %v1642 = vld [vmem:[%s1473 + $0x540] sm:$0xff]
      %v1643 = vld [vmem:[%s1473 + $0x548] sm:$0xff]
      %v1644 = vld [vmem:[%s1473 + $0x550] sm:$0xff]
      %v1645 = vld [vmem:[%s1473 + $0x558] sm:$0xff]
      %v1646 = vld [vmem:[%s1473 + $0x560] sm:$0xff]
      %v1647 = vld [vmem:[%s1473 + $0x568] sm:$0xff]
      %v1648 = vld [vmem:[%s1473 + $0x570] sm:$0xff]
      %v1649 = vld [vmem:[%s1473 + $0x578] sm:$0xff]
      %v1650 = vld [vmem:[%s1473 + $0x580] sm:$0xff]
      %v1651 = vld [vmem:[%s1473 + $0x588] sm:$0xff]
      %v1652 = vld [vmem:[%s1473 + $0x590] sm:$0xff]
      %v1653 = vld [vmem:[%s1473 + $0x598] sm:$0xff]
      %v1654 = vld [vmem:[%s1473 + $0x5a0] sm:$0xff]
      %v1655 = vld [vmem:[%s1473 + $0x5a8] sm:$0xff]
      %v1656 = vld [vmem:[%s1473 + $0x5b0] sm:$0xff]
      %v1657 = vld [vmem:[%s1473 + $0x5b8] sm:$0xff]
      %v1658 = vld [vmem:[%s1473 + $0x5c0] sm:$0xff]
      %v1659 = vld [vmem:[%s1473 + $0x5c8] sm:$0xff]
      %v1660 = vld [vmem:[%s1473 + $0x5d0] sm:$0xff]
      %v1661 = vld [vmem:[%s1473 + $0x5d8] sm:$0xff]
      %v1662 = vld [vmem:[%s1473 + $0x5e0] sm:$0xff]
      %v1663 = vld [vmem:[%s1473 + $0x5e8] sm:$0xff]
      %v1664 = vld [vmem:[%s1473 + $0x5f0] sm:$0xff]
      %v1665 = vld [vmem:[%s1473 + $0x5f8] sm:$0xff]
      %v1666 = vld [vmem:[%s1473 + $0x600] sm:$0xff]
      %v1667 = vld [vmem:[%s1473 + $0x608] sm:$0xff]
      %v1668 = vld [vmem:[%s1473 + $0x610] sm:$0xff]
      %v1669 = vld [vmem:[%s1473 + $0x618] sm:$0xff]
      %v1670 = vld [vmem:[%s1473 + $0x620] sm:$0xff]
      %v1671 = vld [vmem:[%s1473 + $0x628] sm:$0xff]
      %v1672 = vld [vmem:[%s1473 + $0x630] sm:$0xff]
      %v1673 = vld [vmem:[%s1473 + $0x638] sm:$0xff]
      %v1674 = vld [vmem:[%s1473 + $0x640] sm:$0xff]
      %v1675 = vld [vmem:[%s1473 + $0x648] sm:$0xff]
      %v1676 = vld [vmem:[%s1473 + $0x650] sm:$0xff]
      %v1677 = vld [vmem:[%s1473 + $0x658] sm:$0xff]
      %v1678 = vld [vmem:[%s1473 + $0x660] sm:$0xff]
      %v1679 = vld [vmem:[%s1473 + $0x668] sm:$0xff]
      %v1680 = vld [vmem:[%s1473 + $0x670] sm:$0xff]
      %v1681 = vld [vmem:[%s1473 + $0x678] sm:$0xff]
      %v1682 = vld [vmem:[%s1473 + $0x680] sm:$0xff]
      %v1683 = vld [vmem:[%s1473 + $0x688] sm:$0xff]
      %v1684 = vld [vmem:[%s1473 + $0x690] sm:$0xff]
      %v1685 = vld [vmem:[%s1473 + $0x698] sm:$0xff]
      %v1686 = vld [vmem:[%s1473 + $0x6a0] sm:$0xff]
      %v1687 = vld [vmem:[%s1473 + $0x6a8] sm:$0xff]
      %v1688 = vld [vmem:[%s1473 + $0x6b0] sm:$0xff]
      %v1689 = vld [vmem:[%s1473 + $0x6b8] sm:$0xff]
      %v1690 = vld [vmem:[%s1473 + $0x6c0] sm:$0xff]
      %v1691 = vld [vmem:[%s1473 + $0x6c8] sm:$0xff]
      %v1692 = vld [vmem:[%s1473 + $0x6d0] sm:$0xff]
      %v1693 = vld [vmem:[%s1473 + $0x6d8] sm:$0xff]
      %v1694 = vld [vmem:[%s1473 + $0x6e0] sm:$0xff]
      %v1695 = vld [vmem:[%s1473 + $0x6e8] sm:$0xff]
      %v1696 = vld [vmem:[%s1473 + $0x6f0] sm:$0xff]
      %v1697 = vld [vmem:[%s1473 + $0x6f8] sm:$0xff]
      %v1698 = vld [vmem:[%s1473 + $0x700] sm:$0xff]
      %v1699 = vld [vmem:[%s1473 + $0x708] sm:$0xff]
      %v1700 = vld [vmem:[%s1473 + $0x710] sm:$0xff]
      %v1701 = vld [vmem:[%s1473 + $0x718] sm:$0xff]
      %v1702 = vld [vmem:[%s1473 + $0x720] sm:$0xff]
      %v1703 = vld [vmem:[%s1473 + $0x728] sm:$0xff]
      %v1704 = vld [vmem:[%s1473 + $0x730] sm:$0xff]
      %v1705 = vld [vmem:[%s1473 + $0x738] sm:$0xff]
      %v1706 = vld [vmem:[%s1473 + $0x740] sm:$0xff]
      %v1707 = vld [vmem:[%s1473 + $0x748] sm:$0xff]
      %v1708 = vld [vmem:[%s1473 + $0x750] sm:$0xff]
      %v1709 = vld [vmem:[%s1473 + $0x758] sm:$0xff]
      %v1710 = vld [vmem:[%s1473 + $0x760] sm:$0xff]
      %v1711 = vld [vmem:[%s1473 + $0x768] sm:$0xff]
      %v1712 = vld [vmem:[%s1473 + $0x770] sm:$0xff]
      %v1713 = vld [vmem:[%s1473 + $0x778] sm:$0xff]
      %v1714 = vld [vmem:[%s1473 + $0x780] sm:$0xff]
      %v1715 = vld [vmem:[%s1473 + $0x788] sm:$0xff]
      %v1716 = vld [vmem:[%s1473 + $0x790] sm:$0xff]
      %v1717 = vld [vmem:[%s1473 + $0x798] sm:$0xff]
      %v1718 = vld [vmem:[%s1473 + $0x7a0] sm:$0xff]
      %v1719 = vld [vmem:[%s1473 + $0x7a8] sm:$0xff]
      %v1720 = vld [vmem:[%s1473 + $0x7b0] sm:$0xff]
      %v1721 = vld [vmem:[%s1473 + $0x7b8] sm:$0xff]
      %v1722 = vld [vmem:[%s1473 + $0x7c0] sm:$0xff]
      %v1723 = vld [vmem:[%s1473 + $0x7c8] sm:$0xff]
      %v1724 = vld [vmem:[%s1473 + $0x7d0] sm:$0xff]
      %v1725 = vld [vmem:[%s1473 + $0x7d8] sm:$0xff]
      %v1726 = vld [vmem:[%s1473 + $0x7e0] sm:$0xff]
      %v1727 = vld [vmem:[%s1473 + $0x7e8] sm:$0xff]
      %v1728 = vld [vmem:[%s1473 + $0x7f0] sm:$0xff]
      %v1729 = vld [vmem:[%s1473 + $0x7f8] sm:$0xff]
      %v1730 = vld [vmem:[%s1473 + $0x800] sm:$0xff]
      %v1731 = vld [vmem:[%s1473 + $0x808] sm:$0xff]
      %v1732 = vld [vmem:[%s1473 + $0x810] sm:$0xff]
      %v1733 = vld [vmem:[%s1473 + $0x818] sm:$0xff]
      %v1734 = vld [vmem:[%s1473 + $0x820] sm:$0xff]
      %v1735 = vld [vmem:[%s1473 + $0x828] sm:$0xff]
      %v1736 = vld [vmem:[%s1473 + $0x830] sm:$0xff]
      %v1737 = vld [vmem:[%s1473 + $0x838] sm:$0xff]
      %v1738 = vld [vmem:[%s1473 + $0x840] sm:$0xff]
      %v1739 = vld [vmem:[%s1473 + $0x848] sm:$0xff]
      %v1740 = vld [vmem:[%s1473 + $0x850] sm:$0xff]
      %v1741 = vld [vmem:[%s1473 + $0x858] sm:$0xff]
      %v1742 = vld [vmem:[%s1473 + $0x860] sm:$0xff]
      %v1743 = vld [vmem:[%s1473 + $0x868] sm:$0xff]
      %v1744 = vld [vmem:[%s1473 + $0x870] sm:$0xff]
      %v1745 = vld [vmem:[%s1473 + $0x878] sm:$0xff]
      %v1746 = vld [vmem:[%s1473 + $0x880] sm:$0xff]
      %v1747 = vld [vmem:[%s1473 + $0x888] sm:$0xff]
      %v1748 = vld [vmem:[%s1473 + $0x890] sm:$0xff]
      %v1749 = vld [vmem:[%s1473 + $0x898] sm:$0xff]
      %v1750 = vld [vmem:[%s1473 + $0x8a0] sm:$0xff]
      %v1751 = vld [vmem:[%s1473 + $0x8a8] sm:$0xff]
      %v1752 = vld [vmem:[%s1473 + $0x8b0] sm:$0xff]
      %v1753 = vld [vmem:[%s1473 + $0x8b8] sm:$0xff]
      %v1754 = vld [vmem:[%s1473 + $0x8c0] sm:$0xff]
      %v1755 = vld [vmem:[%s1473 + $0x8c8] sm:$0xff]
      %v1756 = vld [vmem:[%s1473 + $0x8d0] sm:$0xff]
      %v1757 = vld [vmem:[%s1473 + $0x8d8] sm:$0xff]
      %v1758 = vld [vmem:[%s1473 + $0x8e0] sm:$0xff]
      %v1759 = vld [vmem:[%s1473 + $0x8e8] sm:$0xff]
      %v1760 = vld [vmem:[%s1473 + $0x8f0] sm:$0xff]
      %v1761 = vld [vmem:[%s1473 + $0x8f8] sm:$0xff]
      %v1762 = vsel %vm681, %v1388, 0
      %v1764 = vsel %vm681, %v1398, 0
      %v1766 = vsel %vm681, %v1413, 0
      %v1768 = vsel %vm681, %v1423, 0
      %v1770 = vsel %vm681, %v1438, 0
      %v1772 = vsel %vm681, %v1448, 0
      %1774 = vmatprep.subr.mxu0 %v1535
      %1775 = vmatpush1.msra.mxu0 %v1534
      %1776 = vmatprep.subr.mxu0 %v1531
      %1777 = vmatpush1.msra.mxu0 %v1530
      %1778 = vmatprep.subr.mxu0 %v1527
      %1779 = vmatpush1.msra.mxu0 %v1526
      %1780 = vmatprep.subr.mxu0 %v1523
      %1781 = vmatpush1.msra.mxu0 %v1522
      %1782 = vmatprep.subr.mxu0 %v1519
      %1783 = vmatpush1.msra.mxu0 %v1518
      %1784 = vmatprep.subr.mxu0 %v1515
      %1785 = vmatpush1.msra.mxu0 %v1514
      %1786 = vmatprep.subr.mxu0 %v1511
      %1787 = vmatpush1.msra.mxu0 %v1510
      %1788 = vmatprep.subr.mxu0 %v1507
      %1789 = vmatpush1.msra.mxu0 %v1506
      %1790 = vmatprep.subr.mxu0 %v1503
      %1791 = vmatpush1.msra.mxu0 %v1502
      %1792 = vmatprep.subr.mxu0 %v1499
      %1793 = vmatpush1.msra.mxu0 %v1498
      %1794 = vmatprep.subr.mxu0 %v1495
      %1795 = vmatpush1.msra.mxu0 %v1494
      %1796 = vmatprep.subr.mxu0 %v1491
      %1797 = vmatpush1.msra.mxu0 %v1490
      %1798 = vmatprep.subr.mxu0 %v1487
      %1799 = vmatpush1.msra.mxu0 %v1486
      %1800 = vmatprep.subr.mxu0 %v1483
      %1801 = vmatpush1.msra.mxu0 %v1482
      %1802 = vmatprep.subr.mxu0 %v1479
      %1803 = vmatpush1.msra.mxu0 %v1478
      %1804 = vmatprep.subr.mxu0 %v1475
      %1805 = vmatpush1.msra.mxu0 %v1474
      %1806 = vmatprep.subr.mxu0 %v1599
      %1807 = vmatpush2.msra.mxu0 %v1598
      %1808 = vmatprep.subr.mxu0 %v1595
      %1809 = vmatpush2.msra.mxu0 %v1594
      %1810 = vmatprep.subr.mxu0 %v1591
      %1811 = vmatpush2.msra.mxu0 %v1590
      %1812 = vmatprep.subr.mxu0 %v1587
      %1813 = vmatpush2.msra.mxu0 %v1586
      %1814 = vmatprep.subr.mxu0 %v1583
      %1815 = vmatpush2.msra.mxu0 %v1582
      %1816 = vmatprep.subr.mxu0 %v1579
      %1817 = vmatpush2.msra.mxu0 %v1578
      %1818 = vmatprep.subr.mxu0 %v1575
      %1819 = vmatpush2.msra.mxu0 %v1574
      %1820 = vmatprep.subr.mxu0 %v1571
      %1821 = vmatpush2.msra.mxu0 %v1570
      %1822 = vmatprep.subr.mxu0 %v1567
      %1823 = vmatpush2.msra.mxu0 %v1566
      %1824 = vmatprep.subr.mxu0 %v1563
      %1825 = vmatpush2.msra.mxu0 %v1562
      %1826 = vmatprep.subr.mxu0 %v1559
      %1827 = vmatpush2.msra.mxu0 %v1558
      %1828 = vmatprep.subr.mxu0 %v1555
      %1829 = vmatpush2.msra.mxu0 %v1554
      %1830 = vmatprep.subr.mxu0 %v1551
      %1831 = vmatpush2.msra.mxu0 %v1550
      %1832 = vmatprep.subr.mxu0 %v1547
      %1833 = vmatpush2.msra.mxu0 %v1546
      %1834 = vmatprep.subr.mxu0 %v1543
      %1835 = vmatpush2.msra.mxu0 %v1542
      %1836 = vmatprep.subr.mxu0 %v1539
      %1837 = vmatpush2.msra.mxu0 %v1538
      %1838 = vmatprep.mubr.f32.mxu0 %v1379
      %1839 = vmatmul.mubr.f32.gmra.mxu0 %v1376
      %v1840 = vpop.f32.mrf.mxu0
      %v1841 = vadd.f32 0.0, %v1840
      %v1842 = vpop.f32.mrf.mxu0
      %v1843 = vadd.f32 0.0, %v1842
      %1844 = vmatprep.mubr.f32.mxu0 %v1392
      %1845 = vmatmul.mubr.f32.gmra.mxu0 %v1390
      %v1846 = vpop.f32.mrf.mxu0
      %v1847 = vadd.f32 0.0, %v1846
      %v1848 = vpop.f32.mrf.mxu0
      %v1849 = vadd.f32 0.0, %v1848
      %1850 = vmatprep.mubr.f32.mxu0 %v1404
      %1851 = vmatmul.mubr.f32.gmra.mxu0 %v1401
      %v1852 = vpop.f32.mrf.mxu0
      %v1853 = vadd.f32 0.0, %v1852
      %v1854 = vpop.f32.mrf.mxu0
      %v1855 = vadd.f32 0.0, %v1854
      %1856 = vmatprep.mubr.f32.mxu0 %v1417
      %1857 = vmatmul.mubr.f32.gmra.mxu0 %v1415
      %v1858 = vpop.f32.mrf.mxu0
      %v1859 = vadd.f32 0.0, %v1858
      %v1860 = vpop.f32.mrf.mxu0
      %v1861 = vadd.f32 0.0, %v1860
      %1862 = vmatprep.mubr.f32.mxu0 %v1429
      %1863 = vmatmul.mubr.f32.gmra.mxu0 %v1426
      %v1864 = vpop.f32.mrf.mxu0
      %v1865 = vadd.f32 0.0, %v1864
      %v1866 = vpop.f32.mrf.mxu0
      %v1867 = vadd.f32 0.0, %v1866
      %1868 = vmatprep.mubr.f32.mxu0 %v1442
      %1869 = vmatmul.mubr.f32.gmra.mxu0 %v1440
      %v1870 = vpop.f32.mrf.mxu0
      %v1871 = vadd.f32 0.0, %v1870
      %v1872 = vpop.f32.mrf.mxu0
      %v1873 = vadd.f32 0.0, %v1872
      %1874 = vdwg.mxu0
      %1875 = vmatprep.subr.mxu0 %v1663
      %1876 = vmatpush1.msra.mxu0 %v1662
      %1877 = vmatprep.subr.mxu0 %v1659
      %1878 = vmatpush1.msra.mxu0 %v1658
      %1879 = vmatprep.subr.mxu0 %v1655
      %1880 = vmatpush1.msra.mxu0 %v1654
      %1881 = vmatprep.subr.mxu0 %v1651
      %1882 = vmatpush1.msra.mxu0 %v1650
      %1883 = vmatprep.subr.mxu0 %v1647
      %1884 = vmatpush1.msra.mxu0 %v1646
      %1885 = vmatprep.subr.mxu0 %v1643
      %1886 = vmatpush1.msra.mxu0 %v1642
      %1887 = vmatprep.subr.mxu0 %v1639
      %1888 = vmatpush1.msra.mxu0 %v1638
      %1889 = vmatprep.subr.mxu0 %v1635
      %1890 = vmatpush1.msra.mxu0 %v1634
      %1891 = vmatprep.subr.mxu0 %v1631
      %1892 = vmatpush1.msra.mxu0 %v1630
      %1893 = vmatprep.subr.mxu0 %v1627
      %1894 = vmatpush1.msra.mxu0 %v1626
      %1895 = vmatprep.subr.mxu0 %v1623
      %1896 = vmatpush1.msra.mxu0 %v1622
      %1897 = vmatprep.subr.mxu0 %v1619
      %1898 = vmatpush1.msra.mxu0 %v1618
      %1899 = vmatprep.subr.mxu0 %v1615
      %1900 = vmatpush1.msra.mxu0 %v1614
      %1901 = vmatprep.subr.mxu0 %v1611
      %1902 = vmatpush1.msra.mxu0 %v1610
      %1903 = vmatprep.subr.mxu0 %v1607
      %1904 = vmatpush1.msra.mxu0 %v1606
      %1905 = vmatprep.subr.mxu0 %v1603
      %1906 = vmatpush1.msra.mxu0 %v1602
      %1907 = vmatprep.subr.mxu0 %v1727
      %1908 = vmatpush2.msra.mxu0 %v1726
      %1909 = vmatprep.subr.mxu0 %v1723
      %1910 = vmatpush2.msra.mxu0 %v1722
      %1911 = vmatprep.subr.mxu0 %v1719
      %1912 = vmatpush2.msra.mxu0 %v1718
      %1913 = vmatprep.subr.mxu0 %v1715
      %1914 = vmatpush2.msra.mxu0 %v1714
      %1915 = vmatprep.subr.mxu0 %v1711
      %1916 = vmatpush2.msra.mxu0 %v1710
      %1917 = vmatprep.subr.mxu0 %v1707
      %1918 = vmatpush2.msra.mxu0 %v1706
      %1919 = vmatprep.subr.mxu0 %v1703
      %1920 = vmatpush2.msra.mxu0 %v1702
      %1921 = vmatprep.subr.mxu0 %v1699
      %1922 = vmatpush2.msra.mxu0 %v1698
      %1923 = vmatprep.subr.mxu0 %v1695
      %1924 = vmatpush2.msra.mxu0 %v1694
      %1925 = vmatprep.subr.mxu0 %v1691
      %1926 = vmatpush2.msra.mxu0 %v1690
      %1927 = vmatprep.subr.mxu0 %v1687
      %1928 = vmatpush2.msra.mxu0 %v1686
      %1929 = vmatprep.subr.mxu0 %v1683
      %1930 = vmatpush2.msra.mxu0 %v1682
      %1931 = vmatprep.subr.mxu0 %v1679
      %1932 = vmatpush2.msra.mxu0 %v1678
      %1933 = vmatprep.subr.mxu0 %v1675
      %1934 = vmatpush2.msra.mxu0 %v1674
      %1935 = vmatprep.subr.mxu0 %v1671
      %1936 = vmatpush2.msra.mxu0 %v1670
      %1937 = vmatprep.subr.mxu0 %v1667
      %1938 = vmatpush2.msra.mxu0 %v1666
      %1939 = vmatprep.mubr.f32.mxu0 %v1385
      %1940 = vmatmul.mubr.f32.gmra.mxu0 %v1382
      %v1941 = vpop.f32.mrf.mxu0
      %v1942 = vadd.f32 %v1841, %v1941
      %v1943 = vpop.f32.mrf.mxu0
      %v1944 = vadd.f32 %v1843, %v1943
      %1945 = vmatprep.mubr.f32.mxu0 %v1396
      %1946 = vmatmul.mubr.f32.gmra.mxu0 %v1394
      %v1947 = vpop.f32.mrf.mxu0
      %v1948 = vadd.f32 %v1847, %v1947
      %v1949 = vpop.f32.mrf.mxu0
      %v1950 = vadd.f32 %v1849, %v1949
      %1951 = vmatprep.mubr.f32.mxu0 %v1410
      %1952 = vmatmul.mubr.f32.gmra.mxu0 %v1407
      %v1953 = vpop.f32.mrf.mxu0
      %v1954 = vadd.f32 %v1853, %v1953
      %v1955 = vpop.f32.mrf.mxu0
      %v1956 = vadd.f32 %v1855, %v1955
      %1957 = vmatprep.mubr.f32.mxu0 %v1421
      %1958 = vmatmul.mubr.f32.gmra.mxu0 %v1419
      %v1959 = vpop.f32.mrf.mxu0
      %v1960 = vadd.f32 %v1859, %v1959
      %v1961 = vpop.f32.mrf.mxu0
      %v1962 = vadd.f32 %v1861, %v1961
      %1963 = vmatprep.mubr.f32.mxu0 %v1435
      %1964 = vmatmul.mubr.f32.gmra.mxu0 %v1432
      %v1965 = vpop.f32.mrf.mxu0
      %v1966 = vadd.f32 %v1865, %v1965
      %v1967 = vpop.f32.mrf.mxu0
      %v1968 = vadd.f32 %v1867, %v1967
      %1969 = vmatprep.mubr.f32.mxu0 %v1446
      %1970 = vmatmul.mubr.f32.gmra.mxu0 %v1444
      %v1971 = vpop.f32.mrf.mxu0
      %v1972 = vadd.f32 %v1871, %v1971
      %v1973 = vpop.f32.mrf.mxu0
      %v1974 = vadd.f32 %v1873, %v1973
      %1975 = vdwg.mxu0
      %1976 = vmatprep.subr.mxu0 0.0
      %1977 = vmatpush1.msra.mxu0 0.0
      %1978 = vmatprep.subr.mxu0 0.0
      %1979 = vmatpush1.msra.mxu0 0.0
      %1980 = vmatprep.subr.mxu0 0.0
      %1981 = vmatpush1.msra.mxu0 0.0
      %1982 = vmatprep.subr.mxu0 0.0
      %1983 = vmatpush1.msra.mxu0 0.0
      %1984 = vmatprep.subr.mxu0 0.0
      %1985 = vmatpush1.msra.mxu0 0.0
      %1986 = vmatprep.subr.mxu0 0.0
      %1987 = vmatpush1.msra.mxu0 0.0
      %1988 = vmatprep.subr.mxu0 0.0
      %1989 = vmatpush1.msra.mxu0 0.0
      %1990 = vmatprep.subr.mxu0 0.0
      %1991 = vmatpush1.msra.mxu0 0.0
      %1992 = vmatprep.subr.mxu0 %v1759
      %1993 = vmatpush1.msra.mxu0 %v1758
      %1994 = vmatprep.subr.mxu0 %v1755
      %1995 = vmatpush1.msra.mxu0 %v1754
      %1996 = vmatprep.subr.mxu0 %v1751
      %1997 = vmatpush1.msra.mxu0 %v1750
      %1998 = vmatprep.subr.mxu0 %v1747
      %1999 = vmatpush1.msra.mxu0 %v1746
      %2000 = vmatprep.subr.mxu0 %v1743
      %2001 = vmatpush1.msra.mxu0 %v1742
      %2002 = vmatprep.subr.mxu0 %v1739
      %2003 = vmatpush1.msra.mxu0 %v1738
      %2004 = vmatprep.subr.mxu0 %v1735
      %2005 = vmatpush1.msra.mxu0 %v1734
      %2006 = vmatprep.subr.mxu0 %v1731
      %2007 = vmatpush1.msra.mxu0 %v1730
      %2008 = vmatprep.subr.mxu0 0.0
      %2009 = vmatpush2.msra.mxu0 0.0
      %2010 = vmatprep.subr.mxu0 0.0
      %2011 = vmatpush2.msra.mxu0 0.0
      %2012 = vmatprep.subr.mxu0 0.0
      %2013 = vmatpush2.msra.mxu0 0.0
      %2014 = vmatprep.subr.mxu0 0.0
      %2015 = vmatpush2.msra.mxu0 0.0
      %2016 = vmatprep.subr.mxu0 0.0
      %2017 = vmatpush2.msra.mxu0 0.0
      %2018 = vmatprep.subr.mxu0 0.0
      %2019 = vmatpush2.msra.mxu0 0.0
      %2020 = vmatprep.subr.mxu0 0.0
      %2021 = vmatpush2.msra.mxu0 0.0
      %2022 = vmatprep.subr.mxu0 0.0
      %2023 = vmatpush2.msra.mxu0 0.0
      %2024 = vmatprep.subr.mxu0 0.0
      %2025 = vmatpush2.msra.mxu0 0.0
      %2026 = vmatprep.subr.mxu0 0.0
      %2027 = vmatpush2.msra.mxu0 0.0
      %2028 = vmatprep.subr.mxu0 0.0
      %2029 = vmatpush2.msra.mxu0 0.0
      %2030 = vmatprep.subr.mxu0 0.0
      %2031 = vmatpush2.msra.mxu0 0.0
      %2032 = vmatprep.subr.mxu0 0.0
      %2033 = vmatpush2.msra.mxu0 0.0
      %2034 = vmatprep.subr.mxu0 0.0
      %2035 = vmatpush2.msra.mxu0 0.0
      %2036 = vmatprep.subr.mxu0 0.0
      %2037 = vmatpush2.msra.mxu0 0.0
      %2038 = vmatprep.subr.mxu0 0.0
      %2039 = vmatpush2.msra.mxu0 0.0
      %2040 = vmatprep.mubr.f32.mxu0 0.0
      %2041 = vmatmul.mubr.f32.gmra.mxu0 %v1762
      %v2042 = vpop.f32.mrf.mxu0
      %v2043 = vadd.f32 %v1942, %v2042
      %v2044 = vpop.f32.mrf.mxu0
      %v2045 = vadd.f32 %v1944, %v2044
      %2046 = vmatprep.mubr.f32.mxu0 0.0
      %2047 = vmatmul.mubr.f32.gmra.mxu0 %v1764
      %v2048 = vpop.f32.mrf.mxu0
      %v2049 = vadd.f32 %v1948, %v2048
      %v2050 = vpop.f32.mrf.mxu0
      %v2051 = vadd.f32 %v1950, %v2050
      %2052 = vmatprep.mubr.f32.mxu0 0.0
      %2053 = vmatmul.mubr.f32.gmra.mxu0 %v1766
      %v2054 = vpop.f32.mrf.mxu0
      %v2055 = vadd.f32 %v1954, %v2054
      %v2056 = vpop.f32.mrf.mxu0
      %v2057 = vadd.f32 %v1956, %v2056
      %2058 = vmatprep.mubr.f32.mxu0 0.0
      %2059 = vmatmul.mubr.f32.gmra.mxu0 %v1768
      %v2060 = vpop.f32.mrf.mxu0
      %v2061 = vadd.f32 %v1960, %v2060
      %v2062 = vpop.f32.mrf.mxu0
      %v2063 = vadd.f32 %v1962, %v2062
      %2064 = vmatprep.mubr.f32.mxu0 0.0
      %2065 = vmatmul.mubr.f32.gmra.mxu0 %v1770
      %v2066 = vpop.f32.mrf.mxu0
      %v2067 = vadd.f32 %v1966, %v2066
      %v2068 = vpop.f32.mrf.mxu0
      %v2069 = vadd.f32 %v1968, %v2068
      %2070 = vmatprep.mubr.f32.mxu0 0.0
      %2071 = vmatmul.mubr.f32.gmra.mxu0 %v1772
      %v2072 = vpop.f32.mrf.mxu0
      %v2073 = vadd.f32 %v1972, %v2072
      %v2074 = vpop.f32.mrf.mxu0
      %v2075 = vadd.f32 %v1974, %v2074
      %2076 = vdwg.mxu0
      %2077 = vmatprep.subr.mxu0 %v1537
      %2078 = vmatpush1.msra.mxu0 %v1536
      %2079 = vmatprep.subr.mxu0 %v1533
      %2080 = vmatpush1.msra.mxu0 %v1532
      %2081 = vmatprep.subr.mxu0 %v1529
      %2082 = vmatpush1.msra.mxu0 %v1528
      %2083 = vmatprep.subr.mxu0 %v1525
      %2084 = vmatpush1.msra.mxu0 %v1524
      %2085 = vmatprep.subr.mxu0 %v1521
      %2086 = vmatpush1.msra.mxu0 %v1520
      %2087 = vmatprep.subr.mxu0 %v1517
      %2088 = vmatpush1.msra.mxu0 %v1516
      %2089 = vmatprep.subr.mxu0 %v1513
      %2090 = vmatpush1.msra.mxu0 %v1512
      %2091 = vmatprep.subr.mxu0 %v1509
      %2092 = vmatpush1.msra.mxu0 %v1508
      %2093 = vmatprep.subr.mxu0 %v1505
      %2094 = vmatpush1.msra.mxu0 %v1504
      %2095 = vmatprep.subr.mxu0 %v1501
      %2096 = vmatpush1.msra.mxu0 %v1500
      %2097 = vmatprep.subr.mxu0 %v1497
      %2098 = vmatpush1.msra.mxu0 %v1496
      %2099 = vmatprep.subr.mxu0 %v1493
      %2100 = vmatpush1.msra.mxu0 %v1492
      %2101 = vmatprep.subr.mxu0 %v1489
      %2102 = vmatpush1.msra.mxu0 %v1488
      %2103 = vmatprep.subr.mxu0 %v1485
      %2104 = vmatpush1.msra.mxu0 %v1484
      %2105 = vmatprep.subr.mxu0 %v1481
      %2106 = vmatpush1.msra.mxu0 %v1480
      %2107 = vmatprep.subr.mxu0 %v1477
      %2108 = vmatpush1.msra.mxu0 %v1476
      %2109 = vmatprep.subr.mxu0 %v1601
      %2110 = vmatpush2.msra.mxu0 %v1600
      %2111 = vmatprep.subr.mxu0 %v1597
      %2112 = vmatpush2.msra.mxu0 %v1596
      %2113 = vmatprep.subr.mxu0 %v1593
      %2114 = vmatpush2.msra.mxu0 %v1592
      %2115 = vmatprep.subr.mxu0 %v1589
      %2116 = vmatpush2.msra.mxu0 %v1588
      %2117 = vmatprep.subr.mxu0 %v1585
      %2118 = vmatpush2.msra.mxu0 %v1584
      %2119 = vmatprep.subr.mxu0 %v1581
      %2120 = vmatpush2.msra.mxu0 %v1580
      %2121 = vmatprep.subr.mxu0 %v1577
      %2122 = vmatpush2.msra.mxu0 %v1576
      %2123 = vmatprep.subr.mxu0 %v1573
      %2124 = vmatpush2.msra.mxu0 %v1572
      %2125 = vmatprep.subr.mxu0 %v1569
      %2126 = vmatpush2.msra.mxu0 %v1568
      %2127 = vmatprep.subr.mxu0 %v1565
      %2128 = vmatpush2.msra.mxu0 %v1564
      %2129 = vmatprep.subr.mxu0 %v1561
      %2130 = vmatpush2.msra.mxu0 %v1560
      %2131 = vmatprep.subr.mxu0 %v1557
      %2132 = vmatpush2.msra.mxu0 %v1556
      %2133 = vmatprep.subr.mxu0 %v1553
      %2134 = vmatpush2.msra.mxu0 %v1552
      %2135 = vmatprep.subr.mxu0 %v1549
      %2136 = vmatpush2.msra.mxu0 %v1548
      %2137 = vmatprep.subr.mxu0 %v1545
      %2138 = vmatpush2.msra.mxu0 %v1544
      %2139 = vmatprep.subr.mxu0 %v1541
      %2140 = vmatpush2.msra.mxu0 %v1540
      %2141 = vmatprep.mubr.f32.mxu0 %v1379
      %2142 = vmatmul.mubr.f32.gmra.mxu0 %v1376
      %v2143 = vpop.f32.mrf.mxu0
      %v2144 = vadd.f32 0.0, %v2143
      %v2145 = vpop.f32.mrf.mxu0
      %v2146 = vadd.f32 0.0, %v2145
      %2147 = vmatprep.mubr.f32.mxu0 %v1392
      %2148 = vmatmul.mubr.f32.gmra.mxu0 %v1390
      %v2149 = vpop.f32.mrf.mxu0
      %v2150 = vadd.f32 0.0, %v2149
      %v2151 = vpop.f32.mrf.mxu0
      %v2152 = vadd.f32 0.0, %v2151
      %2153 = vmatprep.mubr.f32.mxu0 %v1404
      %2154 = vmatmul.mubr.f32.gmra.mxu0 %v1401
      %v2155 = vpop.f32.mrf.mxu0
      %v2156 = vadd.f32 0.0, %v2155
      %v2157 = vpop.f32.mrf.mxu0
      %v2158 = vadd.f32 0.0, %v2157
      %2159 = vmatprep.mubr.f32.mxu0 %v1417
      %2160 = vmatmul.mubr.f32.gmra.mxu0 %v1415
      %v2161 = vpop.f32.mrf.mxu0
      %v2162 = vadd.f32 0.0, %v2161
      %v2163 = vpop.f32.mrf.mxu0
      %v2164 = vadd.f32 0.0, %v2163
      %2165 = vmatprep.mubr.f32.mxu0 %v1429
      %2166 = vmatmul.mubr.f32.gmra.mxu0 %v1426
      %v2167 = vpop.f32.mrf.mxu0
      %v2168 = vadd.f32 0.0, %v2167
      %v2169 = vpop.f32.mrf.mxu0
      %v2170 = vadd.f32 0.0, %v2169
      %2171 = vmatprep.mubr.f32.mxu0 %v1442
      %2172 = vmatmul.mubr.f32.gmra.mxu0 %v1440
      %v2173 = vpop.f32.mrf.mxu0
      %v2174 = vadd.f32 0.0, %v2173
      %v2175 = vpop.f32.mrf.mxu0
      %v2176 = vadd.f32 0.0, %v2175
      %2177 = vdwg.mxu0
      %2178 = vmatprep.subr.mxu0 %v1665
      %2179 = vmatpush1.msra.mxu0 %v1664
      %2180 = vmatprep.subr.mxu0 %v1661
      %2181 = vmatpush1.msra.mxu0 %v1660
      %2182 = vmatprep.subr.mxu0 %v1657
      %2183 = vmatpush1.msra.mxu0 %v1656
      %2184 = vmatprep.subr.mxu0 %v1653
      %2185 = vmatpush1.msra.mxu0 %v1652
      %2186 = vmatprep.subr.mxu0 %v1649
      %2187 = vmatpush1.msra.mxu0 %v1648
      %2188 = vmatprep.subr.mxu0 %v1645
      %2189 = vmatpush1.msra.mxu0 %v1644
      %2190 = vmatprep.subr.mxu0 %v1641
      %2191 = vmatpush1.msra.mxu0 %v1640
      %2192 = vmatprep.subr.mxu0 %v1637
      %2193 = vmatpush1.msra.mxu0 %v1636
      %2194 = vmatprep.subr.mxu0 %v1633
      %2195 = vmatpush1.msra.mxu0 %v1632
      %2196 = vmatprep.subr.mxu0 %v1629
      %2197 = vmatpush1.msra.mxu0 %v1628
      %2198 = vmatprep.subr.mxu0 %v1625
      %2199 = vmatpush1.msra.mxu0 %v1624
      %2200 = vmatprep.subr.mxu0 %v1621
      %2201 = vmatpush1.msra.mxu0 %v1620
      %2202 = vmatprep.subr.mxu0 %v1617
      %2203 = vmatpush1.msra.mxu0 %v1616
      %2204 = vmatprep.subr.mxu0 %v1613
      %2205 = vmatpush1.msra.mxu0 %v1612
      %2206 = vmatprep.subr.mxu0 %v1609
      %2207 = vmatpush1.msra.mxu0 %v1608
      %2208 = vmatprep.subr.mxu0 %v1605
      %2209 = vmatpush1.msra.mxu0 %v1604
      %2210 = vmatprep.subr.mxu0 %v1729
      %2211 = vmatpush2.msra.mxu0 %v1728
      %2212 = vmatprep.subr.mxu0 %v1725
      %2213 = vmatpush2.msra.mxu0 %v1724
      %2214 = vmatprep.subr.mxu0 %v1721
      %2215 = vmatpush2.msra.mxu0 %v1720
      %2216 = vmatprep.subr.mxu0 %v1717
      %2217 = vmatpush2.msra.mxu0 %v1716
      %2218 = vmatprep.subr.mxu0 %v1713
      %2219 = vmatpush2.msra.mxu0 %v1712
      %2220 = vmatprep.subr.mxu0 %v1709
      %2221 = vmatpush2.msra.mxu0 %v1708
      %2222 = vmatprep.subr.mxu0 %v1705
      %2223 = vmatpush2.msra.mxu0 %v1704
      %2224 = vmatprep.subr.mxu0 %v1701
      %2225 = vmatpush2.msra.mxu0 %v1700
      %2226 = vmatprep.subr.mxu0 %v1697
      %2227 = vmatpush2.msra.mxu0 %v1696
      %2228 = vmatprep.subr.mxu0 %v1693
      %2229 = vmatpush2.msra.mxu0 %v1692
      %2230 = vmatprep.subr.mxu0 %v1689
      %2231 = vmatpush2.msra.mxu0 %v1688
      %2232 = vmatprep.subr.mxu0 %v1685
      %2233 = vmatpush2.msra.mxu0 %v1684
      %2234 = vmatprep.subr.mxu0 %v1681
      %2235 = vmatpush2.msra.mxu0 %v1680
      %2236 = vmatprep.subr.mxu0 %v1677
      %2237 = vmatpush2.msra.mxu0 %v1676
      %2238 = vmatprep.subr.mxu0 %v1673
      %2239 = vmatpush2.msra.mxu0 %v1672
      %2240 = vmatprep.subr.mxu0 %v1669
      %2241 = vmatpush2.msra.mxu0 %v1668
      %2242 = vmatprep.mubr.f32.mxu0 %v1385
      %2243 = vmatmul.mubr.f32.gmra.mxu0 %v1382
      %v2244 = vpop.f32.mrf.mxu0
      %v2245 = vadd.f32 %v2144, %v2244
      %v2246 = vpop.f32.mrf.mxu0
      %v2247 = vadd.f32 %v2146, %v2246
      %2248 = vmatprep.mubr.f32.mxu0 %v1396
      %2249 = vmatmul.mubr.f32.gmra.mxu0 %v1394
      %v2250 = vpop.f32.mrf.mxu0
      %v2251 = vadd.f32 %v2150, %v2250
      %v2252 = vpop.f32.mrf.mxu0
      %v2253 = vadd.f32 %v2152, %v2252
      %2254 = vmatprep.mubr.f32.mxu0 %v1410
      %2255 = vmatmul.mubr.f32.gmra.mxu0 %v1407
      %v2256 = vpop.f32.mrf.mxu0
      %v2257 = vadd.f32 %v2156, %v2256
      %v2258 = vpop.f32.mrf.mxu0
      %v2259 = vadd.f32 %v2158, %v2258
      %2260 = vmatprep.mubr.f32.mxu0 %v1421
      %2261 = vmatmul.mubr.f32.gmra.mxu0 %v1419
      %v2262 = vpop.f32.mrf.mxu0
      %v2263 = vadd.f32 %v2162, %v2262
      %v2264 = vpop.f32.mrf.mxu0
      %v2265 = vadd.f32 %v2164, %v2264
      %2266 = vmatprep.mubr.f32.mxu0 %v1435
      %2267 = vmatmul.mubr.f32.gmra.mxu0 %v1432
      %v2268 = vpop.f32.mrf.mxu0
      %v2269 = vadd.f32 %v2168, %v2268
      %v2270 = vpop.f32.mrf.mxu0
      %v2271 = vadd.f32 %v2170, %v2270
      %2272 = vmatprep.mubr.f32.mxu0 %v1446
      %2273 = vmatmul.mubr.f32.gmra.mxu0 %v1444
      %v2274 = vpop.f32.mrf.mxu0
      %v2275 = vadd.f32 %v2174, %v2274
      %v2276 = vpop.f32.mrf.mxu0
      %v2277 = vadd.f32 %v2176, %v2276
      %2278 = vdwg.mxu0
      %2279 = vmatprep.subr.mxu0 0.0
      %2280 = vmatpush1.msra.mxu0 0.0
      %2281 = vmatprep.subr.mxu0 0.0
      %2282 = vmatpush1.msra.mxu0 0.0
      %2283 = vmatprep.subr.mxu0 0.0
      %2284 = vmatpush1.msra.mxu0 0.0
      %2285 = vmatprep.subr.mxu0 0.0
      %2286 = vmatpush1.msra.mxu0 0.0
      %2287 = vmatprep.subr.mxu0 0.0
      %2288 = vmatpush1.msra.mxu0 0.0
      %2289 = vmatprep.subr.mxu0 0.0
      %2290 = vmatpush1.msra.mxu0 0.0
      %2291 = vmatprep.subr.mxu0 0.0
      %2292 = vmatpush1.msra.mxu0 0.0
      %2293 = vmatprep.subr.mxu0 0.0
      %2294 = vmatpush1.msra.mxu0 0.0
      %2295 = vmatprep.subr.mxu0 %v1761
      %2296 = vmatpush1.msra.mxu0 %v1760
      %2297 = vmatprep.subr.mxu0 %v1757
      %2298 = vmatpush1.msra.mxu0 %v1756
      %2299 = vmatprep.subr.mxu0 %v1753
      %2300 = vmatpush1.msra.mxu0 %v1752
      %2301 = vmatprep.subr.mxu0 %v1749
      %2302 = vmatpush1.msra.mxu0 %v1748
      %2303 = vmatprep.subr.mxu0 %v1745
      %2304 = vmatpush1.msra.mxu0 %v1744
      %2305 = vmatprep.subr.mxu0 %v1741
      %2306 = vmatpush1.msra.mxu0 %v1740
      %2307 = vmatprep.subr.mxu0 %v1737
      %2308 = vmatpush1.msra.mxu0 %v1736
      %2309 = vmatprep.subr.mxu0 %v1733
      %2310 = vmatpush1.msra.mxu0 %v1732
      %2311 = vmatprep.subr.mxu0 0.0
      %2312 = vmatpush2.msra.mxu0 0.0
      %2313 = vmatprep.subr.mxu0 0.0
      %2314 = vmatpush2.msra.mxu0 0.0
      %2315 = vmatprep.subr.mxu0 0.0
      %2316 = vmatpush2.msra.mxu0 0.0
      %2317 = vmatprep.subr.mxu0 0.0
      %2318 = vmatpush2.msra.mxu0 0.0
      %2319 = vmatprep.subr.mxu0 0.0
      %2320 = vmatpush2.msra.mxu0 0.0
      %2321 = vmatprep.subr.mxu0 0.0
      %2322 = vmatpush2.msra.mxu0 0.0
      %2323 = vmatprep.subr.mxu0 0.0
      %2324 = vmatpush2.msra.mxu0 0.0
      %2325 = vmatprep.subr.mxu0 0.0
      %2326 = vmatpush2.msra.mxu0 0.0
      %2327 = vmatprep.subr.mxu0 0.0
      %2328 = vmatpush2.msra.mxu0 0.0
      %2329 = vmatprep.subr.mxu0 0.0
      %2330 = vmatpush2.msra.mxu0 0.0
      %2331 = vmatprep.subr.mxu0 0.0
      %2332 = vmatpush2.msra.mxu0 0.0
      %2333 = vmatprep.subr.mxu0 0.0
      %2334 = vmatpush2.msra.mxu0 0.0
      %2335 = vmatprep.subr.mxu0 0.0
      %2336 = vmatpush2.msra.mxu0 0.0
      %2337 = vmatprep.subr.mxu0 0.0
      %2338 = vmatpush2.msra.mxu0 0.0
      %2339 = vmatprep.subr.mxu0 0.0
      %2340 = vmatpush2.msra.mxu0 0.0
      %2341 = vmatprep.subr.mxu0 0.0
      %2342 = vmatpush2.msra.mxu0 0.0
      %2343 = vmatprep.mubr.f32.mxu0 0.0
      %2344 = vmatmul.mubr.f32.gmra.mxu0 %v1762
      %v2345 = vpop.f32.mrf.mxu0
      %v2346 = vadd.f32 %v2245, %v2345
      %v2347 = vpop.f32.mrf.mxu0
      %v2348 = vadd.f32 %v2247, %v2347
      %2349 = vmatprep.mubr.f32.mxu0 0.0
      %2350 = vmatmul.mubr.f32.gmra.mxu0 %v1764
      %v2351 = vpop.f32.mrf.mxu0
      %v2352 = vadd.f32 %v2251, %v2351
      %v2353 = vpop.f32.mrf.mxu0
      %v2354 = vadd.f32 %v2253, %v2353
      %2355 = vmatprep.mubr.f32.mxu0 0.0
      %2356 = vmatmul.mubr.f32.gmra.mxu0 %v1766
      %v2357 = vpop.f32.mrf.mxu0
      %v2358 = vadd.f32 %v2257, %v2357
      %v2359 = vpop.f32.mrf.mxu0
      %v2360 = vadd.f32 %v2259, %v2359
      %2361 = vmatprep.mubr.f32.mxu0 0.0
      %2362 = vmatmul.mubr.f32.gmra.mxu0 %v1768
      %v2363 = vpop.f32.mrf.mxu0
      %v2364 = vadd.f32 %v2263, %v2363
      %v2365 = vpop.f32.mrf.mxu0
      %v2366 = vadd.f32 %v2265, %v2365
      %2367 = vmatprep.mubr.f32.mxu0 0.0
      %2368 = vmatmul.mubr.f32.gmra.mxu0 %v1770
      %v2369 = vpop.f32.mrf.mxu0
      %v2370 = vadd.f32 %v2269, %v2369
      %v2371 = vpop.f32.mrf.mxu0
      %v2372 = vadd.f32 %v2271, %v2371
      %2373 = vmatprep.mubr.f32.mxu0 0.0
      %2374 = vmatmul.mubr.f32.gmra.mxu0 %v1772
      %v2375 = vpop.f32.mrf.mxu0
      %v2376 = vadd.f32 %v2275, %v2375
      %v2377 = vpop.f32.mrf.mxu0
      %v2378 = vadd.f32 %v2277, %v2377
      %2379 = vdwg.mxu0
      %v2381 = vsel %vm681, %v984, 0
      %v2383 = vsel %vm681, %v989, 0
      %v2386 = vsel %vm681, %v994, 0
      %v2388 = vsel %vm681, %v999, 0
      %v2391 = vsel %vm681, %v1004, 0
      %v2393 = vsel %vm681, %v1009, 0
      %2395 = vmatprep.subr.mxu0 %v1071
      %2396 = vmatpush1.msra.mxu0 %v1070
      %2397 = vmatprep.subr.mxu0 %v1067
      %2398 = vmatpush1.msra.mxu0 %v1066
      %2399 = vmatprep.subr.mxu0 %v1063
      %2400 = vmatpush1.msra.mxu0 %v1062
      %2401 = vmatprep.subr.mxu0 %v1059
      %2402 = vmatpush1.msra.mxu0 %v1058
      %2403 = vmatprep.subr.mxu0 %v1055
      %2404 = vmatpush1.msra.mxu0 %v1054
      %2405 = vmatprep.subr.mxu0 %v1051
      %2406 = vmatpush1.msra.mxu0 %v1050
      %2407 = vmatprep.subr.mxu0 %v1047
      %2408 = vmatpush1.msra.mxu0 %v1046
      %2409 = vmatprep.subr.mxu0 %v1043
      %2410 = vmatpush1.msra.mxu0 %v1042
      %2411 = vmatprep.subr.mxu0 %v1039
      %2412 = vmatpush1.msra.mxu0 %v1038
      %2413 = vmatprep.subr.mxu0 %v1035
      %2414 = vmatpush1.msra.mxu0 %v1034
      %2415 = vmatprep.subr.mxu0 %v1031
      %2416 = vmatpush1.msra.mxu0 %v1030
      %2417 = vmatprep.subr.mxu0 %v1027
      %2418 = vmatpush1.msra.mxu0 %v1026
      %2419 = vmatprep.subr.mxu0 %v1023
      %2420 = vmatpush1.msra.mxu0 %v1022
      %2421 = vmatprep.subr.mxu0 %v1019
      %2422 = vmatpush1.msra.mxu0 %v1018
      %2423 = vmatprep.subr.mxu0 %v1015
      %2424 = vmatpush1.msra.mxu0 %v1014
      %2425 = vmatprep.subr.mxu0 %v1011
      %2426 = vmatpush1.msra.mxu0 %v1010
      %2427 = vmatprep.subr.mxu0 %v1135
      %2428 = vmatpush2.msra.mxu0 %v1134
      %2429 = vmatprep.subr.mxu0 %v1131
      %2430 = vmatpush2.msra.mxu0 %v1130
      %2431 = vmatprep.subr.mxu0 %v1127
      %2432 = vmatpush2.msra.mxu0 %v1126
      %2433 = vmatprep.subr.mxu0 %v1123
      %2434 = vmatpush2.msra.mxu0 %v1122
      %2435 = vmatprep.subr.mxu0 %v1119
      %2436 = vmatpush2.msra.mxu0 %v1118
      %2437 = vmatprep.subr.mxu0 %v1115
      %2438 = vmatpush2.msra.mxu0 %v1114
      %2439 = vmatprep.subr.mxu0 %v1111
      %2440 = vmatpush2.msra.mxu0 %v1110
      %2441 = vmatprep.subr.mxu0 %v1107
      %2442 = vmatpush2.msra.mxu0 %v1106
      %2443 = vmatprep.subr.mxu0 %v1103
      %2444 = vmatpush2.msra.mxu0 %v1102
      %2445 = vmatprep.subr.mxu0 %v1099
      %2446 = vmatpush2.msra.mxu0 %v1098
      %2447 = vmatprep.subr.mxu0 %v1095
      %2448 = vmatpush2.msra.mxu0 %v1094
      %2449 = vmatprep.subr.mxu0 %v1091
      %2450 = vmatpush2.msra.mxu0 %v1090
      %2451 = vmatprep.subr.mxu0 %v1087
      %2452 = vmatpush2.msra.mxu0 %v1086
      %2453 = vmatprep.subr.mxu0 %v1083
      %2454 = vmatpush2.msra.mxu0 %v1082
      %2455 = vmatprep.subr.mxu0 %v1079
      %2456 = vmatpush2.msra.mxu0 %v1078
      %2457 = vmatprep.subr.mxu0 %v1075
      %2458 = vmatpush2.msra.mxu0 %v1074
      %2459 = vmatprep.mubr.f32.mxu0 %v981
      %2460 = vmatmul.mubr.f32.gmra.mxu0 %v980
      %v2461 = vpop.f32.mrf.mxu0
      %v2462 = vadd.f32 %v2043, %v2461
      %v2463 = vpop.f32.mrf.mxu0
      %v2464 = vadd.f32 %v2045, %v2463
      %2465 = vmatprep.mubr.f32.mxu0 %v986
      %2466 = vmatmul.mubr.f32.gmra.mxu0 %v985
      %v2467 = vpop.f32.mrf.mxu0
      %v2468 = vadd.f32 %v2049, %v2467
      %v2469 = vpop.f32.mrf.mxu0
      %v2470 = vadd.f32 %v2051, %v2469
      %2471 = vmatprep.mubr.f32.mxu0 %v991
      %2472 = vmatmul.mubr.f32.gmra.mxu0 %v990
      %v2473 = vpop.f32.mrf.mxu0
      %v2474 = vadd.f32 %v2055, %v2473
      %v2475 = vpop.f32.mrf.mxu0
      %v2476 = vadd.f32 %v2057, %v2475
      %2477 = vmatprep.mubr.f32.mxu0 %v996
      %2478 = vmatmul.mubr.f32.gmra.mxu0 %v995
      %v2479 = vpop.f32.mrf.mxu0
      %v2480 = vadd.f32 %v2061, %v2479
      %v2481 = vpop.f32.mrf.mxu0
      %v2482 = vadd.f32 %v2063, %v2481
      %2483 = vmatprep.mubr.f32.mxu0 %v1001
      %2484 = vmatmul.mubr.f32.gmra.mxu0 %v1000
      %v2485 = vpop.f32.mrf.mxu0
      %v2486 = vadd.f32 %v2067, %v2485
      %v2487 = vpop.f32.mrf.mxu0
      %v2488 = vadd.f32 %v2069, %v2487
      %2489 = vmatprep.mubr.f32.mxu0 %v1006
      %2490 = vmatmul.mubr.f32.gmra.mxu0 %v1005
      %v2491 = vpop.f32.mrf.mxu0
      %v2492 = vadd.f32 %v2073, %v2491
      %v2493 = vpop.f32.mrf.mxu0
      %v2494 = vadd.f32 %v2075, %v2493
      %2495 = vdwg.mxu0
      %2496 = vmatprep.subr.mxu0 %v1199
      %2497 = vmatpush1.msra.mxu0 %v1198
      %2498 = vmatprep.subr.mxu0 %v1195
      %2499 = vmatpush1.msra.mxu0 %v1194
      %2500 = vmatprep.subr.mxu0 %v1191
      %2501 = vmatpush1.msra.mxu0 %v1190
      %2502 = vmatprep.subr.mxu0 %v1187
      %2503 = vmatpush1.msra.mxu0 %v1186
      %2504 = vmatprep.subr.mxu0 %v1183
      %2505 = vmatpush1.msra.mxu0 %v1182
      %2506 = vmatprep.subr.mxu0 %v1179
      %2507 = vmatpush1.msra.mxu0 %v1178
      %2508 = vmatprep.subr.mxu0 %v1175
      %2509 = vmatpush1.msra.mxu0 %v1174
      %2510 = vmatprep.subr.mxu0 %v1171
      %2511 = vmatpush1.msra.mxu0 %v1170
      %2512 = vmatprep.subr.mxu0 %v1167
      %2513 = vmatpush1.msra.mxu0 %v1166
      %2514 = vmatprep.subr.mxu0 %v1163
      %2515 = vmatpush1.msra.mxu0 %v1162
      %2516 = vmatprep.subr.mxu0 %v1159
      %2517 = vmatpush1.msra.mxu0 %v1158
      %2518 = vmatprep.subr.mxu0 %v1155
      %2519 = vmatpush1.msra.mxu0 %v1154
      %2520 = vmatprep.subr.mxu0 %v1151
      %2521 = vmatpush1.msra.mxu0 %v1150
      %2522 = vmatprep.subr.mxu0 %v1147
      %2523 = vmatpush1.msra.mxu0 %v1146
      %2524 = vmatprep.subr.mxu0 %v1143
      %2525 = vmatpush1.msra.mxu0 %v1142
      %2526 = vmatprep.subr.mxu0 %v1139
      %2527 = vmatpush1.msra.mxu0 %v1138
      %2528 = vmatprep.subr.mxu0 %v1263
      %2529 = vmatpush2.msra.mxu0 %v1262
      %2530 = vmatprep.subr.mxu0 %v1259
      %2531 = vmatpush2.msra.mxu0 %v1258
      %2532 = vmatprep.subr.mxu0 %v1255
      %2533 = vmatpush2.msra.mxu0 %v1254
      %2534 = vmatprep.subr.mxu0 %v1251
      %2535 = vmatpush2.msra.mxu0 %v1250
      %2536 = vmatprep.subr.mxu0 %v1247
      %2537 = vmatpush2.msra.mxu0 %v1246
      %2538 = vmatprep.subr.mxu0 %v1243
      %2539 = vmatpush2.msra.mxu0 %v1242
      %2540 = vmatprep.subr.mxu0 %v1239
      %2541 = vmatpush2.msra.mxu0 %v1238
      %2542 = vmatprep.subr.mxu0 %v1235
      %2543 = vmatpush2.msra.mxu0 %v1234
      %2544 = vmatprep.subr.mxu0 %v1231
      %2545 = vmatpush2.msra.mxu0 %v1230
      %2546 = vmatprep.subr.mxu0 %v1227
      %2547 = vmatpush2.msra.mxu0 %v1226
      %2548 = vmatprep.subr.mxu0 %v1223
      %2549 = vmatpush2.msra.mxu0 %v1222
      %2550 = vmatprep.subr.mxu0 %v1219
      %2551 = vmatpush2.msra.mxu0 %v1218
      %2552 = vmatprep.subr.mxu0 %v1215
      %2553 = vmatpush2.msra.mxu0 %v1214
      %2554 = vmatprep.subr.mxu0 %v1211
      %2555 = vmatpush2.msra.mxu0 %v1210
      %2556 = vmatprep.subr.mxu0 %v1207
      %2557 = vmatpush2.msra.mxu0 %v1206
      %2558 = vmatprep.subr.mxu0 %v1203
      %2559 = vmatpush2.msra.mxu0 %v1202
      %2560 = vmatprep.mubr.f32.mxu0 %v983
      %2561 = vmatmul.mubr.f32.gmra.mxu0 %v982
      %v2562 = vpop.f32.mrf.mxu0
      %v2563 = vadd.f32 %v2462, %v2562
      %v2564 = vpop.f32.mrf.mxu0
      %v2565 = vadd.f32 %v2464, %v2564
      %2566 = vmatprep.mubr.f32.mxu0 %v988
      %2567 = vmatmul.mubr.f32.gmra.mxu0 %v987
      %v2568 = vpop.f32.mrf.mxu0
      %v2569 = vadd.f32 %v2468, %v2568
      %v2570 = vpop.f32.mrf.mxu0
      %v2571 = vadd.f32 %v2470, %v2570
      %2572 = vmatprep.mubr.f32.mxu0 %v993
      %2573 = vmatmul.mubr.f32.gmra.mxu0 %v992
      %v2574 = vpop.f32.mrf.mxu0
      %v2575 = vadd.f32 %v2474, %v2574
      %v2576 = vpop.f32.mrf.mxu0
      %v2577 = vadd.f32 %v2476, %v2576
      %2578 = vmatprep.mubr.f32.mxu0 %v998
      %2579 = vmatmul.mubr.f32.gmra.mxu0 %v997
      %v2580 = vpop.f32.mrf.mxu0
      %v2581 = vadd.f32 %v2480, %v2580
      %v2582 = vpop.f32.mrf.mxu0
      %v2583 = vadd.f32 %v2482, %v2582
      %2584 = vmatprep.mubr.f32.mxu0 %v1003
      %2585 = vmatmul.mubr.f32.gmra.mxu0 %v1002
      %v2586 = vpop.f32.mrf.mxu0
      %v2587 = vadd.f32 %v2486, %v2586
      %v2588 = vpop.f32.mrf.mxu0
      %v2589 = vadd.f32 %v2488, %v2588
      %2590 = vmatprep.mubr.f32.mxu0 %v1008
      %2591 = vmatmul.mubr.f32.gmra.mxu0 %v1007
      %v2592 = vpop.f32.mrf.mxu0
      %v2593 = vadd.f32 %v2492, %v2592
      %v2594 = vpop.f32.mrf.mxu0
      %v2595 = vadd.f32 %v2494, %v2594
      %2596 = vdwg.mxu0
      %2597 = vmatprep.subr.mxu0 0.0
      %2598 = vmatpush1.msra.mxu0 0.0
      %2599 = vmatprep.subr.mxu0 0.0
      %2600 = vmatpush1.msra.mxu0 0.0
      %2601 = vmatprep.subr.mxu0 0.0
      %2602 = vmatpush1.msra.mxu0 0.0
      %2603 = vmatprep.subr.mxu0 0.0
      %2604 = vmatpush1.msra.mxu0 0.0
      %2605 = vmatprep.subr.mxu0 0.0
      %2606 = vmatpush1.msra.mxu0 0.0
      %2607 = vmatprep.subr.mxu0 0.0
      %2608 = vmatpush1.msra.mxu0 0.0
      %2609 = vmatprep.subr.mxu0 0.0
      %2610 = vmatpush1.msra.mxu0 0.0
      %2611 = vmatprep.subr.mxu0 0.0
      %2612 = vmatpush1.msra.mxu0 0.0
      %2613 = vmatprep.subr.mxu0 %v1295
      %2614 = vmatpush1.msra.mxu0 %v1294
      %2615 = vmatprep.subr.mxu0 %v1291
      %2616 = vmatpush1.msra.mxu0 %v1290
      %2617 = vmatprep.subr.mxu0 %v1287
      %2618 = vmatpush1.msra.mxu0 %v1286
      %2619 = vmatprep.subr.mxu0 %v1283
      %2620 = vmatpush1.msra.mxu0 %v1282
      %2621 = vmatprep.subr.mxu0 %v1279
      %2622 = vmatpush1.msra.mxu0 %v1278
      %2623 = vmatprep.subr.mxu0 %v1275
      %2624 = vmatpush1.msra.mxu0 %v1274
      %2625 = vmatprep.subr.mxu0 %v1271
      %2626 = vmatpush1.msra.mxu0 %v1270
      %2627 = vmatprep.subr.mxu0 %v1267
      %2628 = vmatpush1.msra.mxu0 %v1266
      %2629 = vmatprep.subr.mxu0 0.0
      %2630 = vmatpush2.msra.mxu0 0.0
      %2631 = vmatprep.subr.mxu0 0.0
      %2632 = vmatpush2.msra.mxu0 0.0
      %2633 = vmatprep.subr.mxu0 0.0
      %2634 = vmatpush2.msra.mxu0 0.0
      %2635 = vmatprep.subr.mxu0 0.0
      %2636 = vmatpush2.msra.mxu0 0.0
      %2637 = vmatprep.subr.mxu0 0.0
      %2638 = vmatpush2.msra.mxu0 0.0
      %2639 = vmatprep.subr.mxu0 0.0
      %2640 = vmatpush2.msra.mxu0 0.0
      %2641 = vmatprep.subr.mxu0 0.0
      %2642 = vmatpush2.msra.mxu0 0.0
      %2643 = vmatprep.subr.mxu0 0.0
      %2644 = vmatpush2.msra.mxu0 0.0
      %2645 = vmatprep.subr.mxu0 0.0
      %2646 = vmatpush2.msra.mxu0 0.0
      %2647 = vmatprep.subr.mxu0 0.0
      %2648 = vmatpush2.msra.mxu0 0.0
      %2649 = vmatprep.subr.mxu0 0.0
      %2650 = vmatpush2.msra.mxu0 0.0
      %2651 = vmatprep.subr.mxu0 0.0
      %2652 = vmatpush2.msra.mxu0 0.0
      %2653 = vmatprep.subr.mxu0 0.0
      %2654 = vmatpush2.msra.mxu0 0.0
      %2655 = vmatprep.subr.mxu0 0.0
      %2656 = vmatpush2.msra.mxu0 0.0
      %2657 = vmatprep.subr.mxu0 0.0
      %2658 = vmatpush2.msra.mxu0 0.0
      %2659 = vmatprep.subr.mxu0 0.0
      %2660 = vmatpush2.msra.mxu0 0.0
      %2661 = vmatprep.mubr.f32.mxu0 0.0
      %2662 = vmatmul.mubr.f32.gmra.mxu0 %v2381
      %v2663 = vpop.f32.mrf.mxu0
      %v2664 = vadd.f32 %v2563, %v2663
      %v2665 = vpop.f32.mrf.mxu0
      %v2666 = vadd.f32 %v2565, %v2665
      %2667 = vmatprep.mubr.f32.mxu0 0.0
      %2668 = vmatmul.mubr.f32.gmra.mxu0 %v2383
      %v2669 = vpop.f32.mrf.mxu0
      %v2670 = vadd.f32 %v2569, %v2669
      %v2671 = vpop.f32.mrf.mxu0
      %v2672 = vadd.f32 %v2571, %v2671
      %2673 = vmatprep.mubr.f32.mxu0 0.0
      %2674 = vmatmul.mubr.f32.gmra.mxu0 %v2386
      %v2675 = vpop.f32.mrf.mxu0
      %v2676 = vadd.f32 %v2575, %v2675
      %v2677 = vpop.f32.mrf.mxu0
      %v2678 = vadd.f32 %v2577, %v2677
      %2679 = vmatprep.mubr.f32.mxu0 0.0
      %2680 = vmatmul.mubr.f32.gmra.mxu0 %v2388
      %v2681 = vpop.f32.mrf.mxu0
      %v2682 = vadd.f32 %v2581, %v2681
      %v2683 = vpop.f32.mrf.mxu0
      %v2684 = vadd.f32 %v2583, %v2683
      %2685 = vmatprep.mubr.f32.mxu0 0.0
      %2686 = vmatmul.mubr.f32.gmra.mxu0 %v2391
      %v2687 = vpop.f32.mrf.mxu0
      %v2688 = vadd.f32 %v2587, %v2687
      %v2689 = vpop.f32.mrf.mxu0
      %v2690 = vadd.f32 %v2589, %v2689
      %2691 = vmatprep.mubr.f32.mxu0 0.0
      %2692 = vmatmul.mubr.f32.gmra.mxu0 %v2393
      %v2693 = vpop.f32.mrf.mxu0
      %v2694 = vadd.f32 %v2593, %v2693
      %v2695 = vpop.f32.mrf.mxu0
      %v2696 = vadd.f32 %v2595, %v2695
      %2697 = vdwg.mxu0
      %2698 = vmatprep.subr.mxu0 %v1073
      %2699 = vmatpush1.msra.mxu0 %v1072
      %2700 = vmatprep.subr.mxu0 %v1069
      %2701 = vmatpush1.msra.mxu0 %v1068
      %2702 = vmatprep.subr.mxu0 %v1065
      %2703 = vmatpush1.msra.mxu0 %v1064
      %2704 = vmatprep.subr.mxu0 %v1061
      %2705 = vmatpush1.msra.mxu0 %v1060
      %2706 = vmatprep.subr.mxu0 %v1057
      %2707 = vmatpush1.msra.mxu0 %v1056
      %2708 = vmatprep.subr.mxu0 %v1053
      %2709 = vmatpush1.msra.mxu0 %v1052
      %2710 = vmatprep.subr.mxu0 %v1049
      %2711 = vmatpush1.msra.mxu0 %v1048
      %2712 = vmatprep.subr.mxu0 %v1045
      %2713 = vmatpush1.msra.mxu0 %v1044
      %2714 = vmatprep.subr.mxu0 %v1041
      %2715 = vmatpush1.msra.mxu0 %v1040
      %2716 = vmatprep.subr.mxu0 %v1037
      %2717 = vmatpush1.msra.mxu0 %v1036
      %2718 = vmatprep.subr.mxu0 %v1033
      %2719 = vmatpush1.msra.mxu0 %v1032
      %2720 = vmatprep.subr.mxu0 %v1029
      %2721 = vmatpush1.msra.mxu0 %v1028
      %2722 = vmatprep.subr.mxu0 %v1025
      %2723 = vmatpush1.msra.mxu0 %v1024
      %2724 = vmatprep.subr.mxu0 %v1021
      %2725 = vmatpush1.msra.mxu0 %v1020
      %2726 = vmatprep.subr.mxu0 %v1017
      %2727 = vmatpush1.msra.mxu0 %v1016
      %2728 = vmatprep.subr.mxu0 %v1013
      %2729 = vmatpush1.msra.mxu0 %v1012
      %2730 = vmatprep.subr.mxu0 %v1137
      %2731 = vmatpush2.msra.mxu0 %v1136
      %2732 = vmatprep.subr.mxu0 %v1133
      %2733 = vmatpush2.msra.mxu0 %v1132
      %2734 = vmatprep.subr.mxu0 %v1129
      %2735 = vmatpush2.msra.mxu0 %v1128
      %2736 = vmatprep.subr.mxu0 %v1125
      %2737 = vmatpush2.msra.mxu0 %v1124
      %2738 = vmatprep.subr.mxu0 %v1121
      %2739 = vmatpush2.msra.mxu0 %v1120
      %2740 = vmatprep.subr.mxu0 %v1117
      %2741 = vmatpush2.msra.mxu0 %v1116
      %2742 = vmatprep.subr.mxu0 %v1113
      %2743 = vmatpush2.msra.mxu0 %v1112
      %2744 = vmatprep.subr.mxu0 %v1109
      %2745 = vmatpush2.msra.mxu0 %v1108
      %2746 = vmatprep.subr.mxu0 %v1105
      %2747 = vmatpush2.msra.mxu0 %v1104
      %2748 = vmatprep.subr.mxu0 %v1101
      %2749 = vmatpush2.msra.mxu0 %v1100
      %2750 = vmatprep.subr.mxu0 %v1097
      %2751 = vmatpush2.msra.mxu0 %v1096
      %2752 = vmatprep.subr.mxu0 %v1093
      %2753 = vmatpush2.msra.mxu0 %v1092
      %2754 = vmatprep.subr.mxu0 %v1089
      %2755 = vmatpush2.msra.mxu0 %v1088
      %2756 = vmatprep.subr.mxu0 %v1085
      %2757 = vmatpush2.msra.mxu0 %v1084
      %2758 = vmatprep.subr.mxu0 %v1081
      %2759 = vmatpush2.msra.mxu0 %v1080
      %2760 = vmatprep.subr.mxu0 %v1077
      %2761 = vmatpush2.msra.mxu0 %v1076
      %2762 = vmatprep.mubr.f32.mxu0 %v981
      %2763 = vmatmul.mubr.f32.gmra.mxu0 %v980
      %v2764 = vpop.f32.mrf.mxu0
      %v2765 = vadd.f32 %v2346, %v2764
      %v2766 = vpop.f32.mrf.mxu0
      %v2767 = vadd.f32 %v2348, %v2766
      %2768 = vmatprep.mubr.f32.mxu0 %v986
      %2769 = vmatmul.mubr.f32.gmra.mxu0 %v985
      %v2770 = vpop.f32.mrf.mxu0
      %v2771 = vadd.f32 %v2352, %v2770
      %v2772 = vpop.f32.mrf.mxu0
      %v2773 = vadd.f32 %v2354, %v2772
      %2774 = vmatprep.mubr.f32.mxu0 %v991
      %2775 = vmatmul.mubr.f32.gmra.mxu0 %v990
      %v2776 = vpop.f32.mrf.mxu0
      %v2777 = vadd.f32 %v2358, %v2776
      %v2778 = vpop.f32.mrf.mxu0
      %v2779 = vadd.f32 %v2360, %v2778
      %2780 = vmatprep.mubr.f32.mxu0 %v996
      %2781 = vmatmul.mubr.f32.gmra.mxu0 %v995
      %v2782 = vpop.f32.mrf.mxu0
      %v2783 = vadd.f32 %v2364, %v2782
      %v2784 = vpop.f32.mrf.mxu0
      %v2785 = vadd.f32 %v2366, %v2784
      %2786 = vmatprep.mubr.f32.mxu0 %v1001
      %2787 = vmatmul.mubr.f32.gmra.mxu0 %v1000
      %v2788 = vpop.f32.mrf.mxu0
      %v2789 = vadd.f32 %v2370, %v2788
      %v2790 = vpop.f32.mrf.mxu0
      %v2791 = vadd.f32 %v2372, %v2790
      %2792 = vmatprep.mubr.f32.mxu0 %v1006
      %2793 = vmatmul.mubr.f32.gmra.mxu0 %v1005
      %v2794 = vpop.f32.mrf.mxu0
      %v2795 = vadd.f32 %v2376, %v2794
      %v2796 = vpop.f32.mrf.mxu0
      %v2797 = vadd.f32 %v2378, %v2796
      %2798 = vdwg.mxu0
      %2799 = vmatprep.subr.mxu0 %v1201
      %2800 = vmatpush1.msra.mxu0 %v1200
      %2801 = vmatprep.subr.mxu0 %v1197
      %2802 = vmatpush1.msra.mxu0 %v1196
      %2803 = vmatprep.subr.mxu0 %v1193
      %2804 = vmatpush1.msra.mxu0 %v1192
      %2805 = vmatprep.subr.mxu0 %v1189
      %2806 = vmatpush1.msra.mxu0 %v1188
      %2807 = vmatprep.subr.mxu0 %v1185
      %2808 = vmatpush1.msra.mxu0 %v1184
      %2809 = vmatprep.subr.mxu0 %v1181
      %2810 = vmatpush1.msra.mxu0 %v1180
      %2811 = vmatprep.subr.mxu0 %v1177
      %2812 = vmatpush1.msra.mxu0 %v1176
      %2813 = vmatprep.subr.mxu0 %v1173
      %2814 = vmatpush1.msra.mxu0 %v1172
      %2815 = vmatprep.subr.mxu0 %v1169
      %2816 = vmatpush1.msra.mxu0 %v1168
      %2817 = vmatprep.subr.mxu0 %v1165
      %2818 = vmatpush1.msra.mxu0 %v1164
      %2819 = vmatprep.subr.mxu0 %v1161
      %2820 = vmatpush1.msra.mxu0 %v1160
      %2821 = vmatprep.subr.mxu0 %v1157
      %2822 = vmatpush1.msra.mxu0 %v1156
      %2823 = vmatprep.subr.mxu0 %v1153
      %2824 = vmatpush1.msra.mxu0 %v1152
      %2825 = vmatprep.subr.mxu0 %v1149
      %2826 = vmatpush1.msra.mxu0 %v1148
      %2827 = vmatprep.subr.mxu0 %v1145
      %2828 = vmatpush1.msra.mxu0 %v1144
      %2829 = vmatprep.subr.mxu0 %v1141
      %2830 = vmatpush1.msra.mxu0 %v1140
      %2831 = vmatprep.subr.mxu0 %v1265
      %2832 = vmatpush2.msra.mxu0 %v1264
      %2833 = vmatprep.subr.mxu0 %v1261
      %2834 = vmatpush2.msra.mxu0 %v1260
      %2835 = vmatprep.subr.mxu0 %v1257
      %2836 = vmatpush2.msra.mxu0 %v1256
      %2837 = vmatprep.subr.mxu0 %v1253
      %2838 = vmatpush2.msra.mxu0 %v1252
      %2839 = vmatprep.subr.mxu0 %v1249
      %2840 = vmatpush2.msra.mxu0 %v1248
      %2841 = vmatprep.subr.mxu0 %v1245
      %2842 = vmatpush2.msra.mxu0 %v1244
      %2843 = vmatprep.subr.mxu0 %v1241
      %2844 = vmatpush2.msra.mxu0 %v1240
      %2845 = vmatprep.subr.mxu0 %v1237
      %2846 = vmatpush2.msra.mxu0 %v1236
      %2847 = vmatprep.subr.mxu0 %v1233
      %2848 = vmatpush2.msra.mxu0 %v1232
      %2849 = vmatprep.subr.mxu0 %v1229
      %2850 = vmatpush2.msra.mxu0 %v1228
      %2851 = vmatprep.subr.mxu0 %v1225
      %2852 = vmatpush2.msra.mxu0 %v1224
      %2853 = vmatprep.subr.mxu0 %v1221
      %2854 = vmatpush2.msra.mxu0 %v1220
      %2855 = vmatprep.subr.mxu0 %v1217
      %2856 = vmatpush2.msra.mxu0 %v1216
      %2857 = vmatprep.subr.mxu0 %v1213
      %2858 = vmatpush2.msra.mxu0 %v1212
      %2859 = vmatprep.subr.mxu0 %v1209
      %2860 = vmatpush2.msra.mxu0 %v1208
      %2861 = vmatprep.subr.mxu0 %v1205
      %2862 = vmatpush2.msra.mxu0 %v1204
      %2863 = vmatprep.mubr.f32.mxu0 %v983
      %2864 = vmatmul.mubr.f32.gmra.mxu0 %v982
      %v2865 = vpop.f32.mrf.mxu0
      %v2866 = vadd.f32 %v2765, %v2865
      %v2867 = vpop.f32.mrf.mxu0
      %v2868 = vadd.f32 %v2767, %v2867
      %2869 = vmatprep.mubr.f32.mxu0 %v988
      %2870 = vmatmul.mubr.f32.gmra.mxu0 %v987
      %v2871 = vpop.f32.mrf.mxu0
      %v2872 = vadd.f32 %v2771, %v2871
      %v2873 = vpop.f32.mrf.mxu0
      %v2874 = vadd.f32 %v2773, %v2873
      %2875 = vmatprep.mubr.f32.mxu0 %v993
      %2876 = vmatmul.mubr.f32.gmra.mxu0 %v992
      %v2877 = vpop.f32.mrf.mxu0
      %v2878 = vadd.f32 %v2777, %v2877
      %v2879 = vpop.f32.mrf.mxu0
      %v2880 = vadd.f32 %v2779, %v2879
      %2881 = vmatprep.mubr.f32.mxu0 %v998
      %2882 = vmatmul.mubr.f32.gmra.mxu0 %v997
      %v2883 = vpop.f32.mrf.mxu0
      %v2884 = vadd.f32 %v2783, %v2883
      %v2885 = vpop.f32.mrf.mxu0
      %v2886 = vadd.f32 %v2785, %v2885
      %2887 = vmatprep.mubr.f32.mxu0 %v1003
      %2888 = vmatmul.mubr.f32.gmra.mxu0 %v1002
      %v2889 = vpop.f32.mrf.mxu0
      %v2890 = vadd.f32 %v2789, %v2889
      %v2891 = vpop.f32.mrf.mxu0
      %v2892 = vadd.f32 %v2791, %v2891
      %2893 = vmatprep.mubr.f32.mxu0 %v1008
      %2894 = vmatmul.mubr.f32.gmra.mxu0 %v1007
      %v2895 = vpop.f32.mrf.mxu0
      %v2896 = vadd.f32 %v2795, %v2895
      %v2897 = vpop.f32.mrf.mxu0
      %v2898 = vadd.f32 %v2797, %v2897
      %2899 = vdwg.mxu0
      %2900 = vmatprep.subr.mxu0 0.0
      %2901 = vmatpush1.msra.mxu0 0.0
      %2902 = vmatprep.subr.mxu0 0.0
      %2903 = vmatpush1.msra.mxu0 0.0
      %2904 = vmatprep.subr.mxu0 0.0
      %2905 = vmatpush1.msra.mxu0 0.0
      %2906 = vmatprep.subr.mxu0 0.0
      %2907 = vmatpush1.msra.mxu0 0.0
      %2908 = vmatprep.subr.mxu0 0.0
      %2909 = vmatpush1.msra.mxu0 0.0
      %2910 = vmatprep.subr.mxu0 0.0
      %2911 = vmatpush1.msra.mxu0 0.0
      %2912 = vmatprep.subr.mxu0 0.0
      %2913 = vmatpush1.msra.mxu0 0.0
      %2914 = vmatprep.subr.mxu0 0.0
      %2915 = vmatpush1.msra.mxu0 0.0
      %2916 = vmatprep.subr.mxu0 %v1297
      %2917 = vmatpush1.msra.mxu0 %v1296
      %2918 = vmatprep.subr.mxu0 %v1293
      %2919 = vmatpush1.msra.mxu0 %v1292
      %2920 = vmatprep.subr.mxu0 %v1289
      %2921 = vmatpush1.msra.mxu0 %v1288
      %2922 = vmatprep.subr.mxu0 %v1285
      %2923 = vmatpush1.msra.mxu0 %v1284
      %2924 = vmatprep.subr.mxu0 %v1281
      %2925 = vmatpush1.msra.mxu0 %v1280
      %2926 = vmatprep.subr.mxu0 %v1277
      %2927 = vmatpush1.msra.mxu0 %v1276
      %2928 = vmatprep.subr.mxu0 %v1273
      %2929 = vmatpush1.msra.mxu0 %v1272
      %2930 = vmatprep.subr.mxu0 %v1269
      %2931 = vmatpush1.msra.mxu0 %v1268
      %2932 = vmatprep.subr.mxu0 0.0
      %2933 = vmatpush2.msra.mxu0 0.0
      %2934 = vmatprep.subr.mxu0 0.0
      %2935 = vmatpush2.msra.mxu0 0.0
      %2936 = vmatprep.subr.mxu0 0.0
      %2937 = vmatpush2.msra.mxu0 0.0
      %2938 = vmatprep.subr.mxu0 0.0
      %2939 = vmatpush2.msra.mxu0 0.0
      %2940 = vmatprep.subr.mxu0 0.0
      %2941 = vmatpush2.msra.mxu0 0.0
      %2942 = vmatprep.subr.mxu0 0.0
      %2943 = vmatpush2.msra.mxu0 0.0
      %2944 = vmatprep.subr.mxu0 0.0
      %2945 = vmatpush2.msra.mxu0 0.0
      %2946 = vmatprep.subr.mxu0 0.0
      %2947 = vmatpush2.msra.mxu0 0.0
      %2948 = vmatprep.subr.mxu0 0.0
      %2949 = vmatpush2.msra.mxu0 0.0
      %2950 = vmatprep.subr.mxu0 0.0
      %2951 = vmatpush2.msra.mxu0 0.0
      %2952 = vmatprep.subr.mxu0 0.0
      %2953 = vmatpush2.msra.mxu0 0.0
      %2954 = vmatprep.subr.mxu0 0.0
      %2955 = vmatpush2.msra.mxu0 0.0
      %2956 = vmatprep.subr.mxu0 0.0
      %2957 = vmatpush2.msra.mxu0 0.0
      %2958 = vmatprep.subr.mxu0 0.0
      %2959 = vmatpush2.msra.mxu0 0.0
      %2960 = vmatprep.subr.mxu0 0.0
      %2961 = vmatpush2.msra.mxu0 0.0
      %2962 = vmatprep.subr.mxu0 0.0
      %2963 = vmatpush2.msra.mxu0 0.0
      %2964 = vmatprep.mubr.f32.mxu0 0.0
      %2965 = vmatmul.mubr.f32.gmra.mxu0 %v2381
      %v2966 = vpop.f32.mrf.mxu0
      %v2967 = vadd.f32 %v2866, %v2966
      %v2968 = vpop.f32.mrf.mxu0
      %v2969 = vadd.f32 %v2868, %v2968
      %2970 = vmatprep.mubr.f32.mxu0 0.0
      %2971 = vmatmul.mubr.f32.gmra.mxu0 %v2383
      %v2972 = vpop.f32.mrf.mxu0
      %v2973 = vadd.f32 %v2872, %v2972
      %v2974 = vpop.f32.mrf.mxu0
      %v2975 = vadd.f32 %v2874, %v2974
      %2976 = vmatprep.mubr.f32.mxu0 0.0
      %2977 = vmatmul.mubr.f32.gmra.mxu0 %v2386
      %v2978 = vpop.f32.mrf.mxu0
      %v2979 = vadd.f32 %v2878, %v2978
      %v2980 = vpop.f32.mrf.mxu0
      %v2981 = vadd.f32 %v2880, %v2980
      %2982 = vmatprep.mubr.f32.mxu0 0.0
      %2983 = vmatmul.mubr.f32.gmra.mxu0 %v2388
      %v2984 = vpop.f32.mrf.mxu0
      %v2985 = vadd.f32 %v2884, %v2984
      %v2986 = vpop.f32.mrf.mxu0
      %v2987 = vadd.f32 %v2886, %v2986
      %2988 = vmatprep.mubr.f32.mxu0 0.0
      %2989 = vmatmul.mubr.f32.gmra.mxu0 %v2391
      %v2990 = vpop.f32.mrf.mxu0
      %v2991 = vadd.f32 %v2890, %v2990
      %v2992 = vpop.f32.mrf.mxu0
      %v2993 = vadd.f32 %v2892, %v2992
      %2994 = vmatprep.mubr.f32.mxu0 0.0
      %2995 = vmatmul.mubr.f32.gmra.mxu0 %v2393
      %v2996 = vpop.f32.mrf.mxu0
      %v2997 = vadd.f32 %v2896, %v2996
      %v2998 = vpop.f32.mrf.mxu0
      %v2999 = vadd.f32 %v2898, %v2998
      %3000 = vdwg.mxu0
      %v3001 = vld [vmem:[#allocation2] sm:$0xfc]
      %v3002 = vld [vmem:[#allocation2 + $0x8] sm:$0xfc]
      %v3003 = vld [vmem:[#allocation2 + $0x10] sm:$0xfc]
      %v3004 = vld [vmem:[#allocation2 + $0x18] sm:$0xfc]
      %v3005 = vld [vmem:[#allocation2 + $0x20] sm:$0xfc]
      %v3006 = vld [vmem:[#allocation2 + $0x50] sm:$0x3]
      %v3007 = vld [vmem:[#allocation2 + $0x58] sm:$0x3]
      %v3008 = vld [vmem:[#allocation2 + $0x60] sm:$0x3]
      %v3009 = vld [vmem:[#allocation2 + $0x68] sm:$0x3]
      %v3010 = vld [vmem:[#allocation2 + $0x70] sm:$0x3]
      %v3011 = vld [vmem:[#allocation2 + $0x78] sm:$0xfc]
      %v3012 = vld [vmem:[#allocation2 + $0x80] sm:$0xfc]
      %v3013 = vld [vmem:[#allocation2 + $0x88] sm:$0xfc]
      %v3014 = vld [vmem:[#allocation2 + $0x90] sm:$0xfc]
      %v3015 = vld [vmem:[#allocation2 + $0x98] sm:$0xfc]
      %v3016 = vld [vmem:[#allocation2 + $0xc8] sm:$0x3]
      %v3017 = vld [vmem:[#allocation2 + $0xd0] sm:$0x3]
      %v3018 = vld [vmem:[#allocation2 + $0xd8] sm:$0x3]
      %v3019 = vld [vmem:[#allocation2 + $0xe0] sm:$0x3]
      %v3020 = vld [vmem:[#allocation2 + $0xe8] sm:$0x3]
      %v3021 = vld [vmem:[#allocation2 + $0xf0] sm:$0xfc]
      %v3022 = vld [vmem:[#allocation2 + $0xf8] sm:$0xfc]
      %v3023 = vld [vmem:[#allocation2 + $0x100] sm:$0xfc]
      %v3024 = vld [vmem:[#allocation2 + $0x108] sm:$0xfc]
      %v3025 = vld [vmem:[#allocation2 + $0x110] sm:$0xfc]
      %v3026 = vld [vmem:[#allocation2 + $0x140] sm:$0x3]
      %v3027 = vld [vmem:[#allocation2 + $0x148] sm:$0x3]
      %v3028 = vld [vmem:[#allocation2 + $0x150] sm:$0x3]
      %v3029 = vld [vmem:[#allocation2 + $0x158] sm:$0x3]
      %v3030 = vld [vmem:[#allocation2 + $0x160] sm:$0x3]
      %vm3061 = vcmask 1045504
      %v3062 = vrot.slane %v3001, 2
      %v3063 = vrot.slane %v985, 2
      %v3064 = vsel %vm3061, %v3062, %v3063
      %v3065 = vrot.slane %v3002, 2
      %v3066 = vrot.slane %v986, 2
      %v3067 = vsel %vm3061, %v3065, %v3066
      %v3068 = vrot.slane %v3003, 2
      %v3069 = vrot.slane %v987, 2
      %v3070 = vsel %vm3061, %v3068, %v3069
      %v3071 = vrot.slane %v3004, 2
      %v3072 = vrot.slane %v988, 2
      %v3073 = vsel %vm3061, %v3071, %v3072
      %v3074 = vrot.slane %v3005, 2
      %v3075 = vrot.slane %v989, 2
      %v3076 = vsel %vm3061, %v3074, %v3075
      %v3077 = vrot.slane %v3006, 2
      %v3078 = vsel %vm3061, %v3063, %v3077
      %v3079 = vrot.slane %v3007, 2
      %v3080 = vsel %vm3061, %v3066, %v3079
      %v3081 = vrot.slane %v3008, 2
      %v3082 = vsel %vm3061, %v3069, %v3081
      %v3083 = vrot.slane %v3009, 2
      %v3084 = vsel %vm3061, %v3072, %v3083
      %v3085 = vrot.slane %v3010, 2
      %v3086 = vsel %vm3061, %v3075, %v3085
      %v3087 = vrot.slane %v3011, 2
      %v3088 = vrot.slane %v995, 2
      %v3089 = vsel %vm3061, %v3087, %v3088
      %v3090 = vrot.slane %v3012, 2
      %v3091 = vrot.slane %v996, 2
      %v3092 = vsel %vm3061, %v3090, %v3091
      %v3093 = vrot.slane %v3013, 2
      %v3094 = vrot.slane %v997, 2
      %v3095 = vsel %vm3061, %v3093, %v3094
      %v3096 = vrot.slane %v3014, 2
      %v3097 = vrot.slane %v998, 2
      %v3098 = vsel %vm3061, %v3096, %v3097
      %v3099 = vrot.slane %v3015, 2
      %v3100 = vrot.slane %v999, 2
      %v3101 = vsel %vm3061, %v3099, %v3100
      %v3102 = vrot.slane %v3016, 2
      %v3103 = vsel %vm3061, %v3088, %v3102
      %v3104 = vrot.slane %v3017, 2
      %v3105 = vsel %vm3061, %v3091, %v3104
      %v3106 = vrot.slane %v3018, 2
      %v3107 = vsel %vm3061, %v3094, %v3106
      %v3108 = vrot.slane %v3019, 2
      %v3109 = vsel %vm3061, %v3097, %v3108
      %v3110 = vrot.slane %v3020, 2
      %v3111 = vsel %vm3061, %v3100, %v3110
      %v3112 = vrot.slane %v3021, 2
      %v3113 = vrot.slane %v1005, 2
      %v3114 = vsel %vm3061, %v3112, %v3113
      %v3115 = vrot.slane %v3022, 2
      %v3116 = vrot.slane %v1006, 2
      %v3117 = vsel %vm3061, %v3115, %v3116
      %v3118 = vrot.slane %v3023, 2
      %v3119 = vrot.slane %v1007, 2
      %v3120 = vsel %vm3061, %v3118, %v3119
      %v3121 = vrot.slane %v3024, 2
      %v3122 = vrot.slane %v1008, 2
      %v3123 = vsel %vm3061, %v3121, %v3122
      %v3124 = vrot.slane %v3025, 2
      %v3125 = vrot.slane %v1009, 2
      %v3126 = vsel %vm3061, %v3124, %v3125
      %v3127 = vrot.slane %v3026, 2
      %v3128 = vsel %vm3061, %v3113, %v3127
      %v3129 = vrot.slane %v3027, 2
      %v3130 = vsel %vm3061, %v3116, %v3129
      %v3131 = vrot.slane %v3028, 2
      %v3132 = vsel %vm3061, %v3119, %v3131
      %v3133 = vrot.slane %v3029, 2
      %v3134 = vsel %vm3061, %v3122, %v3133
      %v3135 = vrot.slane %v3030, 2
      %v3136 = vsel %vm3061, %v3125, %v3135
      %s3161 = scalar_lea.vmem %s3, 4608
      %v3162 = vld [vmem:[%s3161] sm:$0xff]
      %v3163 = vld [vmem:[%s3161 + $0x8] sm:$0xff]
      %v3164 = vld [vmem:[%s3161 + $0x10] sm:$0xff]
      %v3165 = vld [vmem:[%s3161 + $0x18] sm:$0xff]
      %v3166 = vld [vmem:[%s3161 + $0x20] sm:$0xff]
      %v3167 = vld [vmem:[%s3161 + $0x28] sm:$0xff]
      %v3168 = vld [vmem:[%s3161 + $0x30] sm:$0xff]
      %v3169 = vld [vmem:[%s3161 + $0x38] sm:$0xff]
      %v3170 = vld [vmem:[%s3161 + $0x40] sm:$0xff]
      %v3171 = vld [vmem:[%s3161 + $0x48] sm:$0xff]
      %v3172 = vld [vmem:[%s3161 + $0x50] sm:$0xff]
      %v3173 = vld [vmem:[%s3161 + $0x58] sm:$0xff]
      %v3174 = vld [vmem:[%s3161 + $0x60] sm:$0xff]
      %v3175 = vld [vmem:[%s3161 + $0x68] sm:$0xff]
      %v3176 = vld [vmem:[%s3161 + $0x70] sm:$0xff]
      %v3177 = vld [vmem:[%s3161 + $0x78] sm:$0xff]
      %v3178 = vld [vmem:[%s3161 + $0x80] sm:$0xff]
      %v3179 = vld [vmem:[%s3161 + $0x88] sm:$0xff]
      %v3180 = vld [vmem:[%s3161 + $0x90] sm:$0xff]
      %v3181 = vld [vmem:[%s3161 + $0x98] sm:$0xff]
      %v3182 = vld [vmem:[%s3161 + $0xa0] sm:$0xff]
      %v3183 = vld [vmem:[%s3161 + $0xa8] sm:$0xff]
      %v3184 = vld [vmem:[%s3161 + $0xb0] sm:$0xff]
      %v3185 = vld [vmem:[%s3161 + $0xb8] sm:$0xff]
      %v3186 = vld [vmem:[%s3161 + $0xc0] sm:$0xff]
      %v3187 = vld [vmem:[%s3161 + $0xc8] sm:$0xff]
      %v3188 = vld [vmem:[%s3161 + $0xd0] sm:$0xff]
      %v3189 = vld [vmem:[%s3161 + $0xd8] sm:$0xff]
      %v3190 = vld [vmem:[%s3161 + $0xe0] sm:$0xff]
      %v3191 = vld [vmem:[%s3161 + $0xe8] sm:$0xff]
      %v3192 = vld [vmem:[%s3161 + $0xf0] sm:$0xff]
      %v3193 = vld [vmem:[%s3161 + $0xf8] sm:$0xff]
      %v3194 = vld [vmem:[%s3161 + $0x100] sm:$0xff]
      %v3195 = vld [vmem:[%s3161 + $0x108] sm:$0xff]
      %v3196 = vld [vmem:[%s3161 + $0x110] sm:$0xff]
      %v3197 = vld [vmem:[%s3161 + $0x118] sm:$0xff]
      %v3198 = vld [vmem:[%s3161 + $0x120] sm:$0xff]
      %v3199 = vld [vmem:[%s3161 + $0x128] sm:$0xff]
      %v3200 = vld [vmem:[%s3161 + $0x130] sm:$0xff]
      %v3201 = vld [vmem:[%s3161 + $0x138] sm:$0xff]
      %v3202 = vld [vmem:[%s3161 + $0x140] sm:$0xff]
      %v3203 = vld [vmem:[%s3161 + $0x148] sm:$0xff]
      %v3204 = vld [vmem:[%s3161 + $0x150] sm:$0xff]
      %v3205 = vld [vmem:[%s3161 + $0x158] sm:$0xff]
      %v3206 = vld [vmem:[%s3161 + $0x160] sm:$0xff]
      %v3207 = vld [vmem:[%s3161 + $0x168] sm:$0xff]
      %v3208 = vld [vmem:[%s3161 + $0x170] sm:$0xff]
      %v3209 = vld [vmem:[%s3161 + $0x178] sm:$0xff]
      %v3210 = vld [vmem:[%s3161 + $0x180] sm:$0xff]
      %v3211 = vld [vmem:[%s3161 + $0x188] sm:$0xff]
      %v3212 = vld [vmem:[%s3161 + $0x190] sm:$0xff]
      %v3213 = vld [vmem:[%s3161 + $0x198] sm:$0xff]
      %v3214 = vld [vmem:[%s3161 + $0x1a0] sm:$0xff]
      %v3215 = vld [vmem:[%s3161 + $0x1a8] sm:$0xff]
      %v3216 = vld [vmem:[%s3161 + $0x1b0] sm:$0xff]
      %v3217 = vld [vmem:[%s3161 + $0x1b8] sm:$0xff]
      %v3218 = vld [vmem:[%s3161 + $0x1c0] sm:$0xff]
      %v3219 = vld [vmem:[%s3161 + $0x1c8] sm:$0xff]
      %v3220 = vld [vmem:[%s3161 + $0x1d0] sm:$0xff]
      %v3221 = vld [vmem:[%s3161 + $0x1d8] sm:$0xff]
      %v3222 = vld [vmem:[%s3161 + $0x1e0] sm:$0xff]
      %v3223 = vld [vmem:[%s3161 + $0x1e8] sm:$0xff]
      %v3224 = vld [vmem:[%s3161 + $0x1f0] sm:$0xff]
      %v3225 = vld [vmem:[%s3161 + $0x1f8] sm:$0xff]
      %v3226 = vld [vmem:[%s3161 + $0x200] sm:$0xff]
      %v3227 = vld [vmem:[%s3161 + $0x208] sm:$0xff]
      %v3228 = vld [vmem:[%s3161 + $0x210] sm:$0xff]
      %v3229 = vld [vmem:[%s3161 + $0x218] sm:$0xff]
      %v3230 = vld [vmem:[%s3161 + $0x220] sm:$0xff]
      %v3231 = vld [vmem:[%s3161 + $0x228] sm:$0xff]
      %v3232 = vld [vmem:[%s3161 + $0x230] sm:$0xff]
      %v3233 = vld [vmem:[%s3161 + $0x238] sm:$0xff]
      %v3234 = vld [vmem:[%s3161 + $0x240] sm:$0xff]
      %v3235 = vld [vmem:[%s3161 + $0x248] sm:$0xff]
      %v3236 = vld [vmem:[%s3161 + $0x250] sm:$0xff]
      %v3237 = vld [vmem:[%s3161 + $0x258] sm:$0xff]
      %v3238 = vld [vmem:[%s3161 + $0x260] sm:$0xff]
      %v3239 = vld [vmem:[%s3161 + $0x268] sm:$0xff]
      %v3240 = vld [vmem:[%s3161 + $0x270] sm:$0xff]
      %v3241 = vld [vmem:[%s3161 + $0x278] sm:$0xff]
      %v3242 = vld [vmem:[%s3161 + $0x280] sm:$0xff]
      %v3243 = vld [vmem:[%s3161 + $0x288] sm:$0xff]
      %v3244 = vld [vmem:[%s3161 + $0x290] sm:$0xff]
      %v3245 = vld [vmem:[%s3161 + $0x298] sm:$0xff]
      %v3246 = vld [vmem:[%s3161 + $0x2a0] sm:$0xff]
      %v3247 = vld [vmem:[%s3161 + $0x2a8] sm:$0xff]
      %v3248 = vld [vmem:[%s3161 + $0x2b0] sm:$0xff]
      %v3249 = vld [vmem:[%s3161 + $0x2b8] sm:$0xff]
      %v3250 = vld [vmem:[%s3161 + $0x2c0] sm:$0xff]
      %v3251 = vld [vmem:[%s3161 + $0x2c8] sm:$0xff]
      %v3252 = vld [vmem:[%s3161 + $0x2d0] sm:$0xff]
      %v3253 = vld [vmem:[%s3161 + $0x2d8] sm:$0xff]
      %v3254 = vld [vmem:[%s3161 + $0x2e0] sm:$0xff]
      %v3255 = vld [vmem:[%s3161 + $0x2e8] sm:$0xff]
      %v3256 = vld [vmem:[%s3161 + $0x2f0] sm:$0xff]
      %v3257 = vld [vmem:[%s3161 + $0x2f8] sm:$0xff]
      %v3258 = vld [vmem:[%s3161 + $0x300] sm:$0xff]
      %v3259 = vld [vmem:[%s3161 + $0x308] sm:$0xff]
      %v3260 = vld [vmem:[%s3161 + $0x310] sm:$0xff]
      %v3261 = vld [vmem:[%s3161 + $0x318] sm:$0xff]
      %v3262 = vld [vmem:[%s3161 + $0x320] sm:$0xff]
      %v3263 = vld [vmem:[%s3161 + $0x328] sm:$0xff]
      %v3264 = vld [vmem:[%s3161 + $0x330] sm:$0xff]
      %v3265 = vld [vmem:[%s3161 + $0x338] sm:$0xff]
      %v3266 = vld [vmem:[%s3161 + $0x340] sm:$0xff]
      %v3267 = vld [vmem:[%s3161 + $0x348] sm:$0xff]
      %v3268 = vld [vmem:[%s3161 + $0x350] sm:$0xff]
      %v3269 = vld [vmem:[%s3161 + $0x358] sm:$0xff]
      %v3270 = vld [vmem:[%s3161 + $0x360] sm:$0xff]
      %v3271 = vld [vmem:[%s3161 + $0x368] sm:$0xff]
      %v3272 = vld [vmem:[%s3161 + $0x370] sm:$0xff]
      %v3273 = vld [vmem:[%s3161 + $0x378] sm:$0xff]
      %v3274 = vld [vmem:[%s3161 + $0x380] sm:$0xff]
      %v3275 = vld [vmem:[%s3161 + $0x388] sm:$0xff]
      %v3276 = vld [vmem:[%s3161 + $0x390] sm:$0xff]
      %v3277 = vld [vmem:[%s3161 + $0x398] sm:$0xff]
      %v3278 = vld [vmem:[%s3161 + $0x3a0] sm:$0xff]
      %v3279 = vld [vmem:[%s3161 + $0x3a8] sm:$0xff]
      %v3280 = vld [vmem:[%s3161 + $0x3b0] sm:$0xff]
      %v3281 = vld [vmem:[%s3161 + $0x3b8] sm:$0xff]
      %v3282 = vld [vmem:[%s3161 + $0x3c0] sm:$0xff]
      %v3283 = vld [vmem:[%s3161 + $0x3c8] sm:$0xff]
      %v3284 = vld [vmem:[%s3161 + $0x3d0] sm:$0xff]
      %v3285 = vld [vmem:[%s3161 + $0x3d8] sm:$0xff]
      %v3286 = vld [vmem:[%s3161 + $0x3e0] sm:$0xff]
      %v3287 = vld [vmem:[%s3161 + $0x3e8] sm:$0xff]
      %v3288 = vld [vmem:[%s3161 + $0x3f0] sm:$0xff]
      %v3289 = vld [vmem:[%s3161 + $0x3f8] sm:$0xff]
      %v3290 = vld [vmem:[%s3161 + $0x400] sm:$0xff]
      %v3291 = vld [vmem:[%s3161 + $0x408] sm:$0xff]
      %v3292 = vld [vmem:[%s3161 + $0x410] sm:$0xff]
      %v3293 = vld [vmem:[%s3161 + $0x418] sm:$0xff]
      %v3294 = vld [vmem:[%s3161 + $0x420] sm:$0xff]
      %v3295 = vld [vmem:[%s3161 + $0x428] sm:$0xff]
      %v3296 = vld [vmem:[%s3161 + $0x430] sm:$0xff]
      %v3297 = vld [vmem:[%s3161 + $0x438] sm:$0xff]
      %v3298 = vld [vmem:[%s3161 + $0x440] sm:$0xff]
      %v3299 = vld [vmem:[%s3161 + $0x448] sm:$0xff]
      %v3300 = vld [vmem:[%s3161 + $0x450] sm:$0xff]
      %v3301 = vld [vmem:[%s3161 + $0x458] sm:$0xff]
      %v3302 = vld [vmem:[%s3161 + $0x460] sm:$0xff]
      %v3303 = vld [vmem:[%s3161 + $0x468] sm:$0xff]
      %v3304 = vld [vmem:[%s3161 + $0x470] sm:$0xff]
      %v3305 = vld [vmem:[%s3161 + $0x478] sm:$0xff]
      %v3306 = vld [vmem:[%s3161 + $0x480] sm:$0xff]
      %v3307 = vld [vmem:[%s3161 + $0x488] sm:$0xff]
      %v3308 = vld [vmem:[%s3161 + $0x490] sm:$0xff]
      %v3309 = vld [vmem:[%s3161 + $0x498] sm:$0xff]
      %v3310 = vld [vmem:[%s3161 + $0x4a0] sm:$0xff]
      %v3311 = vld [vmem:[%s3161 + $0x4a8] sm:$0xff]
      %v3312 = vld [vmem:[%s3161 + $0x4b0] sm:$0xff]
      %v3313 = vld [vmem:[%s3161 + $0x4b8] sm:$0xff]
      %v3314 = vld [vmem:[%s3161 + $0x4c0] sm:$0xff]
      %v3315 = vld [vmem:[%s3161 + $0x4c8] sm:$0xff]
      %v3316 = vld [vmem:[%s3161 + $0x4d0] sm:$0xff]
      %v3317 = vld [vmem:[%s3161 + $0x4d8] sm:$0xff]
      %v3318 = vld [vmem:[%s3161 + $0x4e0] sm:$0xff]
      %v3319 = vld [vmem:[%s3161 + $0x4e8] sm:$0xff]
      %v3320 = vld [vmem:[%s3161 + $0x4f0] sm:$0xff]
      %v3321 = vld [vmem:[%s3161 + $0x4f8] sm:$0xff]
      %v3322 = vld [vmem:[%s3161 + $0x500] sm:$0xff]
      %v3323 = vld [vmem:[%s3161 + $0x508] sm:$0xff]
      %v3324 = vld [vmem:[%s3161 + $0x510] sm:$0xff]
      %v3325 = vld [vmem:[%s3161 + $0x518] sm:$0xff]
      %v3326 = vld [vmem:[%s3161 + $0x520] sm:$0xff]
      %v3327 = vld [vmem:[%s3161 + $0x528] sm:$0xff]
      %v3328 = vld [vmem:[%s3161 + $0x530] sm:$0xff]
      %v3329 = vld [vmem:[%s3161 + $0x538] sm:$0xff]
      %v3330 = vld [vmem:[%s3161 + $0x540] sm:$0xff]
      %v3331 = vld [vmem:[%s3161 + $0x548] sm:$0xff]
      %v3332 = vld [vmem:[%s3161 + $0x550] sm:$0xff]
      %v3333 = vld [vmem:[%s3161 + $0x558] sm:$0xff]
      %v3334 = vld [vmem:[%s3161 + $0x560] sm:$0xff]
      %v3335 = vld [vmem:[%s3161 + $0x568] sm:$0xff]
      %v3336 = vld [vmem:[%s3161 + $0x570] sm:$0xff]
      %v3337 = vld [vmem:[%s3161 + $0x578] sm:$0xff]
      %v3338 = vld [vmem:[%s3161 + $0x580] sm:$0xff]
      %v3339 = vld [vmem:[%s3161 + $0x588] sm:$0xff]
      %v3340 = vld [vmem:[%s3161 + $0x590] sm:$0xff]
      %v3341 = vld [vmem:[%s3161 + $0x598] sm:$0xff]
      %v3342 = vld [vmem:[%s3161 + $0x5a0] sm:$0xff]
      %v3343 = vld [vmem:[%s3161 + $0x5a8] sm:$0xff]
      %v3344 = vld [vmem:[%s3161 + $0x5b0] sm:$0xff]
      %v3345 = vld [vmem:[%s3161 + $0x5b8] sm:$0xff]
      %v3346 = vld [vmem:[%s3161 + $0x5c0] sm:$0xff]
      %v3347 = vld [vmem:[%s3161 + $0x5c8] sm:$0xff]
      %v3348 = vld [vmem:[%s3161 + $0x5d0] sm:$0xff]
      %v3349 = vld [vmem:[%s3161 + $0x5d8] sm:$0xff]
      %v3350 = vld [vmem:[%s3161 + $0x5e0] sm:$0xff]
      %v3351 = vld [vmem:[%s3161 + $0x5e8] sm:$0xff]
      %v3352 = vld [vmem:[%s3161 + $0x5f0] sm:$0xff]
      %v3353 = vld [vmem:[%s3161 + $0x5f8] sm:$0xff]
      %v3354 = vld [vmem:[%s3161 + $0x600] sm:$0xff]
      %v3355 = vld [vmem:[%s3161 + $0x608] sm:$0xff]
      %v3356 = vld [vmem:[%s3161 + $0x610] sm:$0xff]
      %v3357 = vld [vmem:[%s3161 + $0x618] sm:$0xff]
      %v3358 = vld [vmem:[%s3161 + $0x620] sm:$0xff]
      %v3359 = vld [vmem:[%s3161 + $0x628] sm:$0xff]
      %v3360 = vld [vmem:[%s3161 + $0x630] sm:$0xff]
      %v3361 = vld [vmem:[%s3161 + $0x638] sm:$0xff]
      %v3362 = vld [vmem:[%s3161 + $0x640] sm:$0xff]
      %v3363 = vld [vmem:[%s3161 + $0x648] sm:$0xff]
      %v3364 = vld [vmem:[%s3161 + $0x650] sm:$0xff]
      %v3365 = vld [vmem:[%s3161 + $0x658] sm:$0xff]
      %v3366 = vld [vmem:[%s3161 + $0x660] sm:$0xff]
      %v3367 = vld [vmem:[%s3161 + $0x668] sm:$0xff]
      %v3368 = vld [vmem:[%s3161 + $0x670] sm:$0xff]
      %v3369 = vld [vmem:[%s3161 + $0x678] sm:$0xff]
      %v3370 = vld [vmem:[%s3161 + $0x680] sm:$0xff]
      %v3371 = vld [vmem:[%s3161 + $0x688] sm:$0xff]
      %v3372 = vld [vmem:[%s3161 + $0x690] sm:$0xff]
      %v3373 = vld [vmem:[%s3161 + $0x698] sm:$0xff]
      %v3374 = vld [vmem:[%s3161 + $0x6a0] sm:$0xff]
      %v3375 = vld [vmem:[%s3161 + $0x6a8] sm:$0xff]
      %v3376 = vld [vmem:[%s3161 + $0x6b0] sm:$0xff]
      %v3377 = vld [vmem:[%s3161 + $0x6b8] sm:$0xff]
      %v3378 = vld [vmem:[%s3161 + $0x6c0] sm:$0xff]
      %v3379 = vld [vmem:[%s3161 + $0x6c8] sm:$0xff]
      %v3380 = vld [vmem:[%s3161 + $0x6d0] sm:$0xff]
      %v3381 = vld [vmem:[%s3161 + $0x6d8] sm:$0xff]
      %v3382 = vld [vmem:[%s3161 + $0x6e0] sm:$0xff]
      %v3383 = vld [vmem:[%s3161 + $0x6e8] sm:$0xff]
      %v3384 = vld [vmem:[%s3161 + $0x6f0] sm:$0xff]
      %v3385 = vld [vmem:[%s3161 + $0x6f8] sm:$0xff]
      %v3386 = vld [vmem:[%s3161 + $0x700] sm:$0xff]
      %v3387 = vld [vmem:[%s3161 + $0x708] sm:$0xff]
      %v3388 = vld [vmem:[%s3161 + $0x710] sm:$0xff]
      %v3389 = vld [vmem:[%s3161 + $0x718] sm:$0xff]
      %v3390 = vld [vmem:[%s3161 + $0x720] sm:$0xff]
      %v3391 = vld [vmem:[%s3161 + $0x728] sm:$0xff]
      %v3392 = vld [vmem:[%s3161 + $0x730] sm:$0xff]
      %v3393 = vld [vmem:[%s3161 + $0x738] sm:$0xff]
      %v3394 = vld [vmem:[%s3161 + $0x740] sm:$0xff]
      %v3395 = vld [vmem:[%s3161 + $0x748] sm:$0xff]
      %v3396 = vld [vmem:[%s3161 + $0x750] sm:$0xff]
      %v3397 = vld [vmem:[%s3161 + $0x758] sm:$0xff]
      %v3398 = vld [vmem:[%s3161 + $0x760] sm:$0xff]
      %v3399 = vld [vmem:[%s3161 + $0x768] sm:$0xff]
      %v3400 = vld [vmem:[%s3161 + $0x770] sm:$0xff]
      %v3401 = vld [vmem:[%s3161 + $0x778] sm:$0xff]
      %v3402 = vld [vmem:[%s3161 + $0x780] sm:$0xff]
      %v3403 = vld [vmem:[%s3161 + $0x788] sm:$0xff]
      %v3404 = vld [vmem:[%s3161 + $0x790] sm:$0xff]
      %v3405 = vld [vmem:[%s3161 + $0x798] sm:$0xff]
      %v3406 = vld [vmem:[%s3161 + $0x7a0] sm:$0xff]
      %v3407 = vld [vmem:[%s3161 + $0x7a8] sm:$0xff]
      %v3408 = vld [vmem:[%s3161 + $0x7b0] sm:$0xff]
      %v3409 = vld [vmem:[%s3161 + $0x7b8] sm:$0xff]
      %v3410 = vld [vmem:[%s3161 + $0x7c0] sm:$0xff]
      %v3411 = vld [vmem:[%s3161 + $0x7c8] sm:$0xff]
      %v3412 = vld [vmem:[%s3161 + $0x7d0] sm:$0xff]
      %v3413 = vld [vmem:[%s3161 + $0x7d8] sm:$0xff]
      %v3414 = vld [vmem:[%s3161 + $0x7e0] sm:$0xff]
      %v3415 = vld [vmem:[%s3161 + $0x7e8] sm:$0xff]
      %v3416 = vld [vmem:[%s3161 + $0x7f0] sm:$0xff]
      %v3417 = vld [vmem:[%s3161 + $0x7f8] sm:$0xff]
      %v3418 = vld [vmem:[%s3161 + $0x800] sm:$0xff]
      %v3419 = vld [vmem:[%s3161 + $0x808] sm:$0xff]
      %v3420 = vld [vmem:[%s3161 + $0x810] sm:$0xff]
      %v3421 = vld [vmem:[%s3161 + $0x818] sm:$0xff]
      %v3422 = vld [vmem:[%s3161 + $0x820] sm:$0xff]
      %v3423 = vld [vmem:[%s3161 + $0x828] sm:$0xff]
      %v3424 = vld [vmem:[%s3161 + $0x830] sm:$0xff]
      %v3425 = vld [vmem:[%s3161 + $0x838] sm:$0xff]
      %v3426 = vld [vmem:[%s3161 + $0x840] sm:$0xff]
      %v3427 = vld [vmem:[%s3161 + $0x848] sm:$0xff]
      %v3428 = vld [vmem:[%s3161 + $0x850] sm:$0xff]
      %v3429 = vld [vmem:[%s3161 + $0x858] sm:$0xff]
      %v3430 = vld [vmem:[%s3161 + $0x860] sm:$0xff]
      %v3431 = vld [vmem:[%s3161 + $0x868] sm:$0xff]
      %v3432 = vld [vmem:[%s3161 + $0x870] sm:$0xff]
      %v3433 = vld [vmem:[%s3161 + $0x878] sm:$0xff]
      %v3434 = vld [vmem:[%s3161 + $0x880] sm:$0xff]
      %v3435 = vld [vmem:[%s3161 + $0x888] sm:$0xff]
      %v3436 = vld [vmem:[%s3161 + $0x890] sm:$0xff]
      %v3437 = vld [vmem:[%s3161 + $0x898] sm:$0xff]
      %v3438 = vld [vmem:[%s3161 + $0x8a0] sm:$0xff]
      %v3439 = vld [vmem:[%s3161 + $0x8a8] sm:$0xff]
      %v3440 = vld [vmem:[%s3161 + $0x8b0] sm:$0xff]
      %v3441 = vld [vmem:[%s3161 + $0x8b8] sm:$0xff]
      %v3442 = vld [vmem:[%s3161 + $0x8c0] sm:$0xff]
      %v3443 = vld [vmem:[%s3161 + $0x8c8] sm:$0xff]
      %v3444 = vld [vmem:[%s3161 + $0x8d0] sm:$0xff]
      %v3445 = vld [vmem:[%s3161 + $0x8d8] sm:$0xff]
      %v3446 = vld [vmem:[%s3161 + $0x8e0] sm:$0xff]
      %v3447 = vld [vmem:[%s3161 + $0x8e8] sm:$0xff]
      %v3448 = vld [vmem:[%s3161 + $0x8f0] sm:$0xff]
      %v3449 = vld [vmem:[%s3161 + $0x8f8] sm:$0xff]
      %v3450 = vsel %vm681, %v3076, 0
      %v3452 = vsel %vm681, %v3086, 0
      %v3454 = vsel %vm681, %v3101, 0
      %v3456 = vsel %vm681, %v3111, 0
      %v3458 = vsel %vm681, %v3126, 0
      %v3460 = vsel %vm681, %v3136, 0
      %3462 = vmatprep.subr.mxu0 %v3223
      %3463 = vmatpush1.msra.mxu0 %v3222
      %3464 = vmatprep.subr.mxu0 %v3219
      %3465 = vmatpush1.msra.mxu0 %v3218
      %3466 = vmatprep.subr.mxu0 %v3215
      %3467 = vmatpush1.msra.mxu0 %v3214
      %3468 = vmatprep.subr.mxu0 %v3211
      %3469 = vmatpush1.msra.mxu0 %v3210
      %3470 = vmatprep.subr.mxu0 %v3207
      %3471 = vmatpush1.msra.mxu0 %v3206
      %3472 = vmatprep.subr.mxu0 %v3203
      %3473 = vmatpush1.msra.mxu0 %v3202
      %3474 = vmatprep.subr.mxu0 %v3199
      %3475 = vmatpush1.msra.mxu0 %v3198
      %3476 = vmatprep.subr.mxu0 %v3195
      %3477 = vmatpush1.msra.mxu0 %v3194
      %3478 = vmatprep.subr.mxu0 %v3191
      %3479 = vmatpush1.msra.mxu0 %v3190
      %3480 = vmatprep.subr.mxu0 %v3187
      %3481 = vmatpush1.msra.mxu0 %v3186
      %3482 = vmatprep.subr.mxu0 %v3183
      %3483 = vmatpush1.msra.mxu0 %v3182
      %3484 = vmatprep.subr.mxu0 %v3179
      %3485 = vmatpush1.msra.mxu0 %v3178
      %3486 = vmatprep.subr.mxu0 %v3175
      %3487 = vmatpush1.msra.mxu0 %v3174
      %3488 = vmatprep.subr.mxu0 %v3171
      %3489 = vmatpush1.msra.mxu0 %v3170
      %3490 = vmatprep.subr.mxu0 %v3167
      %3491 = vmatpush1.msra.mxu0 %v3166
      %3492 = vmatprep.subr.mxu0 %v3163
      %3493 = vmatpush1.msra.mxu0 %v3162
      %3494 = vmatprep.subr.mxu0 %v3287
      %3495 = vmatpush2.msra.mxu0 %v3286
      %3496 = vmatprep.subr.mxu0 %v3283
      %3497 = vmatpush2.msra.mxu0 %v3282
      %3498 = vmatprep.subr.mxu0 %v3279
      %3499 = vmatpush2.msra.mxu0 %v3278
      %3500 = vmatprep.subr.mxu0 %v3275
      %3501 = vmatpush2.msra.mxu0 %v3274
      %3502 = vmatprep.subr.mxu0 %v3271
      %3503 = vmatpush2.msra.mxu0 %v3270
      %3504 = vmatprep.subr.mxu0 %v3267
      %3505 = vmatpush2.msra.mxu0 %v3266
      %3506 = vmatprep.subr.mxu0 %v3263
      %3507 = vmatpush2.msra.mxu0 %v3262
      %3508 = vmatprep.subr.mxu0 %v3259
      %3509 = vmatpush2.msra.mxu0 %v3258
      %3510 = vmatprep.subr.mxu0 %v3255
      %3511 = vmatpush2.msra.mxu0 %v3254
      %3512 = vmatprep.subr.mxu0 %v3251
      %3513 = vmatpush2.msra.mxu0 %v3250
      %3514 = vmatprep.subr.mxu0 %v3247
      %3515 = vmatpush2.msra.mxu0 %v3246
      %3516 = vmatprep.subr.mxu0 %v3243
      %3517 = vmatpush2.msra.mxu0 %v3242
      %3518 = vmatprep.subr.mxu0 %v3239
      %3519 = vmatpush2.msra.mxu0 %v3238
      %3520 = vmatprep.subr.mxu0 %v3235
      %3521 = vmatpush2.msra.mxu0 %v3234
      %3522 = vmatprep.subr.mxu0 %v3231
      %3523 = vmatpush2.msra.mxu0 %v3230
      %3524 = vmatprep.subr.mxu0 %v3227
      %3525 = vmatpush2.msra.mxu0 %v3226
      %3526 = vmatprep.mubr.f32.mxu0 %v3067
      %3527 = vmatmul.mubr.f32.gmra.mxu0 %v3064
      %v3528 = vpop.f32.mrf.mxu0
      %v3529 = vadd.f32 0.0, %v3528
      %v3530 = vpop.f32.mrf.mxu0
      %v3531 = vadd.f32 0.0, %v3530
      %3532 = vmatprep.mubr.f32.mxu0 %v3080
      %3533 = vmatmul.mubr.f32.gmra.mxu0 %v3078
      %v3534 = vpop.f32.mrf.mxu0
      %v3535 = vadd.f32 0.0, %v3534
      %v3536 = vpop.f32.mrf.mxu0
      %v3537 = vadd.f32 0.0, %v3536
      %3538 = vmatprep.mubr.f32.mxu0 %v3092
      %3539 = vmatmul.mubr.f32.gmra.mxu0 %v3089
      %v3540 = vpop.f32.mrf.mxu0
      %v3541 = vadd.f32 0.0, %v3540
      %v3542 = vpop.f32.mrf.mxu0
      %v3543 = vadd.f32 0.0, %v3542
      %3544 = vmatprep.mubr.f32.mxu0 %v3105
      %3545 = vmatmul.mubr.f32.gmra.mxu0 %v3103
      %v3546 = vpop.f32.mrf.mxu0
      %v3547 = vadd.f32 0.0, %v3546
      %v3548 = vpop.f32.mrf.mxu0
      %v3549 = vadd.f32 0.0, %v3548
      %3550 = vmatprep.mubr.f32.mxu0 %v3117
      %3551 = vmatmul.mubr.f32.gmra.mxu0 %v3114
      %v3552 = vpop.f32.mrf.mxu0
      %v3553 = vadd.f32 0.0, %v3552
      %v3554 = vpop.f32.mrf.mxu0
      %v3555 = vadd.f32 0.0, %v3554
      %3556 = vmatprep.mubr.f32.mxu0 %v3130
      %3557 = vmatmul.mubr.f32.gmra.mxu0 %v3128
      %v3558 = vpop.f32.mrf.mxu0
      %v3559 = vadd.f32 0.0, %v3558
      %v3560 = vpop.f32.mrf.mxu0
      %v3561 = vadd.f32 0.0, %v3560
      %3562 = vdwg.mxu0
      %3563 = vmatprep.subr.mxu0 %v3351
      %3564 = vmatpush1.msra.mxu0 %v3350
      %3565 = vmatprep.subr.mxu0 %v3347
      %3566 = vmatpush1.msra.mxu0 %v3346
      %3567 = vmatprep.subr.mxu0 %v3343
      %3568 = vmatpush1.msra.mxu0 %v3342
      %3569 = vmatprep.subr.mxu0 %v3339
      %3570 = vmatpush1.msra.mxu0 %v3338
      %3571 = vmatprep.subr.mxu0 %v3335
      %3572 = vmatpush1.msra.mxu0 %v3334
      %3573 = vmatprep.subr.mxu0 %v3331
      %3574 = vmatpush1.msra.mxu0 %v3330
      %3575 = vmatprep.subr.mxu0 %v3327
      %3576 = vmatpush1.msra.mxu0 %v3326
      %3577 = vmatprep.subr.mxu0 %v3323
      %3578 = vmatpush1.msra.mxu0 %v3322
      %3579 = vmatprep.subr.mxu0 %v3319
      %3580 = vmatpush1.msra.mxu0 %v3318
      %3581 = vmatprep.subr.mxu0 %v3315
      %3582 = vmatpush1.msra.mxu0 %v3314
      %3583 = vmatprep.subr.mxu0 %v3311
      %3584 = vmatpush1.msra.mxu0 %v3310
      %3585 = vmatprep.subr.mxu0 %v3307
      %3586 = vmatpush1.msra.mxu0 %v3306
      %3587 = vmatprep.subr.mxu0 %v3303
      %3588 = vmatpush1.msra.mxu0 %v3302
      %3589 = vmatprep.subr.mxu0 %v3299
      %3590 = vmatpush1.msra.mxu0 %v3298
      %3591 = vmatprep.subr.mxu0 %v3295
      %3592 = vmatpush1.msra.mxu0 %v3294
      %3593 = vmatprep.subr.mxu0 %v3291
      %3594 = vmatpush1.msra.mxu0 %v3290
      %3595 = vmatprep.subr.mxu0 %v3415
      %3596 = vmatpush2.msra.mxu0 %v3414
      %3597 = vmatprep.subr.mxu0 %v3411
      %3598 = vmatpush2.msra.mxu0 %v3410
      %3599 = vmatprep.subr.mxu0 %v3407
      %3600 = vmatpush2.msra.mxu0 %v3406
      %3601 = vmatprep.subr.mxu0 %v3403
      %3602 = vmatpush2.msra.mxu0 %v3402
      %3603 = vmatprep.subr.mxu0 %v3399
      %3604 = vmatpush2.msra.mxu0 %v3398
      %3605 = vmatprep.subr.mxu0 %v3395
      %3606 = vmatpush2.msra.mxu0 %v3394
      %3607 = vmatprep.subr.mxu0 %v3391
      %3608 = vmatpush2.msra.mxu0 %v3390
      %3609 = vmatprep.subr.mxu0 %v3387
      %3610 = vmatpush2.msra.mxu0 %v3386
      %3611 = vmatprep.subr.mxu0 %v3383
      %3612 = vmatpush2.msra.mxu0 %v3382
      %3613 = vmatprep.subr.mxu0 %v3379
      %3614 = vmatpush2.msra.mxu0 %v3378
      %3615 = vmatprep.subr.mxu0 %v3375
      %3616 = vmatpush2.msra.mxu0 %v3374
      %3617 = vmatprep.subr.mxu0 %v3371
      %3618 = vmatpush2.msra.mxu0 %v3370
      %3619 = vmatprep.subr.mxu0 %v3367
      %3620 = vmatpush2.msra.mxu0 %v3366
      %3621 = vmatprep.subr.mxu0 %v3363
      %3622 = vmatpush2.msra.mxu0 %v3362
      %3623 = vmatprep.subr.mxu0 %v3359
      %3624 = vmatpush2.msra.mxu0 %v3358
      %3625 = vmatprep.subr.mxu0 %v3355
      %3626 = vmatpush2.msra.mxu0 %v3354
      %3627 = vmatprep.mubr.f32.mxu0 %v3073
      %3628 = vmatmul.mubr.f32.gmra.mxu0 %v3070
      %v3629 = vpop.f32.mrf.mxu0
      %v3630 = vadd.f32 %v3529, %v3629
      %v3631 = vpop.f32.mrf.mxu0
      %v3632 = vadd.f32 %v3531, %v3631
      %3633 = vmatprep.mubr.f32.mxu0 %v3084
      %3634 = vmatmul.mubr.f32.gmra.mxu0 %v3082
      %v3635 = vpop.f32.mrf.mxu0
      %v3636 = vadd.f32 %v3535, %v3635
      %v3637 = vpop.f32.mrf.mxu0
      %v3638 = vadd.f32 %v3537, %v3637
      %3639 = vmatprep.mubr.f32.mxu0 %v3098
      %3640 = vmatmul.mubr.f32.gmra.mxu0 %v3095
      %v3641 = vpop.f32.mrf.mxu0
      %v3642 = vadd.f32 %v3541, %v3641
      %v3643 = vpop.f32.mrf.mxu0
      %v3644 = vadd.f32 %v3543, %v3643
      %3645 = vmatprep.mubr.f32.mxu0 %v3109
      %3646 = vmatmul.mubr.f32.gmra.mxu0 %v3107
      %v3647 = vpop.f32.mrf.mxu0
      %v3648 = vadd.f32 %v3547, %v3647
      %v3649 = vpop.f32.mrf.mxu0
      %v3650 = vadd.f32 %v3549, %v3649
      %3651 = vmatprep.mubr.f32.mxu0 %v3123
      %3652 = vmatmul.mubr.f32.gmra.mxu0 %v3120
      %v3653 = vpop.f32.mrf.mxu0
      %v3654 = vadd.f32 %v3553, %v3653
      %v3655 = vpop.f32.mrf.mxu0
      %v3656 = vadd.f32 %v3555, %v3655
      %3657 = vmatprep.mubr.f32.mxu0 %v3134
      %3658 = vmatmul.mubr.f32.gmra.mxu0 %v3132
      %v3659 = vpop.f32.mrf.mxu0
      %v3660 = vadd.f32 %v3559, %v3659
      %v3661 = vpop.f32.mrf.mxu0
      %v3662 = vadd.f32 %v3561, %v3661
      %3663 = vdwg.mxu0
      %3664 = vmatprep.subr.mxu0 0.0
      %3665 = vmatpush1.msra.mxu0 0.0
      %3666 = vmatprep.subr.mxu0 0.0
      %3667 = vmatpush1.msra.mxu0 0.0
      %3668 = vmatprep.subr.mxu0 0.0
      %3669 = vmatpush1.msra.mxu0 0.0
      %3670 = vmatprep.subr.mxu0 0.0
      %3671 = vmatpush1.msra.mxu0 0.0
      %3672 = vmatprep.subr.mxu0 0.0
      %3673 = vmatpush1.msra.mxu0 0.0
      %3674 = vmatprep.subr.mxu0 0.0
      %3675 = vmatpush1.msra.mxu0 0.0
      %3676 = vmatprep.subr.mxu0 0.0
      %3677 = vmatpush1.msra.mxu0 0.0
      %3678 = vmatprep.subr.mxu0 0.0
      %3679 = vmatpush1.msra.mxu0 0.0
      %3680 = vmatprep.subr.mxu0 %v3447
      %3681 = vmatpush1.msra.mxu0 %v3446
      %3682 = vmatprep.subr.mxu0 %v3443
      %3683 = vmatpush1.msra.mxu0 %v3442
      %3684 = vmatprep.subr.mxu0 %v3439
      %3685 = vmatpush1.msra.mxu0 %v3438
      %3686 = vmatprep.subr.mxu0 %v3435
      %3687 = vmatpush1.msra.mxu0 %v3434
      %3688 = vmatprep.subr.mxu0 %v3431
      %3689 = vmatpush1.msra.mxu0 %v3430
      %3690 = vmatprep.subr.mxu0 %v3427
      %3691 = vmatpush1.msra.mxu0 %v3426
      %3692 = vmatprep.subr.mxu0 %v3423
      %3693 = vmatpush1.msra.mxu0 %v3422
      %3694 = vmatprep.subr.mxu0 %v3419
      %3695 = vmatpush1.msra.mxu0 %v3418
      %3696 = vmatprep.subr.mxu0 0.0
      %3697 = vmatpush2.msra.mxu0 0.0
      %3698 = vmatprep.subr.mxu0 0.0
      %3699 = vmatpush2.msra.mxu0 0.0
      %3700 = vmatprep.subr.mxu0 0.0
      %3701 = vmatpush2.msra.mxu0 0.0
      %3702 = vmatprep.subr.mxu0 0.0
      %3703 = vmatpush2.msra.mxu0 0.0
      %3704 = vmatprep.subr.mxu0 0.0
      %3705 = vmatpush2.msra.mxu0 0.0
      %3706 = vmatprep.subr.mxu0 0.0
      %3707 = vmatpush2.msra.mxu0 0.0
      %3708 = vmatprep.subr.mxu0 0.0
      %3709 = vmatpush2.msra.mxu0 0.0
      %3710 = vmatprep.subr.mxu0 0.0
      %3711 = vmatpush2.msra.mxu0 0.0
      %3712 = vmatprep.subr.mxu0 0.0
      %3713 = vmatpush2.msra.mxu0 0.0
      %3714 = vmatprep.subr.mxu0 0.0
      %3715 = vmatpush2.msra.mxu0 0.0
      %3716 = vmatprep.subr.mxu0 0.0
      %3717 = vmatpush2.msra.mxu0 0.0
      %3718 = vmatprep.subr.mxu0 0.0
      %3719 = vmatpush2.msra.mxu0 0.0
      %3720 = vmatprep.subr.mxu0 0.0
      %3721 = vmatpush2.msra.mxu0 0.0
      %3722 = vmatprep.subr.mxu0 0.0
      %3723 = vmatpush2.msra.mxu0 0.0
      %3724 = vmatprep.subr.mxu0 0.0
      %3725 = vmatpush2.msra.mxu0 0.0
      %3726 = vmatprep.subr.mxu0 0.0
      %3727 = vmatpush2.msra.mxu0 0.0
      %3728 = vmatprep.mubr.f32.mxu0 0.0
      %3729 = vmatmul.mubr.f32.gmra.mxu0 %v3450
      %v3730 = vpop.f32.mrf.mxu0
      %v3731 = vadd.f32 %v3630, %v3730
      %v3732 = vpop.f32.mrf.mxu0
      %v3733 = vadd.f32 %v3632, %v3732
      %3734 = vmatprep.mubr.f32.mxu0 0.0
      %3735 = vmatmul.mubr.f32.gmra.mxu0 %v3452
      %v3736 = vpop.f32.mrf.mxu0
      %v3737 = vadd.f32 %v3636, %v3736
      %v3738 = vpop.f32.mrf.mxu0
      %v3739 = vadd.f32 %v3638, %v3738
      %3740 = vmatprep.mubr.f32.mxu0 0.0
      %3741 = vmatmul.mubr.f32.gmra.mxu0 %v3454
      %v3742 = vpop.f32.mrf.mxu0
      %v3743 = vadd.f32 %v3642, %v3742
      %v3744 = vpop.f32.mrf.mxu0
      %v3745 = vadd.f32 %v3644, %v3744
      %3746 = vmatprep.mubr.f32.mxu0 0.0
      %3747 = vmatmul.mubr.f32.gmra.mxu0 %v3456
      %v3748 = vpop.f32.mrf.mxu0
      %v3749 = vadd.f32 %v3648, %v3748
      %v3750 = vpop.f32.mrf.mxu0
      %v3751 = vadd.f32 %v3650, %v3750
      %3752 = vmatprep.mubr.f32.mxu0 0.0
      %3753 = vmatmul.mubr.f32.gmra.mxu0 %v3458
      %v3754 = vpop.f32.mrf.mxu0
      %v3755 = vadd.f32 %v3654, %v3754
      %v3756 = vpop.f32.mrf.mxu0
      %v3757 = vadd.f32 %v3656, %v3756
      %3758 = vmatprep.mubr.f32.mxu0 0.0
      %3759 = vmatmul.mubr.f32.gmra.mxu0 %v3460
      %v3760 = vpop.f32.mrf.mxu0
      %v3761 = vadd.f32 %v3660, %v3760
      %v3762 = vpop.f32.mrf.mxu0
      %v3763 = vadd.f32 %v3662, %v3762
      %3764 = vdwg.mxu0
      %3765 = vmatprep.subr.mxu0 %v3225
      %3766 = vmatpush1.msra.mxu0 %v3224
      %3767 = vmatprep.subr.mxu0 %v3221
      %3768 = vmatpush1.msra.mxu0 %v3220
      %3769 = vmatprep.subr.mxu0 %v3217
      %3770 = vmatpush1.msra.mxu0 %v3216
      %3771 = vmatprep.subr.mxu0 %v3213
      %3772 = vmatpush1.msra.mxu0 %v3212
      %3773 = vmatprep.subr.mxu0 %v3209
      %3774 = vmatpush1.msra.mxu0 %v3208
      %3775 = vmatprep.subr.mxu0 %v3205
      %3776 = vmatpush1.msra.mxu0 %v3204
      %3777 = vmatprep.subr.mxu0 %v3201
      %3778 = vmatpush1.msra.mxu0 %v3200
      %3779 = vmatprep.subr.mxu0 %v3197
      %3780 = vmatpush1.msra.mxu0 %v3196
      %3781 = vmatprep.subr.mxu0 %v3193
      %3782 = vmatpush1.msra.mxu0 %v3192
      %3783 = vmatprep.subr.mxu0 %v3189
      %3784 = vmatpush1.msra.mxu0 %v3188
      %3785 = vmatprep.subr.mxu0 %v3185
      %3786 = vmatpush1.msra.mxu0 %v3184
      %3787 = vmatprep.subr.mxu0 %v3181
      %3788 = vmatpush1.msra.mxu0 %v3180
      %3789 = vmatprep.subr.mxu0 %v3177
      %3790 = vmatpush1.msra.mxu0 %v3176
      %3791 = vmatprep.subr.mxu0 %v3173
      %3792 = vmatpush1.msra.mxu0 %v3172
      %3793 = vmatprep.subr.mxu0 %v3169
      %3794 = vmatpush1.msra.mxu0 %v3168
      %3795 = vmatprep.subr.mxu0 %v3165
      %3796 = vmatpush1.msra.mxu0 %v3164
      %3797 = vmatprep.subr.mxu0 %v3289
      %3798 = vmatpush2.msra.mxu0 %v3288
      %3799 = vmatprep.subr.mxu0 %v3285
      %3800 = vmatpush2.msra.mxu0 %v3284
      %3801 = vmatprep.subr.mxu0 %v3281
      %3802 = vmatpush2.msra.mxu0 %v3280
      %3803 = vmatprep.subr.mxu0 %v3277
      %3804 = vmatpush2.msra.mxu0 %v3276
      %3805 = vmatprep.subr.mxu0 %v3273
      %3806 = vmatpush2.msra.mxu0 %v3272
      %3807 = vmatprep.subr.mxu0 %v3269
      %3808 = vmatpush2.msra.mxu0 %v3268
      %3809 = vmatprep.subr.mxu0 %v3265
      %3810 = vmatpush2.msra.mxu0 %v3264
      %3811 = vmatprep.subr.mxu0 %v3261
      %3812 = vmatpush2.msra.mxu0 %v3260
      %3813 = vmatprep.subr.mxu0 %v3257
      %3814 = vmatpush2.msra.mxu0 %v3256
      %3815 = vmatprep.subr.mxu0 %v3253
      %3816 = vmatpush2.msra.mxu0 %v3252
      %3817 = vmatprep.subr.mxu0 %v3249
      %3818 = vmatpush2.msra.mxu0 %v3248
      %3819 = vmatprep.subr.mxu0 %v3245
      %3820 = vmatpush2.msra.mxu0 %v3244
      %3821 = vmatprep.subr.mxu0 %v3241
      %3822 = vmatpush2.msra.mxu0 %v3240
      %3823 = vmatprep.subr.mxu0 %v3237
      %3824 = vmatpush2.msra.mxu0 %v3236
      %3825 = vmatprep.subr.mxu0 %v3233
      %3826 = vmatpush2.msra.mxu0 %v3232
      %3827 = vmatprep.subr.mxu0 %v3229
      %3828 = vmatpush2.msra.mxu0 %v3228
      %3829 = vmatprep.mubr.f32.mxu0 %v3067
      %3830 = vmatmul.mubr.f32.gmra.mxu0 %v3064
      %v3831 = vpop.f32.mrf.mxu0
      %v3832 = vadd.f32 0.0, %v3831
      %v3833 = vpop.f32.mrf.mxu0
      %v3834 = vadd.f32 0.0, %v3833
      %3835 = vmatprep.mubr.f32.mxu0 %v3080
      %3836 = vmatmul.mubr.f32.gmra.mxu0 %v3078
      %v3837 = vpop.f32.mrf.mxu0
      %v3838 = vadd.f32 0.0, %v3837
      %v3839 = vpop.f32.mrf.mxu0
      %v3840 = vadd.f32 0.0, %v3839
      %3841 = vmatprep.mubr.f32.mxu0 %v3092
      %3842 = vmatmul.mubr.f32.gmra.mxu0 %v3089
      %v3843 = vpop.f32.mrf.mxu0
      %v3844 = vadd.f32 0.0, %v3843
      %v3845 = vpop.f32.mrf.mxu0
      %v3846 = vadd.f32 0.0, %v3845
      %3847 = vmatprep.mubr.f32.mxu0 %v3105
      %3848 = vmatmul.mubr.f32.gmra.mxu0 %v3103
      %v3849 = vpop.f32.mrf.mxu0
      %v3850 = vadd.f32 0.0, %v3849
      %v3851 = vpop.f32.mrf.mxu0
      %v3852 = vadd.f32 0.0, %v3851
      %3853 = vmatprep.mubr.f32.mxu0 %v3117
      %3854 = vmatmul.mubr.f32.gmra.mxu0 %v3114
      %v3855 = vpop.f32.mrf.mxu0
      %v3856 = vadd.f32 0.0, %v3855
      %v3857 = vpop.f32.mrf.mxu0
      %v3858 = vadd.f32 0.0, %v3857
      %3859 = vmatprep.mubr.f32.mxu0 %v3130
      %3860 = vmatmul.mubr.f32.gmra.mxu0 %v3128
      %v3861 = vpop.f32.mrf.mxu0
      %v3862 = vadd.f32 0.0, %v3861
      %v3863 = vpop.f32.mrf.mxu0
      %v3864 = vadd.f32 0.0, %v3863
      %3865 = vdwg.mxu0
      %3866 = vmatprep.subr.mxu0 %v3353
      %3867 = vmatpush1.msra.mxu0 %v3352
      %3868 = vmatprep.subr.mxu0 %v3349
      %3869 = vmatpush1.msra.mxu0 %v3348
      %3870 = vmatprep.subr.mxu0 %v3345
      %3871 = vmatpush1.msra.mxu0 %v3344
      %3872 = vmatprep.subr.mxu0 %v3341
      %3873 = vmatpush1.msra.mxu0 %v3340
      %3874 = vmatprep.subr.mxu0 %v3337
      %3875 = vmatpush1.msra.mxu0 %v3336
      %3876 = vmatprep.subr.mxu0 %v3333
      %3877 = vmatpush1.msra.mxu0 %v3332
      %3878 = vmatprep.subr.mxu0 %v3329
      %3879 = vmatpush1.msra.mxu0 %v3328
      %3880 = vmatprep.subr.mxu0 %v3325
      %3881 = vmatpush1.msra.mxu0 %v3324
      %3882 = vmatprep.subr.mxu0 %v3321
      %3883 = vmatpush1.msra.mxu0 %v3320
      %3884 = vmatprep.subr.mxu0 %v3317
      %3885 = vmatpush1.msra.mxu0 %v3316
      %3886 = vmatprep.subr.mxu0 %v3313
      %3887 = vmatpush1.msra.mxu0 %v3312
      %3888 = vmatprep.subr.mxu0 %v3309
      %3889 = vmatpush1.msra.mxu0 %v3308
      %3890 = vmatprep.subr.mxu0 %v3305
      %3891 = vmatpush1.msra.mxu0 %v3304
      %3892 = vmatprep.subr.mxu0 %v3301
      %3893 = vmatpush1.msra.mxu0 %v3300
      %3894 = vmatprep.subr.mxu0 %v3297
      %3895 = vmatpush1.msra.mxu0 %v3296
      %3896 = vmatprep.subr.mxu0 %v3293
      %3897 = vmatpush1.msra.mxu0 %v3292
      %3898 = vmatprep.subr.mxu0 %v3417
      %3899 = vmatpush2.msra.mxu0 %v3416
      %3900 = vmatprep.subr.mxu0 %v3413
      %3901 = vmatpush2.msra.mxu0 %v3412
      %3902 = vmatprep.subr.mxu0 %v3409
      %3903 = vmatpush2.msra.mxu0 %v3408
      %3904 = vmatprep.subr.mxu0 %v3405
      %3905 = vmatpush2.msra.mxu0 %v3404
      %3906 = vmatprep.subr.mxu0 %v3401
      %3907 = vmatpush2.msra.mxu0 %v3400
      %3908 = vmatprep.subr.mxu0 %v3397
      %3909 = vmatpush2.msra.mxu0 %v3396
      %3910 = vmatprep.subr.mxu0 %v3393
      %3911 = vmatpush2.msra.mxu0 %v3392
      %3912 = vmatprep.subr.mxu0 %v3389
      %3913 = vmatpush2.msra.mxu0 %v3388
      %3914 = vmatprep.subr.mxu0 %v3385
      %3915 = vmatpush2.msra.mxu0 %v3384
      %3916 = vmatprep.subr.mxu0 %v3381
      %3917 = vmatpush2.msra.mxu0 %v3380
      %3918 = vmatprep.subr.mxu0 %v3377
      %3919 = vmatpush2.msra.mxu0 %v3376
      %3920 = vmatprep.subr.mxu0 %v3373
      %3921 = vmatpush2.msra.mxu0 %v3372
      %3922 = vmatprep.subr.mxu0 %v3369
      %3923 = vmatpush2.msra.mxu0 %v3368
      %3924 = vmatprep.subr.mxu0 %v3365
      %3925 = vmatpush2.msra.mxu0 %v3364
      %3926 = vmatprep.subr.mxu0 %v3361
      %3927 = vmatpush2.msra.mxu0 %v3360
      %3928 = vmatprep.subr.mxu0 %v3357
      %3929 = vmatpush2.msra.mxu0 %v3356
      %3930 = vmatprep.mubr.f32.mxu0 %v3073
      %3931 = vmatmul.mubr.f32.gmra.mxu0 %v3070
      %v3932 = vpop.f32.mrf.mxu0
      %v3933 = vadd.f32 %v3832, %v3932
      %v3934 = vpop.f32.mrf.mxu0
      %v3935 = vadd.f32 %v3834, %v3934
      %3936 = vmatprep.mubr.f32.mxu0 %v3084
      %3937 = vmatmul.mubr.f32.gmra.mxu0 %v3082
      %v3938 = vpop.f32.mrf.mxu0
      %v3939 = vadd.f32 %v3838, %v3938
      %v3940 = vpop.f32.mrf.mxu0
      %v3941 = vadd.f32 %v3840, %v3940
      %3942 = vmatprep.mubr.f32.mxu0 %v3098
      %3943 = vmatmul.mubr.f32.gmra.mxu0 %v3095
      %v3944 = vpop.f32.mrf.mxu0
      %v3945 = vadd.f32 %v3844, %v3944
      %v3946 = vpop.f32.mrf.mxu0
      %v3947 = vadd.f32 %v3846, %v3946
      %3948 = vmatprep.mubr.f32.mxu0 %v3109
      %3949 = vmatmul.mubr.f32.gmra.mxu0 %v3107
      %v3950 = vpop.f32.mrf.mxu0
      %v3951 = vadd.f32 %v3850, %v3950
      %v3952 = vpop.f32.mrf.mxu0
      %v3953 = vadd.f32 %v3852, %v3952
      %3954 = vmatprep.mubr.f32.mxu0 %v3123
      %3955 = vmatmul.mubr.f32.gmra.mxu0 %v3120
      %v3956 = vpop.f32.mrf.mxu0
      %v3957 = vadd.f32 %v3856, %v3956
      %v3958 = vpop.f32.mrf.mxu0
      %v3959 = vadd.f32 %v3858, %v3958
      %3960 = vmatprep.mubr.f32.mxu0 %v3134
      %3961 = vmatmul.mubr.f32.gmra.mxu0 %v3132
      %v3962 = vpop.f32.mrf.mxu0
      %v3963 = vadd.f32 %v3862, %v3962
      %v3964 = vpop.f32.mrf.mxu0
      %v3965 = vadd.f32 %v3864, %v3964
      %3966 = vdwg.mxu0
      %3967 = vmatprep.subr.mxu0 0.0
      %3968 = vmatpush1.msra.mxu0 0.0
      %3969 = vmatprep.subr.mxu0 0.0
      %3970 = vmatpush1.msra.mxu0 0.0
      %3971 = vmatprep.subr.mxu0 0.0
      %3972 = vmatpush1.msra.mxu0 0.0
      %3973 = vmatprep.subr.mxu0 0.0
      %3974 = vmatpush1.msra.mxu0 0.0
      %3975 = vmatprep.subr.mxu0 0.0
      %3976 = vmatpush1.msra.mxu0 0.0
      %3977 = vmatprep.subr.mxu0 0.0
      %3978 = vmatpush1.msra.mxu0 0.0
      %3979 = vmatprep.subr.mxu0 0.0
      %3980 = vmatpush1.msra.mxu0 0.0
      %3981 = vmatprep.subr.mxu0 0.0
      %3982 = vmatpush1.msra.mxu0 0.0
      %3983 = vmatprep.subr.mxu0 %v3449
      %3984 = vmatpush1.msra.mxu0 %v3448
      %3985 = vmatprep.subr.mxu0 %v3445
      %3986 = vmatpush1.msra.mxu0 %v3444
      %3987 = vmatprep.subr.mxu0 %v3441
      %3988 = vmatpush1.msra.mxu0 %v3440
      %3989 = vmatprep.subr.mxu0 %v3437
      %3990 = vmatpush1.msra.mxu0 %v3436
      %3991 = vmatprep.subr.mxu0 %v3433
      %3992 = vmatpush1.msra.mxu0 %v3432
      %3993 = vmatprep.subr.mxu0 %v3429
      %3994 = vmatpush1.msra.mxu0 %v3428
      %3995 = vmatprep.subr.mxu0 %v3425
      %3996 = vmatpush1.msra.mxu0 %v3424
      %3997 = vmatprep.subr.mxu0 %v3421
      %3998 = vmatpush1.msra.mxu0 %v3420
      %3999 = vmatprep.subr.mxu0 0.0
      %4000 = vmatpush2.msra.mxu0 0.0
      %4001 = vmatprep.subr.mxu0 0.0
      %4002 = vmatpush2.msra.mxu0 0.0
      %4003 = vmatprep.subr.mxu0 0.0
      %4004 = vmatpush2.msra.mxu0 0.0
      %4005 = vmatprep.subr.mxu0 0.0
      %4006 = vmatpush2.msra.mxu0 0.0
      %4007 = vmatprep.subr.mxu0 0.0
      %4008 = vmatpush2.msra.mxu0 0.0
      %4009 = vmatprep.subr.mxu0 0.0
      %4010 = vmatpush2.msra.mxu0 0.0
      %4011 = vmatprep.subr.mxu0 0.0
      %4012 = vmatpush2.msra.mxu0 0.0
      %4013 = vmatprep.subr.mxu0 0.0
      %4014 = vmatpush2.msra.mxu0 0.0
      %4015 = vmatprep.subr.mxu0 0.0
      %4016 = vmatpush2.msra.mxu0 0.0
      %4017 = vmatprep.subr.mxu0 0.0
      %4018 = vmatpush2.msra.mxu0 0.0
      %4019 = vmatprep.subr.mxu0 0.0
      %4020 = vmatpush2.msra.mxu0 0.0
      %4021 = vmatprep.subr.mxu0 0.0
      %4022 = vmatpush2.msra.mxu0 0.0
      %4023 = vmatprep.subr.mxu0 0.0
      %4024 = vmatpush2.msra.mxu0 0.0
      %4025 = vmatprep.subr.mxu0 0.0
      %4026 = vmatpush2.msra.mxu0 0.0
      %4027 = vmatprep.subr.mxu0 0.0
      %4028 = vmatpush2.msra.mxu0 0.0
      %4029 = vmatprep.subr.mxu0 0.0
      %4030 = vmatpush2.msra.mxu0 0.0
      %4031 = vmatprep.mubr.f32.mxu0 0.0
      %4032 = vmatmul.mubr.f32.gmra.mxu0 %v3450
      %v4033 = vpop.f32.mrf.mxu0
      %v4034 = vadd.f32 %v3933, %v4033
      %v4035 = vpop.f32.mrf.mxu0
      %v4036 = vadd.f32 %v3935, %v4035
      %4037 = vmatprep.mubr.f32.mxu0 0.0
      %4038 = vmatmul.mubr.f32.gmra.mxu0 %v3452
      %v4039 = vpop.f32.mrf.mxu0
      %v4040 = vadd.f32 %v3939, %v4039
      %v4041 = vpop.f32.mrf.mxu0
      %v4042 = vadd.f32 %v3941, %v4041
      %4043 = vmatprep.mubr.f32.mxu0 0.0
      %4044 = vmatmul.mubr.f32.gmra.mxu0 %v3454
      %v4045 = vpop.f32.mrf.mxu0
      %v4046 = vadd.f32 %v3945, %v4045
      %v4047 = vpop.f32.mrf.mxu0
      %v4048 = vadd.f32 %v3947, %v4047
      %4049 = vmatprep.mubr.f32.mxu0 0.0
      %4050 = vmatmul.mubr.f32.gmra.mxu0 %v3456
      %v4051 = vpop.f32.mrf.mxu0
      %v4052 = vadd.f32 %v3951, %v4051
      %v4053 = vpop.f32.mrf.mxu0
      %v4054 = vadd.f32 %v3953, %v4053
      %4055 = vmatprep.mubr.f32.mxu0 0.0
      %4056 = vmatmul.mubr.f32.gmra.mxu0 %v3458
      %v4057 = vpop.f32.mrf.mxu0
      %v4058 = vadd.f32 %v3957, %v4057
      %v4059 = vpop.f32.mrf.mxu0
      %v4060 = vadd.f32 %v3959, %v4059
      %4061 = vmatprep.mubr.f32.mxu0 0.0
      %4062 = vmatmul.mubr.f32.gmra.mxu0 %v3460
      %v4063 = vpop.f32.mrf.mxu0
      %v4064 = vadd.f32 %v3963, %v4063
      %v4065 = vpop.f32.mrf.mxu0
      %v4066 = vadd.f32 %v3965, %v4065
      %4067 = vdwg.mxu0
      %v4068 = vadd.f32 %v2664, %v3731
      %v4069 = vadd.f32 %v2666, %v3733
      %v4070 = vadd.f32 %v2967, %v4034
      %v4071 = vadd.f32 %v2969, %v4036
      %v4072 = vadd.f32 %v2670, %v3737
      %v4073 = vadd.f32 %v2672, %v3739
      %v4074 = vadd.f32 %v2973, %v4040
      %v4075 = vadd.f32 %v2975, %v4042
      %v4076 = vadd.f32 %v2676, %v3743
      %v4077 = vadd.f32 %v2678, %v3745
      %v4078 = vadd.f32 %v2979, %v4046
      %v4079 = vadd.f32 %v2981, %v4048
      %v4080 = vadd.f32 %v2682, %v3749
      %v4081 = vadd.f32 %v2684, %v3751
      %v4082 = vadd.f32 %v2985, %v4052
      %v4083 = vadd.f32 %v2987, %v4054
      %v4084 = vadd.f32 %v2688, %v3755
      %v4085 = vadd.f32 %v2690, %v3757
      %v4086 = vadd.f32 %v2991, %v4058
      %v4087 = vadd.f32 %v2993, %v4060
      %v4088 = vadd.f32 %v2694, %v3761
      %v4089 = vadd.f32 %v2696, %v3763
      %v4090 = vadd.f32 %v2997, %v4064
      %v4091 = vadd.f32 %v2999, %v4066
      %v4092 = vld [vmem:[%s4] sm:$0xf]
      %v4094 = vlaneseq
      %v4095 = vshrl.u32 %v4094, 7
      %v4096 = vsub.s32 0, %v4095
      %v4097 = vrot.slane %v4092, %v4096
      %v4098 = vlaneseq
      %v4099 = vshrl.u32 %v4098, 7
      %v4100 = vsub.s32 1, %v4099
      %v4101 = vrot.slane %v4092, %v4100
      %v4102 = vlaneseq
      %v4103 = vshrl.u32 %v4102, 7
      %v4104 = vsub.s32 2, %v4103
      %v4105 = vrot.slane %v4092, %v4104
      %v4106 = vlaneseq
      %v4107 = vshrl.u32 %v4106, 7
      %v4108 = vsub.s32 3, %v4107
      %v4109 = vrot.slane %v4092, %v4108
      %v4114 = vadd.f32 %v4068, %v4097
      %v4115 = vadd.f32 %v4069, %v4101
      %v4116 = vadd.f32 %v4070, %v4105
      %v4117 = vadd.f32 %v4071, %v4109
      %v4118 = vadd.f32 %v4072, %v4097
      %v4119 = vadd.f32 %v4073, %v4101
      %v4120 = vadd.f32 %v4074, %v4105
      %v4121 = vadd.f32 %v4075, %v4109
      %v4122 = vadd.f32 %v4076, %v4097
      %v4123 = vadd.f32 %v4077, %v4101
      %v4124 = vadd.f32 %v4078, %v4105
      %v4125 = vadd.f32 %v4079, %v4109
      %v4126 = vadd.f32 %v4080, %v4097
      %v4127 = vadd.f32 %v4081, %v4101
      %v4128 = vadd.f32 %v4082, %v4105
      %v4129 = vadd.f32 %v4083, %v4109
      %v4130 = vadd.f32 %v4084, %v4097
      %v4131 = vadd.f32 %v4085, %v4101
      %v4132 = vadd.f32 %v4086, %v4105
      %v4133 = vadd.f32 %v4087, %v4109
      %v4134 = vadd.f32 %v4088, %v4097
      %v4135 = vadd.f32 %v4089, %v4101
      %v4136 = vadd.f32 %v4090, %v4105
      %v4137 = vadd.f32 %v4091, %v4109
      %v4138 = vld [vmem:[%s320] sm:$0xff]
      %v4139 = vld [vmem:[%s320 + $0x8] sm:$0xff]
      %v4140 = vld [vmem:[%s320 + $0x10] sm:$0xff]
      %v4141 = vld [vmem:[%s320 + $0x18] sm:$0xff]
      %v4142 = vld [vmem:[%s320 + $0x20] sm:$0xff]
      %v4143 = vld [vmem:[%s320 + $0x28] sm:$0xff]
      %v4144 = vld [vmem:[%s320 + $0x30] sm:$0xff]
      %v4145 = vld [vmem:[%s320 + $0x38] sm:$0xff]
      %v4146 = vld [vmem:[%s320 + $0x40] sm:$0xff]
      %v4147 = vld [vmem:[%s320 + $0x48] sm:$0xff]
      %v4148 = vld [vmem:[%s320 + $0x50] sm:$0xff]
      %v4149 = vld [vmem:[%s320 + $0x58] sm:$0xff]
      %v4150 = vld [vmem:[%s320 + $0x60] sm:$0xff]
      %v4151 = vld [vmem:[%s320 + $0x68] sm:$0xff]
      %v4152 = vld [vmem:[%s320 + $0x70] sm:$0xff]
      %v4153 = vld [vmem:[%s320 + $0x78] sm:$0xff]
      %v4154 = vld [vmem:[%s320 + $0x80] sm:$0xff]
      %v4155 = vld [vmem:[%s320 + $0x88] sm:$0xff]
      %v4156 = vld [vmem:[%s320 + $0x90] sm:$0xff]
      %v4157 = vld [vmem:[%s320 + $0x98] sm:$0xff]
      %v4158 = vld [vmem:[%s320 + $0xa0] sm:$0xff]
      %v4159 = vld [vmem:[%s320 + $0xa8] sm:$0xff]
      %v4160 = vld [vmem:[%s320 + $0xb0] sm:$0xff]
      %v4161 = vld [vmem:[%s320 + $0xb8] sm:$0xff]
      %v4162 = vadd.f32 %v4114, %v4138
      %v4163 = vadd.f32 %v4115, %v4139
      %v4164 = vadd.f32 %v4116, %v4140
      %v4165 = vadd.f32 %v4117, %v4141
      %v4166 = vadd.f32 %v4118, %v4142
      %v4167 = vadd.f32 %v4119, %v4143
      %v4168 = vadd.f32 %v4120, %v4144
      %v4169 = vadd.f32 %v4121, %v4145
      %v4170 = vadd.f32 %v4122, %v4146
      %v4171 = vadd.f32 %v4123, %v4147
      %v4172 = vadd.f32 %v4124, %v4148
      %v4173 = vadd.f32 %v4125, %v4149
      %v4174 = vadd.f32 %v4126, %v4150
      %v4175 = vadd.f32 %v4127, %v4151
      %v4176 = vadd.f32 %v4128, %v4152
      %v4177 = vadd.f32 %v4129, %v4153
      %v4178 = vadd.f32 %v4130, %v4154
      %v4179 = vadd.f32 %v4131, %v4155
      %v4180 = vadd.f32 %v4132, %v4156
      %v4181 = vadd.f32 %v4133, %v4157
      %v4182 = vadd.f32 %v4134, %v4158
      %v4183 = vadd.f32 %v4135, %v4159
      %v4184 = vadd.f32 %v4136, %v4160
      %v4185 = vadd.f32 %v4137, %v4161
      %4186 = vst [vmem:[%s327] sm:$0xff] %v4162
      %4187 = vst [vmem:[%s327 + $0x8] sm:$0xff] %v4163
      %4188 = vst [vmem:[%s327 + $0x10] sm:$0xff] %v4164
      %4189 = vst [vmem:[%s327 + $0x18] sm:$0xff] %v4165
      %4190 = vst [vmem:[%s327 + $0x20] sm:$0xff] %v4166
      %4191 = vst [vmem:[%s327 + $0x28] sm:$0xff] %v4167
      %4192 = vst [vmem:[%s327 + $0x30] sm:$0xff] %v4168
      %4193 = vst [vmem:[%s327 + $0x38] sm:$0xff] %v4169
      %4194 = vst [vmem:[%s327 + $0x40] sm:$0xff] %v4170
      %4195 = vst [vmem:[%s327 + $0x48] sm:$0xff] %v4171
      %4196 = vst [vmem:[%s327 + $0x50] sm:$0xff] %v4172
      %4197 = vst [vmem:[%s327 + $0x58] sm:$0xff] %v4173
      %4198 = vst [vmem:[%s327 + $0x60] sm:$0xff] %v4174
      %4199 = vst [vmem:[%s327 + $0x68] sm:$0xff] %v4175
      %4200 = vst [vmem:[%s327 + $0x70] sm:$0xff] %v4176
      %4201 = vst [vmem:[%s327 + $0x78] sm:$0xff] %v4177
      %4202 = vst [vmem:[%s327 + $0x80] sm:$0xff] %v4178
      %4203 = vst [vmem:[%s327 + $0x88] sm:$0xff] %v4179
      %4204 = vst [vmem:[%s327 + $0x90] sm:$0xff] %v4180
      %4205 = vst [vmem:[%s327 + $0x98] sm:$0xff] %v4181
      %4206 = vst [vmem:[%s327 + $0xa0] sm:$0xff] %v4182
      %4207 = vst [vmem:[%s327 + $0xa8] sm:$0xff] %v4183
      %4208 = vst [vmem:[%s327 + $0xb0] sm:$0xff] %v4184
      %4209 = vst [vmem:[%s327 + $0xb8] sm:$0xff] %v4185
      %s4210 = smul.u32 3, %s17
      %p4211 = scmp.lt.s32.totalorder %s4210, 5
      %s4212 = scalar_select %p4211, %s4210, 5
      %s4213 = smul.addr %s4212, 8
      %s4214 = smul.addr %s4213, 8
      %s4215 = scalar_lea.vmem %s6, %s4214
      // Predicated region
      $region45: #{resnet_block_forward.3} parent=43 // pred_check
        %p4216 = pneg %p181
      $region46: #{resnet_block_forward.3} parent=43 // pred_check_branch
        %4218 = sbr.rel (%p4216) target = $region48
      $region47: #{resnet_block_forward.3} parent=43 // pred_region
        %s4219 = smul.u32 3, %s17
      $region48: #{resnet_block_forward.3} parent=43 // pred_fallthru
        _
    $region44: #{resnet_block_forward.3} parent=5 // pred_fallthru
      _
    %p4220 = scmp.le.s32.totalorder 2, %s12
    // Predicated region
    $region49: #{resnet_block_forward.3} parent=5 // pred_check
      %p4221 = pneg %p4220
    $region50: #{resnet_block_forward.3} parent=5 // pred_check_branch
      %4223 = sbr.rel (%p4221) target = $region52
    $region51: #{resnet_block_forward.3} parent=5 // pred_region
      %s4224 = ssub.s32 %s12, 2
      // Predicated region
      $region53: #{resnet_block_forward.3} parent=51 // pred_check
        %p4225 = pneg %p187
      $region54: #{resnet_block_forward.3} parent=51 // pred_check_branch
        %4227 = sbr.rel (%p4225) target = $region56
      $region55: #{resnet_block_forward.3} parent=51 // pred_region
        %s4228 = smul.u32 3, %s18
        %p4229 = scmp.lt.s32.totalorder %s4228, 5
        %s4230 = scalar_select %p4229, %s4228, 5
        %s4231 = smul.addr %s4230, 8
        %s4232 = smul.addr %s4231, 8
        %s4233 = scalar_lea.vmem %s6, %s4232
      $region56: #{resnet_block_forward.3} parent=51 // pred_fallthru
        _
    $region52: #{resnet_block_forward.3} parent=5 // pred_fallthru
      _
  $region6: #{resnet_block_forward.3} parent=0 // loop_footer
    %s16 = sadd.s32 1, %s12
  $region7: #{resnet_block_forward.3} parent=0 // loop_footer_branch
    %11 = sbr.rel target = $region3
  $region8: #{resnet_block_forward.3} parent=0 // loop_exit
    _

</llo_original>
